<compile_context>
chip_gen: v7x
topology: tpu7x:2x2x1
jax: 0.10.0
libtpu: 0.0.40
codegen_flags: <defaults>
</compile_context>

<pallas_src>
import jax
import jax.numpy as jnp
from jax.experimental import pallas as pl
from jax.experimental.pallas import tpu as pltpu


# ----------------------------------------------------------------------------
# Fused conv stage: conv1 -> ReLU -> conv2 -> ReLU -> 2x2 maxpool -> NHWC feats
# ----------------------------------------------------------------------------
def _conv_fused_kernel(p_ref, w1_ref, b1_ref, w2_ref, b2_ref, o_ref,
                       z_ref, vp_ref):
    """Process G images per grid step, fully VMEM-resident.

    p_ref : [G, 624, 27] bf16  dx-expanded conv1 im2col patches.
            Row k = r*24 + c (r in 0..25 conv1 rows, c in 0..23); the 27
            features are the 3x3 input patches at columns c, c+1, c+2.
    w1_ref: [27, 96] bf16      block-diag(conv1_w, conv1_w, conv1_w).
    b1_ref: [1, 96]  f32       tile(conv1_b, 3).
    w2_ref: [3, 96, 64] bf16   conv2 weights grouped by dy; K axis = (dx, ci).
    b2_ref: [1, 64]  f32
    o_ref : [G, 144, 64] bf16  pooled NHWC features, row = h*12 + w.
    z_ref : VMEM [624, 96] bf16  dx-expanded conv1 activation (per image).
    vp_ref: VMEM [288, 64] f32   vertically pooled conv2 rows (per image),
                                 row layout h*24 + j (h pooled row, j conv col).
    """
    G = p_ref.shape[0]
    w1 = w1_ref[...]
    b1 = b1_ref[...]
    b2 = b2_ref[...]

    for g in range(G):
        # ---- conv1 (dx-expanded) + ReLU -> z scratch, written once.
        # 3 chunks of 208 rows (208 = 13*16, bf16 sublane-tile aligned).
        for c in range(3):
            r0 = c * 208
            zc = jnp.dot(p_ref[g, r0:r0 + 208, :], w1,
                         preferred_element_type=jnp.float32)
            z_ref[r0:r0 + 208, :] = jnp.maximum(zc + b1, 0.0).astype(jnp.bfloat16)

        # ---- conv2: out2[i*24 + j] = sum_dy z[(i+dy)*24 + j] @ w2[dy] + b2.
        # The z row-stride (24) equals the conv2 output width, so the flat
        # windows are exact (no garbage columns, nothing to crop).
        # 4 chunks of 6 output rows (144 flat rows), register accumulation;
        # the vertical half of the 2x2 max-pool is fused into the chunk.
        for cidx in range(4):
            m0 = cidx * 144
            acc = jnp.dot(z_ref[m0:m0 + 144, :], w2_ref[0],
                          preferred_element_type=jnp.float32)
            acc = acc + jnp.dot(z_ref[m0 + 24:m0 + 168, :], w2_ref[1],
                                preferred_element_type=jnp.float32)
            acc = acc + jnp.dot(z_ref[m0 + 48:m0 + 192, :], w2_ref[2],
                                preferred_element_type=jnp.float32)
            y = jnp.maximum(acc + b2, 0.0)                    # [144, 64] f32
            # vertical max of conv-row pairs (2k, 2k+1) within the chunk
            for k in range(3):
                vp_ref[cidx * 72 + k * 24: cidx * 72 + (k + 1) * 24, :] = (
                    jnp.maximum(y[48 * k:48 * k + 24, :],
                                y[48 * k + 24:48 * k + 48, :]))

        # ---- horizontal max of column pairs (stride-2 compaction) + store.
        even = vp_ref[pl.ds(0, 144, stride=2), :]
        odd = vp_ref[pl.ds(1, 144, stride=2), :]
        o_ref[g] = jnp.maximum(even, odd).astype(o_ref.dtype)


def conv_stage_pallas(patches, w1x, b1x, w2x, b2, *, images_per_step=8):
    """patches [B, 624, 27] bf16 -> pooled NHWC features [B, 144, 64] bf16."""
    B = patches.shape[0]
    G = min(B, images_per_step)
    Bp = ((B + G - 1) // G) * G
    if Bp != B:
        patches = jnp.pad(patches, ((0, Bp - B), (0, 0), (0, 0)))
    out = pl.pallas_call(
        _conv_fused_kernel,
        out_shape=jax.ShapeDtypeStruct((Bp, 144, 64), jnp.bfloat16),
        grid=(Bp // G,),
        in_specs=[
            pl.BlockSpec((G, 624, 27), lambda i: (i, 0, 0)),
            pl.BlockSpec((27, 96), lambda i: (0, 0)),
            pl.BlockSpec((1, 96), lambda i: (0, 0)),
            pl.BlockSpec((3, 96, 64), lambda i: (0, 0, 0)),
            pl.BlockSpec((1, 64), lambda i: (0, 0)),
        ],
        out_specs=pl.BlockSpec((G, 144, 64), lambda i: (i, 0, 0)),
        scratch_shapes=[pltpu.VMEM((624, 96), jnp.bfloat16),
                        pltpu.VMEM((288, 64), jnp.float32)],
        compiler_params=pltpu.CompilerParams(dimension_semantics=("parallel",)),
    )(patches, w1x, b1x, w2x, b2)
    return out[:B] if Bp != B else out


# ----------------------------------------------------------------------------
# Fused fc1 + ReLU + fc2
# ----------------------------------------------------------------------------
def _fc_kernel(x_ref, w1_ref, b1_ref, w2_ref, b2_ref, o_ref, acc_ref):
    """Grid = (M blocks, K blocks); K is an 'arbitrary' reduction axis."""
    k = pl.program_id(1)

    @pl.when(k == 0)
    def _init():
        acc_ref[...] = jnp.zeros_like(acc_ref)

    acc_ref[...] += jnp.dot(x_ref[...], w1_ref[...],
                            preferred_element_type=jnp.float32)

    @pl.when(k == pl.num_programs(1) - 1)
    def _finalize():
        h = jnp.maximum(acc_ref[...] + b1_ref[...], 0.0).astype(jnp.bfloat16)
        logits = jnp.dot(h, w2_ref[...], preferred_element_type=jnp.float32)
        o_ref[...] = (logits + b2_ref[...]).astype(o_ref.dtype)


def fc_pallas(x, w1, b1, w2, b2, *, block_k=4608, max_block_m=256):
    M, K = x.shape
    Hf = w1.shape[1]          # 128
    N = w2.shape[1]           # 10
    assert K % block_k == 0
    if M >= 16:
        # >= 2 M blocks so the 'parallel' axis shards across v7x's 2 TCs.
        bm = min(max_block_m, ((M + 1) // 2 + 7) // 8 * 8)
    else:
        bm = M
    grid = (pl.cdiv(M, bm), K // block_k)
    return pl.pallas_call(
        _fc_kernel,
        out_shape=jax.ShapeDtypeStruct((M, N), jnp.float32),
        grid=grid,
        in_specs=[
            pl.BlockSpec((bm, block_k), lambda i, k: (i, k)),
            pl.BlockSpec((block_k, Hf), lambda i, k: (k, 0)),
            pl.BlockSpec((1, Hf), lambda i, k: (0, 0)),
            pl.BlockSpec((Hf, N), lambda i, k: (0, 0)),
            pl.BlockSpec((1, N), lambda i, k: (0, 0)),
        ],
        out_specs=pl.BlockSpec((bm, N), lambda i, k: (i, 0)),
        scratch_shapes=[pltpu.VMEM((bm, Hf), jnp.float32)],
        compiler_params=pltpu.CompilerParams(
            dimension_semantics=("parallel", "arbitrary")),
    )(x, w1, b1, w2, b2)


# ----------------------------------------------------------------------------
# Parameter packing (once, outside the hot path) + forward pass glue
# ----------------------------------------------------------------------------
def prepare_params(params):
    """Pack PyTorch-layout params into kernel-friendly layouts (bf16 for MXU)."""
    # conv1: [32,1,3,3] -> [9,32] (rows ordered (ky,kx)); block-diag x3 for the
    # dx-expanded formulation (27 patch features -> 96 channels).
    w1m = params["conv1_w"].reshape(32, 9).T                      # [9, 32]
    w1x = jnp.zeros((27, 96), jnp.float32)
    for dx in range(3):
        w1x = w1x.at[dx * 9:(dx + 1) * 9, dx * 32:(dx + 1) * 32].set(w1m)
    b1x = jnp.tile(params["conv1_b"].reshape(1, 32), (1, 3))      # [1, 96]

    # conv2: [64,32,3,3] -> [3(dy), 96(dx*32+ci), 64(co)]
    w2x = params["conv2_w"].transpose(2, 3, 1, 0).reshape(3, 96, 64)

    # fc1: permute columns from NCHW-flatten (c*144 + h*12 + w) to NHWC-flatten
    # ((h*12 + w)*64 + c) so it matches the kernel's pooled feature layout.
    fc1_w_nhwc = (params["fc1_w"].reshape(128, 64, 12, 12)
                  .transpose(0, 2, 3, 1)
                  .reshape(128, 9216))
    return {
        "w1x": w1x.astype(jnp.bfloat16),
        "b1x": b1x.astype(jnp.float32),
        "w2x": w2x.astype(jnp.bfloat16),
        "b2": params["conv2_b"].reshape(1, 64).astype(jnp.float32),
        "fc1_w": fc1_w_nhwc.T.astype(jnp.bfloat16),                # [9216, 128]
        "fc1_b": params["fc1_b"].reshape(1, 128).astype(jnp.float32),
        "fc2_w": params["fc2_w"].T.astype(jnp.bfloat16),           # [128, 10]
        "fc2_b": params["fc2_b"].reshape(1, 10).astype(jnp.float32),
    }


def net_forward(x_nchw, kp):
    B = x_nchw.shape[0]
    img = x_nchw.reshape(B, 28, 28).astype(jnp.bfloat16)          # C == 1

    # dx-expanded conv1 im2col (tiny, 1-channel; XLA-fused): for position
    # (r, c) with r in 0..25, c in 0..23, the 27 features are the 3x3 input
    # patches at columns c, c+1, c+2, ordered (dx, ky, kx).
    cols = [img[:, ky:ky + 26, dx + kx:dx + kx + 24]
            for dx in range(3) for ky in range(3) for kx in range(3)]
    patches = jnp.stack(cols, axis=-1).reshape(B, 624, 27)

    # conv1 -> ReLU -> conv2 -> ReLU -> 2x2 maxpool, one fused Pallas kernel.
    feat = conv_stage_pallas(patches, kp["w1x"], kp["b1x"], kp["w2x"], kp["b2"])
    feat = feat.reshape(B, 9216)     # free bitcast; NHWC flatten order

    # Dropout2d(0.25): identity at inference time (eval mode).
    # fc1 + ReLU + fc2 fused (Pallas), K=9216 tiled as a 2-step reduction axis.
    return fc_pallas(feat, kp["fc1_w"], kp["fc1_b"], kp["fc2_w"], kp["fc2_b"])


# ----------------------------------------------------------------------------
# Pure-JAX reference (PyTorch semantics) + synthetic init
# ----------------------------------------------------------------------------
def reference_forward(x, params):
    dn = ("NCHW", "OIHW", "NCHW")
    hi = jax.lax.Precision.HIGHEST
    y = jax.lax.conv_general_dilated(x, params["conv1_w"], (1, 1), "VALID",
                                     dimension_numbers=dn, precision=hi)
    y = jax.nn.relu(y + params["conv1_b"][None, :, None, None])
    y = jax.lax.conv_general_dilated(y, params["conv2_w"], (1, 1), "VALID",
                                     dimension_numbers=dn, precision=hi)
    y = jax.nn.relu(y + params["conv2_b"][None, :, None, None])
    y = jax.lax.reduce_window(y, -jnp.inf, jax.lax.max,
                              (1, 1, 2, 2), (1, 1, 2, 2), "VALID")
    y = y.reshape(y.shape[0], -1)
    y = jax.nn.relu(y @ params["fc1_w"].T + params["fc1_b"])
    return y @ params["fc2_w"].T + params["fc2_b"]


def init_params(keys):
    def uinit(k, shape, fan_in):
        bound = 1.0 / (fan_in ** 0.5)
        return jax.random.uniform(k, shape, jnp.float32, -bound, bound)

    return {
        "conv1_w": uinit(keys[0], (32, 1, 3, 3), 9),
        "conv1_b": uinit(keys[1], (32,), 9),
        "conv2_w": uinit(keys[2], (64, 32, 3, 3), 288),
        "conv2_b": uinit(keys[3], (64,), 288),
        "fc1_w": uinit(keys[4], (128, 9216), 9216),
        "fc1_b": uinit(keys[5], (128,), 9216),
        "fc2_w": uinit(keys[6], (10, 128), 128),
        "fc2_b": uinit(keys[7], (10,), 128),
    }


if __name__ == "__main__":
    key = jax.random.PRNGKey(0)
    ks = jax.random.split(key, 9)
    params = init_params(ks)
    # fc1 expects 9216 = 64*12*12 features => input must be [B, 1, 28, 28]
    x = jax.random.normal(ks[8], (2, 1, 28, 28), jnp.float32)

    kp = prepare_params(params)
    out = jax.jit(net_forward)(x, kp)
    out = jax.block_until_ready(out)
    assert out.shape == (2, 10) and out.dtype == jnp.float32

    ref = reference_forward(x, params)
    assert jnp.allclose(out, ref, atol=5e-2, rtol=5e-2), (out, ref)

    print("KERNEL_OK")
</pallas_src>

<mosaic_0001>
module attributes {stable_mosaic.version = 11 : i64} {
  func.func @_conv_fused_kernel(%arg0: i32, %arg1: memref<2x624x27xbf16, #tpu.memory_space<vmem>>, %arg2: memref<27x96xbf16, #tpu.memory_space<vmem>>, %arg3: memref<1x96xf32, #tpu.memory_space<vmem>>, %arg4: memref<3x96x64xbf16, #tpu.memory_space<vmem>>, %arg5: memref<1x64xf32, #tpu.memory_space<vmem>>, %arg6: memref<2x144x64xbf16, #tpu.memory_space<vmem>>, %arg7: memref<624x96xbf16, #tpu.memory_space<vmem>>, %arg8: memref<288x64xf32, #tpu.memory_space<vmem>>) attributes {dimension_semantics = [#tpu.dimension_semantics<parallel>], iteration_bounds = array<i64: 1>, scalar_prefetch = 0 : i64, scratch_operands = 2 : i64, tpu.core_type = #tpu.core_type<tc>, window_params = [{transform_indices = @transform_0, window_bounds = array<i64: 2, 624, 27>}, {pipeline_mode = #tpu.pipeline_mode<synchronous>, transform_indices = @transform_1, window_bounds = array<i64: 27, 96>}, {pipeline_mode = #tpu.pipeline_mode<synchronous>, transform_indices = @transform_2, window_bounds = array<i64: 1, 96>}, {pipeline_mode = #tpu.pipeline_mode<synchronous>, transform_indices = @transform_3, window_bounds = array<i64: 3, 96, 64>}, {pipeline_mode = #tpu.pipeline_mode<synchronous>, transform_indices = @transform_4, window_bounds = array<i64: 1, 64>}, {transform_indices = @transform_5, window_bounds = array<i64: 2, 144, 64>}]} {
    %c0 = arith.constant 0 : index
    %c0_0 = arith.constant 0 : index
    %0 = vector.load %arg2[%c0, %c0_0] : memref<27x96xbf16, #tpu.memory_space<vmem>>, vector<27x96xbf16>
    %c0_1 = arith.constant 0 : index
    %c0_2 = arith.constant 0 : index
    %1 = vector.load %arg3[%c0_1, %c0_2] : memref<1x96xf32, #tpu.memory_space<vmem>>, vector<1x96xf32>
    %c0_3 = arith.constant 0 : index
    %c0_4 = arith.constant 0 : index
    %2 = vector.load %arg5[%c0_3, %c0_4] : memref<1x64xf32, #tpu.memory_space<vmem>>, vector<1x64xf32>
    %c0_5 = arith.constant 0 : index
    %c0_6 = arith.constant 0 : index
    %c0_7 = arith.constant 0 : index
    %3 = vector.load %arg1[%c0_5, %c0_6, %c0_7] : memref<2x624x27xbf16, #tpu.memory_space<vmem>>, vector<1x208x27xbf16>
    %4 = vector.shape_cast %3 : vector<1x208x27xbf16> to vector<208x27xbf16>
    %cst = arith.constant dense<0.000000e+00> : vector<208x96xf32>
    %5 = tpu.matmul %4, %0, %cst {dimension_numbers = #tpu.dot_dimension_numbers<[1], [0], [0], [1], [0, 0, 1, 1], [], []>} : vector<208x27xbf16>, vector<27x96xbf16>, vector<208x96xf32> -> vector<208x96xf32>
    %6 = vector.broadcast %1 : vector<1x96xf32> to vector<208x96xf32>
    %7 = arith.addf %5, %6 : vector<208x96xf32>
    %cst_8 = arith.constant 0.000000e+00 : f32
    %8 = vector.broadcast %cst_8 : f32 to vector<208x96xf32>
    %9 = arith.maximumf %7, %8 : vector<208x96xf32>
    %10 = arith.truncf %9 : vector<208x96xf32> to vector<208x96xbf16>
    %c0_9 = arith.constant 0 : index
    %c0_10 = arith.constant 0 : index
    %11 = vector.load %arg7[%c0_9, %c0_10] : memref<624x96xbf16, #tpu.memory_space<vmem>>, vector<208x96xbf16>
    tpu.vector_store %arg7[%c0_9, %c0_10], %10 {strides = array<i32>} : memref<624x96xbf16, #tpu.memory_space<vmem>>, vector<208x96xbf16>,
    %c0_11 = arith.constant 0 : index
    %c208 = arith.constant 208 : index
    %c0_12 = arith.constant 0 : index
    %12 = vector.load %arg1[%c0_11, %c208, %c0_12] : memref<2x624x27xbf16, #tpu.memory_space<vmem>>, vector<1x208x27xbf16>
    %13 = vector.shape_cast %12 : vector<1x208x27xbf16> to vector<208x27xbf16>
    %cst_13 = arith.constant dense<0.000000e+00> : vector<208x96xf32>
    %14 = tpu.matmul %13, %0, %cst_13 {dimension_numbers = #tpu.dot_dimension_numbers<[1], [0], [0], [1], [0, 0, 1, 1], [], []>} : vector<208x27xbf16>, vector<27x96xbf16>, vector<208x96xf32> -> vector<208x96xf32>
    %15 = vector.broadcast %1 : vector<1x96xf32> to vector<208x96xf32>
    %16 = arith.addf %14, %15 : vector<208x96xf32>
    %cst_14 = arith.constant 0.000000e+00 : f32
    %17 = vector.broadcast %cst_14 : f32 to vector<208x96xf32>
    %18 = arith.maximumf %16, %17 : vector<208x96xf32>
    %19 = arith.truncf %18 : vector<208x96xf32> to vector<208x96xbf16>
    %c208_15 = arith.constant 208 : index
    %c0_16 = arith.constant 0 : index
    %20 = vector.load %arg7[%c208_15, %c0_16] : memref<624x96xbf16, #tpu.memory_space<vmem>>, vector<208x96xbf16>
    tpu.vector_store %arg7[%c208_15, %c0_16], %19 {strides = array<i32>} : memref<624x96xbf16, #tpu.memory_space<vmem>>, vector<208x96xbf16>,
    %c0_17 = arith.constant 0 : index
    %c416 = arith.constant 416 : index
    %c0_18 = arith.constant 0 : index
    %21 = vector.load %arg1[%c0_17, %c416, %c0_18] : memref<2x624x27xbf16, #tpu.memory_space<vmem>>, vector<1x208x27xbf16>
    %22 = vector.shape_cast %21 : vector<1x208x27xbf16> to vector<208x27xbf16>
    %cst_19 = arith.constant dense<0.000000e+00> : vector<208x96xf32>
    %23 = tpu.matmul %22, %0, %cst_19 {dimension_numbers = #tpu.dot_dimension_numbers<[1], [0], [0], [1], [0, 0, 1, 1], [], []>} : vector<208x27xbf16>, vector<27x96xbf16>, vector<208x96xf32> -> vector<208x96xf32>
    %24 = vector.broadcast %1 : vector<1x96xf32> to vector<208x96xf32>
    %25 = arith.addf %23, %24 : vector<208x96xf32>
    %cst_20 = arith.constant 0.000000e+00 : f32
    %26 = vector.broadcast %cst_20 : f32 to vector<208x96xf32>
    %27 = arith.maximumf %25, %26 : vector<208x96xf32>
    %28 = arith.truncf %27 : vector<208x96xf32> to vector<208x96xbf16>
    %c416_21 = arith.constant 416 : index
    %c0_22 = arith.constant 0 : index
    %29 = vector.load %arg7[%c416_21, %c0_22] : memref<624x96xbf16, #tpu.memory_space<vmem>>, vector<208x96xbf16>
    tpu.vector_store %arg7[%c416_21, %c0_22], %28 {strides = array<i32>} : memref<624x96xbf16, #tpu.memory_space<vmem>>, vector<208x96xbf16>,
    %c0_23 = arith.constant 0 : index
    %c0_24 = arith.constant 0 : index
    %30 = vector.load %arg7[%c0_23, %c0_24] : memref<624x96xbf16, #tpu.memory_space<vmem>>, vector<144x96xbf16>
    %c0_25 = arith.constant 0 : index
    %c0_26 = arith.constant 0 : index
    %c0_27 = arith.constant 0 : index
    %31 = vector.load %arg4[%c0_25, %c0_26, %c0_27] : memref<3x96x64xbf16, #tpu.memory_space<vmem>>, vector<1x96x64xbf16>
    %32 = vector.shape_cast %31 : vector<1x96x64xbf16> to vector<96x64xbf16>
    %cst_28 = arith.constant dense<0.000000e+00> : vector<144x64xf32>
    %33 = tpu.matmul %30, %32, %cst_28 {dimension_numbers = #tpu.dot_dimension_numbers<[1], [0], [0], [1], [0, 0, 1, 1], [], []>} : vector<144x96xbf16>, vector<96x64xbf16>, vector<144x64xf32> -> vector<144x64xf32>
    %c24 = arith.constant 24 : index
    %c0_29 = arith.constant 0 : index
    %34 = vector.load %arg7[%c24, %c0_29] : memref<624x96xbf16, #tpu.memory_space<vmem>>, vector<144x96xbf16>
    %c1 = arith.constant 1 : index
    %c0_30 = arith.constant 0 : index
    %c0_31 = arith.constant 0 : index
    %35 = vector.load %arg4[%c1, %c0_30, %c0_31] : memref<3x96x64xbf16, #tpu.memory_space<vmem>>, vector<1x96x64xbf16>
    %36 = vector.shape_cast %35 : vector<1x96x64xbf16> to vector<96x64xbf16>
    %cst_32 = arith.constant dense<0.000000e+00> : vector<144x64xf32>
    %37 = tpu.matmul %34, %36, %cst_32 {dimension_numbers = #tpu.dot_dimension_numbers<[1], [0], [0], [1], [0, 0, 1, 1], [], []>} : vector<144x96xbf16>, vector<96x64xbf16>, vector<144x64xf32> -> vector<144x64xf32>
    %38 = arith.addf %33, %37 : vector<144x64xf32>
    %c48 = arith.constant 48 : index
    %c0_33 = arith.constant 0 : index
    %39 = vector.load %arg7[%c48, %c0_33] : memref<624x96xbf16, #tpu.memory_space<vmem>>, vector<144x96xbf16>
    %c2 = arith.constant 2 : index
    %c0_34 = arith.constant 0 : index
    %c0_35 = arith.constant 0 : index
    %40 = vector.load %arg4[%c2, %c0_34, %c0_35] : memref<3x96x64xbf16, #tpu.memory_space<vmem>>, vector<1x96x64xbf16>
    %41 = vector.shape_cast %40 : vector<1x96x64xbf16> to vector<96x64xbf16>
    %cst_36 = arith.constant dense<0.000000e+00> : vector<144x64xf32>
    %42 = tpu.matmul %39, %41, %cst_36 {dimension_numbers = #tpu.dot_dimension_numbers<[1], [0], [0], [1], [0, 0, 1, 1], [], []>} : vector<144x96xbf16>, vector<96x64xbf16>, vector<144x64xf32> -> vector<144x64xf32>
    %43 = arith.addf %38, %42 : vector<144x64xf32>
    %44 = vector.broadcast %2 : vector<1x64xf32> to vector<144x64xf32>
    %45 = arith.addf %43, %44 : vector<144x64xf32>
    %cst_37 = arith.constant 0.000000e+00 : f32
    %46 = vector.broadcast %cst_37 : f32 to vector<144x64xf32>
    %47 = arith.maximumf %45, %46 : vector<144x64xf32>
    %48 = vector.extract_strided_slice %47 {offsets = [0, 0], sizes = [24, 64], strides = [1, 1]} : vector<144x64xf32> to vector<24x64xf32>
    %49 = vector.extract_strided_slice %47 {offsets = [24, 0], sizes = [24, 64], strides = [1, 1]} : vector<144x64xf32> to vector<24x64xf32>
    %50 = arith.maximumf %48, %49 : vector<24x64xf32>
    %c0_38 = arith.constant 0 : index
    %c0_39 = arith.constant 0 : index
    %51 = vector.load %arg8[%c0_38, %c0_39] : memref<288x64xf32, #tpu.memory_space<vmem>>, vector<24x64xf32>
    tpu.vector_store %arg8[%c0_38, %c0_39], %50 {strides = array<i32>} : memref<288x64xf32, #tpu.memory_space<vmem>>, vector<24x64xf32>,
    %52 = vector.extract_strided_slice %47 {offsets = [48, 0], sizes = [24, 64], strides = [1, 1]} : vector<144x64xf32> to vector<24x64xf32>
    %53 = vector.extract_strided_slice %47 {offsets = [72, 0], sizes = [24, 64], strides = [1, 1]} : vector<144x64xf32> to vector<24x64xf32>
    %54 = arith.maximumf %52, %53 : vector<24x64xf32>
    %c24_40 = arith.constant 24 : index
    %c0_41 = arith.constant 0 : index
    %55 = vector.load %arg8[%c24_40, %c0_41] : memref<288x64xf32, #tpu.memory_space<vmem>>, vector<24x64xf32>
    tpu.vector_store %arg8[%c24_40, %c0_41], %54 {strides = array<i32>} : memref<288x64xf32, #tpu.memory_space<vmem>>, vector<24x64xf32>,
    %56 = vector.extract_strided_slice %47 {offsets = [96, 0], sizes = [24, 64], strides = [1, 1]} : vector<144x64xf32> to vector<24x64xf32>
    %57 = vector.extract_strided_slice %47 {offsets = [120, 0], sizes = [24, 64], strides = [1, 1]} : vector<144x64xf32> to vector<24x64xf32>
    %58 = arith.maximumf %56, %57 : vector<24x64xf32>
    %c48_42 = arith.constant 48 : index
    %c0_43 = arith.constant 0 : index
    %59 = vector.load %arg8[%c48_42, %c0_43] : memref<288x64xf32, #tpu.memory_space<vmem>>, vector<24x64xf32>
    tpu.vector_store %arg8[%c48_42, %c0_43], %58 {strides = array<i32>} : memref<288x64xf32, #tpu.memory_space<vmem>>, vector<24x64xf32>,
    %c144 = arith.constant 144 : index
    %c0_44 = arith.constant 0 : index
    %60 = vector.load %arg7[%c144, %c0_44] : memref<624x96xbf16, #tpu.memory_space<vmem>>, vector<144x96xbf16>
    %c0_45 = arith.constant 0 : index
    %c0_46 = arith.constant 0 : index
    %c0_47 = arith.constant 0 : index
    %61 = vector.load %arg4[%c0_45, %c0_46, %c0_47] : memref<3x96x64xbf16, #tpu.memory_space<vmem>>, vector<1x96x64xbf16>
    %62 = vector.shape_cast %61 : vector<1x96x64xbf16> to vector<96x64xbf16>
    %cst_48 = arith.constant dense<0.000000e+00> : vector<144x64xf32>
    %63 = tpu.matmul %60, %62, %cst_48 {dimension_numbers = #tpu.dot_dimension_numbers<[1], [0], [0], [1], [0, 0, 1, 1], [], []>} : vector<144x96xbf16>, vector<96x64xbf16>, vector<144x64xf32> -> vector<144x64xf32>
    %c168 = arith.constant 168 : index
    %c0_49 = arith.constant 0 : index
    %64 = vector.load %arg7[%c168, %c0_49] : memref<624x96xbf16, #tpu.memory_space<vmem>>, vector<144x96xbf16>
    %c1_50 = arith.constant 1 : index
    %c0_51 = arith.constant 0 : index
    %c0_52 = arith.constant 0 : index
    %65 = vector.load %arg4[%c1_50, %c0_51, %c0_52] : memref<3x96x64xbf16, #tpu.memory_space<vmem>>, vector<1x96x64xbf16>
    %66 = vector.shape_cast %65 : vector<1x96x64xbf16> to vector<96x64xbf16>
    %cst_53 = arith.constant dense<0.000000e+00> : vector<144x64xf32>
    %67 = tpu.matmul %64, %66, %cst_53 {dimension_numbers = #tpu.dot_dimension_numbers<[1], [0], [0], [1], [0, 0, 1, 1], [], []>} : vector<144x96xbf16>, vector<96x64xbf16>, vector<144x64xf32> -> vector<144x64xf32>
    %68 = arith.addf %63, %67 : vector<144x64xf32>
    %c192 = arith.constant 192 : index
    %c0_54 = arith.constant 0 : index
    %69 = vector.load %arg7[%c192, %c0_54] : memref<624x96xbf16, #tpu.memory_space<vmem>>, vector<144x96xbf16>
    %c2_55 = arith.constant 2 : index
    %c0_56 = arith.constant 0 : index
    %c0_57 = arith.constant 0 : index
    %70 = vector.load %arg4[%c2_55, %c0_56, %c0_57] : memref<3x96x64xbf16, #tpu.memory_space<vmem>>, vector<1x96x64xbf16>
    %71 = vector.shape_cast %70 : vector<1x96x64xbf16> to vector<96x64xbf16>
    %cst_58 = arith.constant dense<0.000000e+00> : vector<144x64xf32>
    %72 = tpu.matmul %69, %71, %cst_58 {dimension_numbers = #tpu.dot_dimension_numbers<[1], [0], [0], [1], [0, 0, 1, 1], [], []>} : vector<144x96xbf16>, vector<96x64xbf16>, vector<144x64xf32> -> vector<144x64xf32>
    %73 = arith.addf %68, %72 : vector<144x64xf32>
    %74 = vector.broadcast %2 : vector<1x64xf32> to vector<144x64xf32>
    %75 = arith.addf %73, %74 : vector<144x64xf32>
    %cst_59 = arith.constant 0.000000e+00 : f32
    %76 = vector.broadcast %cst_59 : f32 to vector<144x64xf32>
    %77 = arith.maximumf %75, %76 : vector<144x64xf32>
    %78 = vector.extract_strided_slice %77 {offsets = [0, 0], sizes = [24, 64], strides = [1, 1]} : vector<144x64xf32> to vector<24x64xf32>
    %79 = vector.extract_strided_slice %77 {offsets = [24, 0], sizes = [24, 64], strides = [1, 1]} : vector<144x64xf32> to vector<24x64xf32>
    %80 = arith.maximumf %78, %79 : vector<24x64xf32>
    %c72 = arith.constant 72 : index
    %c0_60 = arith.constant 0 : index
    %81 = vector.load %arg8[%c72, %c0_60] : memref<288x64xf32, #tpu.memory_space<vmem>>, vector<24x64xf32>
    tpu.vector_store %arg8[%c72, %c0_60], %80 {strides = array<i32>} : memref<288x64xf32, #tpu.memory_space<vmem>>, vector<24x64xf32>,
    %82 = vector.extract_strided_slice %77 {offsets = [48, 0], sizes = [24, 64], strides = [1, 1]} : vector<144x64xf32> to vector<24x64xf32>
    %83 = vector.extract_strided_slice %77 {offsets = [72, 0], sizes = [24, 64], strides = [1, 1]} : vector<144x64xf32> to vector<24x64xf32>
    %84 = arith.maximumf %82, %83 : vector<24x64xf32>
    %c96 = arith.constant 96 : index
    %c0_61 = arith.constant 0 : index
    %85 = vector.load %arg8[%c96, %c0_61] : memref<288x64xf32, #tpu.memory_space<vmem>>, vector<24x64xf32>
    tpu.vector_store %arg8[%c96, %c0_61], %84 {strides = array<i32>} : memref<288x64xf32, #tpu.memory_space<vmem>>, vector<24x64xf32>,
    %86 = vector.extract_strided_slice %77 {offsets = [96, 0], sizes = [24, 64], strides = [1, 1]} : vector<144x64xf32> to vector<24x64xf32>
    %87 = vector.extract_strided_slice %77 {offsets = [120, 0], sizes = [24, 64], strides = [1, 1]} : vector<144x64xf32> to vector<24x64xf32>
    %88 = arith.maximumf %86, %87 : vector<24x64xf32>
    %c120 = arith.constant 120 : index
    %c0_62 = arith.constant 0 : index
    %89 = vector.load %arg8[%c120, %c0_62] : memref<288x64xf32, #tpu.memory_space<vmem>>, vector<24x64xf32>
    tpu.vector_store %arg8[%c120, %c0_62], %88 {strides = array<i32>} : memref<288x64xf32, #tpu.memory_space<vmem>>, vector<24x64xf32>,
    %c288 = arith.constant 288 : index
    %c0_63 = arith.constant 0 : index
    %90 = vector.load %arg7[%c288, %c0_63] : memref<624x96xbf16, #tpu.memory_space<vmem>>, vector<144x96xbf16>
    %c0_64 = arith.constant 0 : index
    %c0_65 = arith.constant 0 : index
    %c0_66 = arith.constant 0 : index
    %91 = vector.load %arg4[%c0_64, %c0_65, %c0_66] : memref<3x96x64xbf16, #tpu.memory_space<vmem>>, vector<1x96x64xbf16>
    %92 = vector.shape_cast %91 : vector<1x96x64xbf16> to vector<96x64xbf16>
    %cst_67 = arith.constant dense<0.000000e+00> : vector<144x64xf32>
    %93 = tpu.matmul %90, %92, %cst_67 {dimension_numbers = #tpu.dot_dimension_numbers<[1], [0], [0], [1], [0, 0, 1, 1], [], []>} : vector<144x96xbf16>, vector<96x64xbf16>, vector<144x64xf32> -> vector<144x64xf32>
    %c312 = arith.constant 312 : index
    %c0_68 = arith.constant 0 : index
    %94 = vector.load %arg7[%c312, %c0_68] : memref<624x96xbf16, #tpu.memory_space<vmem>>, vector<144x96xbf16>
    %c1_69 = arith.constant 1 : index
    %c0_70 = arith.constant 0 : index
    %c0_71 = arith.constant 0 : index
    %95 = vector.load %arg4[%c1_69, %c0_70, %c0_71] : memref<3x96x64xbf16, #tpu.memory_space<vmem>>, vector<1x96x64xbf16>
    %96 = vector.shape_cast %95 : vector<1x96x64xbf16> to vector<96x64xbf16>
    %cst_72 = arith.constant dense<0.000000e+00> : vector<144x64xf32>
    %97 = tpu.matmul %94, %96, %cst_72 {dimension_numbers = #tpu.dot_dimension_numbers<[1], [0], [0], [1], [0, 0, 1, 1], [], []>} : vector<144x96xbf16>, vector<96x64xbf16>, vector<144x64xf32> -> vector<144x64xf32>
    %98 = arith.addf %93, %97 : vector<144x64xf32>
    %c336 = arith.constant 336 : index
    %c0_73 = arith.constant 0 : index
    %99 = vector.load %arg7[%c336, %c0_73] : memref<624x96xbf16, #tpu.memory_space<vmem>>, vector<144x96xbf16>
    %c2_74 = arith.constant 2 : index
    %c0_75 = arith.constant 0 : index
    %c0_76 = arith.constant 0 : index
    %100 = vector.load %arg4[%c2_74, %c0_75, %c0_76] : memref<3x96x64xbf16, #tpu.memory_space<vmem>>, vector<1x96x64xbf16>
    %101 = vector.shape_cast %100 : vector<1x96x64xbf16> to vector<96x64xbf16>
    %cst_77 = arith.constant dense<0.000000e+00> : vector<144x64xf32>
    %102 = tpu.matmul %99, %101, %cst_77 {dimension_numbers = #tpu.dot_dimension_numbers<[1], [0], [0], [1], [0, 0, 1, 1], [], []>} : vector<144x96xbf16>, vector<96x64xbf16>, vector<144x64xf32> -> vector<144x64xf32>
    %103 = arith.addf %98, %102 : vector<144x64xf32>
    %104 = vector.broadcast %2 : vector<1x64xf32> to vector<144x64xf32>
    %105 = arith.addf %103, %104 : vector<144x64xf32>
    %cst_78 = arith.constant 0.000000e+00 : f32
    %106 = vector.broadcast %cst_78 : f32 to vector<144x64xf32>
    %107 = arith.maximumf %105, %106 : vector<144x64xf32>
    %108 = vector.extract_strided_slice %107 {offsets = [0, 0], sizes = [24, 64], strides = [1, 1]} : vector<144x64xf32> to vector<24x64xf32>
    %109 = vector.extract_strided_slice %107 {offsets = [24, 0], sizes = [24, 64], strides = [1, 1]} : vector<144x64xf32> to vector<24x64xf32>
    %110 = arith.maximumf %108, %109 : vector<24x64xf32>
    %c144_79 = arith.constant 144 : index
    %c0_80 = arith.constant 0 : index
    %111 = vector.load %arg8[%c144_79, %c0_80] : memref<288x64xf32, #tpu.memory_space<vmem>>, vector<24x64xf32>
    tpu.vector_store %arg8[%c144_79, %c0_80], %110 {strides = array<i32>} : memref<288x64xf32, #tpu.memory_space<vmem>>, vector<24x64xf32>,
    %112 = vector.extract_strided_slice %107 {offsets = [48, 0], sizes = [24, 64], strides = [1, 1]} : vector<144x64xf32> to vector<24x64xf32>
    %113 = vector.extract_strided_slice %107 {offsets = [72, 0], sizes = [24, 64], strides = [1, 1]} : vector<144x64xf32> to vector<24x64xf32>
    %114 = arith.maximumf %112, %113 : vector<24x64xf32>
    %c168_81 = arith.constant 168 : index
    %c0_82 = arith.constant 0 : index
    %115 = vector.load %arg8[%c168_81, %c0_82] : memref<288x64xf32, #tpu.memory_space<vmem>>, vector<24x64xf32>
    tpu.vector_store %arg8[%c168_81, %c0_82], %114 {strides = array<i32>} : memref<288x64xf32, #tpu.memory_space<vmem>>, vector<24x64xf32>,
    %116 = vector.extract_strided_slice %107 {offsets = [96, 0], sizes = [24, 64], strides = [1, 1]} : vector<144x64xf32> to vector<24x64xf32>
    %117 = vector.extract_strided_slice %107 {offsets = [120, 0], sizes = [24, 64], strides = [1, 1]} : vector<144x64xf32> to vector<24x64xf32>
    %118 = arith.maximumf %116, %117 : vector<24x64xf32>
    %c192_83 = arith.constant 192 : index
    %c0_84 = arith.constant 0 : index
    %119 = vector.load %arg8[%c192_83, %c0_84] : memref<288x64xf32, #tpu.memory_space<vmem>>, vector<24x64xf32>
    tpu.vector_store %arg8[%c192_83, %c0_84], %118 {strides = array<i32>} : memref<288x64xf32, #tpu.memory_space<vmem>>, vector<24x64xf32>,
    %c432 = arith.constant 432 : index
    %c0_85 = arith.constant 0 : index
    %120 = vector.load %arg7[%c432, %c0_85] : memref<624x96xbf16, #tpu.memory_space<vmem>>, vector<144x96xbf16>
    %c0_86 = arith.constant 0 : index
    %c0_87 = arith.constant 0 : index
    %c0_88 = arith.constant 0 : index
    %121 = vector.load %arg4[%c0_86, %c0_87, %c0_88] : memref<3x96x64xbf16, #tpu.memory_space<vmem>>, vector<1x96x64xbf16>
    %122 = vector.shape_cast %121 : vector<1x96x64xbf16> to vector<96x64xbf16>
    %cst_89 = arith.constant dense<0.000000e+00> : vector<144x64xf32>
    %123 = tpu.matmul %120, %122, %cst_89 {dimension_numbers = #tpu.dot_dimension_numbers<[1], [0], [0], [1], [0, 0, 1, 1], [], []>} : vector<144x96xbf16>, vector<96x64xbf16>, vector<144x64xf32> -> vector<144x64xf32>
    %c456 = arith.constant 456 : index
    %c0_90 = arith.constant 0 : index
    %124 = vector.load %arg7[%c456, %c0_90] : memref<624x96xbf16, #tpu.memory_space<vmem>>, vector<144x96xbf16>
    %c1_91 = arith.constant 1 : index
    %c0_92 = arith.constant 0 : index
    %c0_93 = arith.constant 0 : index
    %125 = vector.load %arg4[%c1_91, %c0_92, %c0_93] : memref<3x96x64xbf16, #tpu.memory_space<vmem>>, vector<1x96x64xbf16>
    %126 = vector.shape_cast %125 : vector<1x96x64xbf16> to vector<96x64xbf16>
    %cst_94 = arith.constant dense<0.000000e+00> : vector<144x64xf32>
    %127 = tpu.matmul %124, %126, %cst_94 {dimension_numbers = #tpu.dot_dimension_numbers<[1], [0], [0], [1], [0, 0, 1, 1], [], []>} : vector<144x96xbf16>, vector<96x64xbf16>, vector<144x64xf32> -> vector<144x64xf32>
    %128 = arith.addf %123, %127 : vector<144x64xf32>
    %c480 = arith.constant 480 : index
    %c0_95 = arith.constant 0 : index
    %129 = vector.load %arg7[%c480, %c0_95] : memref<624x96xbf16, #tpu.memory_space<vmem>>, vector<144x96xbf16>
    %c2_96 = arith.constant 2 : index
    %c0_97 = arith.constant 0 : index
    %c0_98 = arith.constant 0 : index
    %130 = vector.load %arg4[%c2_96, %c0_97, %c0_98] : memref<3x96x64xbf16, #tpu.memory_space<vmem>>, vector<1x96x64xbf16>
    %131 = vector.shape_cast %130 : vector<1x96x64xbf16> to vector<96x64xbf16>
    %cst_99 = arith.constant dense<0.000000e+00> : vector<144x64xf32>
    %132 = tpu.matmul %129, %131, %cst_99 {dimension_numbers = #tpu.dot_dimension_numbers<[1], [0], [0], [1], [0, 0, 1, 1], [], []>} : vector<144x96xbf16>, vector<96x64xbf16>, vector<144x64xf32> -> vector<144x64xf32>
    %133 = arith.addf %128, %132 : vector<144x64xf32>
    %134 = vector.broadcast %2 : vector<1x64xf32> to vector<144x64xf32>
    %135 = arith.addf %133, %134 : vector<144x64xf32>
    %cst_100 = arith.constant 0.000000e+00 : f32
    %136 = vector.broadcast %cst_100 : f32 to vector<144x64xf32>
    %137 = arith.maximumf %135, %136 : vector<144x64xf32>
    %138 = vector.extract_strided_slice %137 {offsets = [0, 0], sizes = [24, 64], strides = [1, 1]} : vector<144x64xf32> to vector<24x64xf32>
    %139 = vector.extract_strided_slice %137 {offsets = [24, 0], sizes = [24, 64], strides = [1, 1]} : vector<144x64xf32> to vector<24x64xf32>
    %140 = arith.maximumf %138, %139 : vector<24x64xf32>
    %c216 = arith.constant 216 : index
    %c0_101 = arith.constant 0 : index
    %141 = vector.load %arg8[%c216, %c0_101] : memref<288x64xf32, #tpu.memory_space<vmem>>, vector<24x64xf32>
    tpu.vector_store %arg8[%c216, %c0_101], %140 {strides = array<i32>} : memref<288x64xf32, #tpu.memory_space<vmem>>, vector<24x64xf32>,
    %142 = vector.extract_strided_slice %137 {offsets = [48, 0], sizes = [24, 64], strides = [1, 1]} : vector<144x64xf32> to vector<24x64xf32>
    %143 = vector.extract_strided_slice %137 {offsets = [72, 0], sizes = [24, 64], strides = [1, 1]} : vector<144x64xf32> to vector<24x64xf32>
    %144 = arith.maximumf %142, %143 : vector<24x64xf32>
    %c240 = arith.constant 240 : index
    %c0_102 = arith.constant 0 : index
    %145 = vector.load %arg8[%c240, %c0_102] : memref<288x64xf32, #tpu.memory_space<vmem>>, vector<24x64xf32>
    tpu.vector_store %arg8[%c240, %c0_102], %144 {strides = array<i32>} : memref<288x64xf32, #tpu.memory_space<vmem>>, vector<24x64xf32>,
    %146 = vector.extract_strided_slice %137 {offsets = [96, 0], sizes = [24, 64], strides = [1, 1]} : vector<144x64xf32> to vector<24x64xf32>
    %147 = vector.extract_strided_slice %137 {offsets = [120, 0], sizes = [24, 64], strides = [1, 1]} : vector<144x64xf32> to vector<24x64xf32>
    %148 = arith.maximumf %146, %147 : vector<24x64xf32>
    %c264 = arith.constant 264 : index
    %c0_103 = arith.constant 0 : index
    %149 = vector.load %arg8[%c264, %c0_103] : memref<288x64xf32, #tpu.memory_space<vmem>>, vector<24x64xf32>
    tpu.vector_store %arg8[%c264, %c0_103], %148 {strides = array<i32>} : memref<288x64xf32, #tpu.memory_space<vmem>>, vector<24x64xf32>,
    %c0_104 = arith.constant 0 : index
    %c0_105 = arith.constant 0 : index
    %150 = tpu.strided_load %arg8[%c0_104, %c0_105] {strides = array<i32: 2, 1>} : memref<288x64xf32, #tpu.memory_space<vmem>>, vector<144x64xf32>
    %c1_106 = arith.constant 1 : index
    %c0_107 = arith.constant 0 : index
    %151 = tpu.strided_load %arg8[%c1_106, %c0_107] {strides = array<i32: 2, 1>} : memref<288x64xf32, #tpu.memory_space<vmem>>, vector<144x64xf32>
    %152 = arith.maximumf %150, %151 : vector<144x64xf32>
    %153 = arith.truncf %152 : vector<144x64xf32> to vector<144x64xbf16>
    %c0_108 = arith.constant 0 : index
    %c0_109 = arith.constant 0 : index
    %c0_110 = arith.constant 0 : index
    %154 = vector.load %arg6[%c0_108, %c0_109, %c0_110] : memref<2x144x64xbf16, #tpu.memory_space<vmem>>, vector<1x144x64xbf16>
    %155 = vector.shape_cast %154 : vector<1x144x64xbf16> to vector<144x64xbf16>
    %156 = vector.shape_cast %153 : vector<144x64xbf16> to vector<1x144x64xbf16>
    tpu.vector_store %arg6[%c0_108, %c0_109, %c0_110], %156 {strides = array<i32>} : memref<2x144x64xbf16, #tpu.memory_space<vmem>>, vector<1x144x64xbf16>,
    %c1_111 = arith.constant 1 : index
    %c0_112 = arith.constant 0 : index
    %c0_113 = arith.constant 0 : index
    %157 = vector.load %arg1[%c1_111, %c0_112, %c0_113] : memref<2x624x27xbf16, #tpu.memory_space<vmem>>, vector<1x208x27xbf16>
    %158 = vector.shape_cast %157 : vector<1x208x27xbf16> to vector<208x27xbf16>
    %cst_114 = arith.constant dense<0.000000e+00> : vector<208x96xf32>
    %159 = tpu.matmul %158, %0, %cst_114 {dimension_numbers = #tpu.dot_dimension_numbers<[1], [0], [0], [1], [0, 0, 1, 1], [], []>} : vector<208x27xbf16>, vector<27x96xbf16>, vector<208x96xf32> -> vector<208x96xf32>
    %160 = vector.broadcast %1 : vector<1x96xf32> to vector<208x96xf32>
    %161 = arith.addf %159, %160 : vector<208x96xf32>
    %cst_115 = arith.constant 0.000000e+00 : f32
    %162 = vector.broadcast %cst_115 : f32 to vector<208x96xf32>
    %163 = arith.maximumf %161, %162 : vector<208x96xf32>
    %164 = arith.truncf %163 : vector<208x96xf32> to vector<208x96xbf16>
    %c0_116 = arith.constant 0 : index
    %c0_117 = arith.constant 0 : index
    %165 = vector.load %arg7[%c0_116, %c0_117] : memref<624x96xbf16, #tpu.memory_space<vmem>>, vector<208x96xbf16>
    tpu.vector_store %arg7[%c0_116, %c0_117], %164 {strides = array<i32>} : memref<624x96xbf16, #tpu.memory_space<vmem>>, vector<208x96xbf16>,
    %c1_118 = arith.constant 1 : index
    %c208_119 = arith.constant 208 : index
    %c0_120 = arith.constant 0 : index
    %166 = vector.load %arg1[%c1_118, %c208_119, %c0_120] : memref<2x624x27xbf16, #tpu.memory_space<vmem>>, vector<1x208x27xbf16>
    %167 = vector.shape_cast %166 : vector<1x208x27xbf16> to vector<208x27xbf16>
    %cst_121 = arith.constant dense<0.000000e+00> : vector<208x96xf32>
    %168 = tpu.matmul %167, %0, %cst_121 {dimension_numbers = #tpu.dot_dimension_numbers<[1], [0], [0], [1], [0, 0, 1, 1], [], []>} : vector<208x27xbf16>, vector<27x96xbf16>, vector<208x96xf32> -> vector<208x96xf32>
    %169 = vector.broadcast %1 : vector<1x96xf32> to vector<208x96xf32>
    %170 = arith.addf %168, %169 : vector<208x96xf32>
    %cst_122 = arith.constant 0.000000e+00 : f32
    %171 = vector.broadcast %cst_122 : f32 to vector<208x96xf32>
    %172 = arith.maximumf %170, %171 : vector<208x96xf32>
    %173 = arith.truncf %172 : vector<208x96xf32> to vector<208x96xbf16>
    %c208_123 = arith.constant 208 : index
    %c0_124 = arith.constant 0 : index
    %174 = vector.load %arg7[%c208_123, %c0_124] : memref<624x96xbf16, #tpu.memory_space<vmem>>, vector<208x96xbf16>
    tpu.vector_store %arg7[%c208_123, %c0_124], %173 {strides = array<i32>} : memref<624x96xbf16, #tpu.memory_space<vmem>>, vector<208x96xbf16>,
    %c1_125 = arith.constant 1 : index
    %c416_126 = arith.constant 416 : index
    %c0_127 = arith.constant 0 : index
    %175 = vector.load %arg1[%c1_125, %c416_126, %c0_127] : memref<2x624x27xbf16, #tpu.memory_space<vmem>>, vector<1x208x27xbf16>
    %176 = vector.shape_cast %175 : vector<1x208x27xbf16> to vector<208x27xbf16>
    %cst_128 = arith.constant dense<0.000000e+00> : vector<208x96xf32>
    %177 = tpu.matmul %176, %0, %cst_128 {dimension_numbers = #tpu.dot_dimension_numbers<[1], [0], [0], [1], [0, 0, 1, 1], [], []>} : vector<208x27xbf16>, vector<27x96xbf16>, vector<208x96xf32> -> vector<208x96xf32>
    %178 = vector.broadcast %1 : vector<1x96xf32> to vector<208x96xf32>
    %179 = arith.addf %177, %178 : vector<208x96xf32>
    %cst_129 = arith.constant 0.000000e+00 : f32
    %180 = vector.broadcast %cst_129 : f32 to vector<208x96xf32>
    %181 = arith.maximumf %179, %180 : vector<208x96xf32>
    %182 = arith.truncf %181 : vector<208x96xf32> to vector<208x96xbf16>
    %c416_130 = arith.constant 416 : index
    %c0_131 = arith.constant 0 : index
    %183 = vector.load %arg7[%c416_130, %c0_131] : memref<624x96xbf16, #tpu.memory_space<vmem>>, vector<208x96xbf16>
    tpu.vector_store %arg7[%c416_130, %c0_131], %182 {strides = array<i32>} : memref<624x96xbf16, #tpu.memory_space<vmem>>, vector<208x96xbf16>,
    %c0_132 = arith.constant 0 : index
    %c0_133 = arith.constant 0 : index
    %184 = vector.load %arg7[%c0_132, %c0_133] : memref<624x96xbf16, #tpu.memory_space<vmem>>, vector<144x96xbf16>
    %c0_134 = arith.constant 0 : index
    %c0_135 = arith.constant 0 : index
    %c0_136 = arith.constant 0 : index
    %185 = vector.load %arg4[%c0_134, %c0_135, %c0_136] : memref<3x96x64xbf16, #tpu.memory_space<vmem>>, vector<1x96x64xbf16>
    %186 = vector.shape_cast %185 : vector<1x96x64xbf16> to vector<96x64xbf16>
    %cst_137 = arith.constant dense<0.000000e+00> : vector<144x64xf32>
    %187 = tpu.matmul %184, %186, %cst_137 {dimension_numbers = #tpu.dot_dimension_numbers<[1], [0], [0], [1], [0, 0, 1, 1], [], []>} : vector<144x96xbf16>, vector<96x64xbf16>, vector<144x64xf32> -> vector<144x64xf32>
    %c24_138 = arith.constant 24 : index
    %c0_139 = arith.constant 0 : index
    %188 = vector.load %arg7[%c24_138, %c0_139] : memref<624x96xbf16, #tpu.memory_space<vmem>>, vector<144x96xbf16>
    %c1_140 = arith.constant 1 : index
    %c0_141 = arith.constant 0 : index
    %c0_142 = arith.constant 0 : index
    %189 = vector.load %arg4[%c1_140, %c0_141, %c0_142] : memref<3x96x64xbf16, #tpu.memory_space<vmem>>, vector<1x96x64xbf16>
    %190 = vector.shape_cast %189 : vector<1x96x64xbf16> to vector<96x64xbf16>
    %cst_143 = arith.constant dense<0.000000e+00> : vector<144x64xf32>
    %191 = tpu.matmul %188, %190, %cst_143 {dimension_numbers = #tpu.dot_dimension_numbers<[1], [0], [0], [1], [0, 0, 1, 1], [], []>} : vector<144x96xbf16>, vector<96x64xbf16>, vector<144x64xf32> -> vector<144x64xf32>
    %192 = arith.addf %187, %191 : vector<144x64xf32>
    %c48_144 = arith.constant 48 : index
    %c0_145 = arith.constant 0 : index
    %193 = vector.load %arg7[%c48_144, %c0_145] : memref<624x96xbf16, #tpu.memory_space<vmem>>, vector<144x96xbf16>
    %c2_146 = arith.constant 2 : index
    %c0_147 = arith.constant 0 : index
    %c0_148 = arith.constant 0 : index
    %194 = vector.load %arg4[%c2_146, %c0_147, %c0_148] : memref<3x96x64xbf16, #tpu.memory_space<vmem>>, vector<1x96x64xbf16>
    %195 = vector.shape_cast %194 : vector<1x96x64xbf16> to vector<96x64xbf16>
    %cst_149 = arith.constant dense<0.000000e+00> : vector<144x64xf32>
    %196 = tpu.matmul %193, %195, %cst_149 {dimension_numbers = #tpu.dot_dimension_numbers<[1], [0], [0], [1], [0, 0, 1, 1], [], []>} : vector<144x96xbf16>, vector<96x64xbf16>, vector<144x64xf32> -> vector<144x64xf32>
    %197 = arith.addf %192, %196 : vector<144x64xf32>
    %198 = vector.broadcast %2 : vector<1x64xf32> to vector<144x64xf32>
    %199 = arith.addf %197, %198 : vector<144x64xf32>
    %cst_150 = arith.constant 0.000000e+00 : f32
    %200 = vector.broadcast %cst_150 : f32 to vector<144x64xf32>
    %201 = arith.maximumf %199, %200 : vector<144x64xf32>
    %202 = vector.extract_strided_slice %201 {offsets = [0, 0], sizes = [24, 64], strides = [1, 1]} : vector<144x64xf32> to vector<24x64xf32>
    %203 = vector.extract_strided_slice %201 {offsets = [24, 0], sizes = [24, 64], strides = [1, 1]} : vector<144x64xf32> to vector<24x64xf32>
    %204 = arith.maximumf %202, %203 : vector<24x64xf32>
    %c0_151 = arith.constant 0 : index
    %c0_152 = arith.constant 0 : index
    %205 = vector.load %arg8[%c0_151, %c0_152] : memref<288x64xf32, #tpu.memory_space<vmem>>, vector<24x64xf32>
    tpu.vector_store %arg8[%c0_151, %c0_152], %204 {strides = array<i32>} : memref<288x64xf32, #tpu.memory_space<vmem>>, vector<24x64xf32>,
    %206 = vector.extract_strided_slice %201 {offsets = [48, 0], sizes = [24, 64], strides = [1, 1]} : vector<144x64xf32> to vector<24x64xf32>
    %207 = vector.extract_strided_slice %201 {offsets = [72, 0], sizes = [24, 64], strides = [1, 1]} : vector<144x64xf32> to vector<24x64xf32>
    %208 = arith.maximumf %206, %207 : vector<24x64xf32>
    %c24_153 = arith.constant 24 : index
    %c0_154 = arith.constant 0 : index
    %209 = vector.load %arg8[%c24_153, %c0_154] : memref<288x64xf32, #tpu.memory_space<vmem>>, vector<24x64xf32>
    tpu.vector_store %arg8[%c24_153, %c0_154], %208 {strides = array<i32>} : memref<288x64xf32, #tpu.memory_space<vmem>>, vector<24x64xf32>,
    %210 = vector.extract_strided_slice %201 {offsets = [96, 0], sizes = [24, 64], strides = [1, 1]} : vector<144x64xf32> to vector<24x64xf32>
    %211 = vector.extract_strided_slice %201 {offsets = [120, 0], sizes = [24, 64], strides = [1, 1]} : vector<144x64xf32> to vector<24x64xf32>
    %212 = arith.maximumf %210, %211 : vector<24x64xf32>
    %c48_155 = arith.constant 48 : index
    %c0_156 = arith.constant 0 : index
    %213 = vector.load %arg8[%c48_155, %c0_156] : memref<288x64xf32, #tpu.memory_space<vmem>>, vector<24x64xf32>
    tpu.vector_store %arg8[%c48_155, %c0_156], %212 {strides = array<i32>} : memref<288x64xf32, #tpu.memory_space<vmem>>, vector<24x64xf32>,
    %c144_157 = arith.constant 144 : index
    %c0_158 = arith.constant 0 : index
    %214 = vector.load %arg7[%c144_157, %c0_158] : memref<624x96xbf16, #tpu.memory_space<vmem>>, vector<144x96xbf16>
    %c0_159 = arith.constant 0 : index
    %c0_160 = arith.constant 0 : index
    %c0_161 = arith.constant 0 : index
    %215 = vector.load %arg4[%c0_159, %c0_160, %c0_161] : memref<3x96x64xbf16, #tpu.memory_space<vmem>>, vector<1x96x64xbf16>
    %216 = vector.shape_cast %215 : vector<1x96x64xbf16> to vector<96x64xbf16>
    %cst_162 = arith.constant dense<0.000000e+00> : vector<144x64xf32>
    %217 = tpu.matmul %214, %216, %cst_162 {dimension_numbers = #tpu.dot_dimension_numbers<[1], [0], [0], [1], [0, 0, 1, 1], [], []>} : vector<144x96xbf16>, vector<96x64xbf16>, vector<144x64xf32> -> vector<144x64xf32>
    %c168_163 = arith.constant 168 : index
    %c0_164 = arith.constant 0 : index
    %218 = vector.load %arg7[%c168_163, %c0_164] : memref<624x96xbf16, #tpu.memory_space<vmem>>, vector<144x96xbf16>
    %c1_165 = arith.constant 1 : index
    %c0_166 = arith.constant 0 : index
    %c0_167 = arith.constant 0 : index
    %219 = vector.load %arg4[%c1_165, %c0_166, %c0_167] : memref<3x96x64xbf16, #tpu.memory_space<vmem>>, vector<1x96x64xbf16>
    %220 = vector.shape_cast %219 : vector<1x96x64xbf16> to vector<96x64xbf16>
    %cst_168 = arith.constant dense<0.000000e+00> : vector<144x64xf32>
    %221 = tpu.matmul %218, %220, %cst_168 {dimension_numbers = #tpu.dot_dimension_numbers<[1], [0], [0], [1], [0, 0, 1, 1], [], []>} : vector<144x96xbf16>, vector<96x64xbf16>, vector<144x64xf32> -> vector<144x64xf32>
    %222 = arith.addf %217, %221 : vector<144x64xf32>
    %c192_169 = arith.constant 192 : index
    %c0_170 = arith.constant 0 : index
    %223 = vector.load %arg7[%c192_169, %c0_170] : memref<624x96xbf16, #tpu.memory_space<vmem>>, vector<144x96xbf16>
    %c2_171 = arith.constant 2 : index
    %c0_172 = arith.constant 0 : index
    %c0_173 = arith.constant 0 : index
    %224 = vector.load %arg4[%c2_171, %c0_172, %c0_173] : memref<3x96x64xbf16, #tpu.memory_space<vmem>>, vector<1x96x64xbf16>
    %225 = vector.shape_cast %224 : vector<1x96x64xbf16> to vector<96x64xbf16>
    %cst_174 = arith.constant dense<0.000000e+00> : vector<144x64xf32>
    %226 = tpu.matmul %223, %225, %cst_174 {dimension_numbers = #tpu.dot_dimension_numbers<[1], [0], [0], [1], [0, 0, 1, 1], [], []>} : vector<144x96xbf16>, vector<96x64xbf16>, vector<144x64xf32> -> vector<144x64xf32>
    %227 = arith.addf %222, %226 : vector<144x64xf32>
    %228 = vector.broadcast %2 : vector<1x64xf32> to vector<144x64xf32>
    %229 = arith.addf %227, %228 : vector<144x64xf32>
    %cst_175 = arith.constant 0.000000e+00 : f32
    %230 = vector.broadcast %cst_175 : f32 to vector<144x64xf32>
    %231 = arith.maximumf %229, %230 : vector<144x64xf32>
    %232 = vector.extract_strided_slice %231 {offsets = [0, 0], sizes = [24, 64], strides = [1, 1]} : vector<144x64xf32> to vector<24x64xf32>
    %233 = vector.extract_strided_slice %231 {offsets = [24, 0], sizes = [24, 64], strides = [1, 1]} : vector<144x64xf32> to vector<24x64xf32>
    %234 = arith.maximumf %232, %233 : vector<24x64xf32>
    %c72_176 = arith.constant 72 : index
    %c0_177 = arith.constant 0 : index
    %235 = vector.load %arg8[%c72_176, %c0_177] : memref<288x64xf32, #tpu.memory_space<vmem>>, vector<24x64xf32>
    tpu.vector_store %arg8[%c72_176, %c0_177], %234 {strides = array<i32>} : memref<288x64xf32, #tpu.memory_space<vmem>>, vector<24x64xf32>,
    %236 = vector.extract_strided_slice %231 {offsets = [48, 0], sizes = [24, 64], strides = [1, 1]} : vector<144x64xf32> to vector<24x64xf32>
    %237 = vector.extract_strided_slice %231 {offsets = [72, 0], sizes = [24, 64], strides = [1, 1]} : vector<144x64xf32> to vector<24x64xf32>
    %238 = arith.maximumf %236, %237 : vector<24x64xf32>
    %c96_178 = arith.constant 96 : index
    %c0_179 = arith.constant 0 : index
    %239 = vector.load %arg8[%c96_178, %c0_179] : memref<288x64xf32, #tpu.memory_space<vmem>>, vector<24x64xf32>
    tpu.vector_store %arg8[%c96_178, %c0_179], %238 {strides = array<i32>} : memref<288x64xf32, #tpu.memory_space<vmem>>, vector<24x64xf32>,
    %240 = vector.extract_strided_slice %231 {offsets = [96, 0], sizes = [24, 64], strides = [1, 1]} : vector<144x64xf32> to vector<24x64xf32>
    %241 = vector.extract_strided_slice %231 {offsets = [120, 0], sizes = [24, 64], strides = [1, 1]} : vector<144x64xf32> to vector<24x64xf32>
    %242 = arith.maximumf %240, %241 : vector<24x64xf32>
    %c120_180 = arith.constant 120 : index
    %c0_181 = arith.constant 0 : index
    %243 = vector.load %arg8[%c120_180, %c0_181] : memref<288x64xf32, #tpu.memory_space<vmem>>, vector<24x64xf32>
    tpu.vector_store %arg8[%c120_180, %c0_181], %242 {strides = array<i32>} : memref<288x64xf32, #tpu.memory_space<vmem>>, vector<24x64xf32>,
    %c288_182 = arith.constant 288 : index
    %c0_183 = arith.constant 0 : index
    %244 = vector.load %arg7[%c288_182, %c0_183] : memref<624x96xbf16, #tpu.memory_space<vmem>>, vector<144x96xbf16>
    %c0_184 = arith.constant 0 : index
    %c0_185 = arith.constant 0 : index
    %c0_186 = arith.constant 0 : index
    %245 = vector.load %arg4[%c0_184, %c0_185, %c0_186] : memref<3x96x64xbf16, #tpu.memory_space<vmem>>, vector<1x96x64xbf16>
    %246 = vector.shape_cast %245 : vector<1x96x64xbf16> to vector<96x64xbf16>
    %cst_187 = arith.constant dense<0.000000e+00> : vector<144x64xf32>
    %247 = tpu.matmul %244, %246, %cst_187 {dimension_numbers = #tpu.dot_dimension_numbers<[1], [0], [0], [1], [0, 0, 1, 1], [], []>} : vector<144x96xbf16>, vector<96x64xbf16>, vector<144x64xf32> -> vector<144x64xf32>
    %c312_188 = arith.constant 312 : index
    %c0_189 = arith.constant 0 : index
    %248 = vector.load %arg7[%c312_188, %c0_189] : memref<624x96xbf16, #tpu.memory_space<vmem>>, vector<144x96xbf16>
    %c1_190 = arith.constant 1 : index
    %c0_191 = arith.constant 0 : index
    %c0_192 = arith.constant 0 : index
    %249 = vector.load %arg4[%c1_190, %c0_191, %c0_192] : memref<3x96x64xbf16, #tpu.memory_space<vmem>>, vector<1x96x64xbf16>
    %250 = vector.shape_cast %249 : vector<1x96x64xbf16> to vector<96x64xbf16>
    %cst_193 = arith.constant dense<0.000000e+00> : vector<144x64xf32>
    %251 = tpu.matmul %248, %250, %cst_193 {dimension_numbers = #tpu.dot_dimension_numbers<[1], [0], [0], [1], [0, 0, 1, 1], [], []>} : vector<144x96xbf16>, vector<96x64xbf16>, vector<144x64xf32> -> vector<144x64xf32>
    %252 = arith.addf %247, %251 : vector<144x64xf32>
    %c336_194 = arith.constant 336 : index
    %c0_195 = arith.constant 0 : index
    %253 = vector.load %arg7[%c336_194, %c0_195] : memref<624x96xbf16, #tpu.memory_space<vmem>>, vector<144x96xbf16>
    %c2_196 = arith.constant 2 : index
    %c0_197 = arith.constant 0 : index
    %c0_198 = arith.constant 0 : index
    %254 = vector.load %arg4[%c2_196, %c0_197, %c0_198] : memref<3x96x64xbf16, #tpu.memory_space<vmem>>, vector<1x96x64xbf16>
    %255 = vector.shape_cast %254 : vector<1x96x64xbf16> to vector<96x64xbf16>
    %cst_199 = arith.constant dense<0.000000e+00> : vector<144x64xf32>
    %256 = tpu.matmul %253, %255, %cst_199 {dimension_numbers = #tpu.dot_dimension_numbers<[1], [0], [0], [1], [0, 0, 1, 1], [], []>} : vector<144x96xbf16>, vector<96x64xbf16>, vector<144x64xf32> -> vector<144x64xf32>
    %257 = arith.addf %252, %256 : vector<144x64xf32>
    %258 = vector.broadcast %2 : vector<1x64xf32> to vector<144x64xf32>
    %259 = arith.addf %257, %258 : vector<144x64xf32>
    %cst_200 = arith.constant 0.000000e+00 : f32
    %260 = vector.broadcast %cst_200 : f32 to vector<144x64xf32>
    %261 = arith.maximumf %259, %260 : vector<144x64xf32>
    %262 = vector.extract_strided_slice %261 {offsets = [0, 0], sizes = [24, 64], strides = [1, 1]} : vector<144x64xf32> to vector<24x64xf32>
    %263 = vector.extract_strided_slice %261 {offsets = [24, 0], sizes = [24, 64], strides = [1, 1]} : vector<144x64xf32> to vector<24x64xf32>
    %264 = arith.maximumf %262, %263 : vector<24x64xf32>
    %c144_201 = arith.constant 144 : index
    %c0_202 = arith.constant 0 : index
    %265 = vector.load %arg8[%c144_201, %c0_202] : memref<288x64xf32, #tpu.memory_space<vmem>>, vector<24x64xf32>
    tpu.vector_store %arg8[%c144_201, %c0_202], %264 {strides = array<i32>} : memref<288x64xf32, #tpu.memory_space<vmem>>, vector<24x64xf32>,
    %266 = vector.extract_strided_slice %261 {offsets = [48, 0], sizes = [24, 64], strides = [1, 1]} : vector<144x64xf32> to vector<24x64xf32>
    %267 = vector.extract_strided_slice %261 {offsets = [72, 0], sizes = [24, 64], strides = [1, 1]} : vector<144x64xf32> to vector<24x64xf32>
    %268 = arith.maximumf %266, %267 : vector<24x64xf32>
    %c168_203 = arith.constant 168 : index
    %c0_204 = arith.constant 0 : index
    %269 = vector.load %arg8[%c168_203, %c0_204] : memref<288x64xf32, #tpu.memory_space<vmem>>, vector<24x64xf32>
    tpu.vector_store %arg8[%c168_203, %c0_204], %268 {strides = array<i32>} : memref<288x64xf32, #tpu.memory_space<vmem>>, vector<24x64xf32>,
    %270 = vector.extract_strided_slice %261 {offsets = [96, 0], sizes = [24, 64], strides = [1, 1]} : vector<144x64xf32> to vector<24x64xf32>
    %271 = vector.extract_strided_slice %261 {offsets = [120, 0], sizes = [24, 64], strides = [1, 1]} : vector<144x64xf32> to vector<24x64xf32>
    %272 = arith.maximumf %270, %271 : vector<24x64xf32>
    %c192_205 = arith.constant 192 : index
    %c0_206 = arith.constant 0 : index
    %273 = vector.load %arg8[%c192_205, %c0_206] : memref<288x64xf32, #tpu.memory_space<vmem>>, vector<24x64xf32>
    tpu.vector_store %arg8[%c192_205, %c0_206], %272 {strides = array<i32>} : memref<288x64xf32, #tpu.memory_space<vmem>>, vector<24x64xf32>,
    %c432_207 = arith.constant 432 : index
    %c0_208 = arith.constant 0 : index
    %274 = vector.load %arg7[%c432_207, %c0_208] : memref<624x96xbf16, #tpu.memory_space<vmem>>, vector<144x96xbf16>
    %c0_209 = arith.constant 0 : index
    %c0_210 = arith.constant 0 : index
    %c0_211 = arith.constant 0 : index
    %275 = vector.load %arg4[%c0_209, %c0_210, %c0_211] : memref<3x96x64xbf16, #tpu.memory_space<vmem>>, vector<1x96x64xbf16>
    %276 = vector.shape_cast %275 : vector<1x96x64xbf16> to vector<96x64xbf16>
    %cst_212 = arith.constant dense<0.000000e+00> : vector<144x64xf32>
    %277 = tpu.matmul %274, %276, %cst_212 {dimension_numbers = #tpu.dot_dimension_numbers<[1], [0], [0], [1], [0, 0, 1, 1], [], []>} : vector<144x96xbf16>, vector<96x64xbf16>, vector<144x64xf32> -> vector<144x64xf32>
    %c456_213 = arith.constant 456 : index
    %c0_214 = arith.constant 0 : index
    %278 = vector.load %arg7[%c456_213, %c0_214] : memref<624x96xbf16, #tpu.memory_space<vmem>>, vector<144x96xbf16>
    %c1_215 = arith.constant 1 : index
    %c0_216 = arith.constant 0 : index
    %c0_217 = arith.constant 0 : index
    %279 = vector.load %arg4[%c1_215, %c0_216, %c0_217] : memref<3x96x64xbf16, #tpu.memory_space<vmem>>, vector<1x96x64xbf16>
    %280 = vector.shape_cast %279 : vector<1x96x64xbf16> to vector<96x64xbf16>
    %cst_218 = arith.constant dense<0.000000e+00> : vector<144x64xf32>
    %281 = tpu.matmul %278, %280, %cst_218 {dimension_numbers = #tpu.dot_dimension_numbers<[1], [0], [0], [1], [0, 0, 1, 1], [], []>} : vector<144x96xbf16>, vector<96x64xbf16>, vector<144x64xf32> -> vector<144x64xf32>
    %282 = arith.addf %277, %281 : vector<144x64xf32>
    %c480_219 = arith.constant 480 : index
    %c0_220 = arith.constant 0 : index
    %283 = vector.load %arg7[%c480_219, %c0_220] : memref<624x96xbf16, #tpu.memory_space<vmem>>, vector<144x96xbf16>
    %c2_221 = arith.constant 2 : index
    %c0_222 = arith.constant 0 : index
    %c0_223 = arith.constant 0 : index
    %284 = vector.load %arg4[%c2_221, %c0_222, %c0_223] : memref<3x96x64xbf16, #tpu.memory_space<vmem>>, vector<1x96x64xbf16>
    %285 = vector.shape_cast %284 : vector<1x96x64xbf16> to vector<96x64xbf16>
    %cst_224 = arith.constant dense<0.000000e+00> : vector<144x64xf32>
    %286 = tpu.matmul %283, %285, %cst_224 {dimension_numbers = #tpu.dot_dimension_numbers<[1], [0], [0], [1], [0, 0, 1, 1], [], []>} : vector<144x96xbf16>, vector<96x64xbf16>, vector<144x64xf32> -> vector<144x64xf32>
    %287 = arith.addf %282, %286 : vector<144x64xf32>
    %288 = vector.broadcast %2 : vector<1x64xf32> to vector<144x64xf32>
    %289 = arith.addf %287, %288 : vector<144x64xf32>
    %cst_225 = arith.constant 0.000000e+00 : f32
    %290 = vector.broadcast %cst_225 : f32 to vector<144x64xf32>
    %291 = arith.maximumf %289, %290 : vector<144x64xf32>
    %292 = vector.extract_strided_slice %291 {offsets = [0, 0], sizes = [24, 64], strides = [1, 1]} : vector<144x64xf32> to vector<24x64xf32>
    %293 = vector.extract_strided_slice %291 {offsets = [24, 0], sizes = [24, 64], strides = [1, 1]} : vector<144x64xf32> to vector<24x64xf32>
    %294 = arith.maximumf %292, %293 : vector<24x64xf32>
    %c216_226 = arith.constant 216 : index
    %c0_227 = arith.constant 0 : index
    %295 = vector.load %arg8[%c216_226, %c0_227] : memref<288x64xf32, #tpu.memory_space<vmem>>, vector<24x64xf32>
    tpu.vector_store %arg8[%c216_226, %c0_227], %294 {strides = array<i32>} : memref<288x64xf32, #tpu.memory_space<vmem>>, vector<24x64xf32>,
    %296 = vector.extract_strided_slice %291 {offsets = [48, 0], sizes = [24, 64], strides = [1, 1]} : vector<144x64xf32> to vector<24x64xf32>
    %297 = vector.extract_strided_slice %291 {offsets = [72, 0], sizes = [24, 64], strides = [1, 1]} : vector<144x64xf32> to vector<24x64xf32>
    %298 = arith.maximumf %296, %297 : vector<24x64xf32>
    %c240_228 = arith.constant 240 : index
    %c0_229 = arith.constant 0 : index
    %299 = vector.load %arg8[%c240_228, %c0_229] : memref<288x64xf32, #tpu.memory_space<vmem>>, vector<24x64xf32>
    tpu.vector_store %arg8[%c240_228, %c0_229], %298 {strides = array<i32>} : memref<288x64xf32, #tpu.memory_space<vmem>>, vector<24x64xf32>,
    %300 = vector.extract_strided_slice %291 {offsets = [96, 0], sizes = [24, 64], strides = [1, 1]} : vector<144x64xf32> to vector<24x64xf32>
    %301 = vector.extract_strided_slice %291 {offsets = [120, 0], sizes = [24, 64], strides = [1, 1]} : vector<144x64xf32> to vector<24x64xf32>
    %302 = arith.maximumf %300, %301 : vector<24x64xf32>
    %c264_230 = arith.constant 264 : index
    %c0_231 = arith.constant 0 : index
    %303 = vector.load %arg8[%c264_230, %c0_231] : memref<288x64xf32, #tpu.memory_space<vmem>>, vector<24x64xf32>
    tpu.vector_store %arg8[%c264_230, %c0_231], %302 {strides = array<i32>} : memref<288x64xf32, #tpu.memory_space<vmem>>, vector<24x64xf32>,
    %c0_232 = arith.constant 0 : index
    %c0_233 = arith.constant 0 : index
    %304 = tpu.strided_load %arg8[%c0_232, %c0_233] {strides = array<i32: 2, 1>} : memref<288x64xf32, #tpu.memory_space<vmem>>, vector<144x64xf32>
    %c1_234 = arith.constant 1 : index
    %c0_235 = arith.constant 0 : index
    %305 = tpu.strided_load %arg8[%c1_234, %c0_235] {strides = array<i32: 2, 1>} : memref<288x64xf32, #tpu.memory_space<vmem>>, vector<144x64xf32>
    %306 = arith.maximumf %304, %305 : vector<144x64xf32>
    %307 = arith.truncf %306 : vector<144x64xf32> to vector<144x64xbf16>
    %c1_236 = arith.constant 1 : index
    %c0_237 = arith.constant 0 : index
    %c0_238 = arith.constant 0 : index
    %308 = vector.load %arg6[%c1_236, %c0_237, %c0_238] : memref<2x144x64xbf16, #tpu.memory_space<vmem>>, vector<1x144x64xbf16>
    %309 = vector.shape_cast %308 : vector<1x144x64xbf16> to vector<144x64xbf16>
    %310 = vector.shape_cast %307 : vector<144x64xbf16> to vector<1x144x64xbf16>
    tpu.vector_store %arg6[%c1_236, %c0_237, %c0_238], %310 {strides = array<i32>} : memref<2x144x64xbf16, #tpu.memory_space<vmem>>, vector<1x144x64xbf16>,
    return
  }
  func.func @transform_0(%arg0: i32) -> (i32, i32, i32) {
    %c0_i32 = arith.constant 0 : i32
    %c0_i32_0 = arith.constant 0 : i32
    %c0_i32_1 = arith.constant 0 : i32
    return %arg0, %c0_i32, %c0_i32_0 : i32, i32, i32
  }
  func.func @transform_1(%arg0: i32) -> (i32, i32) {
    %c0_i32 = arith.constant 0 : i32
    %c0_i32_0 = arith.constant 0 : i32
    %c0_i32_1 = arith.constant 0 : i32
    return %c0_i32, %c0_i32_0 : i32, i32
  }
  func.func @transform_2(%arg0: i32) -> (i32, i32) {
    %c0_i32 = arith.constant 0 : i32
    %c0_i32_0 = arith.constant 0 : i32
    %c0_i32_1 = arith.constant 0 : i32
    return %c0_i32, %c0_i32_0 : i32, i32
  }
  func.func @transform_3(%arg0: i32) -> (i32, i32, i32) {
    %c0_i32 = arith.constant 0 : i32
    %c0_i32_0 = arith.constant 0 : i32
    %c0_i32_1 = arith.constant 0 : i32
    %c0_i32_2 = arith.constant 0 : i32
    return %c0_i32, %c0_i32_0, %c0_i32_1 : i32, i32, i32
  }
  func.func @transform_4(%arg0: i32) -> (i32, i32) {
    %c0_i32 = arith.constant 0 : i32
    %c0_i32_0 = arith.constant 0 : i32
    %c0_i32_1 = arith.constant 0 : i32
    return %c0_i32, %c0_i32_0 : i32, i32
  }
  func.func @transform_5(%arg0: i32) -> (i32, i32, i32) {
    %c0_i32 = arith.constant 0 : i32
    %c0_i32_0 = arith.constant 0 : i32
    %c0_i32_1 = arith.constant 0 : i32
    return %arg0, %c0_i32, %c0_i32_0 : i32, i32, i32
  }
}

module attributes {stable_mosaic.version = 11 : i64} {
  func.func @_fc_kernel(%arg0: i32, %arg1: i32, %arg2: memref<2x4608xbf16, #tpu.memory_space<vmem>>, %arg3: memref<4608x128xbf16, #tpu.memory_space<vmem>>, %arg4: memref<1x128xf32, #tpu.memory_space<vmem>>, %arg5: memref<128x10xbf16, #tpu.memory_space<vmem>>, %arg6: memref<1x10xf32, #tpu.memory_space<vmem>>, %arg7: memref<2x10xf32, #tpu.memory_space<vmem>>, %arg8: memref<2x128xf32, #tpu.memory_space<vmem>>) attributes {dimension_semantics = [#tpu.dimension_semantics<parallel>, #tpu.dimension_semantics<arbitrary>], iteration_bounds = array<i64: 1, 2>, scalar_prefetch = 0 : i64, scratch_operands = 1 : i64, tpu.core_type = #tpu.core_type<tc>, window_params = [{transform_indices = @transform_0, window_bounds = array<i64: 2, 4608>}, {transform_indices = @transform_1, window_bounds = array<i64: 4608, 128>}, {pipeline_mode = #tpu.pipeline_mode<synchronous>, transform_indices = @transform_2, window_bounds = array<i64: 1, 128>}, {pipeline_mode = #tpu.pipeline_mode<synchronous>, transform_indices = @transform_3, window_bounds = array<i64: 128, 10>}, {pipeline_mode = #tpu.pipeline_mode<synchronous>, transform_indices = @transform_4, window_bounds = array<i64: 1, 10>}, {transform_indices = @transform_5, window_bounds = array<i64: 2, 10>}]} {
    %c0_i32 = arith.constant 0 : i32
    %0 = arith.cmpi eq, %arg1, %c0_i32 : i32
    %1 = arith.extui %0 : i1 to i32
    %c0_i32_0 = arith.constant 0 : i32
    %2 = arith.cmpi ne, %1, %c0_i32_0 : i32
    scf.if %2 {
      %cst_9 = arith.constant 0.000000e+00 : f32
      %12 = vector.broadcast %cst_9 : f32 to vector<2x128xf32>
      %c0_10 = arith.constant 0 : index
      %c0_11 = arith.constant 0 : index
      %13 = vector.load %arg8[%c0_10, %c0_11] : memref<2x128xf32, #tpu.memory_space<vmem>>, vector<2x128xf32>
      tpu.vector_store %arg8[%c0_10, %c0_11], %12 {strides = array<i32>} : memref<2x128xf32, #tpu.memory_space<vmem>>, vector<2x128xf32>,
    } else {
    }
    %c0 = arith.constant 0 : index
    %c0_1 = arith.constant 0 : index
    %3 = vector.load %arg8[%c0, %c0_1] : memref<2x128xf32, #tpu.memory_space<vmem>>, vector<2x128xf32>
    %c0_2 = arith.constant 0 : index
    %c0_3 = arith.constant 0 : index
    %4 = vector.load %arg2[%c0_2, %c0_3] : memref<2x4608xbf16, #tpu.memory_space<vmem>>, vector<2x4608xbf16>
    %c0_4 = arith.constant 0 : index
    %c0_5 = arith.constant 0 : index
    %5 = vector.load %arg3[%c0_4, %c0_5] : memref<4608x128xbf16, #tpu.memory_space<vmem>>, vector<4608x128xbf16>
    %cst = arith.constant dense<0.000000e+00> : vector<2x128xf32>
    %6 = tpu.matmul %4, %5, %cst {dimension_numbers = #tpu.dot_dimension_numbers<[1], [0], [0], [1], [0, 0, 1, 1], [], []>} : vector<2x4608xbf16>, vector<4608x128xbf16>, vector<2x128xf32> -> vector<2x128xf32>
    %7 = arith.addf %3, %6 : vector<2x128xf32>
    %c0_6 = arith.constant 0 : index
    %c0_7 = arith.constant 0 : index
    %8 = vector.load %arg8[%c0_6, %c0_7] : memref<2x128xf32, #tpu.memory_space<vmem>>, vector<2x128xf32>
    tpu.vector_store %arg8[%c0_6, %c0_7], %7 {strides = array<i32>} : memref<2x128xf32, #tpu.memory_space<vmem>>, vector<2x128xf32>,
    %c1_i32 = arith.constant 1 : i32
    %9 = arith.cmpi eq, %arg1, %c1_i32 : i32
    %10 = arith.extui %9 : i1 to i32
    %c0_i32_8 = arith.constant 0 : i32
    %11 = arith.cmpi ne, %10, %c0_i32_8 : i32
    scf.if %11 {
      %c0_9 = arith.constant 0 : index
      %c0_10 = arith.constant 0 : index
      %12 = vector.load %arg8[%c0_9, %c0_10] : memref<2x128xf32, #tpu.memory_space<vmem>>, vector<2x128xf32>
      %c0_11 = arith.constant 0 : index
      %c0_12 = arith.constant 0 : index
      %13 = vector.load %arg4[%c0_11, %c0_12] : memref<1x128xf32, #tpu.memory_space<vmem>>, vector<1x128xf32>
      %14 = vector.broadcast %13 : vector<1x128xf32> to vector<2x128xf32>
      %15 = arith.addf %12, %14 : vector<2x128xf32>
      %cst_13 = arith.constant 0.000000e+00 : f32
      %16 = vector.broadcast %cst_13 : f32 to vector<2x128xf32>
      %17 = arith.maximumf %15, %16 : vector<2x128xf32>
      %18 = arith.truncf %17 : vector<2x128xf32> to vector<2x128xbf16>
      %c0_14 = arith.constant 0 : index
      %c0_15 = arith.constant 0 : index
      %19 = vector.load %arg5[%c0_14, %c0_15] : memref<128x10xbf16, #tpu.memory_space<vmem>>, vector<128x10xbf16>
      %cst_16 = arith.constant dense<0.000000e+00> : vector<2x10xf32>
      %20 = tpu.matmul %18, %19, %cst_16 {dimension_numbers = #tpu.dot_dimension_numbers<[1], [0], [0], [1], [0, 0, 1, 1], [], []>} : vector<2x128xbf16>, vector<128x10xbf16>, vector<2x10xf32> -> vector<2x10xf32>
      %c0_17 = arith.constant 0 : index
      %c0_18 = arith.constant 0 : index
      %21 = vector.load %arg6[%c0_17, %c0_18] : memref<1x10xf32, #tpu.memory_space<vmem>>, vector<1x10xf32>
      %22 = vector.broadcast %21 : vector<1x10xf32> to vector<2x10xf32>
      %23 = arith.addf %20, %22 : vector<2x10xf32>
      %c0_19 = arith.constant 0 : index
      %c0_20 = arith.constant 0 : index
      %24 = vector.load %arg7[%c0_19, %c0_20] : memref<2x10xf32, #tpu.memory_space<vmem>>, vector<2x10xf32>
      tpu.vector_store %arg7[%c0_19, %c0_20], %23 {strides = array<i32>} : memref<2x10xf32, #tpu.memory_space<vmem>>, vector<2x10xf32>,
    } else {
    }
    return
  }
  func.func @transform_0(%arg0: i32, %arg1: i32) -> (i32, i32) {
    %c0_i32 = arith.constant 0 : i32
    return %arg0, %arg1 : i32, i32
  }
  func.func @transform_1(%arg0: i32, %arg1: i32) -> (i32, i32) {
    %c0_i32 = arith.constant 0 : i32
    %c0_i32_0 = arith.constant 0 : i32
    return %arg1, %c0_i32 : i32, i32
  }
  func.func @transform_2(%arg0: i32, %arg1: i32) -> (i32, i32) {
    %c0_i32 = arith.constant 0 : i32
    %c0_i32_0 = arith.constant 0 : i32
    %c0_i32_1 = arith.constant 0 : i32
    return %c0_i32, %c0_i32_0 : i32, i32
  }
  func.func @transform_3(%arg0: i32, %arg1: i32) -> (i32, i32) {
    %c0_i32 = arith.constant 0 : i32
    %c0_i32_0 = arith.constant 0 : i32
    %c0_i32_1 = arith.constant 0 : i32
    return %c0_i32, %c0_i32_0 : i32, i32
  }
  func.func @transform_4(%arg0: i32, %arg1: i32) -> (i32, i32) {
    %c0_i32 = arith.constant 0 : i32
    %c0_i32_0 = arith.constant 0 : i32
    %c0_i32_1 = arith.constant 0 : i32
    return %c0_i32, %c0_i32_0 : i32, i32
  }
  func.func @transform_5(%arg0: i32, %arg1: i32) -> (i32, i32) {
    %c0_i32 = arith.constant 0 : i32
    %c0_i32_0 = arith.constant 0 : i32
    return %arg0, %c0_i32 : i32, i32
  }
}

</mosaic_0001>

<llo_original>
// kernel: net_forward.3
$region0: #{net_forward.3}
  #allocation0 [shape = 'u32[]', space=smem, size = 0x4, offset = 0x4, fixed_abs, tag = 'smem constant byte address 0x4 - core index']
  #allocation1 [shape = 'u32[144,128]{1,0:T(1,128)}', space=vmem, size = 0x12000, scoped, tag = 'internal scratch']
  #allocation2 [shape = 'f32[2,128]{1,0:T(2,128)}', space=vmem, size = 0x400, scoped, tag = 'scratch operand']
  %s0 = inlined_call_operand.vmem [shape: bf16[2,9216], index: 0, kind: input, shape index: {}]
  %s1 = inlined_call_operand.vmem [shape: bf16[9216,128], index: 1, kind: input, shape index: {}]
  %s2 = inlined_call_operand.vmem [shape: f32[1,128], index: 2, kind: input, shape index: {}]
  %s3 = inlined_call_operand.vmem [shape: bf16[128,10], index: 3, kind: input, shape index: {}]
  %s4 = inlined_call_operand.vmem [shape: f32[1,10], index: 4, kind: input, shape index: {}]
  %s5 = inlined_call_operand.hbm [shape: f32[2,10], index: 5, kind: output, shape index: {}]
  %s6 = sld [smem:[#allocation0]]
  $region61: #{net_forward.3} parent=0
    _
  %s8 = ssub.s32 1, %s6
  %s9 = scalar_select 0, %s8, %s6
  $region1: #{net_forward.3} parent=0
    #allocation3 [shape = 'u8[1024]{0}', space=vmem, size = 0x400, scoped, tag = 'output window, operand 0, single buffered']
    #allocation4 [shape = 's32[2]{0}', space=sflag, size = 0x8, scoped, tag = 'scoped memory for net_forward.3']
    %10 = vsyncpa [#allocation4], 0
    loop: start=0, step=1, limit=4
    $region2: #{net_forward.3} parent=1 // loop_pre_header
      _
    $region3: #{net_forward.3} parent=1 // loop_header
      %s12 = sphi 0, %s16
      %p13 = scmp.ge.s32.totalorder %s12, 4
      %s19 = sphi 0, %s31
      %s20 = sphi 0, %s27
      %s21 = sphi 0, %s19
      %s22 = sphi 0, %s20
      %s23 = sphi 0, %s21
      %s24 = sphi 0, %s22
      %s36 = sphi 0, %s38
      %s39 = sphi 0, %s36
      %s40 = sphi 0, %s39
      %s56 = sphi 0, %s40
      %s62 = sphi 0, %s64
      %s65 = sphi 0, %s62
      %s66 = sphi 0, %s65
      %s82 = sphi 0, %s66
      %s86 = sphi 0, %s86
      %s88 = sphi 0, %s86
      %s89 = sphi 0, %s88
      %s103 = sphi 0, %s89
      %s107 = sphi 0, %s107
      %s109 = sphi 0, %s107
      %s110 = sphi 0, %s109
      %s124 = sphi 0, %s110
      %s128 = sphi 0, %s128
      %s130 = sphi 0, %s128
      %s131 = sphi 0, %s130
      %s145 = sphi 0, %s131
      %s151 = sphi 0, %s153
      %s154 = sphi 0, %s151
      %s155 = sphi 0, %s154
      %s171 = sphi 0, %s155
    $region4: #{net_forward.3} parent=1 // loop_header_branch
      %15 = sbr.rel (%p13) target = $region8
    $region5: #{net_forward.3} parent=1 // loop_body
      %s17 = ssub.s32 %s12, 1
      %s18 = ssub.s32 %s12, 2
      %s25 = sadd.s32 1, %s20
      %p26 = scmp.ge.s32.totalorder %s25, 2
      %s27 = scalar_select %p26, 0, %s25
      %s28 = sadd.s32 1, %s19
      %s29 = scalar_select %p26, %s28, %s19
      %p30 = scmp.ge.s32.totalorder %s29, 1
      %s31 = scalar_select %p30, 0, %s29
      %s32 = ssub.s32 %s19, %s31
      %s33 = ssub.s32 %s20, %s27
      %s34 = sor.u32 %s32, %s33
      %p35 = scmp.eq.s32.totalorder %s34, 0
      %s37 = sadd.s32 %s36, 1
      %s38 = scalar_select %p35, %s36, %s37
      %p41 = pneg %p35
      %p42 = scmp.eq.s32.totalorder %s12, 1
      %p43 = por %p41, %p42
      %p44 = scmp.ne.s32.totalorder %s36, %s39
      %p45 = scmp.eq.s32.totalorder %s12, 0
      %p46 = por %p44, %p45
      %p47 = scmp.ne.s32.totalorder %s36, %s39
      %p48 = scmp.eq.s32.totalorder %s17, 1
      %p49 = por %p47, %p48
      %p50 = scmp.ne.s32.totalorder %s39, %s40
      %p51 = scmp.eq.s32.totalorder %s17, 0
      %p52 = por %p50, %p51
      %p53 = scmp.ne.s32.totalorder %s39, %s40
      %p54 = scmp.eq.s32.totalorder %s18, 1
      %p55 = por %p53, %p54
      %p57 = scmp.ne.s32.totalorder %s40, %s56
      %p58 = scmp.eq.s32.totalorder %s18, 0
      %p59 = por %p57, %p58
      %s60 = ssub.s32 %s20, %s27
      %p61 = scmp.eq.s32.totalorder %s60, 0
      %s63 = sadd.s32 %s62, 1
      %s64 = scalar_select %p61, %s62, %s63
      %p67 = pneg %p61
      %p68 = scmp.eq.s32.totalorder %s12, 1
      %p69 = por %p67, %p68
      %p70 = scmp.ne.s32.totalorder %s62, %s65
      %p71 = scmp.eq.s32.totalorder %s12, 0
      %p72 = por %p70, %p71
      %p73 = scmp.ne.s32.totalorder %s62, %s65
      %p74 = scmp.eq.s32.totalorder %s17, 1
      %p75 = por %p73, %p74
      %p76 = scmp.ne.s32.totalorder %s65, %s66
      %p77 = scmp.eq.s32.totalorder %s17, 0
      %p78 = por %p76, %p77
      %p79 = scmp.ne.s32.totalorder %s65, %s66
      %p80 = scmp.eq.s32.totalorder %s18, 1
      %p81 = por %p79, %p80
      %p83 = scmp.ne.s32.totalorder %s66, %s82
      %p84 = scmp.eq.s32.totalorder %s18, 0
      %p85 = por %p83, %p84
      %s87 = sadd.s32 %s86, 1
      %p90 = scmp.eq.s32.totalorder %s12, 1
      %p91 = scmp.ne.s32.totalorder %s86, %s88
      %p92 = scmp.eq.s32.totalorder %s12, 0
      %p93 = por %p91, %p92
      %p94 = scmp.ne.s32.totalorder %s86, %s88
      %p95 = scmp.eq.s32.totalorder %s17, 1
      %p96 = por %p94, %p95
      %p97 = scmp.ne.s32.totalorder %s88, %s89
      %p98 = scmp.eq.s32.totalorder %s17, 0
      %p99 = por %p97, %p98
      %p100 = scmp.ne.s32.totalorder %s88, %s89
      %p101 = scmp.eq.s32.totalorder %s18, 1
      %p102 = por %p100, %p101
      %p104 = scmp.ne.s32.totalorder %s89, %s103
      %p105 = scmp.eq.s32.totalorder %s18, 0
      %p106 = por %p104, %p105
      %s108 = sadd.s32 %s107, 1
      %p111 = scmp.eq.s32.totalorder %s12, 1
      %p112 = scmp.ne.s32.totalorder %s107, %s109
      %p113 = scmp.eq.s32.totalorder %s12, 0
      %p114 = por %p112, %p113
      %p115 = scmp.ne.s32.totalorder %s107, %s109
      %p116 = scmp.eq.s32.totalorder %s17, 1
      %p117 = por %p115, %p116
      %p118 = scmp.ne.s32.totalorder %s109, %s110
      %p119 = scmp.eq.s32.totalorder %s17, 0
      %p120 = por %p118, %p119
      %p121 = scmp.ne.s32.totalorder %s109, %s110
      %p122 = scmp.eq.s32.totalorder %s18, 1
      %p123 = por %p121, %p122
      %p125 = scmp.ne.s32.totalorder %s110, %s124
      %p126 = scmp.eq.s32.totalorder %s18, 0
      %p127 = por %p125, %p126
      %s129 = sadd.s32 %s128, 1
      %p132 = scmp.eq.s32.totalorder %s12, 1
      %p133 = scmp.ne.s32.totalorder %s128, %s130
      %p134 = scmp.eq.s32.totalorder %s12, 0
      %p135 = por %p133, %p134
      %p136 = scmp.ne.s32.totalorder %s128, %s130
      %p137 = scmp.eq.s32.totalorder %s17, 1
      %p138 = por %p136, %p137
      %p139 = scmp.ne.s32.totalorder %s130, %s131
      %p140 = scmp.eq.s32.totalorder %s17, 0
      %p141 = por %p139, %p140
      %p142 = scmp.ne.s32.totalorder %s130, %s131
      %p143 = scmp.eq.s32.totalorder %s18, 1
      %p144 = por %p142, %p143
      %p146 = scmp.ne.s32.totalorder %s131, %s145
      %p147 = scmp.eq.s32.totalorder %s18, 0
      %p148 = por %p146, %p147
      %s149 = ssub.s32 %s19, %s31
      %p150 = scmp.eq.s32.totalorder %s149, 0
      %s152 = sadd.s32 %s151, 1
      %s153 = scalar_select %p150, %s151, %s152
      %p156 = pneg %p150
      %p157 = scmp.eq.s32.totalorder %s12, 1
      %p158 = por %p156, %p157
      %p159 = scmp.ne.s32.totalorder %s151, %s154
      %p160 = scmp.eq.s32.totalorder %s12, 0
      %p161 = por %p159, %p160
      %p162 = scmp.ne.s32.totalorder %s151, %s154
      %p163 = scmp.eq.s32.totalorder %s17, 1
      %p164 = por %p162, %p163
      %p165 = scmp.ne.s32.totalorder %s154, %s155
      %p166 = scmp.eq.s32.totalorder %s17, 0
      %p167 = por %p165, %p166
      %p168 = scmp.ne.s32.totalorder %s154, %s155
      %p169 = scmp.eq.s32.totalorder %s18, 1
      %p170 = por %p168, %p169
      %p172 = scmp.ne.s32.totalorder %s155, %s171
      %p173 = scmp.eq.s32.totalorder %s18, 0
      %p174 = por %p172, %p173
      %p175 = scmp.le.s32.totalorder 1, %s12
      %p176 = scmp.lt.s32.totalorder %s12, 3
      %p177 = pnand %p175, %p176
      %p178 = pneg %p177
      // Predicated region
      $region9: #{net_forward.3} parent=5 // pred_check
        _
      $region10: #{net_forward.3} parent=5 // pred_check_branch
        %180 = sbr.rel (%p177) target = $region12
      $region11: #{net_forward.3} parent=5 // pred_region
        %s181 = ssub.s32 %s12, 1
        // Predicated region
        $region13: #{net_forward.3} parent=11 // pred_check
          %p182 = pneg %p99
        $region14: #{net_forward.3} parent=11 // pred_check_branch
          %184 = sbr.rel (%p182) target = $region16
        $region15: #{net_forward.3} parent=11 // pred_region
          _
        $region16: #{net_forward.3} parent=11 // pred_fallthru
          _
        // Predicated region
        $region17: #{net_forward.3} parent=11 // pred_check
          %p185 = pneg %p120
        $region18: #{net_forward.3} parent=11 // pred_check_branch
          %187 = sbr.rel (%p185) target = $region20
        $region19: #{net_forward.3} parent=11 // pred_region
          _
        $region20: #{net_forward.3} parent=11 // pred_fallthru
          _
        // Predicated region
        $region21: #{net_forward.3} parent=11 // pred_check
          %p188 = pneg %p141
        $region22: #{net_forward.3} parent=11 // pred_check_branch
          %190 = sbr.rel (%p188) target = $region24
        $region23: #{net_forward.3} parent=11 // pred_region
          _
        $region24: #{net_forward.3} parent=11 // pred_fallthru
          _
      $region12: #{net_forward.3} parent=5 // pred_fallthru
        _
      %p191 = scmp.lt.s32.totalorder %s12, 2
      // Predicated region
      $region25: #{net_forward.3} parent=5 // pred_check
        %p192 = pneg %p191
      $region26: #{net_forward.3} parent=5 // pred_check_branch
        %194 = sbr.rel (%p192) target = $region28
      $region27: #{net_forward.3} parent=5 // pred_region
        // Predicated region
        $region29: #{net_forward.3} parent=27 // pred_check
          %p195 = pneg %p46
        $region30: #{net_forward.3} parent=27 // pred_check_branch
          %197 = sbr.rel (%p195) target = $region32
        $region31: #{net_forward.3} parent=27 // pred_region
          %s198 = smul.u32 36, %s20
          %p199 = scmp.lt.s32.totalorder %s19, 0
          %s200 = scalar_select %p199, %s19, 0
          %p201 = scmp.lt.s32.totalorder %s198, 71
          %s202 = scalar_select %p201, %s198, 71
          %s203 = smul.addr %s200, 72
          %s204 = sadd.s32 %s202, %s203
          %s205 = scalar_lea.vmem %s0, %s204
          %s206 = smul.u32 36, %s20
        $region32: #{net_forward.3} parent=27 // pred_fallthru
          _
        // Predicated region
        $region33: #{net_forward.3} parent=27 // pred_check
          %p207 = pneg %p72
        $region34: #{net_forward.3} parent=27 // pred_check_branch
          %209 = sbr.rel (%p207) target = $region36
        $region35: #{net_forward.3} parent=27 // pred_region
          %s210 = smul.u32 576, %s20
          %p211 = scmp.lt.s32.totalorder %s210, 1151
          %s212 = scalar_select %p211, %s210, 1151
          %s213 = smul.addr %s212, 4
          %s214 = scalar_lea.vmem %s1, %s213
          %s215 = smul.u32 576, %s20
        $region36: #{net_forward.3} parent=27 // pred_fallthru
          _
      $region28: #{net_forward.3} parent=5 // pred_fallthru
        _
      %p216 = scmp.le.s32.totalorder 1, %s12
      %p217 = scmp.lt.s32.totalorder %s12, 3
      %p218 = pnand %p216, %p217
      %p219 = pneg %p218
      // Predicated region
      $region37: #{net_forward.3} parent=5 // pred_check
        _
      $region38: #{net_forward.3} parent=5 // pred_check_branch
        %221 = sbr.rel (%p218) target = $region40
      $region39: #{net_forward.3} parent=5 // pred_region
        %s222 = ssub.s32 %s12, 1
        %s223 = smul.u32 36, %s22
        %p224 = scmp.lt.s32.totalorder %s21, 0
        %s225 = scalar_select %p224, %s21, 0
        %p226 = scmp.lt.s32.totalorder %s223, 71
        %s227 = scalar_select %p226, %s223, 71
        %s228 = smul.addr %s225, 72
        %s229 = sadd.s32 %s227, %s228
        %s230 = scalar_lea.vmem %s0, %s229
        %p231 = pneg %p52
        %p232 = pneg %p49
        %s233 = smul.u32 576, %s22
        %p234 = scmp.lt.s32.totalorder %s233, 1151
        %s235 = scalar_select %p234, %s233, 1151
        %s236 = smul.addr %s235, 4
        %s237 = scalar_lea.vmem %s1, %s236
        %p238 = pneg %p78
        %p239 = pneg %p75
        %p240 = pneg %p99
        %p241 = pneg %p96
        %p242 = pneg %p120
        %p243 = pneg %p117
        %p244 = pneg %p141
        %p245 = pneg %p138
        %p246 = pneg %p167
        %p247 = pneg %p164
        %s248 = smul.u32 36, %s22
        %p249 = scmp.lt.s32.totalorder %s21, 0
        %s250 = scalar_select %p249, %s21, 0
        %p251 = scmp.lt.s32.totalorder %s248, 71
        %s252 = scalar_select %p251, %s248, 71
        %s253 = smul.addr %s250, 72
        %s254 = sadd.s32 %s252, %s253
        %s255 = scalar_lea.vmem %s0, %s254
        %s256 = smul.u32 36, %s22
        %s257 = smul.u32 576, %s22
        %p258 = scmp.lt.s32.totalorder %s257, 1151
        %s259 = scalar_select %p258, %s257, 1151
        %s260 = smul.addr %s259, 4
        %s261 = scalar_lea.vmem %s1, %s260
        %s262 = smul.u32 576, %s22
        %p264 = scmp.eq.s32.totalorder %s22, 0
        // Predicated region
        $region41: #{net_forward.3} parent=39 // pred_check
          %p265 = pneg %p264
        $region42: #{net_forward.3} parent=39 // pred_check_branch
          %267 = sbr.rel (%p265) target = $region44
        $region43: #{net_forward.3} parent=39 // pred_region
          %268 = vst [vmem:[#allocation2] sm:$0x3] 0.0
        $region44: #{net_forward.3} parent=39 // pred_fallthru
          _
        %v269 = vld [vmem:[#allocation2] sm:$0x3]
        %v270 = vld [vmem:[%s255] sm:$0xff]
        %v271 = vld [vmem:[%s255 + $0x8] sm:$0xff]
        %v272 = vld [vmem:[%s255 + $0x10] sm:$0xff]
        %v273 = vld [vmem:[%s255 + $0x18] sm:$0xff]
        %v274 = vld [vmem:[%s255 + $0x20] sm:$0xf]
        %v275 = vld [vmem:[%s261] sm:$0xf]
        %v276 = vld [vmem:[%s261 + $0x4] sm:$0xf]
        %v277 = vld [vmem:[%s261 + $0x8] sm:$0xf]
        %v278 = vld [vmem:[%s261 + $0xc] sm:$0xf]
        %v279 = vld [vmem:[%s261 + $0x10] sm:$0xf]
        %v280 = vld [vmem:[%s261 + $0x14] sm:$0xf]
        %v281 = vld [vmem:[%s261 + $0x18] sm:$0xf]
        %v282 = vld [vmem:[%s261 + $0x1c] sm:$0xf]
        %v283 = vld [vmem:[%s261 + $0x20] sm:$0xf]
        %v284 = vld [vmem:[%s261 + $0x24] sm:$0xf]
        %v285 = vld [vmem:[%s261 + $0x28] sm:$0xf]
        %v286 = vld [vmem:[%s261 + $0x2c] sm:$0xf]
        %v287 = vld [vmem:[%s261 + $0x30] sm:$0xf]
        %v288 = vld [vmem:[%s261 + $0x34] sm:$0xf]
        %v289 = vld [vmem:[%s261 + $0x38] sm:$0xf]
        %v290 = vld [vmem:[%s261 + $0x3c] sm:$0xf]
        %v291 = vld [vmem:[%s261 + $0x40] sm:$0xf]
        %v292 = vld [vmem:[%s261 + $0x44] sm:$0xf]
        %v293 = vld [vmem:[%s261 + $0x48] sm:$0xf]
        %v294 = vld [vmem:[%s261 + $0x4c] sm:$0xf]
        %v295 = vld [vmem:[%s261 + $0x50] sm:$0xf]
        %v296 = vld [vmem:[%s261 + $0x54] sm:$0xf]
        %v297 = vld [vmem:[%s261 + $0x58] sm:$0xf]
        %v298 = vld [vmem:[%s261 + $0x5c] sm:$0xf]
        %v299 = vld [vmem:[%s261 + $0x60] sm:$0xf]
        %v300 = vld [vmem:[%s261 + $0x64] sm:$0xf]
        %v301 = vld [vmem:[%s261 + $0x68] sm:$0xf]
        %v302 = vld [vmem:[%s261 + $0x6c] sm:$0xf]
        %v303 = vld [vmem:[%s261 + $0x70] sm:$0xf]
        %v304 = vld [vmem:[%s261 + $0x74] sm:$0xf]
        %v305 = vld [vmem:[%s261 + $0x78] sm:$0xf]
        %v306 = vld [vmem:[%s261 + $0x7c] sm:$0xf]
        %v307 = vld [vmem:[%s261 + $0x80] sm:$0xf]
        %v308 = vld [vmem:[%s261 + $0x84] sm:$0xf]
        %v309 = vld [vmem:[%s261 + $0x88] sm:$0xf]
        %v310 = vld [vmem:[%s261 + $0x8c] sm:$0xf]
        %v311 = vld [vmem:[%s261 + $0x90] sm:$0xf]
        %v312 = vld [vmem:[%s261 + $0x94] sm:$0xf]
        %v313 = vld [vmem:[%s261 + $0x98] sm:$0xf]
        %v314 = vld [vmem:[%s261 + $0x9c] sm:$0xf]
        %v315 = vld [vmem:[%s261 + $0xa0] sm:$0xf]
        %v316 = vld [vmem:[%s261 + $0xa4] sm:$0xf]
        %v317 = vld [vmem:[%s261 + $0xa8] sm:$0xf]
        %v318 = vld [vmem:[%s261 + $0xac] sm:$0xf]
        %v319 = vld [vmem:[%s261 + $0xb0] sm:$0xf]
        %v320 = vld [vmem:[%s261 + $0xb4] sm:$0xf]
        %v321 = vld [vmem:[%s261 + $0xb8] sm:$0xf]
        %v322 = vld [vmem:[%s261 + $0xbc] sm:$0xf]
        %v323 = vld [vmem:[%s261 + $0xc0] sm:$0xf]
        %v324 = vld [vmem:[%s261 + $0xc4] sm:$0xf]
        %v325 = vld [vmem:[%s261 + $0xc8] sm:$0xf]
        %v326 = vld [vmem:[%s261 + $0xcc] sm:$0xf]
        %v327 = vld [vmem:[%s261 + $0xd0] sm:$0xf]
        %v328 = vld [vmem:[%s261 + $0xd4] sm:$0xf]
        %v329 = vld [vmem:[%s261 + $0xd8] sm:$0xf]
        %v330 = vld [vmem:[%s261 + $0xdc] sm:$0xf]
        %v331 = vld [vmem:[%s261 + $0xe0] sm:$0xf]
        %v332 = vld [vmem:[%s261 + $0xe4] sm:$0xf]
        %v333 = vld [vmem:[%s261 + $0xe8] sm:$0xf]
        %v334 = vld [vmem:[%s261 + $0xec] sm:$0xf]
        %v335 = vld [vmem:[%s261 + $0xf0] sm:$0xf]
        %v336 = vld [vmem:[%s261 + $0xf4] sm:$0xf]
        %v337 = vld [vmem:[%s261 + $0xf8] sm:$0xf]
        %v338 = vld [vmem:[%s261 + $0xfc] sm:$0xf]
        %v339 = vld [vmem:[%s261 + $0x100] sm:$0xf]
        %v340 = vld [vmem:[%s261 + $0x104] sm:$0xf]
        %v341 = vld [vmem:[%s261 + $0x108] sm:$0xf]
        %v342 = vld [vmem:[%s261 + $0x10c] sm:$0xf]
        %v343 = vld [vmem:[%s261 + $0x110] sm:$0xf]
        %v344 = vld [vmem:[%s261 + $0x114] sm:$0xf]
        %v345 = vld [vmem:[%s261 + $0x118] sm:$0xf]
        %v346 = vld [vmem:[%s261 + $0x11c] sm:$0xf]
        %v347 = vld [vmem:[%s261 + $0x120] sm:$0xf]
        %v348 = vld [vmem:[%s261 + $0x124] sm:$0xf]
        %v349 = vld [vmem:[%s261 + $0x128] sm:$0xf]
        %v350 = vld [vmem:[%s261 + $0x12c] sm:$0xf]
        %v351 = vld [vmem:[%s261 + $0x130] sm:$0xf]
        %v352 = vld [vmem:[%s261 + $0x134] sm:$0xf]
        %v353 = vld [vmem:[%s261 + $0x138] sm:$0xf]
        %v354 = vld [vmem:[%s261 + $0x13c] sm:$0xf]
        %v355 = vld [vmem:[%s261 + $0x140] sm:$0xf]
        %v356 = vld [vmem:[%s261 + $0x144] sm:$0xf]
        %v357 = vld [vmem:[%s261 + $0x148] sm:$0xf]
        %v358 = vld [vmem:[%s261 + $0x14c] sm:$0xf]
        %v359 = vld [vmem:[%s261 + $0x150] sm:$0xf]
        %v360 = vld [vmem:[%s261 + $0x154] sm:$0xf]
        %v361 = vld [vmem:[%s261 + $0x158] sm:$0xf]
        %v362 = vld [vmem:[%s261 + $0x15c] sm:$0xf]
        %v363 = vld [vmem:[%s261 + $0x160] sm:$0xf]
        %v364 = vld [vmem:[%s261 + $0x164] sm:$0xf]
        %v365 = vld [vmem:[%s261 + $0x168] sm:$0xf]
        %v366 = vld [vmem:[%s261 + $0x16c] sm:$0xf]
        %v367 = vld [vmem:[%s261 + $0x170] sm:$0xf]
        %v368 = vld [vmem:[%s261 + $0x174] sm:$0xf]
        %v369 = vld [vmem:[%s261 + $0x178] sm:$0xf]
        %v370 = vld [vmem:[%s261 + $0x17c] sm:$0xf]
        %v371 = vld [vmem:[%s261 + $0x180] sm:$0xf]
        %v372 = vld [vmem:[%s261 + $0x184] sm:$0xf]
        %v373 = vld [vmem:[%s261 + $0x188] sm:$0xf]
        %v374 = vld [vmem:[%s261 + $0x18c] sm:$0xf]
        %v375 = vld [vmem:[%s261 + $0x190] sm:$0xf]
        %v376 = vld [vmem:[%s261 + $0x194] sm:$0xf]
        %v377 = vld [vmem:[%s261 + $0x198] sm:$0xf]
        %v378 = vld [vmem:[%s261 + $0x19c] sm:$0xf]
        %v379 = vld [vmem:[%s261 + $0x1a0] sm:$0xf]
        %v380 = vld [vmem:[%s261 + $0x1a4] sm:$0xf]
        %v381 = vld [vmem:[%s261 + $0x1a8] sm:$0xf]
        %v382 = vld [vmem:[%s261 + $0x1ac] sm:$0xf]
        %v383 = vld [vmem:[%s261 + $0x1b0] sm:$0xf]
        %v384 = vld [vmem:[%s261 + $0x1b4] sm:$0xf]
        %v385 = vld [vmem:[%s261 + $0x1b8] sm:$0xf]
        %v386 = vld [vmem:[%s261 + $0x1bc] sm:$0xf]
        %v387 = vld [vmem:[%s261 + $0x1c0] sm:$0xf]
        %v388 = vld [vmem:[%s261 + $0x1c4] sm:$0xf]
        %v389 = vld [vmem:[%s261 + $0x1c8] sm:$0xf]
        %v390 = vld [vmem:[%s261 + $0x1cc] sm:$0xf]
        %v391 = vld [vmem:[%s261 + $0x1d0] sm:$0xf]
        %v392 = vld [vmem:[%s261 + $0x1d4] sm:$0xf]
        %v393 = vld [vmem:[%s261 + $0x1d8] sm:$0xf]
        %v394 = vld [vmem:[%s261 + $0x1dc] sm:$0xf]
        %v395 = vld [vmem:[%s261 + $0x1e0] sm:$0xf]
        %v396 = vld [vmem:[%s261 + $0x1e4] sm:$0xf]
        %v397 = vld [vmem:[%s261 + $0x1e8] sm:$0xf]
        %v398 = vld [vmem:[%s261 + $0x1ec] sm:$0xf]
        %v399 = vld [vmem:[%s261 + $0x1f0] sm:$0xf]
        %v400 = vld [vmem:[%s261 + $0x1f4] sm:$0xf]
        %v401 = vld [vmem:[%s261 + $0x1f8] sm:$0xf]
        %v402 = vld [vmem:[%s261 + $0x1fc] sm:$0xf]
        %v403 = vld [vmem:[%s261 + $0x200] sm:$0xf]
        %v404 = vld [vmem:[%s261 + $0x204] sm:$0xf]
        %v405 = vld [vmem:[%s261 + $0x208] sm:$0xf]
        %v406 = vld [vmem:[%s261 + $0x20c] sm:$0xf]
        %v407 = vld [vmem:[%s261 + $0x210] sm:$0xf]
        %v408 = vld [vmem:[%s261 + $0x214] sm:$0xf]
        %v409 = vld [vmem:[%s261 + $0x218] sm:$0xf]
        %v410 = vld [vmem:[%s261 + $0x21c] sm:$0xf]
        %v411 = vld [vmem:[%s261 + $0x220] sm:$0xf]
        %v412 = vld [vmem:[%s261 + $0x224] sm:$0xf]
        %v413 = vld [vmem:[%s261 + $0x228] sm:$0xf]
        %v414 = vld [vmem:[%s261 + $0x22c] sm:$0xf]
        %v415 = vld [vmem:[%s261 + $0x230] sm:$0xf]
        %v416 = vld [vmem:[%s261 + $0x234] sm:$0xf]
        %v417 = vld [vmem:[%s261 + $0x238] sm:$0xf]
        %v418 = vld [vmem:[%s261 + $0x23c] sm:$0xf]
        %v419 = vld [vmem:[%s261 + $0x240] sm:$0xf]
        %v420 = vld [vmem:[%s261 + $0x244] sm:$0xf]
        %v421 = vld [vmem:[%s261 + $0x248] sm:$0xf]
        %v422 = vld [vmem:[%s261 + $0x24c] sm:$0xf]
        %v423 = vld [vmem:[%s261 + $0x250] sm:$0xf]
        %v424 = vld [vmem:[%s261 + $0x254] sm:$0xf]
        %v425 = vld [vmem:[%s261 + $0x258] sm:$0xf]
        %v426 = vld [vmem:[%s261 + $0x25c] sm:$0xf]
        %v427 = vld [vmem:[%s261 + $0x260] sm:$0xf]
        %v428 = vld [vmem:[%s261 + $0x264] sm:$0xf]
        %v429 = vld [vmem:[%s261 + $0x268] sm:$0xf]
        %v430 = vld [vmem:[%s261 + $0x26c] sm:$0xf]
        %v431 = vld [vmem:[%s261 + $0x270] sm:$0xf]
        %v432 = vld [vmem:[%s261 + $0x274] sm:$0xf]
        %v433 = vld [vmem:[%s261 + $0x278] sm:$0xf]
        %v434 = vld [vmem:[%s261 + $0x27c] sm:$0xf]
        %v435 = vld [vmem:[%s261 + $0x280] sm:$0xf]
        %v436 = vld [vmem:[%s261 + $0x284] sm:$0xf]
        %v437 = vld [vmem:[%s261 + $0x288] sm:$0xf]
        %v438 = vld [vmem:[%s261 + $0x28c] sm:$0xf]
        %v439 = vld [vmem:[%s261 + $0x290] sm:$0xf]
        %v440 = vld [vmem:[%s261 + $0x294] sm:$0xf]
        %v441 = vld [vmem:[%s261 + $0x298] sm:$0xf]
        %v442 = vld [vmem:[%s261 + $0x29c] sm:$0xf]
        %v443 = vld [vmem:[%s261 + $0x2a0] sm:$0xf]
        %v444 = vld [vmem:[%s261 + $0x2a4] sm:$0xf]
        %v445 = vld [vmem:[%s261 + $0x2a8] sm:$0xf]
        %v446 = vld [vmem:[%s261 + $0x2ac] sm:$0xf]
        %v447 = vld [vmem:[%s261 + $0x2b0] sm:$0xf]
        %v448 = vld [vmem:[%s261 + $0x2b4] sm:$0xf]
        %v449 = vld [vmem:[%s261 + $0x2b8] sm:$0xf]
        %v450 = vld [vmem:[%s261 + $0x2bc] sm:$0xf]
        %v451 = vld [vmem:[%s261 + $0x2c0] sm:$0xf]
        %v452 = vld [vmem:[%s261 + $0x2c4] sm:$0xf]
        %v453 = vld [vmem:[%s261 + $0x2c8] sm:$0xf]
        %v454 = vld [vmem:[%s261 + $0x2cc] sm:$0xf]
        %v455 = vld [vmem:[%s261 + $0x2d0] sm:$0xf]
        %v456 = vld [vmem:[%s261 + $0x2d4] sm:$0xf]
        %v457 = vld [vmem:[%s261 + $0x2d8] sm:$0xf]
        %v458 = vld [vmem:[%s261 + $0x2dc] sm:$0xf]
        %v459 = vld [vmem:[%s261 + $0x2e0] sm:$0xf]
        %v460 = vld [vmem:[%s261 + $0x2e4] sm:$0xf]
        %v461 = vld [vmem:[%s261 + $0x2e8] sm:$0xf]
        %v462 = vld [vmem:[%s261 + $0x2ec] sm:$0xf]
        %v463 = vld [vmem:[%s261 + $0x2f0] sm:$0xf]
        %v464 = vld [vmem:[%s261 + $0x2f4] sm:$0xf]
        %v465 = vld [vmem:[%s261 + $0x2f8] sm:$0xf]
        %v466 = vld [vmem:[%s261 + $0x2fc] sm:$0xf]
        %v467 = vld [vmem:[%s261 + $0x300] sm:$0xf]
        %v468 = vld [vmem:[%s261 + $0x304] sm:$0xf]
        %v469 = vld [vmem:[%s261 + $0x308] sm:$0xf]
        %v470 = vld [vmem:[%s261 + $0x30c] sm:$0xf]
        %v471 = vld [vmem:[%s261 + $0x310] sm:$0xf]
        %v472 = vld [vmem:[%s261 + $0x314] sm:$0xf]
        %v473 = vld [vmem:[%s261 + $0x318] sm:$0xf]
        %v474 = vld [vmem:[%s261 + $0x31c] sm:$0xf]
        %v475 = vld [vmem:[%s261 + $0x320] sm:$0xf]
        %v476 = vld [vmem:[%s261 + $0x324] sm:$0xf]
        %v477 = vld [vmem:[%s261 + $0x328] sm:$0xf]
        %v478 = vld [vmem:[%s261 + $0x32c] sm:$0xf]
        %v479 = vld [vmem:[%s261 + $0x330] sm:$0xf]
        %v480 = vld [vmem:[%s261 + $0x334] sm:$0xf]
        %v481 = vld [vmem:[%s261 + $0x338] sm:$0xf]
        %v482 = vld [vmem:[%s261 + $0x33c] sm:$0xf]
        %v483 = vld [vmem:[%s261 + $0x340] sm:$0xf]
        %v484 = vld [vmem:[%s261 + $0x344] sm:$0xf]
        %v485 = vld [vmem:[%s261 + $0x348] sm:$0xf]
        %v486 = vld [vmem:[%s261 + $0x34c] sm:$0xf]
        %v487 = vld [vmem:[%s261 + $0x350] sm:$0xf]
        %v488 = vld [vmem:[%s261 + $0x354] sm:$0xf]
        %v489 = vld [vmem:[%s261 + $0x358] sm:$0xf]
        %v490 = vld [vmem:[%s261 + $0x35c] sm:$0xf]
        %v491 = vld [vmem:[%s261 + $0x360] sm:$0xf]
        %v492 = vld [vmem:[%s261 + $0x364] sm:$0xf]
        %v493 = vld [vmem:[%s261 + $0x368] sm:$0xf]
        %v494 = vld [vmem:[%s261 + $0x36c] sm:$0xf]
        %v495 = vld [vmem:[%s261 + $0x370] sm:$0xf]
        %v496 = vld [vmem:[%s261 + $0x374] sm:$0xf]
        %v497 = vld [vmem:[%s261 + $0x378] sm:$0xf]
        %v498 = vld [vmem:[%s261 + $0x37c] sm:$0xf]
        %v499 = vld [vmem:[%s261 + $0x380] sm:$0xf]
        %v500 = vld [vmem:[%s261 + $0x384] sm:$0xf]
        %v501 = vld [vmem:[%s261 + $0x388] sm:$0xf]
        %v502 = vld [vmem:[%s261 + $0x38c] sm:$0xf]
        %v503 = vld [vmem:[%s261 + $0x390] sm:$0xf]
        %v504 = vld [vmem:[%s261 + $0x394] sm:$0xf]
        %v505 = vld [vmem:[%s261 + $0x398] sm:$0xf]
        %v506 = vld [vmem:[%s261 + $0x39c] sm:$0xf]
        %v507 = vld [vmem:[%s261 + $0x3a0] sm:$0xf]
        %v508 = vld [vmem:[%s261 + $0x3a4] sm:$0xf]
        %v509 = vld [vmem:[%s261 + $0x3a8] sm:$0xf]
        %v510 = vld [vmem:[%s261 + $0x3ac] sm:$0xf]
        %v511 = vld [vmem:[%s261 + $0x3b0] sm:$0xf]
        %v512 = vld [vmem:[%s261 + $0x3b4] sm:$0xf]
        %v513 = vld [vmem:[%s261 + $0x3b8] sm:$0xf]
        %v514 = vld [vmem:[%s261 + $0x3bc] sm:$0xf]
        %v515 = vld [vmem:[%s261 + $0x3c0] sm:$0xf]
        %v516 = vld [vmem:[%s261 + $0x3c4] sm:$0xf]
        %v517 = vld [vmem:[%s261 + $0x3c8] sm:$0xf]
        %v518 = vld [vmem:[%s261 + $0x3cc] sm:$0xf]
        %v519 = vld [vmem:[%s261 + $0x3d0] sm:$0xf]
        %v520 = vld [vmem:[%s261 + $0x3d4] sm:$0xf]
        %v521 = vld [vmem:[%s261 + $0x3d8] sm:$0xf]
        %v522 = vld [vmem:[%s261 + $0x3dc] sm:$0xf]
        %v523 = vld [vmem:[%s261 + $0x3e0] sm:$0xf]
        %v524 = vld [vmem:[%s261 + $0x3e4] sm:$0xf]
        %v525 = vld [vmem:[%s261 + $0x3e8] sm:$0xf]
        %v526 = vld [vmem:[%s261 + $0x3ec] sm:$0xf]
        %v527 = vld [vmem:[%s261 + $0x3f0] sm:$0xf]
        %v528 = vld [vmem:[%s261 + $0x3f4] sm:$0xf]
        %v529 = vld [vmem:[%s261 + $0x3f8] sm:$0xf]
        %v530 = vld [vmem:[%s261 + $0x3fc] sm:$0xf]
        %v531 = vld [vmem:[%s261 + $0x400] sm:$0xf]
        %v532 = vld [vmem:[%s261 + $0x404] sm:$0xf]
        %v533 = vld [vmem:[%s261 + $0x408] sm:$0xf]
        %v534 = vld [vmem:[%s261 + $0x40c] sm:$0xf]
        %v535 = vld [vmem:[%s261 + $0x410] sm:$0xf]
        %v536 = vld [vmem:[%s261 + $0x414] sm:$0xf]
        %v537 = vld [vmem:[%s261 + $0x418] sm:$0xf]
        %v538 = vld [vmem:[%s261 + $0x41c] sm:$0xf]
        %v539 = vld [vmem:[%s261 + $0x420] sm:$0xf]
        %v540 = vld [vmem:[%s261 + $0x424] sm:$0xf]
        %v541 = vld [vmem:[%s261 + $0x428] sm:$0xf]
        %v542 = vld [vmem:[%s261 + $0x42c] sm:$0xf]
        %v543 = vld [vmem:[%s261 + $0x430] sm:$0xf]
        %v544 = vld [vmem:[%s261 + $0x434] sm:$0xf]
        %v545 = vld [vmem:[%s261 + $0x438] sm:$0xf]
        %v546 = vld [vmem:[%s261 + $0x43c] sm:$0xf]
        %v547 = vld [vmem:[%s261 + $0x440] sm:$0xf]
        %v548 = vld [vmem:[%s261 + $0x444] sm:$0xf]
        %v549 = vld [vmem:[%s261 + $0x448] sm:$0xf]
        %v550 = vld [vmem:[%s261 + $0x44c] sm:$0xf]
        %v551 = vld [vmem:[%s261 + $0x450] sm:$0xf]
        %v552 = vld [vmem:[%s261 + $0x454] sm:$0xf]
        %v553 = vld [vmem:[%s261 + $0x458] sm:$0xf]
        %v554 = vld [vmem:[%s261 + $0x45c] sm:$0xf]
        %v555 = vld [vmem:[%s261 + $0x460] sm:$0xf]
        %v556 = vld [vmem:[%s261 + $0x464] sm:$0xf]
        %v557 = vld [vmem:[%s261 + $0x468] sm:$0xf]
        %v558 = vld [vmem:[%s261 + $0x46c] sm:$0xf]
        %v559 = vld [vmem:[%s261 + $0x470] sm:$0xf]
        %v560 = vld [vmem:[%s261 + $0x474] sm:$0xf]
        %v561 = vld [vmem:[%s261 + $0x478] sm:$0xf]
        %v562 = vld [vmem:[%s261 + $0x47c] sm:$0xf]
        %v563 = vld [vmem:[%s261 + $0x480] sm:$0xf]
        %v564 = vld [vmem:[%s261 + $0x484] sm:$0xf]
        %v565 = vld [vmem:[%s261 + $0x488] sm:$0xf]
        %v566 = vld [vmem:[%s261 + $0x48c] sm:$0xf]
        %v567 = vld [vmem:[%s261 + $0x490] sm:$0xf]
        %v568 = vld [vmem:[%s261 + $0x494] sm:$0xf]
        %v569 = vld [vmem:[%s261 + $0x498] sm:$0xf]
        %v570 = vld [vmem:[%s261 + $0x49c] sm:$0xf]
        %v571 = vld [vmem:[%s261 + $0x4a0] sm:$0xf]
        %v572 = vld [vmem:[%s261 + $0x4a4] sm:$0xf]
        %v573 = vld [vmem:[%s261 + $0x4a8] sm:$0xf]
        %v574 = vld [vmem:[%s261 + $0x4ac] sm:$0xf]
        %v575 = vld [vmem:[%s261 + $0x4b0] sm:$0xf]
        %v576 = vld [vmem:[%s261 + $0x4b4] sm:$0xf]
        %v577 = vld [vmem:[%s261 + $0x4b8] sm:$0xf]
        %v578 = vld [vmem:[%s261 + $0x4bc] sm:$0xf]
        %v579 = vld [vmem:[%s261 + $0x4c0] sm:$0xf]
        %v580 = vld [vmem:[%s261 + $0x4c4] sm:$0xf]
        %v581 = vld [vmem:[%s261 + $0x4c8] sm:$0xf]
        %v582 = vld [vmem:[%s261 + $0x4cc] sm:$0xf]
        %v583 = vld [vmem:[%s261 + $0x4d0] sm:$0xf]
        %v584 = vld [vmem:[%s261 + $0x4d4] sm:$0xf]
        %v585 = vld [vmem:[%s261 + $0x4d8] sm:$0xf]
        %v586 = vld [vmem:[%s261 + $0x4dc] sm:$0xf]
        %v587 = vld [vmem:[%s261 + $0x4e0] sm:$0xf]
        %v588 = vld [vmem:[%s261 + $0x4e4] sm:$0xf]
        %v589 = vld [vmem:[%s261 + $0x4e8] sm:$0xf]
        %v590 = vld [vmem:[%s261 + $0x4ec] sm:$0xf]
        %v591 = vld [vmem:[%s261 + $0x4f0] sm:$0xf]
        %v592 = vld [vmem:[%s261 + $0x4f4] sm:$0xf]
        %v593 = vld [vmem:[%s261 + $0x4f8] sm:$0xf]
        %v594 = vld [vmem:[%s261 + $0x4fc] sm:$0xf]
        %v595 = vld [vmem:[%s261 + $0x500] sm:$0xf]
        %v596 = vld [vmem:[%s261 + $0x504] sm:$0xf]
        %v597 = vld [vmem:[%s261 + $0x508] sm:$0xf]
        %v598 = vld [vmem:[%s261 + $0x50c] sm:$0xf]
        %v599 = vld [vmem:[%s261 + $0x510] sm:$0xf]
        %v600 = vld [vmem:[%s261 + $0x514] sm:$0xf]
        %v601 = vld [vmem:[%s261 + $0x518] sm:$0xf]
        %v602 = vld [vmem:[%s261 + $0x51c] sm:$0xf]
        %v603 = vld [vmem:[%s261 + $0x520] sm:$0xf]
        %v604 = vld [vmem:[%s261 + $0x524] sm:$0xf]
        %v605 = vld [vmem:[%s261 + $0x528] sm:$0xf]
        %v606 = vld [vmem:[%s261 + $0x52c] sm:$0xf]
        %v607 = vld [vmem:[%s261 + $0x530] sm:$0xf]
        %v608 = vld [vmem:[%s261 + $0x534] sm:$0xf]
        %v609 = vld [vmem:[%s261 + $0x538] sm:$0xf]
        %v610 = vld [vmem:[%s261 + $0x53c] sm:$0xf]
        %v611 = vld [vmem:[%s261 + $0x540] sm:$0xf]
        %v612 = vld [vmem:[%s261 + $0x544] sm:$0xf]
        %v613 = vld [vmem:[%s261 + $0x548] sm:$0xf]
        %v614 = vld [vmem:[%s261 + $0x54c] sm:$0xf]
        %v615 = vld [vmem:[%s261 + $0x550] sm:$0xf]
        %v616 = vld [vmem:[%s261 + $0x554] sm:$0xf]
        %v617 = vld [vmem:[%s261 + $0x558] sm:$0xf]
        %v618 = vld [vmem:[%s261 + $0x55c] sm:$0xf]
        %v619 = vld [vmem:[%s261 + $0x560] sm:$0xf]
        %v620 = vld [vmem:[%s261 + $0x564] sm:$0xf]
        %v621 = vld [vmem:[%s261 + $0x568] sm:$0xf]
        %v622 = vld [vmem:[%s261 + $0x56c] sm:$0xf]
        %v623 = vld [vmem:[%s261 + $0x570] sm:$0xf]
        %v624 = vld [vmem:[%s261 + $0x574] sm:$0xf]
        %v625 = vld [vmem:[%s261 + $0x578] sm:$0xf]
        %v626 = vld [vmem:[%s261 + $0x57c] sm:$0xf]
        %v627 = vld [vmem:[%s261 + $0x580] sm:$0xf]
        %v628 = vld [vmem:[%s261 + $0x584] sm:$0xf]
        %v629 = vld [vmem:[%s261 + $0x588] sm:$0xf]
        %v630 = vld [vmem:[%s261 + $0x58c] sm:$0xf]
        %v631 = vld [vmem:[%s261 + $0x590] sm:$0xf]
        %v632 = vld [vmem:[%s261 + $0x594] sm:$0xf]
        %v633 = vld [vmem:[%s261 + $0x598] sm:$0xf]
        %v634 = vld [vmem:[%s261 + $0x59c] sm:$0xf]
        %v635 = vld [vmem:[%s261 + $0x5a0] sm:$0xf]
        %v636 = vld [vmem:[%s261 + $0x5a4] sm:$0xf]
        %v637 = vld [vmem:[%s261 + $0x5a8] sm:$0xf]
        %v638 = vld [vmem:[%s261 + $0x5ac] sm:$0xf]
        %v639 = vld [vmem:[%s261 + $0x5b0] sm:$0xf]
        %v640 = vld [vmem:[%s261 + $0x5b4] sm:$0xf]
        %v641 = vld [vmem:[%s261 + $0x5b8] sm:$0xf]
        %v642 = vld [vmem:[%s261 + $0x5bc] sm:$0xf]
        %v643 = vld [vmem:[%s261 + $0x5c0] sm:$0xf]
        %v644 = vld [vmem:[%s261 + $0x5c4] sm:$0xf]
        %v645 = vld [vmem:[%s261 + $0x5c8] sm:$0xf]
        %v646 = vld [vmem:[%s261 + $0x5cc] sm:$0xf]
        %v647 = vld [vmem:[%s261 + $0x5d0] sm:$0xf]
        %v648 = vld [vmem:[%s261 + $0x5d4] sm:$0xf]
        %v649 = vld [vmem:[%s261 + $0x5d8] sm:$0xf]
        %v650 = vld [vmem:[%s261 + $0x5dc] sm:$0xf]
        %v651 = vld [vmem:[%s261 + $0x5e0] sm:$0xf]
        %v652 = vld [vmem:[%s261 + $0x5e4] sm:$0xf]
        %v653 = vld [vmem:[%s261 + $0x5e8] sm:$0xf]
        %v654 = vld [vmem:[%s261 + $0x5ec] sm:$0xf]
        %v655 = vld [vmem:[%s261 + $0x5f0] sm:$0xf]
        %v656 = vld [vmem:[%s261 + $0x5f4] sm:$0xf]
        %v657 = vld [vmem:[%s261 + $0x5f8] sm:$0xf]
        %v658 = vld [vmem:[%s261 + $0x5fc] sm:$0xf]
        %v659 = vld [vmem:[%s261 + $0x600] sm:$0xf]
        %v660 = vld [vmem:[%s261 + $0x604] sm:$0xf]
        %v661 = vld [vmem:[%s261 + $0x608] sm:$0xf]
        %v662 = vld [vmem:[%s261 + $0x60c] sm:$0xf]
        %v663 = vld [vmem:[%s261 + $0x610] sm:$0xf]
        %v664 = vld [vmem:[%s261 + $0x614] sm:$0xf]
        %v665 = vld [vmem:[%s261 + $0x618] sm:$0xf]
        %v666 = vld [vmem:[%s261 + $0x61c] sm:$0xf]
        %v667 = vld [vmem:[%s261 + $0x620] sm:$0xf]
        %v668 = vld [vmem:[%s261 + $0x624] sm:$0xf]
        %v669 = vld [vmem:[%s261 + $0x628] sm:$0xf]
        %v670 = vld [vmem:[%s261 + $0x62c] sm:$0xf]
        %v671 = vld [vmem:[%s261 + $0x630] sm:$0xf]
        %v672 = vld [vmem:[%s261 + $0x634] sm:$0xf]
        %v673 = vld [vmem:[%s261 + $0x638] sm:$0xf]
        %v674 = vld [vmem:[%s261 + $0x63c] sm:$0xf]
        %v675 = vld [vmem:[%s261 + $0x640] sm:$0xf]
        %v676 = vld [vmem:[%s261 + $0x644] sm:$0xf]
        %v677 = vld [vmem:[%s261 + $0x648] sm:$0xf]
        %v678 = vld [vmem:[%s261 + $0x64c] sm:$0xf]
        %v679 = vld [vmem:[%s261 + $0x650] sm:$0xf]
        %v680 = vld [vmem:[%s261 + $0x654] sm:$0xf]
        %v681 = vld [vmem:[%s261 + $0x658] sm:$0xf]
        %v682 = vld [vmem:[%s261 + $0x65c] sm:$0xf]
        %v683 = vld [vmem:[%s261 + $0x660] sm:$0xf]
        %v684 = vld [vmem:[%s261 + $0x664] sm:$0xf]
        %v685 = vld [vmem:[%s261 + $0x668] sm:$0xf]
        %v686 = vld [vmem:[%s261 + $0x66c] sm:$0xf]
        %v687 = vld [vmem:[%s261 + $0x670] sm:$0xf]
        %v688 = vld [vmem:[%s261 + $0x674] sm:$0xf]
        %v689 = vld [vmem:[%s261 + $0x678] sm:$0xf]
        %v690 = vld [vmem:[%s261 + $0x67c] sm:$0xf]
        %v691 = vld [vmem:[%s261 + $0x680] sm:$0xf]
        %v692 = vld [vmem:[%s261 + $0x684] sm:$0xf]
        %v693 = vld [vmem:[%s261 + $0x688] sm:$0xf]
        %v694 = vld [vmem:[%s261 + $0x68c] sm:$0xf]
        %v695 = vld [vmem:[%s261 + $0x690] sm:$0xf]
        %v696 = vld [vmem:[%s261 + $0x694] sm:$0xf]
        %v697 = vld [vmem:[%s261 + $0x698] sm:$0xf]
        %v698 = vld [vmem:[%s261 + $0x69c] sm:$0xf]
        %v699 = vld [vmem:[%s261 + $0x6a0] sm:$0xf]
        %v700 = vld [vmem:[%s261 + $0x6a4] sm:$0xf]
        %v701 = vld [vmem:[%s261 + $0x6a8] sm:$0xf]
        %v702 = vld [vmem:[%s261 + $0x6ac] sm:$0xf]
        %v703 = vld [vmem:[%s261 + $0x6b0] sm:$0xf]
        %v704 = vld [vmem:[%s261 + $0x6b4] sm:$0xf]
        %v705 = vld [vmem:[%s261 + $0x6b8] sm:$0xf]
        %v706 = vld [vmem:[%s261 + $0x6bc] sm:$0xf]
        %v707 = vld [vmem:[%s261 + $0x6c0] sm:$0xf]
        %v708 = vld [vmem:[%s261 + $0x6c4] sm:$0xf]
        %v709 = vld [vmem:[%s261 + $0x6c8] sm:$0xf]
        %v710 = vld [vmem:[%s261 + $0x6cc] sm:$0xf]
        %v711 = vld [vmem:[%s261 + $0x6d0] sm:$0xf]
        %v712 = vld [vmem:[%s261 + $0x6d4] sm:$0xf]
        %v713 = vld [vmem:[%s261 + $0x6d8] sm:$0xf]
        %v714 = vld [vmem:[%s261 + $0x6dc] sm:$0xf]
        %v715 = vld [vmem:[%s261 + $0x6e0] sm:$0xf]
        %v716 = vld [vmem:[%s261 + $0x6e4] sm:$0xf]
        %v717 = vld [vmem:[%s261 + $0x6e8] sm:$0xf]
        %v718 = vld [vmem:[%s261 + $0x6ec] sm:$0xf]
        %v719 = vld [vmem:[%s261 + $0x6f0] sm:$0xf]
        %v720 = vld [vmem:[%s261 + $0x6f4] sm:$0xf]
        %v721 = vld [vmem:[%s261 + $0x6f8] sm:$0xf]
        %v722 = vld [vmem:[%s261 + $0x6fc] sm:$0xf]
        %v723 = vld [vmem:[%s261 + $0x700] sm:$0xf]
        %v724 = vld [vmem:[%s261 + $0x704] sm:$0xf]
        %v725 = vld [vmem:[%s261 + $0x708] sm:$0xf]
        %v726 = vld [vmem:[%s261 + $0x70c] sm:$0xf]
        %v727 = vld [vmem:[%s261 + $0x710] sm:$0xf]
        %v728 = vld [vmem:[%s261 + $0x714] sm:$0xf]
        %v729 = vld [vmem:[%s261 + $0x718] sm:$0xf]
        %v730 = vld [vmem:[%s261 + $0x71c] sm:$0xf]
        %v731 = vld [vmem:[%s261 + $0x720] sm:$0xf]
        %v732 = vld [vmem:[%s261 + $0x724] sm:$0xf]
        %v733 = vld [vmem:[%s261 + $0x728] sm:$0xf]
        %v734 = vld [vmem:[%s261 + $0x72c] sm:$0xf]
        %v735 = vld [vmem:[%s261 + $0x730] sm:$0xf]
        %v736 = vld [vmem:[%s261 + $0x734] sm:$0xf]
        %v737 = vld [vmem:[%s261 + $0x738] sm:$0xf]
        %v738 = vld [vmem:[%s261 + $0x73c] sm:$0xf]
        %v739 = vld [vmem:[%s261 + $0x740] sm:$0xf]
        %v740 = vld [vmem:[%s261 + $0x744] sm:$0xf]
        %v741 = vld [vmem:[%s261 + $0x748] sm:$0xf]
        %v742 = vld [vmem:[%s261 + $0x74c] sm:$0xf]
        %v743 = vld [vmem:[%s261 + $0x750] sm:$0xf]
        %v744 = vld [vmem:[%s261 + $0x754] sm:$0xf]
        %v745 = vld [vmem:[%s261 + $0x758] sm:$0xf]
        %v746 = vld [vmem:[%s261 + $0x75c] sm:$0xf]
        %v747 = vld [vmem:[%s261 + $0x760] sm:$0xf]
        %v748 = vld [vmem:[%s261 + $0x764] sm:$0xf]
        %v749 = vld [vmem:[%s261 + $0x768] sm:$0xf]
        %v750 = vld [vmem:[%s261 + $0x76c] sm:$0xf]
        %v751 = vld [vmem:[%s261 + $0x770] sm:$0xf]
        %v752 = vld [vmem:[%s261 + $0x774] sm:$0xf]
        %v753 = vld [vmem:[%s261 + $0x778] sm:$0xf]
        %v754 = vld [vmem:[%s261 + $0x77c] sm:$0xf]
        %v755 = vld [vmem:[%s261 + $0x780] sm:$0xf]
        %v756 = vld [vmem:[%s261 + $0x784] sm:$0xf]
        %v757 = vld [vmem:[%s261 + $0x788] sm:$0xf]
        %v758 = vld [vmem:[%s261 + $0x78c] sm:$0xf]
        %v759 = vld [vmem:[%s261 + $0x790] sm:$0xf]
        %v760 = vld [vmem:[%s261 + $0x794] sm:$0xf]
        %v761 = vld [vmem:[%s261 + $0x798] sm:$0xf]
        %v762 = vld [vmem:[%s261 + $0x79c] sm:$0xf]
        %v763 = vld [vmem:[%s261 + $0x7a0] sm:$0xf]
        %v764 = vld [vmem:[%s261 + $0x7a4] sm:$0xf]
        %v765 = vld [vmem:[%s261 + $0x7a8] sm:$0xf]
        %v766 = vld [vmem:[%s261 + $0x7ac] sm:$0xf]
        %v767 = vld [vmem:[%s261 + $0x7b0] sm:$0xf]
        %v768 = vld [vmem:[%s261 + $0x7b4] sm:$0xf]
        %v769 = vld [vmem:[%s261 + $0x7b8] sm:$0xf]
        %v770 = vld [vmem:[%s261 + $0x7bc] sm:$0xf]
        %v771 = vld [vmem:[%s261 + $0x7c0] sm:$0xf]
        %v772 = vld [vmem:[%s261 + $0x7c4] sm:$0xf]
        %v773 = vld [vmem:[%s261 + $0x7c8] sm:$0xf]
        %v774 = vld [vmem:[%s261 + $0x7cc] sm:$0xf]
        %v775 = vld [vmem:[%s261 + $0x7d0] sm:$0xf]
        %v776 = vld [vmem:[%s261 + $0x7d4] sm:$0xf]
        %v777 = vld [vmem:[%s261 + $0x7d8] sm:$0xf]
        %v778 = vld [vmem:[%s261 + $0x7dc] sm:$0xf]
        %v779 = vld [vmem:[%s261 + $0x7e0] sm:$0xf]
        %v780 = vld [vmem:[%s261 + $0x7e4] sm:$0xf]
        %v781 = vld [vmem:[%s261 + $0x7e8] sm:$0xf]
        %v782 = vld [vmem:[%s261 + $0x7ec] sm:$0xf]
        %v783 = vld [vmem:[%s261 + $0x7f0] sm:$0xf]
        %v784 = vld [vmem:[%s261 + $0x7f4] sm:$0xf]
        %v785 = vld [vmem:[%s261 + $0x7f8] sm:$0xf]
        %v786 = vld [vmem:[%s261 + $0x7fc] sm:$0xf]
        %v787 = vld [vmem:[%s261 + $0x800] sm:$0xf]
        %v788 = vld [vmem:[%s261 + $0x804] sm:$0xf]
        %v789 = vld [vmem:[%s261 + $0x808] sm:$0xf]
        %v790 = vld [vmem:[%s261 + $0x80c] sm:$0xf]
        %v791 = vld [vmem:[%s261 + $0x810] sm:$0xf]
        %v792 = vld [vmem:[%s261 + $0x814] sm:$0xf]
        %v793 = vld [vmem:[%s261 + $0x818] sm:$0xf]
        %v794 = vld [vmem:[%s261 + $0x81c] sm:$0xf]
        %v795 = vld [vmem:[%s261 + $0x820] sm:$0xf]
        %v796 = vld [vmem:[%s261 + $0x824] sm:$0xf]
        %v797 = vld [vmem:[%s261 + $0x828] sm:$0xf]
        %v798 = vld [vmem:[%s261 + $0x82c] sm:$0xf]
        %v799 = vld [vmem:[%s261 + $0x830] sm:$0xf]
        %v800 = vld [vmem:[%s261 + $0x834] sm:$0xf]
        %v801 = vld [vmem:[%s261 + $0x838] sm:$0xf]
        %v802 = vld [vmem:[%s261 + $0x83c] sm:$0xf]
        %v803 = vld [vmem:[%s261 + $0x840] sm:$0xf]
        %v804 = vld [vmem:[%s261 + $0x844] sm:$0xf]
        %v805 = vld [vmem:[%s261 + $0x848] sm:$0xf]
        %v806 = vld [vmem:[%s261 + $0x84c] sm:$0xf]
        %v807 = vld [vmem:[%s261 + $0x850] sm:$0xf]
        %v808 = vld [vmem:[%s261 + $0x854] sm:$0xf]
        %v809 = vld [vmem:[%s261 + $0x858] sm:$0xf]
        %v810 = vld [vmem:[%s261 + $0x85c] sm:$0xf]
        %v811 = vld [vmem:[%s261 + $0x860] sm:$0xf]
        %v812 = vld [vmem:[%s261 + $0x864] sm:$0xf]
        %v813 = vld [vmem:[%s261 + $0x868] sm:$0xf]
        %v814 = vld [vmem:[%s261 + $0x86c] sm:$0xf]
        %v815 = vld [vmem:[%s261 + $0x870] sm:$0xf]
        %v816 = vld [vmem:[%s261 + $0x874] sm:$0xf]
        %v817 = vld [vmem:[%s261 + $0x878] sm:$0xf]
        %v818 = vld [vmem:[%s261 + $0x87c] sm:$0xf]
        %v819 = vld [vmem:[%s261 + $0x880] sm:$0xf]
        %v820 = vld [vmem:[%s261 + $0x884] sm:$0xf]
        %v821 = vld [vmem:[%s261 + $0x888] sm:$0xf]
        %v822 = vld [vmem:[%s261 + $0x88c] sm:$0xf]
        %v823 = vld [vmem:[%s261 + $0x890] sm:$0xf]
        %v824 = vld [vmem:[%s261 + $0x894] sm:$0xf]
        %v825 = vld [vmem:[%s261 + $0x898] sm:$0xf]
        %v826 = vld [vmem:[%s261 + $0x89c] sm:$0xf]
        %v827 = vld [vmem:[%s261 + $0x8a0] sm:$0xf]
        %v828 = vld [vmem:[%s261 + $0x8a4] sm:$0xf]
        %v829 = vld [vmem:[%s261 + $0x8a8] sm:$0xf]
        %v830 = vld [vmem:[%s261 + $0x8ac] sm:$0xf]
        %v831 = vld [vmem:[%s261 + $0x8b0] sm:$0xf]
        %v832 = vld [vmem:[%s261 + $0x8b4] sm:$0xf]
        %v833 = vld [vmem:[%s261 + $0x8b8] sm:$0xf]
        %v834 = vld [vmem:[%s261 + $0x8bc] sm:$0xf]
        %v835 = vld [vmem:[%s261 + $0x8c0] sm:$0xf]
        %v836 = vld [vmem:[%s261 + $0x8c4] sm:$0xf]
        %v837 = vld [vmem:[%s261 + $0x8c8] sm:$0xf]
        %v838 = vld [vmem:[%s261 + $0x8cc] sm:$0xf]
        %v839 = vld [vmem:[%s261 + $0x8d0] sm:$0xf]
        %v840 = vld [vmem:[%s261 + $0x8d4] sm:$0xf]
        %v841 = vld [vmem:[%s261 + $0x8d8] sm:$0xf]
        %v842 = vld [vmem:[%s261 + $0x8dc] sm:$0xf]
        %v843 = vld [vmem:[%s261 + $0x8e0] sm:$0xf]
        %v844 = vld [vmem:[%s261 + $0x8e4] sm:$0xf]
        %v845 = vld [vmem:[%s261 + $0x8e8] sm:$0xf]
        %v846 = vld [vmem:[%s261 + $0x8ec] sm:$0xf]
        %v847 = vld [vmem:[%s261 + $0x8f0] sm:$0xf]
        %v848 = vld [vmem:[%s261 + $0x8f4] sm:$0xf]
        %v849 = vld [vmem:[%s261 + $0x8f8] sm:$0xf]
        %v850 = vld [vmem:[%s261 + $0x8fc] sm:$0xf]
        %v856 = vcombine.high %v270, %v270
        %v858 = vunpack.c.l.s4 1966171168
        %v859 = vunpack.c.0.s8 %v858
        %v860 = vlaneseq
        %v861 = vshrl.u32 %v860, 7
        %v862 = vsub.s32 %v859, %v861
        %v863 = vrot.slane %v270, %v862
        %v865 = vunpack.c.l.s4 1966171168
        %v866 = vunpack.c.0.s8 %v865
        %v867 = vlaneseq
        %v868 = vshrl.u32 %v867, 7
        %v869 = vsub.s32 %v866, %v868
        %v870 = vrot.slane %v856, %v869
        %v871 = vcombine.high %v863, %v863
        %v872 = vcombine.high %v870, %v870
        %v874 = vunpack.c.l.s4 1966171168
        %v875 = vunpack.c.0.s8 %v874
        %v876 = vlaneseq
        %v877 = vshrl.u32 %v876, 7
        %v878 = vsub.s32 %v875, %v877
        %v879 = vrot.slane %v863, %v878
        %v881 = vunpack.c.l.s4 1966171168
        %v882 = vunpack.c.0.s8 %v881
        %v883 = vlaneseq
        %v884 = vshrl.u32 %v883, 7
        %v885 = vsub.s32 %v882, %v884
        %v886 = vrot.slane %v870, %v885
        %v888 = vunpack.c.l.s4 1966171168
        %v889 = vunpack.c.0.s8 %v888
        %v890 = vlaneseq
        %v891 = vshrl.u32 %v890, 7
        %v892 = vsub.s32 %v889, %v891
        %v893 = vrot.slane %v871, %v892
        %v895 = vunpack.c.l.s4 1966171168
        %v896 = vunpack.c.0.s8 %v895
        %v897 = vlaneseq
        %v898 = vshrl.u32 %v897, 7
        %v899 = vsub.s32 %v896, %v898
        %v900 = vrot.slane %v872, %v899
        %v901 = vcombine.high %v879, %v879
        %v902 = vcombine.high %v886, %v886
        %v903 = vcombine.high %v893, %v893
        %v904 = vcombine.high %v900, %v900
        %v905 = vcombine.high %v271, %v271
        %v907 = vunpack.c.l.s4 1966171168
        %v908 = vunpack.c.0.s8 %v907
        %v909 = vlaneseq
        %v910 = vshrl.u32 %v909, 7
        %v911 = vsub.s32 %v908, %v910
        %v912 = vrot.slane %v271, %v911
        %v914 = vunpack.c.l.s4 1966171168
        %v915 = vunpack.c.0.s8 %v914
        %v916 = vlaneseq
        %v917 = vshrl.u32 %v916, 7
        %v918 = vsub.s32 %v915, %v917
        %v919 = vrot.slane %v905, %v918
        %v920 = vcombine.high %v912, %v912
        %v921 = vcombine.high %v919, %v919
        %v923 = vunpack.c.l.s4 1966171168
        %v924 = vunpack.c.0.s8 %v923
        %v925 = vlaneseq
        %v926 = vshrl.u32 %v925, 7
        %v927 = vsub.s32 %v924, %v926
        %v928 = vrot.slane %v912, %v927
        %v930 = vunpack.c.l.s4 1966171168
        %v931 = vunpack.c.0.s8 %v930
        %v932 = vlaneseq
        %v933 = vshrl.u32 %v932, 7
        %v934 = vsub.s32 %v931, %v933
        %v935 = vrot.slane %v919, %v934
        %v937 = vunpack.c.l.s4 1966171168
        %v938 = vunpack.c.0.s8 %v937
        %v939 = vlaneseq
        %v940 = vshrl.u32 %v939, 7
        %v941 = vsub.s32 %v938, %v940
        %v942 = vrot.slane %v920, %v941
        %v944 = vunpack.c.l.s4 1966171168
        %v945 = vunpack.c.0.s8 %v944
        %v946 = vlaneseq
        %v947 = vshrl.u32 %v946, 7
        %v948 = vsub.s32 %v945, %v947
        %v949 = vrot.slane %v921, %v948
        %v950 = vcombine.high %v928, %v928
        %v951 = vcombine.high %v935, %v935
        %v952 = vcombine.high %v942, %v942
        %v953 = vcombine.high %v949, %v949
        %v954 = vcombine.high %v272, %v272
        %v956 = vunpack.c.l.s4 1966171168
        %v957 = vunpack.c.0.s8 %v956
        %v958 = vlaneseq
        %v959 = vshrl.u32 %v958, 7
        %v960 = vsub.s32 %v957, %v959
        %v961 = vrot.slane %v272, %v960
        %v963 = vunpack.c.l.s4 1966171168
        %v964 = vunpack.c.0.s8 %v963
        %v965 = vlaneseq
        %v966 = vshrl.u32 %v965, 7
        %v967 = vsub.s32 %v964, %v966
        %v968 = vrot.slane %v954, %v967
        %v969 = vcombine.high %v961, %v961
        %v970 = vcombine.high %v968, %v968
        %v972 = vunpack.c.l.s4 1966171168
        %v973 = vunpack.c.0.s8 %v972
        %v974 = vlaneseq
        %v975 = vshrl.u32 %v974, 7
        %v976 = vsub.s32 %v973, %v975
        %v977 = vrot.slane %v961, %v976
        %v979 = vunpack.c.l.s4 1966171168
        %v980 = vunpack.c.0.s8 %v979
        %v981 = vlaneseq
        %v982 = vshrl.u32 %v981, 7
        %v983 = vsub.s32 %v980, %v982
        %v984 = vrot.slane %v968, %v983
        %v986 = vunpack.c.l.s4 1966171168
        %v987 = vunpack.c.0.s8 %v986
        %v988 = vlaneseq
        %v989 = vshrl.u32 %v988, 7
        %v990 = vsub.s32 %v987, %v989
        %v991 = vrot.slane %v969, %v990
        %v993 = vunpack.c.l.s4 1966171168
        %v994 = vunpack.c.0.s8 %v993
        %v995 = vlaneseq
        %v996 = vshrl.u32 %v995, 7
        %v997 = vsub.s32 %v994, %v996
        %v998 = vrot.slane %v970, %v997
        %v999 = vcombine.high %v977, %v977
        %v1000 = vcombine.high %v984, %v984
        %v1001 = vcombine.high %v991, %v991
        %v1002 = vcombine.high %v998, %v998
        %v1003 = vcombine.high %v273, %v273
        %v1005 = vunpack.c.l.s4 1966171168
        %v1006 = vunpack.c.0.s8 %v1005
        %v1007 = vlaneseq
        %v1008 = vshrl.u32 %v1007, 7
        %v1009 = vsub.s32 %v1006, %v1008
        %v1010 = vrot.slane %v273, %v1009
        %v1012 = vunpack.c.l.s4 1966171168
        %v1013 = vunpack.c.0.s8 %v1012
        %v1014 = vlaneseq
        %v1015 = vshrl.u32 %v1014, 7
        %v1016 = vsub.s32 %v1013, %v1015
        %v1017 = vrot.slane %v1003, %v1016
        %v1018 = vcombine.high %v1010, %v1010
        %v1019 = vcombine.high %v1017, %v1017
        %v1021 = vunpack.c.l.s4 1966171168
        %v1022 = vunpack.c.0.s8 %v1021
        %v1023 = vlaneseq
        %v1024 = vshrl.u32 %v1023, 7
        %v1025 = vsub.s32 %v1022, %v1024
        %v1026 = vrot.slane %v1010, %v1025
        %v1028 = vunpack.c.l.s4 1966171168
        %v1029 = vunpack.c.0.s8 %v1028
        %v1030 = vlaneseq
        %v1031 = vshrl.u32 %v1030, 7
        %v1032 = vsub.s32 %v1029, %v1031
        %v1033 = vrot.slane %v1017, %v1032
        %v1035 = vunpack.c.l.s4 1966171168
        %v1036 = vunpack.c.0.s8 %v1035
        %v1037 = vlaneseq
        %v1038 = vshrl.u32 %v1037, 7
        %v1039 = vsub.s32 %v1036, %v1038
        %v1040 = vrot.slane %v1018, %v1039
        %v1042 = vunpack.c.l.s4 1966171168
        %v1043 = vunpack.c.0.s8 %v1042
        %v1044 = vlaneseq
        %v1045 = vshrl.u32 %v1044, 7
        %v1046 = vsub.s32 %v1043, %v1045
        %v1047 = vrot.slane %v1019, %v1046
        %v1048 = vcombine.high %v1026, %v1026
        %v1049 = vcombine.high %v1033, %v1033
        %v1050 = vcombine.high %v1040, %v1040
        %v1051 = vcombine.high %v1047, %v1047
        %v1053 = vunpack.c.l.s4 1966171168
        %v1054 = vunpack.c.0.s8 %v1053
        %v1055 = vlaneseq
        %v1056 = vshrl.u32 %v1055, 7
        %v1057 = vsub.s32 %v1054, %v1056
        %v1058 = vrot.slane %v274, %v1057
        %v1059 = vcombine.high %v1058, %v1058
        %v1061 = vunpack.c.l.s4 1966171168
        %v1062 = vunpack.c.0.s8 %v1061
        %v1063 = vlaneseq
        %v1064 = vshrl.u32 %v1063, 7
        %v1065 = vsub.s32 %v1062, %v1064
        %v1066 = vrot.slane %v1058, %v1065
        %v1068 = vunpack.c.l.s4 1966171168
        %v1069 = vunpack.c.0.s8 %v1068
        %v1070 = vlaneseq
        %v1071 = vshrl.u32 %v1070, 7
        %v1072 = vsub.s32 %v1069, %v1071
        %v1073 = vrot.slane %v1059, %v1072
        %v1074 = vcombine.high %v1066, %v1066
        %v1075 = vcombine.high %v1073, %v1073
        %v1688 = vunpack.c.l.b16 %v275
        %v1689 = vunpack.c.l.b16 %v276
        %v1690 = vunpack.c.l.b16 %v277
        %v1691 = vunpack.c.l.b16 %v278
        %v1692 = vunpack.c.l.b16 %v279
        %v1693 = vunpack.c.l.b16 %v280
        %v1694 = vunpack.c.l.b16 %v281
        %v1695 = vunpack.c.l.b16 %v282
        %v1696 = vunpack.c.l.b16 %v283
        %v1697 = vunpack.c.l.b16 %v284
        %v1698 = vunpack.c.l.b16 %v285
        %v1699 = vunpack.c.l.b16 %v286
        %v1700 = vunpack.c.l.b16 %v287
        %v1701 = vunpack.c.l.b16 %v288
        %v1702 = vunpack.c.l.b16 %v289
        %v1703 = vunpack.c.l.b16 %v290
        %v1704 = vunpack.c.l.b16 %v291
        %v1705 = vunpack.c.l.b16 %v292
        %v1706 = vunpack.c.l.b16 %v293
        %v1707 = vunpack.c.l.b16 %v294
        %v1708 = vunpack.c.l.b16 %v295
        %v1709 = vunpack.c.l.b16 %v296
        %v1710 = vunpack.c.l.b16 %v297
        %v1711 = vunpack.c.l.b16 %v298
        %v1712 = vunpack.c.l.b16 %v299
        %v1713 = vunpack.c.l.b16 %v300
        %v1714 = vunpack.c.l.b16 %v301
        %v1715 = vunpack.c.l.b16 %v302
        %v1716 = vunpack.c.l.b16 %v303
        %v1717 = vunpack.c.l.b16 %v304
        %v1718 = vunpack.c.l.b16 %v305
        %v1719 = vunpack.c.l.b16 %v306
        %v1720 = vunpack.c.l.b16 %v307
        %v1721 = vunpack.c.l.b16 %v308
        %v1722 = vunpack.c.l.b16 %v309
        %v1723 = vunpack.c.l.b16 %v310
        %v1724 = vunpack.c.l.b16 %v311
        %v1725 = vunpack.c.l.b16 %v312
        %v1726 = vunpack.c.l.b16 %v313
        %v1727 = vunpack.c.l.b16 %v314
        %v1728 = vunpack.c.l.b16 %v315
        %v1729 = vunpack.c.l.b16 %v316
        %v1730 = vunpack.c.l.b16 %v317
        %v1731 = vunpack.c.l.b16 %v318
        %v1732 = vunpack.c.l.b16 %v319
        %v1733 = vunpack.c.l.b16 %v320
        %v1734 = vunpack.c.l.b16 %v321
        %v1735 = vunpack.c.l.b16 %v322
        %v1736 = vunpack.c.l.b16 %v323
        %v1737 = vunpack.c.l.b16 %v324
        %v1738 = vunpack.c.l.b16 %v325
        %v1739 = vunpack.c.l.b16 %v326
        %v1740 = vunpack.c.l.b16 %v327
        %v1741 = vunpack.c.l.b16 %v328
        %v1742 = vunpack.c.l.b16 %v329
        %v1743 = vunpack.c.l.b16 %v330
        %v1744 = vunpack.c.l.b16 %v331
        %v1745 = vunpack.c.l.b16 %v332
        %v1746 = vunpack.c.l.b16 %v333
        %v1747 = vunpack.c.l.b16 %v334
        %v1748 = vunpack.c.l.b16 %v335
        %v1749 = vunpack.c.l.b16 %v336
        %v1750 = vunpack.c.l.b16 %v337
        %v1751 = vunpack.c.l.b16 %v338
        %v1752 = vunpack.c.l.b16 %v339
        %v1753 = vunpack.c.l.b16 %v340
        %v1754 = vunpack.c.l.b16 %v341
        %v1755 = vunpack.c.l.b16 %v342
        %v1756 = vunpack.c.l.b16 %v343
        %v1757 = vunpack.c.l.b16 %v344
        %v1758 = vunpack.c.l.b16 %v345
        %v1759 = vunpack.c.l.b16 %v346
        %v1760 = vunpack.c.l.b16 %v347
        %v1761 = vunpack.c.l.b16 %v348
        %v1762 = vunpack.c.l.b16 %v349
        %v1763 = vunpack.c.l.b16 %v350
        %v1764 = vunpack.c.l.b16 %v351
        %v1765 = vunpack.c.l.b16 %v352
        %v1766 = vunpack.c.l.b16 %v353
        %v1767 = vunpack.c.l.b16 %v354
        %v1768 = vunpack.c.l.b16 %v355
        %v1769 = vunpack.c.l.b16 %v356
        %v1770 = vunpack.c.l.b16 %v357
        %v1771 = vunpack.c.l.b16 %v358
        %v1772 = vunpack.c.l.b16 %v359
        %v1773 = vunpack.c.l.b16 %v360
        %v1774 = vunpack.c.l.b16 %v361
        %v1775 = vunpack.c.l.b16 %v362
        %v1776 = vunpack.c.l.b16 %v363
        %v1777 = vunpack.c.l.b16 %v364
        %v1778 = vunpack.c.l.b16 %v365
        %v1779 = vunpack.c.l.b16 %v366
        %v1780 = vunpack.c.l.b16 %v367
        %v1781 = vunpack.c.l.b16 %v368
        %v1782 = vunpack.c.l.b16 %v369
        %v1783 = vunpack.c.l.b16 %v370
        %v1784 = vunpack.c.l.b16 %v371
        %v1785 = vunpack.c.l.b16 %v372
        %v1786 = vunpack.c.l.b16 %v373
        %v1787 = vunpack.c.l.b16 %v374
        %v1788 = vunpack.c.l.b16 %v375
        %v1789 = vunpack.c.l.b16 %v376
        %v1790 = vunpack.c.l.b16 %v377
        %v1791 = vunpack.c.l.b16 %v378
        %v1792 = vunpack.c.l.b16 %v379
        %v1793 = vunpack.c.l.b16 %v380
        %v1794 = vunpack.c.l.b16 %v381
        %v1795 = vunpack.c.l.b16 %v382
        %v1796 = vunpack.c.l.b16 %v383
        %v1797 = vunpack.c.l.b16 %v384
        %v1798 = vunpack.c.l.b16 %v385
        %v1799 = vunpack.c.l.b16 %v386
        %v1800 = vunpack.c.l.b16 %v387
        %v1801 = vunpack.c.l.b16 %v388
        %v1802 = vunpack.c.l.b16 %v389
        %v1803 = vunpack.c.l.b16 %v390
        %v1804 = vunpack.c.l.b16 %v391
        %v1805 = vunpack.c.l.b16 %v392
        %v1806 = vunpack.c.l.b16 %v393
        %v1807 = vunpack.c.l.b16 %v394
        %v1808 = vunpack.c.l.b16 %v395
        %v1809 = vunpack.c.l.b16 %v396
        %v1810 = vunpack.c.l.b16 %v397
        %v1811 = vunpack.c.l.b16 %v398
        %v1812 = vunpack.c.l.b16 %v399
        %v1813 = vunpack.c.l.b16 %v400
        %v1814 = vunpack.c.l.b16 %v401
        %v1815 = vunpack.c.l.b16 %v402
        %v1816 = vunpack.c.l.b16 %v403
        %v1817 = vunpack.c.l.b16 %v404
        %v1818 = vunpack.c.l.b16 %v405
        %v1819 = vunpack.c.l.b16 %v406
        %v1820 = vunpack.c.l.b16 %v407
        %v1821 = vunpack.c.l.b16 %v408
        %v1822 = vunpack.c.l.b16 %v409
        %v1823 = vunpack.c.l.b16 %v410
        %v1824 = vunpack.c.l.b16 %v411
        %v1825 = vunpack.c.l.b16 %v412
        %v1826 = vunpack.c.l.b16 %v413
        %v1827 = vunpack.c.l.b16 %v414
        %v1828 = vunpack.c.l.b16 %v415
        %v1829 = vunpack.c.l.b16 %v416
        %v1830 = vunpack.c.l.b16 %v417
        %v1831 = vunpack.c.l.b16 %v418
        %v1832 = vunpack.c.l.b16 %v419
        %v1833 = vunpack.c.l.b16 %v420
        %v1834 = vunpack.c.l.b16 %v421
        %v1835 = vunpack.c.l.b16 %v422
        %v1836 = vunpack.c.l.b16 %v423
        %v1837 = vunpack.c.l.b16 %v424
        %v1838 = vunpack.c.l.b16 %v425
        %v1839 = vunpack.c.l.b16 %v426
        %v1840 = vunpack.c.l.b16 %v427
        %v1841 = vunpack.c.l.b16 %v428
        %v1842 = vunpack.c.l.b16 %v429
        %v1843 = vunpack.c.l.b16 %v430
        %v1844 = vunpack.c.l.b16 %v431
        %v1845 = vunpack.c.l.b16 %v432
        %v1846 = vunpack.c.l.b16 %v433
        %v1847 = vunpack.c.l.b16 %v434
        %v1848 = vunpack.c.l.b16 %v435
        %v1849 = vunpack.c.l.b16 %v436
        %v1850 = vunpack.c.l.b16 %v437
        %v1851 = vunpack.c.l.b16 %v438
        %v1852 = vunpack.c.l.b16 %v439
        %v1853 = vunpack.c.l.b16 %v440
        %v1854 = vunpack.c.l.b16 %v441
        %v1855 = vunpack.c.l.b16 %v442
        %v1856 = vunpack.c.l.b16 %v443
        %v1857 = vunpack.c.l.b16 %v444
        %v1858 = vunpack.c.l.b16 %v445
        %v1859 = vunpack.c.l.b16 %v446
        %v1860 = vunpack.c.l.b16 %v447
        %v1861 = vunpack.c.l.b16 %v448
        %v1862 = vunpack.c.l.b16 %v449
        %v1863 = vunpack.c.l.b16 %v450
        %v1864 = vunpack.c.l.b16 %v451
        %v1865 = vunpack.c.l.b16 %v452
        %v1866 = vunpack.c.l.b16 %v453
        %v1867 = vunpack.c.l.b16 %v454
        %v1868 = vunpack.c.l.b16 %v455
        %v1869 = vunpack.c.l.b16 %v456
        %v1870 = vunpack.c.l.b16 %v457
        %v1871 = vunpack.c.l.b16 %v458
        %v1872 = vunpack.c.l.b16 %v459
        %v1873 = vunpack.c.l.b16 %v460
        %v1874 = vunpack.c.l.b16 %v461
        %v1875 = vunpack.c.l.b16 %v462
        %v1876 = vunpack.c.l.b16 %v463
        %v1877 = vunpack.c.l.b16 %v464
        %v1878 = vunpack.c.l.b16 %v465
        %v1879 = vunpack.c.l.b16 %v466
        %v1880 = vunpack.c.l.b16 %v467
        %v1881 = vunpack.c.l.b16 %v468
        %v1882 = vunpack.c.l.b16 %v469
        %v1883 = vunpack.c.l.b16 %v470
        %v1884 = vunpack.c.l.b16 %v471
        %v1885 = vunpack.c.l.b16 %v472
        %v1886 = vunpack.c.l.b16 %v473
        %v1887 = vunpack.c.l.b16 %v474
        %v1888 = vunpack.c.l.b16 %v475
        %v1889 = vunpack.c.l.b16 %v476
        %v1890 = vunpack.c.l.b16 %v477
        %v1891 = vunpack.c.l.b16 %v478
        %v1892 = vunpack.c.l.b16 %v479
        %v1893 = vunpack.c.l.b16 %v480
        %v1894 = vunpack.c.l.b16 %v481
        %v1895 = vunpack.c.l.b16 %v482
        %v1896 = vunpack.c.l.b16 %v483
        %v1897 = vunpack.c.l.b16 %v484
        %v1898 = vunpack.c.l.b16 %v485
        %v1899 = vunpack.c.l.b16 %v486
        %v1900 = vunpack.c.l.b16 %v487
        %v1901 = vunpack.c.l.b16 %v488
        %v1902 = vunpack.c.l.b16 %v489
        %v1903 = vunpack.c.l.b16 %v490
        %v1904 = vunpack.c.l.b16 %v491
        %v1905 = vunpack.c.l.b16 %v492
        %v1906 = vunpack.c.l.b16 %v493
        %v1907 = vunpack.c.l.b16 %v494
        %v1908 = vunpack.c.l.b16 %v495
        %v1909 = vunpack.c.l.b16 %v496
        %v1910 = vunpack.c.l.b16 %v497
        %v1911 = vunpack.c.l.b16 %v498
        %v1912 = vunpack.c.l.b16 %v499
        %v1913 = vunpack.c.l.b16 %v500
        %v1914 = vunpack.c.l.b16 %v501
        %v1915 = vunpack.c.l.b16 %v502
        %v1916 = vunpack.c.l.b16 %v503
        %v1917 = vunpack.c.l.b16 %v504
        %v1918 = vunpack.c.l.b16 %v505
        %v1919 = vunpack.c.l.b16 %v506
        %v1920 = vunpack.c.l.b16 %v507
        %v1921 = vunpack.c.l.b16 %v508
        %v1922 = vunpack.c.l.b16 %v509
        %v1923 = vunpack.c.l.b16 %v510
        %v1924 = vunpack.c.l.b16 %v511
        %v1925 = vunpack.c.l.b16 %v512
        %v1926 = vunpack.c.l.b16 %v513
        %v1927 = vunpack.c.l.b16 %v514
        %v1928 = vunpack.c.l.b16 %v515
        %v1929 = vunpack.c.l.b16 %v516
        %v1930 = vunpack.c.l.b16 %v517
        %v1931 = vunpack.c.l.b16 %v518
        %v1932 = vunpack.c.l.b16 %v519
        %v1933 = vunpack.c.l.b16 %v520
        %v1934 = vunpack.c.l.b16 %v521
        %v1935 = vunpack.c.l.b16 %v522
        %v1936 = vunpack.c.l.b16 %v523
        %v1937 = vunpack.c.l.b16 %v524
        %v1938 = vunpack.c.l.b16 %v525
        %v1939 = vunpack.c.l.b16 %v526
        %v1940 = vunpack.c.l.b16 %v527
        %v1941 = vunpack.c.l.b16 %v528
        %v1942 = vunpack.c.l.b16 %v529
        %v1943 = vunpack.c.l.b16 %v530
        %v1944 = vunpack.c.l.b16 %v531
        %v1945 = vunpack.c.l.b16 %v532
        %v1946 = vunpack.c.l.b16 %v533
        %v1947 = vunpack.c.l.b16 %v534
        %v1948 = vunpack.c.l.b16 %v535
        %v1949 = vunpack.c.l.b16 %v536
        %v1950 = vunpack.c.l.b16 %v537
        %v1951 = vunpack.c.l.b16 %v538
        %v1952 = vunpack.c.l.b16 %v539
        %v1953 = vunpack.c.l.b16 %v540
        %v1954 = vunpack.c.l.b16 %v541
        %v1955 = vunpack.c.l.b16 %v542
        %v1956 = vunpack.c.l.b16 %v543
        %v1957 = vunpack.c.l.b16 %v544
        %v1958 = vunpack.c.l.b16 %v545
        %v1959 = vunpack.c.l.b16 %v546
        %v1960 = vunpack.c.l.b16 %v547
        %v1961 = vunpack.c.l.b16 %v548
        %v1962 = vunpack.c.l.b16 %v549
        %v1963 = vunpack.c.l.b16 %v550
        %v1964 = vunpack.c.l.b16 %v551
        %v1965 = vunpack.c.l.b16 %v552
        %v1966 = vunpack.c.l.b16 %v553
        %v1967 = vunpack.c.l.b16 %v554
        %v1968 = vunpack.c.l.b16 %v555
        %v1969 = vunpack.c.l.b16 %v556
        %v1970 = vunpack.c.l.b16 %v557
        %v1971 = vunpack.c.l.b16 %v558
        %v1972 = vunpack.c.l.b16 %v559
        %v1973 = vunpack.c.l.b16 %v560
        %v1974 = vunpack.c.l.b16 %v561
        %v1975 = vunpack.c.l.b16 %v562
        %v1976 = vunpack.c.l.b16 %v563
        %v1977 = vunpack.c.l.b16 %v564
        %v1978 = vunpack.c.l.b16 %v565
        %v1979 = vunpack.c.l.b16 %v566
        %v1980 = vunpack.c.l.b16 %v567
        %v1981 = vunpack.c.l.b16 %v568
        %v1982 = vunpack.c.l.b16 %v569
        %v1983 = vunpack.c.l.b16 %v570
        %v1984 = vunpack.c.l.b16 %v571
        %v1985 = vunpack.c.l.b16 %v572
        %v1986 = vunpack.c.l.b16 %v573
        %v1987 = vunpack.c.l.b16 %v574
        %v1988 = vunpack.c.l.b16 %v575
        %v1989 = vunpack.c.l.b16 %v576
        %v1990 = vunpack.c.l.b16 %v577
        %v1991 = vunpack.c.l.b16 %v578
        %v1992 = vunpack.c.l.b16 %v579
        %v1993 = vunpack.c.l.b16 %v580
        %v1994 = vunpack.c.l.b16 %v581
        %v1995 = vunpack.c.l.b16 %v582
        %v1996 = vunpack.c.l.b16 %v583
        %v1997 = vunpack.c.l.b16 %v584
        %v1998 = vunpack.c.l.b16 %v585
        %v1999 = vunpack.c.l.b16 %v586
        %v2000 = vunpack.c.l.b16 %v587
        %v2001 = vunpack.c.l.b16 %v588
        %v2002 = vunpack.c.l.b16 %v589
        %v2003 = vunpack.c.l.b16 %v590
        %v2004 = vunpack.c.l.b16 %v591
        %v2005 = vunpack.c.l.b16 %v592
        %v2006 = vunpack.c.l.b16 %v593
        %v2007 = vunpack.c.l.b16 %v594
        %v2008 = vunpack.c.l.b16 %v595
        %v2009 = vunpack.c.l.b16 %v596
        %v2010 = vunpack.c.l.b16 %v597
        %v2011 = vunpack.c.l.b16 %v598
        %v2012 = vunpack.c.l.b16 %v599
        %v2013 = vunpack.c.l.b16 %v600
        %v2014 = vunpack.c.l.b16 %v601
        %v2015 = vunpack.c.l.b16 %v602
        %v2016 = vunpack.c.l.b16 %v603
        %v2017 = vunpack.c.l.b16 %v604
        %v2018 = vunpack.c.l.b16 %v605
        %v2019 = vunpack.c.l.b16 %v606
        %v2020 = vunpack.c.l.b16 %v607
        %v2021 = vunpack.c.l.b16 %v608
        %v2022 = vunpack.c.l.b16 %v609
        %v2023 = vunpack.c.l.b16 %v610
        %v2024 = vunpack.c.l.b16 %v611
        %v2025 = vunpack.c.l.b16 %v612
        %v2026 = vunpack.c.l.b16 %v613
        %v2027 = vunpack.c.l.b16 %v614
        %v2028 = vunpack.c.l.b16 %v615
        %v2029 = vunpack.c.l.b16 %v616
        %v2030 = vunpack.c.l.b16 %v617
        %v2031 = vunpack.c.l.b16 %v618
        %v2032 = vunpack.c.l.b16 %v619
        %v2033 = vunpack.c.l.b16 %v620
        %v2034 = vunpack.c.l.b16 %v621
        %v2035 = vunpack.c.l.b16 %v622
        %v2036 = vunpack.c.l.b16 %v623
        %v2037 = vunpack.c.l.b16 %v624
        %v2038 = vunpack.c.l.b16 %v625
        %v2039 = vunpack.c.l.b16 %v626
        %v2040 = vunpack.c.l.b16 %v627
        %v2041 = vunpack.c.l.b16 %v628
        %v2042 = vunpack.c.l.b16 %v629
        %v2043 = vunpack.c.l.b16 %v630
        %v2044 = vunpack.c.l.b16 %v631
        %v2045 = vunpack.c.l.b16 %v632
        %v2046 = vunpack.c.l.b16 %v633
        %v2047 = vunpack.c.l.b16 %v634
        %v2048 = vunpack.c.l.b16 %v635
        %v2049 = vunpack.c.l.b16 %v636
        %v2050 = vunpack.c.l.b16 %v637
        %v2051 = vunpack.c.l.b16 %v638
        %v2052 = vunpack.c.l.b16 %v639
        %v2053 = vunpack.c.l.b16 %v640
        %v2054 = vunpack.c.l.b16 %v641
        %v2055 = vunpack.c.l.b16 %v642
        %v2056 = vunpack.c.l.b16 %v643
        %v2057 = vunpack.c.l.b16 %v644
        %v2058 = vunpack.c.l.b16 %v645
        %v2059 = vunpack.c.l.b16 %v646
        %v2060 = vunpack.c.l.b16 %v647
        %v2061 = vunpack.c.l.b16 %v648
        %v2062 = vunpack.c.l.b16 %v649
        %v2063 = vunpack.c.l.b16 %v650
        %v2064 = vunpack.c.l.b16 %v651
        %v2065 = vunpack.c.l.b16 %v652
        %v2066 = vunpack.c.l.b16 %v653
        %v2067 = vunpack.c.l.b16 %v654
        %v2068 = vunpack.c.l.b16 %v655
        %v2069 = vunpack.c.l.b16 %v656
        %v2070 = vunpack.c.l.b16 %v657
        %v2071 = vunpack.c.l.b16 %v658
        %v2072 = vunpack.c.l.b16 %v659
        %v2073 = vunpack.c.l.b16 %v660
        %v2074 = vunpack.c.l.b16 %v661
        %v2075 = vunpack.c.l.b16 %v662
        %v2076 = vunpack.c.l.b16 %v663
        %v2077 = vunpack.c.l.b16 %v664
        %v2078 = vunpack.c.l.b16 %v665
        %v2079 = vunpack.c.l.b16 %v666
        %v2080 = vunpack.c.l.b16 %v667
        %v2081 = vunpack.c.l.b16 %v668
        %v2082 = vunpack.c.l.b16 %v669
        %v2083 = vunpack.c.l.b16 %v670
        %v2084 = vunpack.c.l.b16 %v671
        %v2085 = vunpack.c.l.b16 %v672
        %v2086 = vunpack.c.l.b16 %v673
        %v2087 = vunpack.c.l.b16 %v674
        %v2088 = vunpack.c.l.b16 %v675
        %v2089 = vunpack.c.l.b16 %v676
        %v2090 = vunpack.c.l.b16 %v677
        %v2091 = vunpack.c.l.b16 %v678
        %v2092 = vunpack.c.l.b16 %v679
        %v2093 = vunpack.c.l.b16 %v680
        %v2094 = vunpack.c.l.b16 %v681
        %v2095 = vunpack.c.l.b16 %v682
        %v2096 = vunpack.c.l.b16 %v683
        %v2097 = vunpack.c.l.b16 %v684
        %v2098 = vunpack.c.l.b16 %v685
        %v2099 = vunpack.c.l.b16 %v686
        %v2100 = vunpack.c.l.b16 %v687
        %v2101 = vunpack.c.l.b16 %v688
        %v2102 = vunpack.c.l.b16 %v689
        %v2103 = vunpack.c.l.b16 %v690
        %v2104 = vunpack.c.l.b16 %v691
        %v2105 = vunpack.c.l.b16 %v692
        %v2106 = vunpack.c.l.b16 %v693
        %v2107 = vunpack.c.l.b16 %v694
        %v2108 = vunpack.c.l.b16 %v695
        %v2109 = vunpack.c.l.b16 %v696
        %v2110 = vunpack.c.l.b16 %v697
        %v2111 = vunpack.c.l.b16 %v698
        %v2112 = vunpack.c.l.b16 %v699
        %v2113 = vunpack.c.l.b16 %v700
        %v2114 = vunpack.c.l.b16 %v701
        %v2115 = vunpack.c.l.b16 %v702
        %v2116 = vunpack.c.l.b16 %v703
        %v2117 = vunpack.c.l.b16 %v704
        %v2118 = vunpack.c.l.b16 %v705
        %v2119 = vunpack.c.l.b16 %v706
        %v2120 = vunpack.c.l.b16 %v707
        %v2121 = vunpack.c.l.b16 %v708
        %v2122 = vunpack.c.l.b16 %v709
        %v2123 = vunpack.c.l.b16 %v710
        %v2124 = vunpack.c.l.b16 %v711
        %v2125 = vunpack.c.l.b16 %v712
        %v2126 = vunpack.c.l.b16 %v713
        %v2127 = vunpack.c.l.b16 %v714
        %v2128 = vunpack.c.l.b16 %v715
        %v2129 = vunpack.c.l.b16 %v716
        %v2130 = vunpack.c.l.b16 %v717
        %v2131 = vunpack.c.l.b16 %v718
        %v2132 = vunpack.c.l.b16 %v719
        %v2133 = vunpack.c.l.b16 %v720
        %v2134 = vunpack.c.l.b16 %v721
        %v2135 = vunpack.c.l.b16 %v722
        %v2136 = vunpack.c.l.b16 %v723
        %v2137 = vunpack.c.l.b16 %v724
        %v2138 = vunpack.c.l.b16 %v725
        %v2139 = vunpack.c.l.b16 %v726
        %v2140 = vunpack.c.l.b16 %v727
        %v2141 = vunpack.c.l.b16 %v728
        %v2142 = vunpack.c.l.b16 %v729
        %v2143 = vunpack.c.l.b16 %v730
        %v2144 = vunpack.c.l.b16 %v731
        %v2145 = vunpack.c.l.b16 %v732
        %v2146 = vunpack.c.l.b16 %v733
        %v2147 = vunpack.c.l.b16 %v734
        %v2148 = vunpack.c.l.b16 %v735
        %v2149 = vunpack.c.l.b16 %v736
        %v2150 = vunpack.c.l.b16 %v737
        %v2151 = vunpack.c.l.b16 %v738
        %v2152 = vunpack.c.l.b16 %v739
        %v2153 = vunpack.c.l.b16 %v740
        %v2154 = vunpack.c.l.b16 %v741
        %v2155 = vunpack.c.l.b16 %v742
        %v2156 = vunpack.c.l.b16 %v743
        %v2157 = vunpack.c.l.b16 %v744
        %v2158 = vunpack.c.l.b16 %v745
        %v2159 = vunpack.c.l.b16 %v746
        %v2160 = vunpack.c.l.b16 %v747
        %v2161 = vunpack.c.l.b16 %v748
        %v2162 = vunpack.c.l.b16 %v749
        %v2163 = vunpack.c.l.b16 %v750
        %v2164 = vunpack.c.l.b16 %v751
        %v2165 = vunpack.c.l.b16 %v752
        %v2166 = vunpack.c.l.b16 %v753
        %v2167 = vunpack.c.l.b16 %v754
        %v2168 = vunpack.c.l.b16 %v755
        %v2169 = vunpack.c.l.b16 %v756
        %v2170 = vunpack.c.l.b16 %v757
        %v2171 = vunpack.c.l.b16 %v758
        %v2172 = vunpack.c.l.b16 %v759
        %v2173 = vunpack.c.l.b16 %v760
        %v2174 = vunpack.c.l.b16 %v761
        %v2175 = vunpack.c.l.b16 %v762
        %v2176 = vunpack.c.l.b16 %v763
        %v2177 = vunpack.c.l.b16 %v764
        %v2178 = vunpack.c.l.b16 %v765
        %v2179 = vunpack.c.l.b16 %v766
        %v2180 = vunpack.c.l.b16 %v767
        %v2181 = vunpack.c.l.b16 %v768
        %v2182 = vunpack.c.l.b16 %v769
        %v2183 = vunpack.c.l.b16 %v770
        %v2184 = vunpack.c.l.b16 %v771
        %v2185 = vunpack.c.l.b16 %v772
        %v2186 = vunpack.c.l.b16 %v773
        %v2187 = vunpack.c.l.b16 %v774
        %v2188 = vunpack.c.l.b16 %v775
        %v2189 = vunpack.c.l.b16 %v776
        %v2190 = vunpack.c.l.b16 %v777
        %v2191 = vunpack.c.l.b16 %v778
        %v2192 = vunpack.c.l.b16 %v779
        %v2193 = vunpack.c.l.b16 %v780
        %v2194 = vunpack.c.l.b16 %v781
        %v2195 = vunpack.c.l.b16 %v782
        %v2196 = vunpack.c.l.b16 %v783
        %v2197 = vunpack.c.l.b16 %v784
        %v2198 = vunpack.c.l.b16 %v785
        %v2199 = vunpack.c.l.b16 %v786
        %v2200 = vunpack.c.l.b16 %v787
        %v2201 = vunpack.c.l.b16 %v788
        %v2202 = vunpack.c.l.b16 %v789
        %v2203 = vunpack.c.l.b16 %v790
        %v2204 = vunpack.c.l.b16 %v791
        %v2205 = vunpack.c.l.b16 %v792
        %v2206 = vunpack.c.l.b16 %v793
        %v2207 = vunpack.c.l.b16 %v794
        %v2208 = vunpack.c.l.b16 %v795
        %v2209 = vunpack.c.l.b16 %v796
        %v2210 = vunpack.c.l.b16 %v797
        %v2211 = vunpack.c.l.b16 %v798
        %v2212 = vunpack.c.l.b16 %v799
        %v2213 = vunpack.c.l.b16 %v800
        %v2214 = vunpack.c.l.b16 %v801
        %v2215 = vunpack.c.l.b16 %v802
        %v2216 = vunpack.c.l.b16 %v803
        %v2217 = vunpack.c.l.b16 %v804
        %v2218 = vunpack.c.l.b16 %v805
        %v2219 = vunpack.c.l.b16 %v806
        %v2220 = vunpack.c.l.b16 %v807
        %v2221 = vunpack.c.l.b16 %v808
        %v2222 = vunpack.c.l.b16 %v809
        %v2223 = vunpack.c.l.b16 %v810
        %v2224 = vunpack.c.l.b16 %v811
        %v2225 = vunpack.c.l.b16 %v812
        %v2226 = vunpack.c.l.b16 %v813
        %v2227 = vunpack.c.l.b16 %v814
        %v2228 = vunpack.c.l.b16 %v815
        %v2229 = vunpack.c.l.b16 %v816
        %v2230 = vunpack.c.l.b16 %v817
        %v2231 = vunpack.c.l.b16 %v818
        %v2232 = vunpack.c.l.b16 %v819
        %v2233 = vunpack.c.l.b16 %v820
        %v2234 = vunpack.c.l.b16 %v821
        %v2235 = vunpack.c.l.b16 %v822
        %v2236 = vunpack.c.l.b16 %v823
        %v2237 = vunpack.c.l.b16 %v824
        %v2238 = vunpack.c.l.b16 %v825
        %v2239 = vunpack.c.l.b16 %v826
        %v2240 = vunpack.c.l.b16 %v827
        %v2241 = vunpack.c.l.b16 %v828
        %v2242 = vunpack.c.l.b16 %v829
        %v2243 = vunpack.c.l.b16 %v830
        %v2244 = vunpack.c.l.b16 %v831
        %v2245 = vunpack.c.l.b16 %v832
        %v2246 = vunpack.c.l.b16 %v833
        %v2247 = vunpack.c.l.b16 %v834
        %v2248 = vunpack.c.l.b16 %v835
        %v2249 = vunpack.c.l.b16 %v836
        %v2250 = vunpack.c.l.b16 %v837
        %v2251 = vunpack.c.l.b16 %v838
        %v2252 = vunpack.c.l.b16 %v839
        %v2253 = vunpack.c.l.b16 %v840
        %v2254 = vunpack.c.l.b16 %v841
        %v2255 = vunpack.c.l.b16 %v842
        %v2256 = vunpack.c.l.b16 %v843
        %v2257 = vunpack.c.l.b16 %v844
        %v2258 = vunpack.c.l.b16 %v845
        %v2259 = vunpack.c.l.b16 %v846
        %v2260 = vunpack.c.l.b16 %v847
        %v2261 = vunpack.c.l.b16 %v848
        %v2262 = vunpack.c.l.b16 %v849
        %v2263 = vunpack.c.l.b16 %v850
        %v2264 = vpack.c.b16 %v1689, %v1688
        %v2265 = vpack.c.b16 %v1691, %v1690
        %v2266 = vpack.c.b16 %v1693, %v1692
        %v2267 = vpack.c.b16 %v1695, %v1694
        %v2268 = vpack.c.b16 %v1697, %v1696
        %v2269 = vpack.c.b16 %v1699, %v1698
        %v2270 = vpack.c.b16 %v1701, %v1700
        %v2271 = vpack.c.b16 %v1703, %v1702
        %v2272 = vpack.c.b16 %v1705, %v1704
        %v2273 = vpack.c.b16 %v1707, %v1706
        %v2274 = vpack.c.b16 %v1709, %v1708
        %v2275 = vpack.c.b16 %v1711, %v1710
        %v2276 = vpack.c.b16 %v1713, %v1712
        %v2277 = vpack.c.b16 %v1715, %v1714
        %v2278 = vpack.c.b16 %v1717, %v1716
        %v2279 = vpack.c.b16 %v1719, %v1718
        %v2280 = vpack.c.b16 %v1721, %v1720
        %v2281 = vpack.c.b16 %v1723, %v1722
        %v2282 = vpack.c.b16 %v1725, %v1724
        %v2283 = vpack.c.b16 %v1727, %v1726
        %v2284 = vpack.c.b16 %v1729, %v1728
        %v2285 = vpack.c.b16 %v1731, %v1730
        %v2286 = vpack.c.b16 %v1733, %v1732
        %v2287 = vpack.c.b16 %v1735, %v1734
        %v2288 = vpack.c.b16 %v1737, %v1736
        %v2289 = vpack.c.b16 %v1739, %v1738
        %v2290 = vpack.c.b16 %v1741, %v1740
        %v2291 = vpack.c.b16 %v1743, %v1742
        %v2292 = vpack.c.b16 %v1745, %v1744
        %v2293 = vpack.c.b16 %v1747, %v1746
        %v2294 = vpack.c.b16 %v1749, %v1748
        %v2295 = vpack.c.b16 %v1751, %v1750
        %v2296 = vpack.c.b16 %v1753, %v1752
        %v2297 = vpack.c.b16 %v1755, %v1754
        %v2298 = vpack.c.b16 %v1757, %v1756
        %v2299 = vpack.c.b16 %v1759, %v1758
        %v2300 = vpack.c.b16 %v1761, %v1760
        %v2301 = vpack.c.b16 %v1763, %v1762
        %v2302 = vpack.c.b16 %v1765, %v1764
        %v2303 = vpack.c.b16 %v1767, %v1766
        %v2304 = vpack.c.b16 %v1769, %v1768
        %v2305 = vpack.c.b16 %v1771, %v1770
        %v2306 = vpack.c.b16 %v1773, %v1772
        %v2307 = vpack.c.b16 %v1775, %v1774
        %v2308 = vpack.c.b16 %v1777, %v1776
        %v2309 = vpack.c.b16 %v1779, %v1778
        %v2310 = vpack.c.b16 %v1781, %v1780
        %v2311 = vpack.c.b16 %v1783, %v1782
        %v2312 = vpack.c.b16 %v1785, %v1784
        %v2313 = vpack.c.b16 %v1787, %v1786
        %v2314 = vpack.c.b16 %v1789, %v1788
        %v2315 = vpack.c.b16 %v1791, %v1790
        %v2316 = vpack.c.b16 %v1793, %v1792
        %v2317 = vpack.c.b16 %v1795, %v1794
        %v2318 = vpack.c.b16 %v1797, %v1796
        %v2319 = vpack.c.b16 %v1799, %v1798
        %v2320 = vpack.c.b16 %v1801, %v1800
        %v2321 = vpack.c.b16 %v1803, %v1802
        %v2322 = vpack.c.b16 %v1805, %v1804
        %v2323 = vpack.c.b16 %v1807, %v1806
        %v2324 = vpack.c.b16 %v1809, %v1808
        %v2325 = vpack.c.b16 %v1811, %v1810
        %v2326 = vpack.c.b16 %v1813, %v1812
        %v2327 = vpack.c.b16 %v1815, %v1814
        %v2328 = vpack.c.b16 %v1817, %v1816
        %v2329 = vpack.c.b16 %v1819, %v1818
        %v2330 = vpack.c.b16 %v1821, %v1820
        %v2331 = vpack.c.b16 %v1823, %v1822
        %v2332 = vpack.c.b16 %v1825, %v1824
        %v2333 = vpack.c.b16 %v1827, %v1826
        %v2334 = vpack.c.b16 %v1829, %v1828
        %v2335 = vpack.c.b16 %v1831, %v1830
        %v2336 = vpack.c.b16 %v1833, %v1832
        %v2337 = vpack.c.b16 %v1835, %v1834
        %v2338 = vpack.c.b16 %v1837, %v1836
        %v2339 = vpack.c.b16 %v1839, %v1838
        %v2340 = vpack.c.b16 %v1841, %v1840
        %v2341 = vpack.c.b16 %v1843, %v1842
        %v2342 = vpack.c.b16 %v1845, %v1844
        %v2343 = vpack.c.b16 %v1847, %v1846
        %v2344 = vpack.c.b16 %v1849, %v1848
        %v2345 = vpack.c.b16 %v1851, %v1850
        %v2346 = vpack.c.b16 %v1853, %v1852
        %v2347 = vpack.c.b16 %v1855, %v1854
        %v2348 = vpack.c.b16 %v1857, %v1856
        %v2349 = vpack.c.b16 %v1859, %v1858
        %v2350 = vpack.c.b16 %v1861, %v1860
        %v2351 = vpack.c.b16 %v1863, %v1862
        %v2352 = vpack.c.b16 %v1865, %v1864
        %v2353 = vpack.c.b16 %v1867, %v1866
        %v2354 = vpack.c.b16 %v1869, %v1868
        %v2355 = vpack.c.b16 %v1871, %v1870
        %v2356 = vpack.c.b16 %v1873, %v1872
        %v2357 = vpack.c.b16 %v1875, %v1874
        %v2358 = vpack.c.b16 %v1877, %v1876
        %v2359 = vpack.c.b16 %v1879, %v1878
        %v2360 = vpack.c.b16 %v1881, %v1880
        %v2361 = vpack.c.b16 %v1883, %v1882
        %v2362 = vpack.c.b16 %v1885, %v1884
        %v2363 = vpack.c.b16 %v1887, %v1886
        %v2364 = vpack.c.b16 %v1889, %v1888
        %v2365 = vpack.c.b16 %v1891, %v1890
        %v2366 = vpack.c.b16 %v1893, %v1892
        %v2367 = vpack.c.b16 %v1895, %v1894
        %v2368 = vpack.c.b16 %v1897, %v1896
        %v2369 = vpack.c.b16 %v1899, %v1898
        %v2370 = vpack.c.b16 %v1901, %v1900
        %v2371 = vpack.c.b16 %v1903, %v1902
        %v2372 = vpack.c.b16 %v1905, %v1904
        %v2373 = vpack.c.b16 %v1907, %v1906
        %v2374 = vpack.c.b16 %v1909, %v1908
        %v2375 = vpack.c.b16 %v1911, %v1910
        %v2376 = vpack.c.b16 %v1913, %v1912
        %v2377 = vpack.c.b16 %v1915, %v1914
        %v2378 = vpack.c.b16 %v1917, %v1916
        %v2379 = vpack.c.b16 %v1919, %v1918
        %v2380 = vpack.c.b16 %v1921, %v1920
        %v2381 = vpack.c.b16 %v1923, %v1922
        %v2382 = vpack.c.b16 %v1925, %v1924
        %v2383 = vpack.c.b16 %v1927, %v1926
        %v2384 = vpack.c.b16 %v1929, %v1928
        %v2385 = vpack.c.b16 %v1931, %v1930
        %v2386 = vpack.c.b16 %v1933, %v1932
        %v2387 = vpack.c.b16 %v1935, %v1934
        %v2388 = vpack.c.b16 %v1937, %v1936
        %v2389 = vpack.c.b16 %v1939, %v1938
        %v2390 = vpack.c.b16 %v1941, %v1940
        %v2391 = vpack.c.b16 %v1943, %v1942
        %v2392 = vpack.c.b16 %v1945, %v1944
        %v2393 = vpack.c.b16 %v1947, %v1946
        %v2394 = vpack.c.b16 %v1949, %v1948
        %v2395 = vpack.c.b16 %v1951, %v1950
        %v2396 = vpack.c.b16 %v1953, %v1952
        %v2397 = vpack.c.b16 %v1955, %v1954
        %v2398 = vpack.c.b16 %v1957, %v1956
        %v2399 = vpack.c.b16 %v1959, %v1958
        %v2400 = vpack.c.b16 %v1961, %v1960
        %v2401 = vpack.c.b16 %v1963, %v1962
        %v2402 = vpack.c.b16 %v1965, %v1964
        %v2403 = vpack.c.b16 %v1967, %v1966
        %v2404 = vpack.c.b16 %v1969, %v1968
        %v2405 = vpack.c.b16 %v1971, %v1970
        %v2406 = vpack.c.b16 %v1973, %v1972
        %v2407 = vpack.c.b16 %v1975, %v1974
        %v2408 = vpack.c.b16 %v1977, %v1976
        %v2409 = vpack.c.b16 %v1979, %v1978
        %v2410 = vpack.c.b16 %v1981, %v1980
        %v2411 = vpack.c.b16 %v1983, %v1982
        %v2412 = vpack.c.b16 %v1985, %v1984
        %v2413 = vpack.c.b16 %v1987, %v1986
        %v2414 = vpack.c.b16 %v1989, %v1988
        %v2415 = vpack.c.b16 %v1991, %v1990
        %v2416 = vpack.c.b16 %v1993, %v1992
        %v2417 = vpack.c.b16 %v1995, %v1994
        %v2418 = vpack.c.b16 %v1997, %v1996
        %v2419 = vpack.c.b16 %v1999, %v1998
        %v2420 = vpack.c.b16 %v2001, %v2000
        %v2421 = vpack.c.b16 %v2003, %v2002
        %v2422 = vpack.c.b16 %v2005, %v2004
        %v2423 = vpack.c.b16 %v2007, %v2006
        %v2424 = vpack.c.b16 %v2009, %v2008
        %v2425 = vpack.c.b16 %v2011, %v2010
        %v2426 = vpack.c.b16 %v2013, %v2012
        %v2427 = vpack.c.b16 %v2015, %v2014
        %v2428 = vpack.c.b16 %v2017, %v2016
        %v2429 = vpack.c.b16 %v2019, %v2018
        %v2430 = vpack.c.b16 %v2021, %v2020
        %v2431 = vpack.c.b16 %v2023, %v2022
        %v2432 = vpack.c.b16 %v2025, %v2024
        %v2433 = vpack.c.b16 %v2027, %v2026
        %v2434 = vpack.c.b16 %v2029, %v2028
        %v2435 = vpack.c.b16 %v2031, %v2030
        %v2436 = vpack.c.b16 %v2033, %v2032
        %v2437 = vpack.c.b16 %v2035, %v2034
        %v2438 = vpack.c.b16 %v2037, %v2036
        %v2439 = vpack.c.b16 %v2039, %v2038
        %v2440 = vpack.c.b16 %v2041, %v2040
        %v2441 = vpack.c.b16 %v2043, %v2042
        %v2442 = vpack.c.b16 %v2045, %v2044
        %v2443 = vpack.c.b16 %v2047, %v2046
        %v2444 = vpack.c.b16 %v2049, %v2048
        %v2445 = vpack.c.b16 %v2051, %v2050
        %v2446 = vpack.c.b16 %v2053, %v2052
        %v2447 = vpack.c.b16 %v2055, %v2054
        %v2448 = vpack.c.b16 %v2057, %v2056
        %v2449 = vpack.c.b16 %v2059, %v2058
        %v2450 = vpack.c.b16 %v2061, %v2060
        %v2451 = vpack.c.b16 %v2063, %v2062
        %v2452 = vpack.c.b16 %v2065, %v2064
        %v2453 = vpack.c.b16 %v2067, %v2066
        %v2454 = vpack.c.b16 %v2069, %v2068
        %v2455 = vpack.c.b16 %v2071, %v2070
        %v2456 = vpack.c.b16 %v2073, %v2072
        %v2457 = vpack.c.b16 %v2075, %v2074
        %v2458 = vpack.c.b16 %v2077, %v2076
        %v2459 = vpack.c.b16 %v2079, %v2078
        %v2460 = vpack.c.b16 %v2081, %v2080
        %v2461 = vpack.c.b16 %v2083, %v2082
        %v2462 = vpack.c.b16 %v2085, %v2084
        %v2463 = vpack.c.b16 %v2087, %v2086
        %v2464 = vpack.c.b16 %v2089, %v2088
        %v2465 = vpack.c.b16 %v2091, %v2090
        %v2466 = vpack.c.b16 %v2093, %v2092
        %v2467 = vpack.c.b16 %v2095, %v2094
        %v2468 = vpack.c.b16 %v2097, %v2096
        %v2469 = vpack.c.b16 %v2099, %v2098
        %v2470 = vpack.c.b16 %v2101, %v2100
        %v2471 = vpack.c.b16 %v2103, %v2102
        %v2472 = vpack.c.b16 %v2105, %v2104
        %v2473 = vpack.c.b16 %v2107, %v2106
        %v2474 = vpack.c.b16 %v2109, %v2108
        %v2475 = vpack.c.b16 %v2111, %v2110
        %v2476 = vpack.c.b16 %v2113, %v2112
        %v2477 = vpack.c.b16 %v2115, %v2114
        %v2478 = vpack.c.b16 %v2117, %v2116
        %v2479 = vpack.c.b16 %v2119, %v2118
        %v2480 = vpack.c.b16 %v2121, %v2120
        %v2481 = vpack.c.b16 %v2123, %v2122
        %v2482 = vpack.c.b16 %v2125, %v2124
        %v2483 = vpack.c.b16 %v2127, %v2126
        %v2484 = vpack.c.b16 %v2129, %v2128
        %v2485 = vpack.c.b16 %v2131, %v2130
        %v2486 = vpack.c.b16 %v2133, %v2132
        %v2487 = vpack.c.b16 %v2135, %v2134
        %v2488 = vpack.c.b16 %v2137, %v2136
        %v2489 = vpack.c.b16 %v2139, %v2138
        %v2490 = vpack.c.b16 %v2141, %v2140
        %v2491 = vpack.c.b16 %v2143, %v2142
        %v2492 = vpack.c.b16 %v2145, %v2144
        %v2493 = vpack.c.b16 %v2147, %v2146
        %v2494 = vpack.c.b16 %v2149, %v2148
        %v2495 = vpack.c.b16 %v2151, %v2150
        %v2496 = vpack.c.b16 %v2153, %v2152
        %v2497 = vpack.c.b16 %v2155, %v2154
        %v2498 = vpack.c.b16 %v2157, %v2156
        %v2499 = vpack.c.b16 %v2159, %v2158
        %v2500 = vpack.c.b16 %v2161, %v2160
        %v2501 = vpack.c.b16 %v2163, %v2162
        %v2502 = vpack.c.b16 %v2165, %v2164
        %v2503 = vpack.c.b16 %v2167, %v2166
        %v2504 = vpack.c.b16 %v2169, %v2168
        %v2505 = vpack.c.b16 %v2171, %v2170
        %v2506 = vpack.c.b16 %v2173, %v2172
        %v2507 = vpack.c.b16 %v2175, %v2174
        %v2508 = vpack.c.b16 %v2177, %v2176
        %v2509 = vpack.c.b16 %v2179, %v2178
        %v2510 = vpack.c.b16 %v2181, %v2180
        %v2511 = vpack.c.b16 %v2183, %v2182
        %v2512 = vpack.c.b16 %v2185, %v2184
        %v2513 = vpack.c.b16 %v2187, %v2186
        %v2514 = vpack.c.b16 %v2189, %v2188
        %v2515 = vpack.c.b16 %v2191, %v2190
        %v2516 = vpack.c.b16 %v2193, %v2192
        %v2517 = vpack.c.b16 %v2195, %v2194
        %v2518 = vpack.c.b16 %v2197, %v2196
        %v2519 = vpack.c.b16 %v2199, %v2198
        %v2520 = vpack.c.b16 %v2201, %v2200
        %v2521 = vpack.c.b16 %v2203, %v2202
        %v2522 = vpack.c.b16 %v2205, %v2204
        %v2523 = vpack.c.b16 %v2207, %v2206
        %v2524 = vpack.c.b16 %v2209, %v2208
        %v2525 = vpack.c.b16 %v2211, %v2210
        %v2526 = vpack.c.b16 %v2213, %v2212
        %v2527 = vpack.c.b16 %v2215, %v2214
        %v2528 = vpack.c.b16 %v2217, %v2216
        %v2529 = vpack.c.b16 %v2219, %v2218
        %v2530 = vpack.c.b16 %v2221, %v2220
        %v2531 = vpack.c.b16 %v2223, %v2222
        %v2532 = vpack.c.b16 %v2225, %v2224
        %v2533 = vpack.c.b16 %v2227, %v2226
        %v2534 = vpack.c.b16 %v2229, %v2228
        %v2535 = vpack.c.b16 %v2231, %v2230
        %v2536 = vpack.c.b16 %v2233, %v2232
        %v2537 = vpack.c.b16 %v2235, %v2234
        %v2538 = vpack.c.b16 %v2237, %v2236
        %v2539 = vpack.c.b16 %v2239, %v2238
        %v2540 = vpack.c.b16 %v2241, %v2240
        %v2541 = vpack.c.b16 %v2243, %v2242
        %v2542 = vpack.c.b16 %v2245, %v2244
        %v2543 = vpack.c.b16 %v2247, %v2246
        %v2544 = vpack.c.b16 %v2249, %v2248
        %v2545 = vpack.c.b16 %v2251, %v2250
        %v2546 = vpack.c.b16 %v2253, %v2252
        %v2547 = vpack.c.b16 %v2255, %v2254
        %v2548 = vpack.c.b16 %v2257, %v2256
        %v2549 = vpack.c.b16 %v2259, %v2258
        %v2550 = vpack.c.b16 %v2261, %v2260
        %v2551 = vpack.c.b16 %v2263, %v2262
        %2840 = vmatprep.subr.bf16.mxu0 0
        %2841 = vmatpush1.bf16.msra.mxu0 %v2264
        %2842 = vmatprep.subr.bf16.mxu0 0
        %2843 = vmatpush1.bf16.msra.mxu0 %v2265
        %2844 = vmatprep.subr.bf16.mxu0 0
        %2845 = vmatpush1.bf16.msra.mxu0 %v2266
        %2846 = vmatprep.subr.bf16.mxu0 0
        %2847 = vmatpush1.bf16.msra.mxu0 %v2267
        %2848 = vmatprep.subr.bf16.mxu0 0
        %2849 = vmatpush1.bf16.msra.mxu0 %v2268
        %2850 = vmatprep.subr.bf16.mxu0 0
        %2851 = vmatpush1.bf16.msra.mxu0 %v2269
        %2852 = vmatprep.subr.bf16.mxu0 0
        %2853 = vmatpush1.bf16.msra.mxu0 %v2270
        %2854 = vmatprep.subr.bf16.mxu0 0
        %2855 = vmatpush1.bf16.msra.mxu0 %v2271
        %2856 = vmatprep.subr.bf16.mxu0 0
        %2857 = vmatpush1.bf16.msra.mxu0 %v2272
        %2858 = vmatprep.subr.bf16.mxu0 0
        %2859 = vmatpush1.bf16.msra.mxu0 %v2273
        %2860 = vmatprep.subr.bf16.mxu0 0
        %2861 = vmatpush1.bf16.msra.mxu0 %v2274
        %2862 = vmatprep.subr.bf16.mxu0 0
        %2863 = vmatpush1.bf16.msra.mxu0 %v2275
        %2864 = vmatprep.subr.bf16.mxu0 0
        %2865 = vmatpush1.bf16.msra.mxu0 %v2276
        %2866 = vmatprep.subr.bf16.mxu0 0
        %2867 = vmatpush1.bf16.msra.mxu0 %v2277
        %2868 = vmatprep.subr.bf16.mxu0 0
        %2869 = vmatpush1.bf16.msra.mxu0 %v2278
        %2870 = vmatprep.subr.bf16.mxu0 0
        %2871 = vmatpush1.bf16.msra.mxu0 %v2279
        %2872 = vmatprep.mubr.bf16.mxu0 %v893
        %2873 = vmatmul.mubr.bf16.gmra.mrb[0].mxu0 %v879
        %v2874 = vpop.f32.mrb[0].mxu0
        %v2875 = vadd.f32 0.0, %v2874
        %v2876 = vpop.f32.mrb[0].mxu0
        %v2877 = vpop.f32.mrb[0].mxu0
        %v2878 = vpop.f32.mrb[0].mxu0
        %2879 = vdwg.mxu0
        %2880 = vmatprep.subr.bf16.mxu0 0
        %2881 = vmatpush1.bf16.msra.mxu0 %v2280
        %2882 = vmatprep.subr.bf16.mxu0 0
        %2883 = vmatpush1.bf16.msra.mxu0 %v2281
        %2884 = vmatprep.subr.bf16.mxu0 0
        %2885 = vmatpush1.bf16.msra.mxu0 %v2282
        %2886 = vmatprep.subr.bf16.mxu0 0
        %2887 = vmatpush1.bf16.msra.mxu0 %v2283
        %2888 = vmatprep.subr.bf16.mxu0 0
        %2889 = vmatpush1.bf16.msra.mxu0 %v2284
        %2890 = vmatprep.subr.bf16.mxu0 0
        %2891 = vmatpush1.bf16.msra.mxu0 %v2285
        %2892 = vmatprep.subr.bf16.mxu0 0
        %2893 = vmatpush1.bf16.msra.mxu0 %v2286
        %2894 = vmatprep.subr.bf16.mxu0 0
        %2895 = vmatpush1.bf16.msra.mxu0 %v2287
        %2896 = vmatprep.subr.bf16.mxu0 0
        %2897 = vmatpush1.bf16.msra.mxu0 %v2288
        %2898 = vmatprep.subr.bf16.mxu0 0
        %2899 = vmatpush1.bf16.msra.mxu0 %v2289
        %2900 = vmatprep.subr.bf16.mxu0 0
        %2901 = vmatpush1.bf16.msra.mxu0 %v2290
        %2902 = vmatprep.subr.bf16.mxu0 0
        %2903 = vmatpush1.bf16.msra.mxu0 %v2291
        %2904 = vmatprep.subr.bf16.mxu0 0
        %2905 = vmatpush1.bf16.msra.mxu0 %v2292
        %2906 = vmatprep.subr.bf16.mxu0 0
        %2907 = vmatpush1.bf16.msra.mxu0 %v2293
        %2908 = vmatprep.subr.bf16.mxu0 0
        %2909 = vmatpush1.bf16.msra.mxu0 %v2294
        %2910 = vmatprep.subr.bf16.mxu0 0
        %2911 = vmatpush1.bf16.msra.mxu0 %v2295
        %2912 = vmatprep.mubr.bf16.mxu0 %v903
        %2913 = vmatmul.mubr.bf16.gmra.mrb[0].mxu0 %v901
        %v2914 = vpop.f32.mrb[0].mxu0
        %v2915 = vadd.f32 %v2875, %v2914
        %v2916 = vpop.f32.mrb[0].mxu0
        %v2917 = vpop.f32.mrb[0].mxu0
        %v2918 = vpop.f32.mrb[0].mxu0
        %2919 = vdwg.mxu0
        %2920 = vmatprep.subr.bf16.mxu0 0
        %2921 = vmatpush1.bf16.msra.mxu0 %v2296
        %2922 = vmatprep.subr.bf16.mxu0 0
        %2923 = vmatpush1.bf16.msra.mxu0 %v2297
        %2924 = vmatprep.subr.bf16.mxu0 0
        %2925 = vmatpush1.bf16.msra.mxu0 %v2298
        %2926 = vmatprep.subr.bf16.mxu0 0
        %2927 = vmatpush1.bf16.msra.mxu0 %v2299
        %2928 = vmatprep.subr.bf16.mxu0 0
        %2929 = vmatpush1.bf16.msra.mxu0 %v2300
        %2930 = vmatprep.subr.bf16.mxu0 0
        %2931 = vmatpush1.bf16.msra.mxu0 %v2301
        %2932 = vmatprep.subr.bf16.mxu0 0
        %2933 = vmatpush1.bf16.msra.mxu0 %v2302
        %2934 = vmatprep.subr.bf16.mxu0 0
        %2935 = vmatpush1.bf16.msra.mxu0 %v2303
        %2936 = vmatprep.subr.bf16.mxu0 0
        %2937 = vmatpush1.bf16.msra.mxu0 %v2304
        %2938 = vmatprep.subr.bf16.mxu0 0
        %2939 = vmatpush1.bf16.msra.mxu0 %v2305
        %2940 = vmatprep.subr.bf16.mxu0 0
        %2941 = vmatpush1.bf16.msra.mxu0 %v2306
        %2942 = vmatprep.subr.bf16.mxu0 0
        %2943 = vmatpush1.bf16.msra.mxu0 %v2307
        %2944 = vmatprep.subr.bf16.mxu0 0
        %2945 = vmatpush1.bf16.msra.mxu0 %v2308
        %2946 = vmatprep.subr.bf16.mxu0 0
        %2947 = vmatpush1.bf16.msra.mxu0 %v2309
        %2948 = vmatprep.subr.bf16.mxu0 0
        %2949 = vmatpush1.bf16.msra.mxu0 %v2310
        %2950 = vmatprep.subr.bf16.mxu0 0
        %2951 = vmatpush1.bf16.msra.mxu0 %v2311
        %2952 = vmatprep.mubr.bf16.mxu0 %v900
        %2953 = vmatmul.mubr.bf16.gmra.mrb[0].mxu0 %v886
        %v2954 = vpop.f32.mrb[0].mxu0
        %v2955 = vadd.f32 %v2915, %v2954
        %v2956 = vpop.f32.mrb[0].mxu0
        %v2957 = vpop.f32.mrb[0].mxu0
        %v2958 = vpop.f32.mrb[0].mxu0
        %2959 = vdwg.mxu0
        %2960 = vmatprep.subr.bf16.mxu0 0
        %2961 = vmatpush1.bf16.msra.mxu0 %v2312
        %2962 = vmatprep.subr.bf16.mxu0 0
        %2963 = vmatpush1.bf16.msra.mxu0 %v2313
        %2964 = vmatprep.subr.bf16.mxu0 0
        %2965 = vmatpush1.bf16.msra.mxu0 %v2314
        %2966 = vmatprep.subr.bf16.mxu0 0
        %2967 = vmatpush1.bf16.msra.mxu0 %v2315
        %2968 = vmatprep.subr.bf16.mxu0 0
        %2969 = vmatpush1.bf16.msra.mxu0 %v2316
        %2970 = vmatprep.subr.bf16.mxu0 0
        %2971 = vmatpush1.bf16.msra.mxu0 %v2317
        %2972 = vmatprep.subr.bf16.mxu0 0
        %2973 = vmatpush1.bf16.msra.mxu0 %v2318
        %2974 = vmatprep.subr.bf16.mxu0 0
        %2975 = vmatpush1.bf16.msra.mxu0 %v2319
        %2976 = vmatprep.subr.bf16.mxu0 0
        %2977 = vmatpush1.bf16.msra.mxu0 %v2320
        %2978 = vmatprep.subr.bf16.mxu0 0
        %2979 = vmatpush1.bf16.msra.mxu0 %v2321
        %2980 = vmatprep.subr.bf16.mxu0 0
        %2981 = vmatpush1.bf16.msra.mxu0 %v2322
        %2982 = vmatprep.subr.bf16.mxu0 0
        %2983 = vmatpush1.bf16.msra.mxu0 %v2323
        %2984 = vmatprep.subr.bf16.mxu0 0
        %2985 = vmatpush1.bf16.msra.mxu0 %v2324
        %2986 = vmatprep.subr.bf16.mxu0 0
        %2987 = vmatpush1.bf16.msra.mxu0 %v2325
        %2988 = vmatprep.subr.bf16.mxu0 0
        %2989 = vmatpush1.bf16.msra.mxu0 %v2326
        %2990 = vmatprep.subr.bf16.mxu0 0
        %2991 = vmatpush1.bf16.msra.mxu0 %v2327
        %2992 = vmatprep.mubr.bf16.mxu0 %v904
        %2993 = vmatmul.mubr.bf16.gmra.mrb[0].mxu0 %v902
        %v2994 = vpop.f32.mrb[0].mxu0
        %v2995 = vadd.f32 %v2955, %v2994
        %v2996 = vpop.f32.mrb[0].mxu0
        %v2997 = vpop.f32.mrb[0].mxu0
        %v2998 = vpop.f32.mrb[0].mxu0
        %2999 = vdwg.mxu0
        %3000 = vmatprep.subr.bf16.mxu0 0
        %3001 = vmatpush1.bf16.msra.mxu0 %v2328
        %3002 = vmatprep.subr.bf16.mxu0 0
        %3003 = vmatpush1.bf16.msra.mxu0 %v2329
        %3004 = vmatprep.subr.bf16.mxu0 0
        %3005 = vmatpush1.bf16.msra.mxu0 %v2330
        %3006 = vmatprep.subr.bf16.mxu0 0
        %3007 = vmatpush1.bf16.msra.mxu0 %v2331
        %3008 = vmatprep.subr.bf16.mxu0 0
        %3009 = vmatpush1.bf16.msra.mxu0 %v2332
        %3010 = vmatprep.subr.bf16.mxu0 0
        %3011 = vmatpush1.bf16.msra.mxu0 %v2333
        %3012 = vmatprep.subr.bf16.mxu0 0
        %3013 = vmatpush1.bf16.msra.mxu0 %v2334
        %3014 = vmatprep.subr.bf16.mxu0 0
        %3015 = vmatpush1.bf16.msra.mxu0 %v2335
        %3016 = vmatprep.subr.bf16.mxu0 0
        %3017 = vmatpush1.bf16.msra.mxu0 %v2336
        %3018 = vmatprep.subr.bf16.mxu0 0
        %3019 = vmatpush1.bf16.msra.mxu0 %v2337
        %3020 = vmatprep.subr.bf16.mxu0 0
        %3021 = vmatpush1.bf16.msra.mxu0 %v2338
        %3022 = vmatprep.subr.bf16.mxu0 0
        %3023 = vmatpush1.bf16.msra.mxu0 %v2339
        %3024 = vmatprep.subr.bf16.mxu0 0
        %3025 = vmatpush1.bf16.msra.mxu0 %v2340
        %3026 = vmatprep.subr.bf16.mxu0 0
        %3027 = vmatpush1.bf16.msra.mxu0 %v2341
        %3028 = vmatprep.subr.bf16.mxu0 0
        %3029 = vmatpush1.bf16.msra.mxu0 %v2342
        %3030 = vmatprep.subr.bf16.mxu0 0
        %3031 = vmatpush1.bf16.msra.mxu0 %v2343
        %3032 = vmatprep.mubr.bf16.mxu0 %v942
        %3033 = vmatmul.mubr.bf16.gmra.mrb[0].mxu0 %v928
        %v3034 = vpop.f32.mrb[0].mxu0
        %v3035 = vadd.f32 %v2995, %v3034
        %v3036 = vpop.f32.mrb[0].mxu0
        %v3037 = vpop.f32.mrb[0].mxu0
        %v3038 = vpop.f32.mrb[0].mxu0
        %3039 = vdwg.mxu0
        %3040 = vmatprep.subr.bf16.mxu0 0
        %3041 = vmatpush1.bf16.msra.mxu0 %v2344
        %3042 = vmatprep.subr.bf16.mxu0 0
        %3043 = vmatpush1.bf16.msra.mxu0 %v2345
        %3044 = vmatprep.subr.bf16.mxu0 0
        %3045 = vmatpush1.bf16.msra.mxu0 %v2346
        %3046 = vmatprep.subr.bf16.mxu0 0
        %3047 = vmatpush1.bf16.msra.mxu0 %v2347
        %3048 = vmatprep.subr.bf16.mxu0 0
        %3049 = vmatpush1.bf16.msra.mxu0 %v2348
        %3050 = vmatprep.subr.bf16.mxu0 0
        %3051 = vmatpush1.bf16.msra.mxu0 %v2349
        %3052 = vmatprep.subr.bf16.mxu0 0
        %3053 = vmatpush1.bf16.msra.mxu0 %v2350
        %3054 = vmatprep.subr.bf16.mxu0 0
        %3055 = vmatpush1.bf16.msra.mxu0 %v2351
        %3056 = vmatprep.subr.bf16.mxu0 0
        %3057 = vmatpush1.bf16.msra.mxu0 %v2352
        %3058 = vmatprep.subr.bf16.mxu0 0
        %3059 = vmatpush1.bf16.msra.mxu0 %v2353
        %3060 = vmatprep.subr.bf16.mxu0 0
        %3061 = vmatpush1.bf16.msra.mxu0 %v2354
        %3062 = vmatprep.subr.bf16.mxu0 0
        %3063 = vmatpush1.bf16.msra.mxu0 %v2355
        %3064 = vmatprep.subr.bf16.mxu0 0
        %3065 = vmatpush1.bf16.msra.mxu0 %v2356
        %3066 = vmatprep.subr.bf16.mxu0 0
        %3067 = vmatpush1.bf16.msra.mxu0 %v2357
        %3068 = vmatprep.subr.bf16.mxu0 0
        %3069 = vmatpush1.bf16.msra.mxu0 %v2358
        %3070 = vmatprep.subr.bf16.mxu0 0
        %3071 = vmatpush1.bf16.msra.mxu0 %v2359
        %3072 = vmatprep.mubr.bf16.mxu0 %v952
        %3073 = vmatmul.mubr.bf16.gmra.mrb[0].mxu0 %v950
        %v3074 = vpop.f32.mrb[0].mxu0
        %v3075 = vadd.f32 %v3035, %v3074
        %v3076 = vpop.f32.mrb[0].mxu0
        %v3077 = vpop.f32.mrb[0].mxu0
        %v3078 = vpop.f32.mrb[0].mxu0
        %3079 = vdwg.mxu0
        %3080 = vmatprep.subr.bf16.mxu0 0
        %3081 = vmatpush1.bf16.msra.mxu0 %v2360
        %3082 = vmatprep.subr.bf16.mxu0 0
        %3083 = vmatpush1.bf16.msra.mxu0 %v2361
        %3084 = vmatprep.subr.bf16.mxu0 0
        %3085 = vmatpush1.bf16.msra.mxu0 %v2362
        %3086 = vmatprep.subr.bf16.mxu0 0
        %3087 = vmatpush1.bf16.msra.mxu0 %v2363
        %3088 = vmatprep.subr.bf16.mxu0 0
        %3089 = vmatpush1.bf16.msra.mxu0 %v2364
        %3090 = vmatprep.subr.bf16.mxu0 0
        %3091 = vmatpush1.bf16.msra.mxu0 %v2365
        %3092 = vmatprep.subr.bf16.mxu0 0
        %3093 = vmatpush1.bf16.msra.mxu0 %v2366
        %3094 = vmatprep.subr.bf16.mxu0 0
        %3095 = vmatpush1.bf16.msra.mxu0 %v2367
        %3096 = vmatprep.subr.bf16.mxu0 0
        %3097 = vmatpush1.bf16.msra.mxu0 %v2368
        %3098 = vmatprep.subr.bf16.mxu0 0
        %3099 = vmatpush1.bf16.msra.mxu0 %v2369
        %3100 = vmatprep.subr.bf16.mxu0 0
        %3101 = vmatpush1.bf16.msra.mxu0 %v2370
        %3102 = vmatprep.subr.bf16.mxu0 0
        %3103 = vmatpush1.bf16.msra.mxu0 %v2371
        %3104 = vmatprep.subr.bf16.mxu0 0
        %3105 = vmatpush1.bf16.msra.mxu0 %v2372
        %3106 = vmatprep.subr.bf16.mxu0 0
        %3107 = vmatpush1.bf16.msra.mxu0 %v2373
        %3108 = vmatprep.subr.bf16.mxu0 0
        %3109 = vmatpush1.bf16.msra.mxu0 %v2374
        %3110 = vmatprep.subr.bf16.mxu0 0
        %3111 = vmatpush1.bf16.msra.mxu0 %v2375
        %3112 = vmatprep.mubr.bf16.mxu0 %v949
        %3113 = vmatmul.mubr.bf16.gmra.mrb[0].mxu0 %v935
        %v3114 = vpop.f32.mrb[0].mxu0
        %v3115 = vadd.f32 %v3075, %v3114
        %v3116 = vpop.f32.mrb[0].mxu0
        %v3117 = vpop.f32.mrb[0].mxu0
        %v3118 = vpop.f32.mrb[0].mxu0
        %3119 = vdwg.mxu0
        %3120 = vmatprep.subr.bf16.mxu0 0
        %3121 = vmatpush1.bf16.msra.mxu0 %v2376
        %3122 = vmatprep.subr.bf16.mxu0 0
        %3123 = vmatpush1.bf16.msra.mxu0 %v2377
        %3124 = vmatprep.subr.bf16.mxu0 0
        %3125 = vmatpush1.bf16.msra.mxu0 %v2378
        %3126 = vmatprep.subr.bf16.mxu0 0
        %3127 = vmatpush1.bf16.msra.mxu0 %v2379
        %3128 = vmatprep.subr.bf16.mxu0 0
        %3129 = vmatpush1.bf16.msra.mxu0 %v2380
        %3130 = vmatprep.subr.bf16.mxu0 0
        %3131 = vmatpush1.bf16.msra.mxu0 %v2381
        %3132 = vmatprep.subr.bf16.mxu0 0
        %3133 = vmatpush1.bf16.msra.mxu0 %v2382
        %3134 = vmatprep.subr.bf16.mxu0 0
        %3135 = vmatpush1.bf16.msra.mxu0 %v2383
        %3136 = vmatprep.subr.bf16.mxu0 0
        %3137 = vmatpush1.bf16.msra.mxu0 %v2384
        %3138 = vmatprep.subr.bf16.mxu0 0
        %3139 = vmatpush1.bf16.msra.mxu0 %v2385
        %3140 = vmatprep.subr.bf16.mxu0 0
        %3141 = vmatpush1.bf16.msra.mxu0 %v2386
        %3142 = vmatprep.subr.bf16.mxu0 0
        %3143 = vmatpush1.bf16.msra.mxu0 %v2387
        %3144 = vmatprep.subr.bf16.mxu0 0
        %3145 = vmatpush1.bf16.msra.mxu0 %v2388
        %3146 = vmatprep.subr.bf16.mxu0 0
        %3147 = vmatpush1.bf16.msra.mxu0 %v2389
        %3148 = vmatprep.subr.bf16.mxu0 0
        %3149 = vmatpush1.bf16.msra.mxu0 %v2390
        %3150 = vmatprep.subr.bf16.mxu0 0
        %3151 = vmatpush1.bf16.msra.mxu0 %v2391
        %3152 = vmatprep.mubr.bf16.mxu0 %v953
        %3153 = vmatmul.mubr.bf16.gmra.mrb[0].mxu0 %v951
        %v3154 = vpop.f32.mrb[0].mxu0
        %v3155 = vadd.f32 %v3115, %v3154
        %v3156 = vpop.f32.mrb[0].mxu0
        %v3157 = vpop.f32.mrb[0].mxu0
        %v3158 = vpop.f32.mrb[0].mxu0
        %3159 = vdwg.mxu0
        %3160 = vmatprep.subr.bf16.mxu0 0
        %3161 = vmatpush1.bf16.msra.mxu0 %v2392
        %3162 = vmatprep.subr.bf16.mxu0 0
        %3163 = vmatpush1.bf16.msra.mxu0 %v2393
        %3164 = vmatprep.subr.bf16.mxu0 0
        %3165 = vmatpush1.bf16.msra.mxu0 %v2394
        %3166 = vmatprep.subr.bf16.mxu0 0
        %3167 = vmatpush1.bf16.msra.mxu0 %v2395
        %3168 = vmatprep.subr.bf16.mxu0 0
        %3169 = vmatpush1.bf16.msra.mxu0 %v2396
        %3170 = vmatprep.subr.bf16.mxu0 0
        %3171 = vmatpush1.bf16.msra.mxu0 %v2397
        %3172 = vmatprep.subr.bf16.mxu0 0
        %3173 = vmatpush1.bf16.msra.mxu0 %v2398
        %3174 = vmatprep.subr.bf16.mxu0 0
        %3175 = vmatpush1.bf16.msra.mxu0 %v2399
        %3176 = vmatprep.subr.bf16.mxu0 0
        %3177 = vmatpush1.bf16.msra.mxu0 %v2400
        %3178 = vmatprep.subr.bf16.mxu0 0
        %3179 = vmatpush1.bf16.msra.mxu0 %v2401
        %3180 = vmatprep.subr.bf16.mxu0 0
        %3181 = vmatpush1.bf16.msra.mxu0 %v2402
        %3182 = vmatprep.subr.bf16.mxu0 0
        %3183 = vmatpush1.bf16.msra.mxu0 %v2403
        %3184 = vmatprep.subr.bf16.mxu0 0
        %3185 = vmatpush1.bf16.msra.mxu0 %v2404
        %3186 = vmatprep.subr.bf16.mxu0 0
        %3187 = vmatpush1.bf16.msra.mxu0 %v2405
        %3188 = vmatprep.subr.bf16.mxu0 0
        %3189 = vmatpush1.bf16.msra.mxu0 %v2406
        %3190 = vmatprep.subr.bf16.mxu0 0
        %3191 = vmatpush1.bf16.msra.mxu0 %v2407
        %3192 = vmatprep.mubr.bf16.mxu0 %v991
        %3193 = vmatmul.mubr.bf16.gmra.mrb[0].mxu0 %v977
        %v3194 = vpop.f32.mrb[0].mxu0
        %v3195 = vadd.f32 %v3155, %v3194
        %v3196 = vpop.f32.mrb[0].mxu0
        %v3197 = vpop.f32.mrb[0].mxu0
        %v3198 = vpop.f32.mrb[0].mxu0
        %3199 = vdwg.mxu0
        %3200 = vmatprep.subr.bf16.mxu0 0
        %3201 = vmatpush1.bf16.msra.mxu0 %v2408
        %3202 = vmatprep.subr.bf16.mxu0 0
        %3203 = vmatpush1.bf16.msra.mxu0 %v2409
        %3204 = vmatprep.subr.bf16.mxu0 0
        %3205 = vmatpush1.bf16.msra.mxu0 %v2410
        %3206 = vmatprep.subr.bf16.mxu0 0
        %3207 = vmatpush1.bf16.msra.mxu0 %v2411
        %3208 = vmatprep.subr.bf16.mxu0 0
        %3209 = vmatpush1.bf16.msra.mxu0 %v2412
        %3210 = vmatprep.subr.bf16.mxu0 0
        %3211 = vmatpush1.bf16.msra.mxu0 %v2413
        %3212 = vmatprep.subr.bf16.mxu0 0
        %3213 = vmatpush1.bf16.msra.mxu0 %v2414
        %3214 = vmatprep.subr.bf16.mxu0 0
        %3215 = vmatpush1.bf16.msra.mxu0 %v2415
        %3216 = vmatprep.subr.bf16.mxu0 0
        %3217 = vmatpush1.bf16.msra.mxu0 %v2416
        %3218 = vmatprep.subr.bf16.mxu0 0
        %3219 = vmatpush1.bf16.msra.mxu0 %v2417
        %3220 = vmatprep.subr.bf16.mxu0 0
        %3221 = vmatpush1.bf16.msra.mxu0 %v2418
        %3222 = vmatprep.subr.bf16.mxu0 0
        %3223 = vmatpush1.bf16.msra.mxu0 %v2419
        %3224 = vmatprep.subr.bf16.mxu0 0
        %3225 = vmatpush1.bf16.msra.mxu0 %v2420
        %3226 = vmatprep.subr.bf16.mxu0 0
        %3227 = vmatpush1.bf16.msra.mxu0 %v2421
        %3228 = vmatprep.subr.bf16.mxu0 0
        %3229 = vmatpush1.bf16.msra.mxu0 %v2422
        %3230 = vmatprep.subr.bf16.mxu0 0
        %3231 = vmatpush1.bf16.msra.mxu0 %v2423
        %3232 = vmatprep.mubr.bf16.mxu0 %v1001
        %3233 = vmatmul.mubr.bf16.gmra.mrb[0].mxu0 %v999
        %v3234 = vpop.f32.mrb[0].mxu0
        %v3235 = vadd.f32 %v3195, %v3234
        %v3236 = vpop.f32.mrb[0].mxu0
        %v3237 = vpop.f32.mrb[0].mxu0
        %v3238 = vpop.f32.mrb[0].mxu0
        %3239 = vdwg.mxu0
        %3240 = vmatprep.subr.bf16.mxu0 0
        %3241 = vmatpush1.bf16.msra.mxu0 %v2424
        %3242 = vmatprep.subr.bf16.mxu0 0
        %3243 = vmatpush1.bf16.msra.mxu0 %v2425
        %3244 = vmatprep.subr.bf16.mxu0 0
        %3245 = vmatpush1.bf16.msra.mxu0 %v2426
        %3246 = vmatprep.subr.bf16.mxu0 0
        %3247 = vmatpush1.bf16.msra.mxu0 %v2427
        %3248 = vmatprep.subr.bf16.mxu0 0
        %3249 = vmatpush1.bf16.msra.mxu0 %v2428
        %3250 = vmatprep.subr.bf16.mxu0 0
        %3251 = vmatpush1.bf16.msra.mxu0 %v2429
        %3252 = vmatprep.subr.bf16.mxu0 0
        %3253 = vmatpush1.bf16.msra.mxu0 %v2430
        %3254 = vmatprep.subr.bf16.mxu0 0
        %3255 = vmatpush1.bf16.msra.mxu0 %v2431
        %3256 = vmatprep.subr.bf16.mxu0 0
        %3257 = vmatpush1.bf16.msra.mxu0 %v2432
        %3258 = vmatprep.subr.bf16.mxu0 0
        %3259 = vmatpush1.bf16.msra.mxu0 %v2433
        %3260 = vmatprep.subr.bf16.mxu0 0
        %3261 = vmatpush1.bf16.msra.mxu0 %v2434
        %3262 = vmatprep.subr.bf16.mxu0 0
        %3263 = vmatpush1.bf16.msra.mxu0 %v2435
        %3264 = vmatprep.subr.bf16.mxu0 0
        %3265 = vmatpush1.bf16.msra.mxu0 %v2436
        %3266 = vmatprep.subr.bf16.mxu0 0
        %3267 = vmatpush1.bf16.msra.mxu0 %v2437
        %3268 = vmatprep.subr.bf16.mxu0 0
        %3269 = vmatpush1.bf16.msra.mxu0 %v2438
        %3270 = vmatprep.subr.bf16.mxu0 0
        %3271 = vmatpush1.bf16.msra.mxu0 %v2439
        %3272 = vmatprep.mubr.bf16.mxu0 %v998
        %3273 = vmatmul.mubr.bf16.gmra.mrb[0].mxu0 %v984
        %v3274 = vpop.f32.mrb[0].mxu0
        %v3275 = vadd.f32 %v3235, %v3274
        %v3276 = vpop.f32.mrb[0].mxu0
        %v3277 = vpop.f32.mrb[0].mxu0
        %v3278 = vpop.f32.mrb[0].mxu0
        %3279 = vdwg.mxu0
        %3280 = vmatprep.subr.bf16.mxu0 0
        %3281 = vmatpush1.bf16.msra.mxu0 %v2440
        %3282 = vmatprep.subr.bf16.mxu0 0
        %3283 = vmatpush1.bf16.msra.mxu0 %v2441
        %3284 = vmatprep.subr.bf16.mxu0 0
        %3285 = vmatpush1.bf16.msra.mxu0 %v2442
        %3286 = vmatprep.subr.bf16.mxu0 0
        %3287 = vmatpush1.bf16.msra.mxu0 %v2443
        %3288 = vmatprep.subr.bf16.mxu0 0
        %3289 = vmatpush1.bf16.msra.mxu0 %v2444
        %3290 = vmatprep.subr.bf16.mxu0 0
        %3291 = vmatpush1.bf16.msra.mxu0 %v2445
        %3292 = vmatprep.subr.bf16.mxu0 0
        %3293 = vmatpush1.bf16.msra.mxu0 %v2446
        %3294 = vmatprep.subr.bf16.mxu0 0
        %3295 = vmatpush1.bf16.msra.mxu0 %v2447
        %3296 = vmatprep.subr.bf16.mxu0 0
        %3297 = vmatpush1.bf16.msra.mxu0 %v2448
        %3298 = vmatprep.subr.bf16.mxu0 0
        %3299 = vmatpush1.bf16.msra.mxu0 %v2449
        %3300 = vmatprep.subr.bf16.mxu0 0
        %3301 = vmatpush1.bf16.msra.mxu0 %v2450
        %3302 = vmatprep.subr.bf16.mxu0 0
        %3303 = vmatpush1.bf16.msra.mxu0 %v2451
        %3304 = vmatprep.subr.bf16.mxu0 0
        %3305 = vmatpush1.bf16.msra.mxu0 %v2452
        %3306 = vmatprep.subr.bf16.mxu0 0
        %3307 = vmatpush1.bf16.msra.mxu0 %v2453
        %3308 = vmatprep.subr.bf16.mxu0 0
        %3309 = vmatpush1.bf16.msra.mxu0 %v2454
        %3310 = vmatprep.subr.bf16.mxu0 0
        %3311 = vmatpush1.bf16.msra.mxu0 %v2455
        %3312 = vmatprep.mubr.bf16.mxu0 %v1002
        %3313 = vmatmul.mubr.bf16.gmra.mrb[0].mxu0 %v1000
        %v3314 = vpop.f32.mrb[0].mxu0
        %v3315 = vadd.f32 %v3275, %v3314
        %v3316 = vpop.f32.mrb[0].mxu0
        %v3317 = vpop.f32.mrb[0].mxu0
        %v3318 = vpop.f32.mrb[0].mxu0
        %3319 = vdwg.mxu0
        %3320 = vmatprep.subr.bf16.mxu0 0
        %3321 = vmatpush1.bf16.msra.mxu0 %v2456
        %3322 = vmatprep.subr.bf16.mxu0 0
        %3323 = vmatpush1.bf16.msra.mxu0 %v2457
        %3324 = vmatprep.subr.bf16.mxu0 0
        %3325 = vmatpush1.bf16.msra.mxu0 %v2458
        %3326 = vmatprep.subr.bf16.mxu0 0
        %3327 = vmatpush1.bf16.msra.mxu0 %v2459
        %3328 = vmatprep.subr.bf16.mxu0 0
        %3329 = vmatpush1.bf16.msra.mxu0 %v2460
        %3330 = vmatprep.subr.bf16.mxu0 0
        %3331 = vmatpush1.bf16.msra.mxu0 %v2461
        %3332 = vmatprep.subr.bf16.mxu0 0
        %3333 = vmatpush1.bf16.msra.mxu0 %v2462
        %3334 = vmatprep.subr.bf16.mxu0 0
        %3335 = vmatpush1.bf16.msra.mxu0 %v2463
        %3336 = vmatprep.subr.bf16.mxu0 0
        %3337 = vmatpush1.bf16.msra.mxu0 %v2464
        %3338 = vmatprep.subr.bf16.mxu0 0
        %3339 = vmatpush1.bf16.msra.mxu0 %v2465
        %3340 = vmatprep.subr.bf16.mxu0 0
        %3341 = vmatpush1.bf16.msra.mxu0 %v2466
        %3342 = vmatprep.subr.bf16.mxu0 0
        %3343 = vmatpush1.bf16.msra.mxu0 %v2467
        %3344 = vmatprep.subr.bf16.mxu0 0
        %3345 = vmatpush1.bf16.msra.mxu0 %v2468
        %3346 = vmatprep.subr.bf16.mxu0 0
        %3347 = vmatpush1.bf16.msra.mxu0 %v2469
        %3348 = vmatprep.subr.bf16.mxu0 0
        %3349 = vmatpush1.bf16.msra.mxu0 %v2470
        %3350 = vmatprep.subr.bf16.mxu0 0
        %3351 = vmatpush1.bf16.msra.mxu0 %v2471
        %3352 = vmatprep.mubr.bf16.mxu0 %v1040
        %3353 = vmatmul.mubr.bf16.gmra.mrb[0].mxu0 %v1026
        %v3354 = vpop.f32.mrb[0].mxu0
        %v3355 = vadd.f32 %v3315, %v3354
        %v3356 = vpop.f32.mrb[0].mxu0
        %v3357 = vpop.f32.mrb[0].mxu0
        %v3358 = vpop.f32.mrb[0].mxu0
        %3359 = vdwg.mxu0
        %3360 = vmatprep.subr.bf16.mxu0 0
        %3361 = vmatpush1.bf16.msra.mxu0 %v2472
        %3362 = vmatprep.subr.bf16.mxu0 0
        %3363 = vmatpush1.bf16.msra.mxu0 %v2473
        %3364 = vmatprep.subr.bf16.mxu0 0
        %3365 = vmatpush1.bf16.msra.mxu0 %v2474
        %3366 = vmatprep.subr.bf16.mxu0 0
        %3367 = vmatpush1.bf16.msra.mxu0 %v2475
        %3368 = vmatprep.subr.bf16.mxu0 0
        %3369 = vmatpush1.bf16.msra.mxu0 %v2476
        %3370 = vmatprep.subr.bf16.mxu0 0
        %3371 = vmatpush1.bf16.msra.mxu0 %v2477
        %3372 = vmatprep.subr.bf16.mxu0 0
        %3373 = vmatpush1.bf16.msra.mxu0 %v2478
        %3374 = vmatprep.subr.bf16.mxu0 0
        %3375 = vmatpush1.bf16.msra.mxu0 %v2479
        %3376 = vmatprep.subr.bf16.mxu0 0
        %3377 = vmatpush1.bf16.msra.mxu0 %v2480
        %3378 = vmatprep.subr.bf16.mxu0 0
        %3379 = vmatpush1.bf16.msra.mxu0 %v2481
        %3380 = vmatprep.subr.bf16.mxu0 0
        %3381 = vmatpush1.bf16.msra.mxu0 %v2482
        %3382 = vmatprep.subr.bf16.mxu0 0
        %3383 = vmatpush1.bf16.msra.mxu0 %v2483
        %3384 = vmatprep.subr.bf16.mxu0 0
        %3385 = vmatpush1.bf16.msra.mxu0 %v2484
        %3386 = vmatprep.subr.bf16.mxu0 0
        %3387 = vmatpush1.bf16.msra.mxu0 %v2485
        %3388 = vmatprep.subr.bf16.mxu0 0
        %3389 = vmatpush1.bf16.msra.mxu0 %v2486
        %3390 = vmatprep.subr.bf16.mxu0 0
        %3391 = vmatpush1.bf16.msra.mxu0 %v2487
        %3392 = vmatprep.mubr.bf16.mxu0 %v1050
        %3393 = vmatmul.mubr.bf16.gmra.mrb[0].mxu0 %v1048
        %v3394 = vpop.f32.mrb[0].mxu0
        %v3395 = vadd.f32 %v3355, %v3394
        %v3396 = vpop.f32.mrb[0].mxu0
        %v3397 = vpop.f32.mrb[0].mxu0
        %v3398 = vpop.f32.mrb[0].mxu0
        %3399 = vdwg.mxu0
        %3400 = vmatprep.subr.bf16.mxu0 0
        %3401 = vmatpush1.bf16.msra.mxu0 %v2488
        %3402 = vmatprep.subr.bf16.mxu0 0
        %3403 = vmatpush1.bf16.msra.mxu0 %v2489
        %3404 = vmatprep.subr.bf16.mxu0 0
        %3405 = vmatpush1.bf16.msra.mxu0 %v2490
        %3406 = vmatprep.subr.bf16.mxu0 0
        %3407 = vmatpush1.bf16.msra.mxu0 %v2491
        %3408 = vmatprep.subr.bf16.mxu0 0
        %3409 = vmatpush1.bf16.msra.mxu0 %v2492
        %3410 = vmatprep.subr.bf16.mxu0 0
        %3411 = vmatpush1.bf16.msra.mxu0 %v2493
        %3412 = vmatprep.subr.bf16.mxu0 0
        %3413 = vmatpush1.bf16.msra.mxu0 %v2494
        %3414 = vmatprep.subr.bf16.mxu0 0
        %3415 = vmatpush1.bf16.msra.mxu0 %v2495
        %3416 = vmatprep.subr.bf16.mxu0 0
        %3417 = vmatpush1.bf16.msra.mxu0 %v2496
        %3418 = vmatprep.subr.bf16.mxu0 0
        %3419 = vmatpush1.bf16.msra.mxu0 %v2497
        %3420 = vmatprep.subr.bf16.mxu0 0
        %3421 = vmatpush1.bf16.msra.mxu0 %v2498
        %3422 = vmatprep.subr.bf16.mxu0 0
        %3423 = vmatpush1.bf16.msra.mxu0 %v2499
        %3424 = vmatprep.subr.bf16.mxu0 0
        %3425 = vmatpush1.bf16.msra.mxu0 %v2500
        %3426 = vmatprep.subr.bf16.mxu0 0
        %3427 = vmatpush1.bf16.msra.mxu0 %v2501
        %3428 = vmatprep.subr.bf16.mxu0 0
        %3429 = vmatpush1.bf16.msra.mxu0 %v2502
        %3430 = vmatprep.subr.bf16.mxu0 0
        %3431 = vmatpush1.bf16.msra.mxu0 %v2503
        %3432 = vmatprep.mubr.bf16.mxu0 %v1047
        %3433 = vmatmul.mubr.bf16.gmra.mrb[0].mxu0 %v1033
        %v3434 = vpop.f32.mrb[0].mxu0
        %v3435 = vadd.f32 %v3395, %v3434
        %v3436 = vpop.f32.mrb[0].mxu0
        %v3437 = vpop.f32.mrb[0].mxu0
        %v3438 = vpop.f32.mrb[0].mxu0
        %3439 = vdwg.mxu0
        %3440 = vmatprep.subr.bf16.mxu0 0
        %3441 = vmatpush1.bf16.msra.mxu0 %v2504
        %3442 = vmatprep.subr.bf16.mxu0 0
        %3443 = vmatpush1.bf16.msra.mxu0 %v2505
        %3444 = vmatprep.subr.bf16.mxu0 0
        %3445 = vmatpush1.bf16.msra.mxu0 %v2506
        %3446 = vmatprep.subr.bf16.mxu0 0
        %3447 = vmatpush1.bf16.msra.mxu0 %v2507
        %3448 = vmatprep.subr.bf16.mxu0 0
        %3449 = vmatpush1.bf16.msra.mxu0 %v2508
        %3450 = vmatprep.subr.bf16.mxu0 0
        %3451 = vmatpush1.bf16.msra.mxu0 %v2509
        %3452 = vmatprep.subr.bf16.mxu0 0
        %3453 = vmatpush1.bf16.msra.mxu0 %v2510
        %3454 = vmatprep.subr.bf16.mxu0 0
        %3455 = vmatpush1.bf16.msra.mxu0 %v2511
        %3456 = vmatprep.subr.bf16.mxu0 0
        %3457 = vmatpush1.bf16.msra.mxu0 %v2512
        %3458 = vmatprep.subr.bf16.mxu0 0
        %3459 = vmatpush1.bf16.msra.mxu0 %v2513
        %3460 = vmatprep.subr.bf16.mxu0 0
        %3461 = vmatpush1.bf16.msra.mxu0 %v2514
        %3462 = vmatprep.subr.bf16.mxu0 0
        %3463 = vmatpush1.bf16.msra.mxu0 %v2515
        %3464 = vmatprep.subr.bf16.mxu0 0
        %3465 = vmatpush1.bf16.msra.mxu0 %v2516
        %3466 = vmatprep.subr.bf16.mxu0 0
        %3467 = vmatpush1.bf16.msra.mxu0 %v2517
        %3468 = vmatprep.subr.bf16.mxu0 0
        %3469 = vmatpush1.bf16.msra.mxu0 %v2518
        %3470 = vmatprep.subr.bf16.mxu0 0
        %3471 = vmatpush1.bf16.msra.mxu0 %v2519
        %3472 = vmatprep.mubr.bf16.mxu0 %v1051
        %3473 = vmatmul.mubr.bf16.gmra.mrb[0].mxu0 %v1049
        %v3474 = vpop.f32.mrb[0].mxu0
        %v3475 = vadd.f32 %v3435, %v3474
        %v3476 = vpop.f32.mrb[0].mxu0
        %v3477 = vpop.f32.mrb[0].mxu0
        %v3478 = vpop.f32.mrb[0].mxu0
        %3479 = vdwg.mxu0
        %3480 = vmatprep.subr.bf16.mxu0 0
        %3481 = vmatpush1.bf16.msra.mxu0 %v2520
        %3482 = vmatprep.subr.bf16.mxu0 0
        %3483 = vmatpush1.bf16.msra.mxu0 %v2521
        %3484 = vmatprep.subr.bf16.mxu0 0
        %3485 = vmatpush1.bf16.msra.mxu0 %v2522
        %3486 = vmatprep.subr.bf16.mxu0 0
        %3487 = vmatpush1.bf16.msra.mxu0 %v2523
        %3488 = vmatprep.subr.bf16.mxu0 0
        %3489 = vmatpush1.bf16.msra.mxu0 %v2524
        %3490 = vmatprep.subr.bf16.mxu0 0
        %3491 = vmatpush1.bf16.msra.mxu0 %v2525
        %3492 = vmatprep.subr.bf16.mxu0 0
        %3493 = vmatpush1.bf16.msra.mxu0 %v2526
        %3494 = vmatprep.subr.bf16.mxu0 0
        %3495 = vmatpush1.bf16.msra.mxu0 %v2527
        %3496 = vmatprep.subr.bf16.mxu0 0
        %3497 = vmatpush1.bf16.msra.mxu0 %v2528
        %3498 = vmatprep.subr.bf16.mxu0 0
        %3499 = vmatpush1.bf16.msra.mxu0 %v2529
        %3500 = vmatprep.subr.bf16.mxu0 0
        %3501 = vmatpush1.bf16.msra.mxu0 %v2530
        %3502 = vmatprep.subr.bf16.mxu0 0
        %3503 = vmatpush1.bf16.msra.mxu0 %v2531
        %3504 = vmatprep.subr.bf16.mxu0 0
        %3505 = vmatpush1.bf16.msra.mxu0 %v2532
        %3506 = vmatprep.subr.bf16.mxu0 0
        %3507 = vmatpush1.bf16.msra.mxu0 %v2533
        %3508 = vmatprep.subr.bf16.mxu0 0
        %3509 = vmatpush1.bf16.msra.mxu0 %v2534
        %3510 = vmatprep.subr.bf16.mxu0 0
        %3511 = vmatpush1.bf16.msra.mxu0 %v2535
        %3512 = vmatprep.mubr.bf16.mxu0 %v1073
        %3513 = vmatmul.mubr.bf16.gmra.mrb[0].mxu0 %v1066
        %v3514 = vpop.f32.mrb[0].mxu0
        %v3515 = vadd.f32 %v3475, %v3514
        %v3516 = vpop.f32.mrb[0].mxu0
        %v3517 = vpop.f32.mrb[0].mxu0
        %v3518 = vpop.f32.mrb[0].mxu0
        %3519 = vdwg.mxu0
        %3520 = vmatprep.subr.bf16.mxu0 0
        %3521 = vmatpush1.bf16.msra.mxu0 %v2536
        %3522 = vmatprep.subr.bf16.mxu0 0
        %3523 = vmatpush1.bf16.msra.mxu0 %v2537
        %3524 = vmatprep.subr.bf16.mxu0 0
        %3525 = vmatpush1.bf16.msra.mxu0 %v2538
        %3526 = vmatprep.subr.bf16.mxu0 0
        %3527 = vmatpush1.bf16.msra.mxu0 %v2539
        %3528 = vmatprep.subr.bf16.mxu0 0
        %3529 = vmatpush1.bf16.msra.mxu0 %v2540
        %3530 = vmatprep.subr.bf16.mxu0 0
        %3531 = vmatpush1.bf16.msra.mxu0 %v2541
        %3532 = vmatprep.subr.bf16.mxu0 0
        %3533 = vmatpush1.bf16.msra.mxu0 %v2542
        %3534 = vmatprep.subr.bf16.mxu0 0
        %3535 = vmatpush1.bf16.msra.mxu0 %v2543
        %3536 = vmatprep.subr.bf16.mxu0 0
        %3537 = vmatpush1.bf16.msra.mxu0 %v2544
        %3538 = vmatprep.subr.bf16.mxu0 0
        %3539 = vmatpush1.bf16.msra.mxu0 %v2545
        %3540 = vmatprep.subr.bf16.mxu0 0
        %3541 = vmatpush1.bf16.msra.mxu0 %v2546
        %3542 = vmatprep.subr.bf16.mxu0 0
        %3543 = vmatpush1.bf16.msra.mxu0 %v2547
        %3544 = vmatprep.subr.bf16.mxu0 0
        %3545 = vmatpush1.bf16.msra.mxu0 %v2548
        %3546 = vmatprep.subr.bf16.mxu0 0
        %3547 = vmatpush1.bf16.msra.mxu0 %v2549
        %3548 = vmatprep.subr.bf16.mxu0 0
        %3549 = vmatpush1.bf16.msra.mxu0 %v2550
        %3550 = vmatprep.subr.bf16.mxu0 0
        %3551 = vmatpush1.bf16.msra.mxu0 %v2551
        %3552 = vmatprep.mubr.bf16.mxu0 %v1075
        %3553 = vmatmul.mubr.bf16.gmra.mrb[0].mxu0 %v1074
        %v3554 = vpop.f32.mrb[0].mxu0
        %v3555 = vadd.f32 %v3515, %v3554
        %v3556 = vpop.f32.mrb[0].mxu0
        %v3557 = vpop.f32.mrb[0].mxu0
        %v3558 = vpop.f32.mrb[0].mxu0
        %3559 = vdwg.mxu0
        %v3560 = vadd.f32 %v269, %v3555
        %3561 = vst [vmem:[#allocation2] sm:$0x3] %v3560
        %p3562 = scmp.eq.s32.totalorder %s22, 1
        // Predicated region
        $region45: #{net_forward.3} parent=39 // pred_check
          %p3563 = pneg %p3562
        $region46: #{net_forward.3} parent=39 // pred_check_branch
          %3565 = sbr.rel (%p3563) target = $region48
        $region47: #{net_forward.3} parent=39 // pred_region
          %v3566 = vld [vmem:[#allocation2] sm:$0x3]
          %v3567 = vld [vmem:[%s2] sm:$0x1]
          %v3569 = vlaneseq
          %v3570 = vshrl.u32 %v3569, 7
          %v3571 = vsub.s32 0, %v3570
          %v3572 = vrot.slane %v3567, %v3571
          %v3574 = vadd.f32 %v3566, %v3572
          %v3575 = vmax.f32 %v3574, 0.0
          %v3576 = vpack.c.bf16 %v3575, %v3575
          %v3577 = vld [vmem:[%s3] sm:$0xf]
          %v3578 = vld [vmem:[%s3 + $0x4] sm:$0xf]
          %v3579 = vld [vmem:[%s3 + $0x8] sm:$0xf]
          %v3580 = vld [vmem:[%s3 + $0xc] sm:$0xf]
          %v3581 = vld [vmem:[%s3 + $0x10] sm:$0xf]
          %v3582 = vld [vmem:[%s3 + $0x14] sm:$0xf]
          %v3583 = vld [vmem:[%s3 + $0x18] sm:$0xf]
          %v3584 = vld [vmem:[%s3 + $0x1c] sm:$0xf]
          %v3585 = vld [vmem:[%s3 + $0x20] sm:$0xf]
          %v3586 = vld [vmem:[%s3 + $0x24] sm:$0xf]
          %v3587 = vld [vmem:[%s3 + $0x28] sm:$0xf]
          %v3588 = vld [vmem:[%s3 + $0x2c] sm:$0xf]
          %v3589 = vld [vmem:[%s3 + $0x30] sm:$0xf]
          %v3590 = vld [vmem:[%s3 + $0x34] sm:$0xf]
          %v3591 = vld [vmem:[%s3 + $0x38] sm:$0xf]
          %v3592 = vld [vmem:[%s3 + $0x3c] sm:$0xf]
          %v3593 = vld [vmem:[%s4] sm:$0x1]
          %v3595 = vlaneseq
          %v3596 = vshrl.u32 %v3595, 7
          %v3597 = vsub.s32 0, %v3596
          %v3598 = vrot.slane %v3593, %v3597
          %v3616 = vunpack.c.l.b16 %v3577
          %v3617 = vunpack.c.l.b16 %v3578
          %v3618 = vunpack.c.l.b16 %v3579
          %v3619 = vunpack.c.l.b16 %v3580
          %v3620 = vunpack.c.l.b16 %v3581
          %v3621 = vunpack.c.l.b16 %v3582
          %v3622 = vunpack.c.l.b16 %v3583
          %v3623 = vunpack.c.l.b16 %v3584
          %v3624 = vunpack.c.l.b16 %v3585
          %v3625 = vunpack.c.l.b16 %v3586
          %v3626 = vunpack.c.l.b16 %v3587
          %v3627 = vunpack.c.l.b16 %v3588
          %v3628 = vunpack.c.l.b16 %v3589
          %v3629 = vunpack.c.l.b16 %v3590
          %v3630 = vunpack.c.l.b16 %v3591
          %v3631 = vunpack.c.l.b16 %v3592
          %v3632 = vpack.c.b16 %v3617, %v3616
          %v3633 = vpack.c.b16 %v3619, %v3618
          %v3634 = vpack.c.b16 %v3621, %v3620
          %v3635 = vpack.c.b16 %v3623, %v3622
          %v3636 = vpack.c.b16 %v3625, %v3624
          %v3637 = vpack.c.b16 %v3627, %v3626
          %v3638 = vpack.c.b16 %v3629, %v3628
          %v3639 = vpack.c.b16 %v3631, %v3630
          %3648 = vmatprep.subr.bf16.mxu0 0
          %3649 = vmatpush1.bf16.msra.mxu0 %v3632
          %3650 = vmatprep.subr.bf16.mxu0 0
          %3651 = vmatpush1.bf16.msra.mxu0 %v3633
          %3652 = vmatprep.subr.bf16.mxu0 0
          %3653 = vmatpush1.bf16.msra.mxu0 %v3634
          %3654 = vmatprep.subr.bf16.mxu0 0
          %3655 = vmatpush1.bf16.msra.mxu0 %v3635
          %3656 = vmatprep.subr.bf16.mxu0 0
          %3657 = vmatpush1.bf16.msra.mxu0 %v3636
          %3658 = vmatprep.subr.bf16.mxu0 0
          %3659 = vmatpush1.bf16.msra.mxu0 %v3637
          %3660 = vmatprep.subr.bf16.mxu0 0
          %3661 = vmatpush1.bf16.msra.mxu0 %v3638
          %3662 = vmatprep.subr.bf16.mxu0 0
          %3663 = vmatpush1.bf16.msra.mxu0 %v3639
          %3664 = vmatprep.subr.bf16.mxu0 0
          %3665 = vmatpush1.bf16.msra.mxu0 0
          %3666 = vmatprep.subr.bf16.mxu0 0
          %3667 = vmatpush1.bf16.msra.mxu0 0
          %3668 = vmatprep.subr.bf16.mxu0 0
          %3669 = vmatpush1.bf16.msra.mxu0 0
          %3670 = vmatprep.subr.bf16.mxu0 0
          %3671 = vmatpush1.bf16.msra.mxu0 0
          %3672 = vmatprep.subr.bf16.mxu0 0
          %3673 = vmatpush1.bf16.msra.mxu0 0
          %3674 = vmatprep.subr.bf16.mxu0 0
          %3675 = vmatpush1.bf16.msra.mxu0 0
          %3676 = vmatprep.subr.bf16.mxu0 0
          %3677 = vmatpush1.bf16.msra.mxu0 0
          %3678 = vmatprep.subr.bf16.mxu0 0
          %3679 = vmatpush1.bf16.msra.mxu0 0
          %3680 = vmatprep.mubr.bf16.mxu0 0
          %3681 = vmatmul.mubr.bf16.gmra.mrb[0].mxu0 %v3576
          %v3682 = vpop.f32.mrb[0].mxu0
          %v3683 = vadd.f32 %v3598, %v3682
          %v3684 = vpop.f32.mrb[0].mxu0
          %v3685 = vpop.f32.mrb[0].mxu0
          %v3686 = vpop.f32.mrb[0].mxu0
          %3687 = vdwg.mxu0
          %vm3688 = vcmask 74752
          %3689 = vst.msk [vmem:[#allocation3] sm:$0x3] %vm3688, %v3683
        $region48: #{net_forward.3} parent=39 // pred_fallthru
          _
        // Predicated region
        $region49: #{net_forward.3} parent=39 // pred_check
          %p3690 = pneg %p164
        $region50: #{net_forward.3} parent=39 // pred_check_branch
          %3692 = sbr.rel (%p3690) target = $region52
        $region51: #{net_forward.3} parent=39 // pred_region
          %s3694 = ssub.s32 32, 32
          %3695 = vsyncadd [#allocation4], %s3694
          %s3696 = smul.addr %s21, 32
          %s3697 = scalar_lea.hbm %s5, %s3696
          %s3699 = sshll.u32 [#allocation3], 4
          %s3700 = int_to_ptr.vmem [resolvable:$true] %s3699
          %3702 = dma.vmem_to_hbm [thread:$0]  %s3700, 32, %s3697, [#allocation4]
        $region52: #{net_forward.3} parent=39 // pred_fallthru
          _
        // Predicated region
        $region53: #{net_forward.3} parent=39 // pred_check
          %p3703 = pneg %p164
        $region54: #{net_forward.3} parent=39 // pred_check_branch
          %3705 = sbr.rel (%p3703) target = $region56
        $region55: #{net_forward.3} parent=39 // pred_region
          %3706 = dma.done [#allocation4], 32
        $region56: #{net_forward.3} parent=39 // pred_fallthru
          _
      $region40: #{net_forward.3} parent=5 // pred_fallthru
        _
      %p3707 = scmp.le.s32.totalorder 2, %s12
      // Predicated region
      $region57: #{net_forward.3} parent=5 // pred_check
        %p3708 = pneg %p3707
      $region58: #{net_forward.3} parent=5 // pred_check_branch
        %3710 = sbr.rel (%p3708) target = $region60
      $region59: #{net_forward.3} parent=5 // pred_region
        %s3711 = ssub.s32 %s12, 2
      $region60: #{net_forward.3} parent=5 // pred_fallthru
        _
    $region6: #{net_forward.3} parent=1 // loop_footer
      %s16 = sadd.s32 1, %s12
    $region7: #{net_forward.3} parent=1 // loop_footer_branch
      %11 = sbr.rel target = $region3
    $region8: #{net_forward.3} parent=1 // loop_exit
      _
    %3712 = vsyncpa [#allocation4], 1
    %s3713 = scalar_lea.sflag [#allocation4], 1
    %3714 = vsyncpa %s3713, 1

// kernel: net_forward.2
$region0: #{net_forward.2}
  #allocation0 [shape = 'u32[]', space=smem, size = 0x4, offset = 0x4, fixed_abs, tag = 'smem constant byte address 0x4 - core index']
  #allocation1 [shape = 'u32[144,128]{1,0:T(1,128)}', space=vmem, size = 0x12000, scoped, tag = 'internal scratch']
  #allocation2 [shape = 'bf16[624,96]{1,0:T(16,128)(2,1)}', space=vmem, size = 0x27000, scoped, tag = 'scratch operand']
  #allocation3 [shape = 'f32[288,64]{1,0:T(8,128)}', space=vmem, size = 0x24000, scoped, tag = 'scratch operand']
  %s0 = inlined_call_operand.vmem [shape: bf16[2,624,27], index: 0, kind: input, shape index: {}]
  %s1 = inlined_call_operand.hbm [shape: bf16[27,96], index: 1, kind: input, shape index: {}]
  %s2 = inlined_call_operand.hbm [shape: f32[1,96], index: 2, kind: input, shape index: {}]
  %s3 = inlined_call_operand.vmem [shape: bf16[3,96,64], index: 3, kind: input, shape index: {}]
  %s4 = inlined_call_operand.hbm [shape: f32[1,64], index: 4, kind: input, shape index: {}]
  %s5 = inlined_call_operand.vmem [shape: bf16[2,144,64], index: 5, kind: output, shape index: {}]
  %s6 = sld [smem:[#allocation0]]
  $region42: #{net_forward.2} parent=0
    _
  %s8 = ssub.s32 1, %s6
  %s9 = scalar_select 0, %s8, %s6
  $region1: #{net_forward.2} parent=0
    #allocation4 [shape = 'u8[8192]{0}', space=vmem, size = 0x2000, scoped, tag = 'input window, operand 1, single buffered']
    #allocation5 [shape = 's32[1]{0}', space=sflag, size = 0x4, scoped, tag = 'scoped memory for net_forward.2']
    #allocation6 [shape = 'u8[512]{0}', space=vmem, size = 0x400, scoped, tag = 'input window, operand 2, single buffered']
    #allocation7 [shape = 's32[1]{0}', space=sflag, size = 0x4, scoped, tag = 'scoped memory for net_forward.2']
    #allocation8 [shape = 'u8[512]{0}', space=vmem, size = 0x400, scoped, tag = 'input window, operand 4, single buffered']
    %10 = vsyncpa [#allocation5], 0
    %11 = vsyncpa [#allocation7], 0
    // Predicated region
    $region2: #{net_forward.2} parent=1 // pred_check
      _
    $region3: #{net_forward.2} parent=1 // pred_check_branch
      %13 = sbr.rel (0) target = $region5
    $region4: #{net_forward.2} parent=1 // pred_region
      _
    $region5: #{net_forward.2} parent=1 // pred_fallthru
      _
    // Predicated region
    $region6: #{net_forward.2} parent=1 // pred_check
      _
    $region7: #{net_forward.2} parent=1 // pred_check_branch
      %15 = sbr.rel (0) target = $region9
    $region8: #{net_forward.2} parent=1 // pred_region
      %s17 = ssub.s32 256, 256
      %18 = vsyncadd [#allocation5], %s17
      %s19 = sshll.u32 [#allocation4], 4
      %s20 = int_to_ptr.vmem [resolvable:$true] %s19
      %25 = dma.hbm_to_vmem [thread:$0]  %s1, 256, %s20, [#allocation5], 64, 64, 4
    $region9: #{net_forward.2} parent=1 // pred_fallthru
      _
    // Predicated region
    $region10: #{net_forward.2} parent=1 // pred_check
      _
    $region11: #{net_forward.2} parent=1 // pred_check_branch
      %27 = sbr.rel (0) target = $region13
    $region12: #{net_forward.2} parent=1 // pred_region
      %s29 = ssub.s32 16, 16
      %30 = vsyncadd [#allocation7], %s29
      %s32 = sshll.u32 [#allocation6], 4
      %s33 = int_to_ptr.vmem [resolvable:$true] %s32
      %35 = dma.hbm_to_vmem [thread:$0]  %s2, 16, %s33, [#allocation7]
    $region13: #{net_forward.2} parent=1 // pred_fallthru
      _
    // Predicated region
    $region14: #{net_forward.2} parent=1 // pred_check
      _
    $region15: #{net_forward.2} parent=1 // pred_check_branch
      %37 = sbr.rel (0) target = $region17
    $region16: #{net_forward.2} parent=1 // pred_region
      _
    $region17: #{net_forward.2} parent=1 // pred_fallthru
      _
    // Predicated region
    $region18: #{net_forward.2} parent=1 // pred_check
      _
    $region19: #{net_forward.2} parent=1 // pred_check_branch
      %39 = sbr.rel (0) target = $region21
    $region20: #{net_forward.2} parent=1 // pred_region
      %s41 = ssub.s32 16, 16
      %42 = vsyncadd [#allocation7], %s41
      %s44 = sshll.u32 [#allocation8], 4
      %s45 = int_to_ptr.vmem [resolvable:$true] %s44
      %47 = dma.hbm_to_vmem [thread:$0]  %s4, 16, %s45, [#allocation7]
    $region21: #{net_forward.2} parent=1 // pred_fallthru
      _
    // Predicated region
    $region22: #{net_forward.2} parent=1 // pred_check
      _
    $region23: #{net_forward.2} parent=1 // pred_check_branch
      %49 = sbr.rel (0) target = $region25
    $region24: #{net_forward.2} parent=1 // pred_region
      %50 = dma.done [#allocation5], 256
    $region25: #{net_forward.2} parent=1 // pred_fallthru
      _
    // Predicated region
    $region26: #{net_forward.2} parent=1 // pred_check
      _
    $region27: #{net_forward.2} parent=1 // pred_check_branch
      %52 = sbr.rel (0) target = $region29
    $region28: #{net_forward.2} parent=1 // pred_region
      %53 = dma.done [#allocation7], 16
    $region29: #{net_forward.2} parent=1 // pred_fallthru
      _
    // Predicated region
    $region30: #{net_forward.2} parent=1 // pred_check
      _
    $region31: #{net_forward.2} parent=1 // pred_check_branch
      %55 = sbr.rel (0) target = $region33
    $region32: #{net_forward.2} parent=1 // pred_region
      %56 = dma.done [#allocation7], 16
    $region33: #{net_forward.2} parent=1 // pred_fallthru
      _
    %v58 = vld [vmem:[#allocation4] sm:$0xf]
    %v59 = vld [vmem:[#allocation4 + $0x4] sm:$0xf]
    %v60 = vld [vmem:[#allocation4 + $0x8] sm:$0xf]
    %v61 = vld [vmem:[#allocation4 + $0xc] sm:$0x3]
    %v62 = vld [vmem:[#allocation6] sm:$0x1]
    %v63 = vld [vmem:[#allocation8] sm:$0x1]
    %v64 = vld [vmem:[%s0] sm:$0xf]
    %v65 = vld [vmem:[%s0 + $0x4] sm:$0xf]
    %v66 = vld [vmem:[%s0 + $0x8] sm:$0xf]
    %v67 = vld [vmem:[%s0 + $0xc] sm:$0xf]
    %v68 = vld [vmem:[%s0 + $0x10] sm:$0xf]
    %v69 = vld [vmem:[%s0 + $0x14] sm:$0xf]
    %v70 = vld [vmem:[%s0 + $0x18] sm:$0xf]
    %v71 = vld [vmem:[%s0 + $0x1c] sm:$0xf]
    %v72 = vld [vmem:[%s0 + $0x20] sm:$0xf]
    %v73 = vld [vmem:[%s0 + $0x24] sm:$0xf]
    %v74 = vld [vmem:[%s0 + $0x28] sm:$0xf]
    %v75 = vld [vmem:[%s0 + $0x2c] sm:$0xf]
    %v76 = vld [vmem:[%s0 + $0x30] sm:$0xf]
    %v77 = vld [vmem:[%s0 + $0x34] sm:$0xf]
    %v78 = vld [vmem:[%s0 + $0x38] sm:$0xf]
    %v79 = vld [vmem:[%s0 + $0x3c] sm:$0xf]
    %v80 = vld [vmem:[%s0 + $0x40] sm:$0xf]
    %v81 = vld [vmem:[%s0 + $0x44] sm:$0xf]
    %v82 = vld [vmem:[%s0 + $0x48] sm:$0xf]
    %v83 = vld [vmem:[%s0 + $0x4c] sm:$0xf]
    %v84 = vld [vmem:[%s0 + $0x50] sm:$0xf]
    %v85 = vld [vmem:[%s0 + $0x54] sm:$0xf]
    %v86 = vld [vmem:[%s0 + $0x58] sm:$0xf]
    %v87 = vld [vmem:[%s0 + $0x5c] sm:$0xf]
    %v88 = vld [vmem:[%s0 + $0x60] sm:$0xf]
    %v89 = vld [vmem:[%s0 + $0x64] sm:$0xf]
    %v91 = vlaneseq
    %v92 = vshrl.u32 %v91, 7
    %v93 = vsub.s32 0, %v92
    %v94 = vrot.slane %v62, %v93
    %v122 = vunpack.c.l.b16 %v64
    %v123 = vunpack.c.l.b16 %v65
    %v124 = vunpack.c.l.b16 %v66
    %v125 = vunpack.c.l.b16 %v67
    %v126 = vunpack.c.l.b16 %v68
    %v127 = vunpack.c.l.b16 %v69
    %v128 = vunpack.c.l.b16 %v70
    %v129 = vunpack.c.l.b16 %v71
    %v130 = vunpack.c.l.b16 %v72
    %v131 = vunpack.c.l.b16 %v73
    %v132 = vunpack.c.l.b16 %v74
    %v133 = vunpack.c.l.b16 %v75
    %v134 = vunpack.c.l.b16 %v76
    %v135 = vunpack.c.l.b16 %v77
    %v136 = vunpack.c.l.b16 %v78
    %v137 = vunpack.c.l.b16 %v79
    %v138 = vunpack.c.l.b16 %v80
    %v139 = vunpack.c.l.b16 %v81
    %v140 = vunpack.c.l.b16 %v82
    %v141 = vunpack.c.l.b16 %v83
    %v142 = vunpack.c.l.b16 %v84
    %v143 = vunpack.c.l.b16 %v85
    %v144 = vunpack.c.l.b16 %v86
    %v145 = vunpack.c.l.b16 %v87
    %v146 = vunpack.c.l.b16 %v88
    %v147 = vunpack.c.l.b16 %v89
    %v148 = vpack.c.b16 %v123, %v122
    %v149 = vpack.c.b16 %v125, %v124
    %v150 = vpack.c.b16 %v127, %v126
    %v151 = vpack.c.b16 %v129, %v128
    %v152 = vpack.c.b16 %v131, %v130
    %v153 = vpack.c.b16 %v133, %v132
    %v154 = vpack.c.b16 %v135, %v134
    %v155 = vpack.c.b16 %v137, %v136
    %v156 = vpack.c.b16 %v139, %v138
    %v157 = vpack.c.b16 %v141, %v140
    %v158 = vpack.c.b16 %v143, %v142
    %v159 = vpack.c.b16 %v145, %v144
    %v160 = vpack.c.b16 %v147, %v146
    %v165 = vunpack.c.l.b16 %v58
    %v166 = vunpack.c.l.b16 %v59
    %v167 = vunpack.c.l.b16 %v60
    %v168 = vunpack.c.l.b16 %v61
    %v169 = vpack.c.b16 %v166, %v165
    %v170 = vpack.c.b16 %v168, %v167
    %vm172 = vcmask 220160
    %v174 = vsel %vm172, %v148, 0
    %v177 = vsel %vm172, %v149, 0
    %v180 = vsel %vm172, %v150, 0
    %v183 = vsel %vm172, %v151, 0
    %v186 = vsel %vm172, %v152, 0
    %v189 = vsel %vm172, %v153, 0
    %v192 = vsel %vm172, %v154, 0
    %v195 = vsel %vm172, %v155, 0
    %v198 = vsel %vm172, %v156, 0
    %v201 = vsel %vm172, %v157, 0
    %v204 = vsel %vm172, %v158, 0
    %v207 = vsel %vm172, %v159, 0
    %v210 = vsel %vm172, %v160, 0
    %vm212 = vcmask 1044480
    %vm213 = vcmask 1045504
    %v214 = vsel %vm212, 4294967295, 65535
    %v215 = vsel %vm213, %v214, 0
    %v217 = vand.u32 %v170, %v215
    %219 = vmatprep.subr.bf16.mxu0 0
    %220 = vmatpush1.bf16.msra.mxu0 %v169
    %221 = vmatprep.subr.bf16.mxu0 0
    %222 = vmatpush1.bf16.msra.mxu0 %v217
    %223 = vmatprep.subr.bf16.mxu0 0
    %224 = vmatpush1.bf16.msra.mxu0 0
    %225 = vmatprep.subr.bf16.mxu0 0
    %226 = vmatpush1.bf16.msra.mxu0 0
    %227 = vmatprep.subr.bf16.mxu0 0
    %228 = vmatpush1.bf16.msra.mxu0 0
    %229 = vmatprep.subr.bf16.mxu0 0
    %230 = vmatpush1.bf16.msra.mxu0 0
    %231 = vmatprep.subr.bf16.mxu0 0
    %232 = vmatpush1.bf16.msra.mxu0 0
    %233 = vmatprep.subr.bf16.mxu0 0
    %234 = vmatpush1.bf16.msra.mxu0 0
    %235 = vmatprep.subr.bf16.mxu0 0
    %236 = vmatpush1.bf16.msra.mxu0 0
    %237 = vmatprep.subr.bf16.mxu0 0
    %238 = vmatpush1.bf16.msra.mxu0 0
    %239 = vmatprep.subr.bf16.mxu0 0
    %240 = vmatpush1.bf16.msra.mxu0 0
    %241 = vmatprep.subr.bf16.mxu0 0
    %242 = vmatpush1.bf16.msra.mxu0 0
    %243 = vmatprep.subr.bf16.mxu0 0
    %244 = vmatpush1.bf16.msra.mxu0 0
    %245 = vmatprep.subr.bf16.mxu0 0
    %246 = vmatpush1.bf16.msra.mxu0 0
    %247 = vmatprep.subr.bf16.mxu0 0
    %248 = vmatpush1.bf16.msra.mxu0 0
    %249 = vmatprep.subr.bf16.mxu0 0
    %250 = vmatpush1.bf16.msra.mxu0 0
    %251 = vmatprep.mubr.bf16.mxu0 0
    %252 = vmatmul.mubr.bf16.gmra.mrb[0].mxu0 %v174
    %v253 = vpop.f32.mrb[0].mxu0
    %v254 = vadd.f32 %v94, %v253
    %v255 = vpop.f32.mrb[0].mxu0
    %v256 = vpop.f32.mrb[0].mxu0
    %v257 = vadd.f32 %v94, %v256
    %v258 = vpop.f32.mrb[0].mxu0
    %259 = vmatprep.mubr.bf16.mxu0 0
    %260 = vmatmul.mubr.bf16.gmra.mrb[0].mxu0 %v177
    %v261 = vpop.f32.mrb[0].mxu0
    %v262 = vadd.f32 %v94, %v261
    %v263 = vpop.f32.mrb[0].mxu0
    %v264 = vpop.f32.mrb[0].mxu0
    %v265 = vadd.f32 %v94, %v264
    %v266 = vpop.f32.mrb[0].mxu0
    %267 = vmatprep.mubr.bf16.mxu0 0
    %268 = vmatmul.mubr.bf16.gmra.mrb[0].mxu0 %v180
    %v269 = vpop.f32.mrb[0].mxu0
    %v270 = vadd.f32 %v94, %v269
    %v271 = vpop.f32.mrb[0].mxu0
    %v272 = vpop.f32.mrb[0].mxu0
    %v273 = vadd.f32 %v94, %v272
    %v274 = vpop.f32.mrb[0].mxu0
    %275 = vmatprep.mubr.bf16.mxu0 0
    %276 = vmatmul.mubr.bf16.gmra.mrb[0].mxu0 %v183
    %v277 = vpop.f32.mrb[0].mxu0
    %v278 = vadd.f32 %v94, %v277
    %v279 = vpop.f32.mrb[0].mxu0
    %v280 = vpop.f32.mrb[0].mxu0
    %v281 = vadd.f32 %v94, %v280
    %v282 = vpop.f32.mrb[0].mxu0
    %283 = vmatprep.mubr.bf16.mxu0 0
    %284 = vmatmul.mubr.bf16.gmra.mrb[0].mxu0 %v186
    %v285 = vpop.f32.mrb[0].mxu0
    %v286 = vadd.f32 %v94, %v285
    %v287 = vpop.f32.mrb[0].mxu0
    %v288 = vpop.f32.mrb[0].mxu0
    %v289 = vadd.f32 %v94, %v288
    %v290 = vpop.f32.mrb[0].mxu0
    %291 = vmatprep.mubr.bf16.mxu0 0
    %292 = vmatmul.mubr.bf16.gmra.mrb[0].mxu0 %v189
    %v293 = vpop.f32.mrb[0].mxu0
    %v294 = vadd.f32 %v94, %v293
    %v295 = vpop.f32.mrb[0].mxu0
    %v296 = vpop.f32.mrb[0].mxu0
    %v297 = vadd.f32 %v94, %v296
    %v298 = vpop.f32.mrb[0].mxu0
    %299 = vmatprep.mubr.bf16.mxu0 0
    %300 = vmatmul.mubr.bf16.gmra.mrb[0].mxu0 %v192
    %v301 = vpop.f32.mrb[0].mxu0
    %v302 = vadd.f32 %v94, %v301
    %v303 = vpop.f32.mrb[0].mxu0
    %v304 = vpop.f32.mrb[0].mxu0
    %v305 = vadd.f32 %v94, %v304
    %v306 = vpop.f32.mrb[0].mxu0
    %307 = vmatprep.mubr.bf16.mxu0 0
    %308 = vmatmul.mubr.bf16.gmra.mrb[0].mxu0 %v195
    %v309 = vpop.f32.mrb[0].mxu0
    %v310 = vadd.f32 %v94, %v309
    %v311 = vpop.f32.mrb[0].mxu0
    %v312 = vpop.f32.mrb[0].mxu0
    %v313 = vadd.f32 %v94, %v312
    %v314 = vpop.f32.mrb[0].mxu0
    %315 = vmatprep.mubr.bf16.mxu0 0
    %316 = vmatmul.mubr.bf16.gmra.mrb[0].mxu0 %v198
    %v317 = vpop.f32.mrb[0].mxu0
    %v318 = vadd.f32 %v94, %v317
    %v319 = vpop.f32.mrb[0].mxu0
    %v320 = vpop.f32.mrb[0].mxu0
    %v321 = vadd.f32 %v94, %v320
    %v322 = vpop.f32.mrb[0].mxu0
    %323 = vmatprep.mubr.bf16.mxu0 0
    %324 = vmatmul.mubr.bf16.gmra.mrb[0].mxu0 %v201
    %v325 = vpop.f32.mrb[0].mxu0
    %v326 = vadd.f32 %v94, %v325
    %v327 = vpop.f32.mrb[0].mxu0
    %v328 = vpop.f32.mrb[0].mxu0
    %v329 = vadd.f32 %v94, %v328
    %v330 = vpop.f32.mrb[0].mxu0
    %331 = vmatprep.mubr.bf16.mxu0 0
    %332 = vmatmul.mubr.bf16.gmra.mrb[0].mxu0 %v204
    %v333 = vpop.f32.mrb[0].mxu0
    %v334 = vadd.f32 %v94, %v333
    %v335 = vpop.f32.mrb[0].mxu0
    %v336 = vpop.f32.mrb[0].mxu0
    %v337 = vadd.f32 %v94, %v336
    %v338 = vpop.f32.mrb[0].mxu0
    %339 = vmatprep.mubr.bf16.mxu0 0
    %340 = vmatmul.mubr.bf16.gmra.mrb[0].mxu0 %v207
    %v341 = vpop.f32.mrb[0].mxu0
    %v342 = vadd.f32 %v94, %v341
    %v343 = vpop.f32.mrb[0].mxu0
    %v344 = vpop.f32.mrb[0].mxu0
    %v345 = vadd.f32 %v94, %v344
    %v346 = vpop.f32.mrb[0].mxu0
    %347 = vmatprep.mubr.bf16.mxu0 0
    %348 = vmatmul.mubr.bf16.gmra.mrb[0].mxu0 %v210
    %v349 = vpop.f32.mrb[0].mxu0
    %v350 = vadd.f32 %v94, %v349
    %v351 = vpop.f32.mrb[0].mxu0
    %v352 = vpop.f32.mrb[0].mxu0
    %v353 = vadd.f32 %v94, %v352
    %v354 = vpop.f32.mrb[0].mxu0
    %355 = vdwg.mxu0
    %v356 = vmax.f32 %v254, 0.0
    %v357 = vmax.f32 %v257, 0.0
    %v358 = vmax.f32 %v262, 0.0
    %v359 = vmax.f32 %v265, 0.0
    %v360 = vmax.f32 %v270, 0.0
    %v361 = vmax.f32 %v273, 0.0
    %v362 = vmax.f32 %v278, 0.0
    %v363 = vmax.f32 %v281, 0.0
    %v364 = vmax.f32 %v286, 0.0
    %v365 = vmax.f32 %v289, 0.0
    %v366 = vmax.f32 %v294, 0.0
    %v367 = vmax.f32 %v297, 0.0
    %v368 = vmax.f32 %v302, 0.0
    %v369 = vmax.f32 %v305, 0.0
    %v370 = vmax.f32 %v310, 0.0
    %v371 = vmax.f32 %v313, 0.0
    %v372 = vmax.f32 %v318, 0.0
    %v373 = vmax.f32 %v321, 0.0
    %v374 = vmax.f32 %v326, 0.0
    %v375 = vmax.f32 %v329, 0.0
    %v376 = vmax.f32 %v334, 0.0
    %v377 = vmax.f32 %v337, 0.0
    %v378 = vmax.f32 %v342, 0.0
    %v379 = vmax.f32 %v345, 0.0
    %v380 = vmax.f32 %v350, 0.0
    %v381 = vmax.f32 %v353, 0.0
    %v382 = vpack.c.bf16 %v357, %v356
    %v383 = vpack.c.bf16 %v359, %v358
    %v384 = vpack.c.bf16 %v361, %v360
    %v385 = vpack.c.bf16 %v363, %v362
    %v386 = vpack.c.bf16 %v365, %v364
    %v387 = vpack.c.bf16 %v367, %v366
    %v388 = vpack.c.bf16 %v369, %v368
    %v389 = vpack.c.bf16 %v371, %v370
    %v390 = vpack.c.bf16 %v373, %v372
    %v391 = vpack.c.bf16 %v375, %v374
    %v392 = vpack.c.bf16 %v377, %v376
    %v393 = vpack.c.bf16 %v379, %v378
    %v394 = vpack.c.bf16 %v381, %v380
    %vm395 = vcmask 785408
    %396 = vst.msk [vmem:[#allocation2] sm:$0xff] %vm395, %v382
    %397 = vst.msk [vmem:[#allocation2 + $0x8] sm:$0xff] %vm395, %v383
    %398 = vst.msk [vmem:[#allocation2 + $0x10] sm:$0xff] %vm395, %v384
    %399 = vst.msk [vmem:[#allocation2 + $0x18] sm:$0xff] %vm395, %v385
    %400 = vst.msk [vmem:[#allocation2 + $0x20] sm:$0xff] %vm395, %v386
    %401 = vst.msk [vmem:[#allocation2 + $0x28] sm:$0xff] %vm395, %v387
    %402 = vst.msk [vmem:[#allocation2 + $0x30] sm:$0xff] %vm395, %v388
    %403 = vst.msk [vmem:[#allocation2 + $0x38] sm:$0xff] %vm395, %v389
    %404 = vst.msk [vmem:[#allocation2 + $0x40] sm:$0xff] %vm395, %v390
    %405 = vst.msk [vmem:[#allocation2 + $0x48] sm:$0xff] %vm395, %v391
    %406 = vst.msk [vmem:[#allocation2 + $0x50] sm:$0xff] %vm395, %v392
    %407 = vst.msk [vmem:[#allocation2 + $0x58] sm:$0xff] %vm395, %v393
    %408 = vst.msk [vmem:[#allocation2 + $0x60] sm:$0xff] %vm395, %v394
    %v409 = vld [vmem:[%s0 + $0x68] sm:$0xf]
    %v410 = vld [vmem:[%s0 + $0x6c] sm:$0xf]
    %v411 = vld [vmem:[%s0 + $0x70] sm:$0xf]
    %v412 = vld [vmem:[%s0 + $0x74] sm:$0xf]
    %v413 = vld [vmem:[%s0 + $0x78] sm:$0xf]
    %v414 = vld [vmem:[%s0 + $0x7c] sm:$0xf]
    %v415 = vld [vmem:[%s0 + $0x80] sm:$0xf]
    %v416 = vld [vmem:[%s0 + $0x84] sm:$0xf]
    %v417 = vld [vmem:[%s0 + $0x88] sm:$0xf]
    %v418 = vld [vmem:[%s0 + $0x8c] sm:$0xf]
    %v419 = vld [vmem:[%s0 + $0x90] sm:$0xf]
    %v420 = vld [vmem:[%s0 + $0x94] sm:$0xf]
    %v421 = vld [vmem:[%s0 + $0x98] sm:$0xf]
    %v422 = vld [vmem:[%s0 + $0x9c] sm:$0xf]
    %v423 = vld [vmem:[%s0 + $0xa0] sm:$0xf]
    %v424 = vld [vmem:[%s0 + $0xa4] sm:$0xf]
    %v425 = vld [vmem:[%s0 + $0xa8] sm:$0xf]
    %v426 = vld [vmem:[%s0 + $0xac] sm:$0xf]
    %v427 = vld [vmem:[%s0 + $0xb0] sm:$0xf]
    %v428 = vld [vmem:[%s0 + $0xb4] sm:$0xf]
    %v429 = vld [vmem:[%s0 + $0xb8] sm:$0xf]
    %v430 = vld [vmem:[%s0 + $0xbc] sm:$0xf]
    %v431 = vld [vmem:[%s0 + $0xc0] sm:$0xf]
    %v432 = vld [vmem:[%s0 + $0xc4] sm:$0xf]
    %v433 = vld [vmem:[%s0 + $0xc8] sm:$0xf]
    %v434 = vld [vmem:[%s0 + $0xcc] sm:$0xf]
    %v461 = vunpack.c.l.b16 %v409
    %v462 = vunpack.c.l.b16 %v410
    %v463 = vunpack.c.l.b16 %v411
    %v464 = vunpack.c.l.b16 %v412
    %v465 = vunpack.c.l.b16 %v413
    %v466 = vunpack.c.l.b16 %v414
    %v467 = vunpack.c.l.b16 %v415
    %v468 = vunpack.c.l.b16 %v416
    %v469 = vunpack.c.l.b16 %v417
    %v470 = vunpack.c.l.b16 %v418
    %v471 = vunpack.c.l.b16 %v419
    %v472 = vunpack.c.l.b16 %v420
    %v473 = vunpack.c.l.b16 %v421
    %v474 = vunpack.c.l.b16 %v422
    %v475 = vunpack.c.l.b16 %v423
    %v476 = vunpack.c.l.b16 %v424
    %v477 = vunpack.c.l.b16 %v425
    %v478 = vunpack.c.l.b16 %v426
    %v479 = vunpack.c.l.b16 %v427
    %v480 = vunpack.c.l.b16 %v428
    %v481 = vunpack.c.l.b16 %v429
    %v482 = vunpack.c.l.b16 %v430
    %v483 = vunpack.c.l.b16 %v431
    %v484 = vunpack.c.l.b16 %v432
    %v485 = vunpack.c.l.b16 %v433
    %v486 = vunpack.c.l.b16 %v434
    %v487 = vpack.c.b16 %v462, %v461
    %v488 = vpack.c.b16 %v464, %v463
    %v489 = vpack.c.b16 %v466, %v465
    %v490 = vpack.c.b16 %v468, %v467
    %v491 = vpack.c.b16 %v470, %v469
    %v492 = vpack.c.b16 %v472, %v471
    %v493 = vpack.c.b16 %v474, %v473
    %v494 = vpack.c.b16 %v476, %v475
    %v495 = vpack.c.b16 %v478, %v477
    %v496 = vpack.c.b16 %v480, %v479
    %v497 = vpack.c.b16 %v482, %v481
    %v498 = vpack.c.b16 %v484, %v483
    %v499 = vpack.c.b16 %v486, %v485
    %v501 = vsel %vm172, %v487, 0
    %v504 = vsel %vm172, %v488, 0
    %v507 = vsel %vm172, %v489, 0
    %v510 = vsel %vm172, %v490, 0
    %v513 = vsel %vm172, %v491, 0
    %v516 = vsel %vm172, %v492, 0
    %v519 = vsel %vm172, %v493, 0
    %v522 = vsel %vm172, %v494, 0
    %v525 = vsel %vm172, %v495, 0
    %v528 = vsel %vm172, %v496, 0
    %v531 = vsel %vm172, %v497, 0
    %v534 = vsel %vm172, %v498, 0
    %v537 = vsel %vm172, %v499, 0
    %539 = vmatprep.subr.bf16.mxu0 0
    %540 = vmatpush1.bf16.msra.mxu0 %v169
    %541 = vmatprep.subr.bf16.mxu0 0
    %542 = vmatpush1.bf16.msra.mxu0 %v217
    %543 = vmatprep.subr.bf16.mxu0 0
    %544 = vmatpush1.bf16.msra.mxu0 0
    %545 = vmatprep.subr.bf16.mxu0 0
    %546 = vmatpush1.bf16.msra.mxu0 0
    %547 = vmatprep.subr.bf16.mxu0 0
    %548 = vmatpush1.bf16.msra.mxu0 0
    %549 = vmatprep.subr.bf16.mxu0 0
    %550 = vmatpush1.bf16.msra.mxu0 0
    %551 = vmatprep.subr.bf16.mxu0 0
    %552 = vmatpush1.bf16.msra.mxu0 0
    %553 = vmatprep.subr.bf16.mxu0 0
    %554 = vmatpush1.bf16.msra.mxu0 0
    %555 = vmatprep.subr.bf16.mxu0 0
    %556 = vmatpush1.bf16.msra.mxu0 0
    %557 = vmatprep.subr.bf16.mxu0 0
    %558 = vmatpush1.bf16.msra.mxu0 0
    %559 = vmatprep.subr.bf16.mxu0 0
    %560 = vmatpush1.bf16.msra.mxu0 0
    %561 = vmatprep.subr.bf16.mxu0 0
    %562 = vmatpush1.bf16.msra.mxu0 0
    %563 = vmatprep.subr.bf16.mxu0 0
    %564 = vmatpush1.bf16.msra.mxu0 0
    %565 = vmatprep.subr.bf16.mxu0 0
    %566 = vmatpush1.bf16.msra.mxu0 0
    %567 = vmatprep.subr.bf16.mxu0 0
    %568 = vmatpush1.bf16.msra.mxu0 0
    %569 = vmatprep.subr.bf16.mxu0 0
    %570 = vmatpush1.bf16.msra.mxu0 0
    %571 = vmatprep.mubr.bf16.mxu0 0
    %572 = vmatmul.mubr.bf16.gmra.mrb[0].mxu0 %v501
    %v573 = vpop.f32.mrb[0].mxu0
    %v574 = vadd.f32 %v94, %v573
    %v575 = vpop.f32.mrb[0].mxu0
    %v576 = vpop.f32.mrb[0].mxu0
    %v577 = vadd.f32 %v94, %v576
    %v578 = vpop.f32.mrb[0].mxu0
    %579 = vmatprep.mubr.bf16.mxu0 0
    %580 = vmatmul.mubr.bf16.gmra.mrb[0].mxu0 %v504
    %v581 = vpop.f32.mrb[0].mxu0
    %v582 = vadd.f32 %v94, %v581
    %v583 = vpop.f32.mrb[0].mxu0
    %v584 = vpop.f32.mrb[0].mxu0
    %v585 = vadd.f32 %v94, %v584
    %v586 = vpop.f32.mrb[0].mxu0
    %587 = vmatprep.mubr.bf16.mxu0 0
    %588 = vmatmul.mubr.bf16.gmra.mrb[0].mxu0 %v507
    %v589 = vpop.f32.mrb[0].mxu0
    %v590 = vadd.f32 %v94, %v589
    %v591 = vpop.f32.mrb[0].mxu0
    %v592 = vpop.f32.mrb[0].mxu0
    %v593 = vadd.f32 %v94, %v592
    %v594 = vpop.f32.mrb[0].mxu0
    %595 = vmatprep.mubr.bf16.mxu0 0
    %596 = vmatmul.mubr.bf16.gmra.mrb[0].mxu0 %v510
    %v597 = vpop.f32.mrb[0].mxu0
    %v598 = vadd.f32 %v94, %v597
    %v599 = vpop.f32.mrb[0].mxu0
    %v600 = vpop.f32.mrb[0].mxu0
    %v601 = vadd.f32 %v94, %v600
    %v602 = vpop.f32.mrb[0].mxu0
    %603 = vmatprep.mubr.bf16.mxu0 0
    %604 = vmatmul.mubr.bf16.gmra.mrb[0].mxu0 %v513
    %v605 = vpop.f32.mrb[0].mxu0
    %v606 = vadd.f32 %v94, %v605
    %v607 = vpop.f32.mrb[0].mxu0
    %v608 = vpop.f32.mrb[0].mxu0
    %v609 = vadd.f32 %v94, %v608
    %v610 = vpop.f32.mrb[0].mxu0
    %611 = vmatprep.mubr.bf16.mxu0 0
    %612 = vmatmul.mubr.bf16.gmra.mrb[0].mxu0 %v516
    %v613 = vpop.f32.mrb[0].mxu0
    %v614 = vadd.f32 %v94, %v613
    %v615 = vpop.f32.mrb[0].mxu0
    %v616 = vpop.f32.mrb[0].mxu0
    %v617 = vadd.f32 %v94, %v616
    %v618 = vpop.f32.mrb[0].mxu0
    %619 = vmatprep.mubr.bf16.mxu0 0
    %620 = vmatmul.mubr.bf16.gmra.mrb[0].mxu0 %v519
    %v621 = vpop.f32.mrb[0].mxu0
    %v622 = vadd.f32 %v94, %v621
    %v623 = vpop.f32.mrb[0].mxu0
    %v624 = vpop.f32.mrb[0].mxu0
    %v625 = vadd.f32 %v94, %v624
    %v626 = vpop.f32.mrb[0].mxu0
    %627 = vmatprep.mubr.bf16.mxu0 0
    %628 = vmatmul.mubr.bf16.gmra.mrb[0].mxu0 %v522
    %v629 = vpop.f32.mrb[0].mxu0
    %v630 = vadd.f32 %v94, %v629
    %v631 = vpop.f32.mrb[0].mxu0
    %v632 = vpop.f32.mrb[0].mxu0
    %v633 = vadd.f32 %v94, %v632
    %v634 = vpop.f32.mrb[0].mxu0
    %635 = vmatprep.mubr.bf16.mxu0 0
    %636 = vmatmul.mubr.bf16.gmra.mrb[0].mxu0 %v525
    %v637 = vpop.f32.mrb[0].mxu0
    %v638 = vadd.f32 %v94, %v637
    %v639 = vpop.f32.mrb[0].mxu0
    %v640 = vpop.f32.mrb[0].mxu0
    %v641 = vadd.f32 %v94, %v640
    %v642 = vpop.f32.mrb[0].mxu0
    %643 = vmatprep.mubr.bf16.mxu0 0
    %644 = vmatmul.mubr.bf16.gmra.mrb[0].mxu0 %v528
    %v645 = vpop.f32.mrb[0].mxu0
    %v646 = vadd.f32 %v94, %v645
    %v647 = vpop.f32.mrb[0].mxu0
    %v648 = vpop.f32.mrb[0].mxu0
    %v649 = vadd.f32 %v94, %v648
    %v650 = vpop.f32.mrb[0].mxu0
    %651 = vmatprep.mubr.bf16.mxu0 0
    %652 = vmatmul.mubr.bf16.gmra.mrb[0].mxu0 %v531
    %v653 = vpop.f32.mrb[0].mxu0
    %v654 = vadd.f32 %v94, %v653
    %v655 = vpop.f32.mrb[0].mxu0
    %v656 = vpop.f32.mrb[0].mxu0
    %v657 = vadd.f32 %v94, %v656
    %v658 = vpop.f32.mrb[0].mxu0
    %659 = vmatprep.mubr.bf16.mxu0 0
    %660 = vmatmul.mubr.bf16.gmra.mrb[0].mxu0 %v534
    %v661 = vpop.f32.mrb[0].mxu0
    %v662 = vadd.f32 %v94, %v661
    %v663 = vpop.f32.mrb[0].mxu0
    %v664 = vpop.f32.mrb[0].mxu0
    %v665 = vadd.f32 %v94, %v664
    %v666 = vpop.f32.mrb[0].mxu0
    %667 = vmatprep.mubr.bf16.mxu0 0
    %668 = vmatmul.mubr.bf16.gmra.mrb[0].mxu0 %v537
    %v669 = vpop.f32.mrb[0].mxu0
    %v670 = vadd.f32 %v94, %v669
    %v671 = vpop.f32.mrb[0].mxu0
    %v672 = vpop.f32.mrb[0].mxu0
    %v673 = vadd.f32 %v94, %v672
    %v674 = vpop.f32.mrb[0].mxu0
    %675 = vdwg.mxu0
    %v676 = vmax.f32 %v574, 0.0
    %v677 = vmax.f32 %v577, 0.0
    %v678 = vmax.f32 %v582, 0.0
    %v679 = vmax.f32 %v585, 0.0
    %v680 = vmax.f32 %v590, 0.0
    %v681 = vmax.f32 %v593, 0.0
    %v682 = vmax.f32 %v598, 0.0
    %v683 = vmax.f32 %v601, 0.0
    %v684 = vmax.f32 %v606, 0.0
    %v685 = vmax.f32 %v609, 0.0
    %v686 = vmax.f32 %v614, 0.0
    %v687 = vmax.f32 %v617, 0.0
    %v688 = vmax.f32 %v622, 0.0
    %v689 = vmax.f32 %v625, 0.0
    %v690 = vmax.f32 %v630, 0.0
    %v691 = vmax.f32 %v633, 0.0
    %v692 = vmax.f32 %v638, 0.0
    %v693 = vmax.f32 %v641, 0.0
    %v694 = vmax.f32 %v646, 0.0
    %v695 = vmax.f32 %v649, 0.0
    %v696 = vmax.f32 %v654, 0.0
    %v697 = vmax.f32 %v657, 0.0
    %v698 = vmax.f32 %v662, 0.0
    %v699 = vmax.f32 %v665, 0.0
    %v700 = vmax.f32 %v670, 0.0
    %v701 = vmax.f32 %v673, 0.0
    %v702 = vpack.c.bf16 %v677, %v676
    %v703 = vpack.c.bf16 %v679, %v678
    %v704 = vpack.c.bf16 %v681, %v680
    %v705 = vpack.c.bf16 %v683, %v682
    %v706 = vpack.c.bf16 %v685, %v684
    %v707 = vpack.c.bf16 %v687, %v686
    %v708 = vpack.c.bf16 %v689, %v688
    %v709 = vpack.c.bf16 %v691, %v690
    %v710 = vpack.c.bf16 %v693, %v692
    %v711 = vpack.c.bf16 %v695, %v694
    %v712 = vpack.c.bf16 %v697, %v696
    %v713 = vpack.c.bf16 %v699, %v698
    %v714 = vpack.c.bf16 %v701, %v700
    %715 = vst.msk [vmem:[#allocation2 + $0x68] sm:$0xff] %vm395, %v702
    %716 = vst.msk [vmem:[#allocation2 + $0x70] sm:$0xff] %vm395, %v703
    %717 = vst.msk [vmem:[#allocation2 + $0x78] sm:$0xff] %vm395, %v704
    %718 = vst.msk [vmem:[#allocation2 + $0x80] sm:$0xff] %vm395, %v705
    %719 = vst.msk [vmem:[#allocation2 + $0x88] sm:$0xff] %vm395, %v706
    %720 = vst.msk [vmem:[#allocation2 + $0x90] sm:$0xff] %vm395, %v707
    %721 = vst.msk [vmem:[#allocation2 + $0x98] sm:$0xff] %vm395, %v708
    %722 = vst.msk [vmem:[#allocation2 + $0xa0] sm:$0xff] %vm395, %v709
    %723 = vst.msk [vmem:[#allocation2 + $0xa8] sm:$0xff] %vm395, %v710
    %724 = vst.msk [vmem:[#allocation2 + $0xb0] sm:$0xff] %vm395, %v711
    %725 = vst.msk [vmem:[#allocation2 + $0xb8] sm:$0xff] %vm395, %v712
    %726 = vst.msk [vmem:[#allocation2 + $0xc0] sm:$0xff] %vm395, %v713
    %727 = vst.msk [vmem:[#allocation2 + $0xc8] sm:$0xff] %vm395, %v714
    %v728 = vld [vmem:[%s0 + $0xd0] sm:$0xf]
    %v729 = vld [vmem:[%s0 + $0xd4] sm:$0xf]
    %v730 = vld [vmem:[%s0 + $0xd8] sm:$0xf]
    %v731 = vld [vmem:[%s0 + $0xdc] sm:$0xf]
    %v732 = vld [vmem:[%s0 + $0xe0] sm:$0xf]
    %v733 = vld [vmem:[%s0 + $0xe4] sm:$0xf]
    %v734 = vld [vmem:[%s0 + $0xe8] sm:$0xf]
    %v735 = vld [vmem:[%s0 + $0xec] sm:$0xf]
    %v736 = vld [vmem:[%s0 + $0xf0] sm:$0xf]
    %v737 = vld [vmem:[%s0 + $0xf4] sm:$0xf]
    %v738 = vld [vmem:[%s0 + $0xf8] sm:$0xf]
    %v739 = vld [vmem:[%s0 + $0xfc] sm:$0xf]
    %v740 = vld [vmem:[%s0 + $0x100] sm:$0xf]
    %v741 = vld [vmem:[%s0 + $0x104] sm:$0xf]
    %v742 = vld [vmem:[%s0 + $0x108] sm:$0xf]
    %v743 = vld [vmem:[%s0 + $0x10c] sm:$0xf]
    %v744 = vld [vmem:[%s0 + $0x110] sm:$0xf]
    %v745 = vld [vmem:[%s0 + $0x114] sm:$0xf]
    %v746 = vld [vmem:[%s0 + $0x118] sm:$0xf]
    %v747 = vld [vmem:[%s0 + $0x11c] sm:$0xf]
    %v748 = vld [vmem:[%s0 + $0x120] sm:$0xf]
    %v749 = vld [vmem:[%s0 + $0x124] sm:$0xf]
    %v750 = vld [vmem:[%s0 + $0x128] sm:$0xf]
    %v751 = vld [vmem:[%s0 + $0x12c] sm:$0xf]
    %v752 = vld [vmem:[%s0 + $0x130] sm:$0xf]
    %v753 = vld [vmem:[%s0 + $0x134] sm:$0xf]
    %v780 = vunpack.c.l.b16 %v728
    %v781 = vunpack.c.l.b16 %v729
    %v782 = vunpack.c.l.b16 %v730
    %v783 = vunpack.c.l.b16 %v731
    %v784 = vunpack.c.l.b16 %v732
    %v785 = vunpack.c.l.b16 %v733
    %v786 = vunpack.c.l.b16 %v734
    %v787 = vunpack.c.l.b16 %v735
    %v788 = vunpack.c.l.b16 %v736
    %v789 = vunpack.c.l.b16 %v737
    %v790 = vunpack.c.l.b16 %v738
    %v791 = vunpack.c.l.b16 %v739
    %v792 = vunpack.c.l.b16 %v740
    %v793 = vunpack.c.l.b16 %v741
    %v794 = vunpack.c.l.b16 %v742
    %v795 = vunpack.c.l.b16 %v743
    %v796 = vunpack.c.l.b16 %v744
    %v797 = vunpack.c.l.b16 %v745
    %v798 = vunpack.c.l.b16 %v746
    %v799 = vunpack.c.l.b16 %v747
    %v800 = vunpack.c.l.b16 %v748
    %v801 = vunpack.c.l.b16 %v749
    %v802 = vunpack.c.l.b16 %v750
    %v803 = vunpack.c.l.b16 %v751
    %v804 = vunpack.c.l.b16 %v752
    %v805 = vunpack.c.l.b16 %v753
    %v806 = vpack.c.b16 %v781, %v780
    %v807 = vpack.c.b16 %v783, %v782
    %v808 = vpack.c.b16 %v785, %v784
    %v809 = vpack.c.b16 %v787, %v786
    %v810 = vpack.c.b16 %v789, %v788
    %v811 = vpack.c.b16 %v791, %v790
    %v812 = vpack.c.b16 %v793, %v792
    %v813 = vpack.c.b16 %v795, %v794
    %v814 = vpack.c.b16 %v797, %v796
    %v815 = vpack.c.b16 %v799, %v798
    %v816 = vpack.c.b16 %v801, %v800
    %v817 = vpack.c.b16 %v803, %v802
    %v818 = vpack.c.b16 %v805, %v804
    %v820 = vsel %vm172, %v806, 0
    %v823 = vsel %vm172, %v807, 0
    %v826 = vsel %vm172, %v808, 0
    %v829 = vsel %vm172, %v809, 0
    %v832 = vsel %vm172, %v810, 0
    %v835 = vsel %vm172, %v811, 0
    %v838 = vsel %vm172, %v812, 0
    %v841 = vsel %vm172, %v813, 0
    %v844 = vsel %vm172, %v814, 0
    %v847 = vsel %vm172, %v815, 0
    %v850 = vsel %vm172, %v816, 0
    %v853 = vsel %vm172, %v817, 0
    %v856 = vsel %vm172, %v818, 0
    %858 = vmatprep.subr.bf16.mxu0 0
    %859 = vmatpush1.bf16.msra.mxu0 %v169
    %860 = vmatprep.subr.bf16.mxu0 0
    %861 = vmatpush1.bf16.msra.mxu0 %v217
    %862 = vmatprep.subr.bf16.mxu0 0
    %863 = vmatpush1.bf16.msra.mxu0 0
    %864 = vmatprep.subr.bf16.mxu0 0
    %865 = vmatpush1.bf16.msra.mxu0 0
    %866 = vmatprep.subr.bf16.mxu0 0
    %867 = vmatpush1.bf16.msra.mxu0 0
    %868 = vmatprep.subr.bf16.mxu0 0
    %869 = vmatpush1.bf16.msra.mxu0 0
    %870 = vmatprep.subr.bf16.mxu0 0
    %871 = vmatpush1.bf16.msra.mxu0 0
    %872 = vmatprep.subr.bf16.mxu0 0
    %873 = vmatpush1.bf16.msra.mxu0 0
    %874 = vmatprep.subr.bf16.mxu0 0
    %875 = vmatpush1.bf16.msra.mxu0 0
    %876 = vmatprep.subr.bf16.mxu0 0
    %877 = vmatpush1.bf16.msra.mxu0 0
    %878 = vmatprep.subr.bf16.mxu0 0
    %879 = vmatpush1.bf16.msra.mxu0 0
    %880 = vmatprep.subr.bf16.mxu0 0
    %881 = vmatpush1.bf16.msra.mxu0 0
    %882 = vmatprep.subr.bf16.mxu0 0
    %883 = vmatpush1.bf16.msra.mxu0 0
    %884 = vmatprep.subr.bf16.mxu0 0
    %885 = vmatpush1.bf16.msra.mxu0 0
    %886 = vmatprep.subr.bf16.mxu0 0
    %887 = vmatpush1.bf16.msra.mxu0 0
    %888 = vmatprep.subr.bf16.mxu0 0
    %889 = vmatpush1.bf16.msra.mxu0 0
    %890 = vmatprep.mubr.bf16.mxu0 0
    %891 = vmatmul.mubr.bf16.gmra.mrb[0].mxu0 %v820
    %v892 = vpop.f32.mrb[0].mxu0
    %v893 = vadd.f32 %v94, %v892
    %v894 = vpop.f32.mrb[0].mxu0
    %v895 = vpop.f32.mrb[0].mxu0
    %v896 = vadd.f32 %v94, %v895
    %v897 = vpop.f32.mrb[0].mxu0
    %898 = vmatprep.mubr.bf16.mxu0 0
    %899 = vmatmul.mubr.bf16.gmra.mrb[0].mxu0 %v823
    %v900 = vpop.f32.mrb[0].mxu0
    %v901 = vadd.f32 %v94, %v900
    %v902 = vpop.f32.mrb[0].mxu0
    %v903 = vpop.f32.mrb[0].mxu0
    %v904 = vadd.f32 %v94, %v903
    %v905 = vpop.f32.mrb[0].mxu0
    %906 = vmatprep.mubr.bf16.mxu0 0
    %907 = vmatmul.mubr.bf16.gmra.mrb[0].mxu0 %v826
    %v908 = vpop.f32.mrb[0].mxu0
    %v909 = vadd.f32 %v94, %v908
    %v910 = vpop.f32.mrb[0].mxu0
    %v911 = vpop.f32.mrb[0].mxu0
    %v912 = vadd.f32 %v94, %v911
    %v913 = vpop.f32.mrb[0].mxu0
    %914 = vmatprep.mubr.bf16.mxu0 0
    %915 = vmatmul.mubr.bf16.gmra.mrb[0].mxu0 %v829
    %v916 = vpop.f32.mrb[0].mxu0
    %v917 = vadd.f32 %v94, %v916
    %v918 = vpop.f32.mrb[0].mxu0
    %v919 = vpop.f32.mrb[0].mxu0
    %v920 = vadd.f32 %v94, %v919
    %v921 = vpop.f32.mrb[0].mxu0
    %922 = vmatprep.mubr.bf16.mxu0 0
    %923 = vmatmul.mubr.bf16.gmra.mrb[0].mxu0 %v832
    %v924 = vpop.f32.mrb[0].mxu0
    %v925 = vadd.f32 %v94, %v924
    %v926 = vpop.f32.mrb[0].mxu0
    %v927 = vpop.f32.mrb[0].mxu0
    %v928 = vadd.f32 %v94, %v927
    %v929 = vpop.f32.mrb[0].mxu0
    %930 = vmatprep.mubr.bf16.mxu0 0
    %931 = vmatmul.mubr.bf16.gmra.mrb[0].mxu0 %v835
    %v932 = vpop.f32.mrb[0].mxu0
    %v933 = vadd.f32 %v94, %v932
    %v934 = vpop.f32.mrb[0].mxu0
    %v935 = vpop.f32.mrb[0].mxu0
    %v936 = vadd.f32 %v94, %v935
    %v937 = vpop.f32.mrb[0].mxu0
    %938 = vmatprep.mubr.bf16.mxu0 0
    %939 = vmatmul.mubr.bf16.gmra.mrb[0].mxu0 %v838
    %v940 = vpop.f32.mrb[0].mxu0
    %v941 = vadd.f32 %v94, %v940
    %v942 = vpop.f32.mrb[0].mxu0
    %v943 = vpop.f32.mrb[0].mxu0
    %v944 = vadd.f32 %v94, %v943
    %v945 = vpop.f32.mrb[0].mxu0
    %946 = vmatprep.mubr.bf16.mxu0 0
    %947 = vmatmul.mubr.bf16.gmra.mrb[0].mxu0 %v841
    %v948 = vpop.f32.mrb[0].mxu0
    %v949 = vadd.f32 %v94, %v948
    %v950 = vpop.f32.mrb[0].mxu0
    %v951 = vpop.f32.mrb[0].mxu0
    %v952 = vadd.f32 %v94, %v951
    %v953 = vpop.f32.mrb[0].mxu0
    %954 = vmatprep.mubr.bf16.mxu0 0
    %955 = vmatmul.mubr.bf16.gmra.mrb[0].mxu0 %v844
    %v956 = vpop.f32.mrb[0].mxu0
    %v957 = vadd.f32 %v94, %v956
    %v958 = vpop.f32.mrb[0].mxu0
    %v959 = vpop.f32.mrb[0].mxu0
    %v960 = vadd.f32 %v94, %v959
    %v961 = vpop.f32.mrb[0].mxu0
    %962 = vmatprep.mubr.bf16.mxu0 0
    %963 = vmatmul.mubr.bf16.gmra.mrb[0].mxu0 %v847
    %v964 = vpop.f32.mrb[0].mxu0
    %v965 = vadd.f32 %v94, %v964
    %v966 = vpop.f32.mrb[0].mxu0
    %v967 = vpop.f32.mrb[0].mxu0
    %v968 = vadd.f32 %v94, %v967
    %v969 = vpop.f32.mrb[0].mxu0
    %970 = vmatprep.mubr.bf16.mxu0 0
    %971 = vmatmul.mubr.bf16.gmra.mrb[0].mxu0 %v850
    %v972 = vpop.f32.mrb[0].mxu0
    %v973 = vadd.f32 %v94, %v972
    %v974 = vpop.f32.mrb[0].mxu0
    %v975 = vpop.f32.mrb[0].mxu0
    %v976 = vadd.f32 %v94, %v975
    %v977 = vpop.f32.mrb[0].mxu0
    %978 = vmatprep.mubr.bf16.mxu0 0
    %979 = vmatmul.mubr.bf16.gmra.mrb[0].mxu0 %v853
    %v980 = vpop.f32.mrb[0].mxu0
    %v981 = vadd.f32 %v94, %v980
    %v982 = vpop.f32.mrb[0].mxu0
    %v983 = vpop.f32.mrb[0].mxu0
    %v984 = vadd.f32 %v94, %v983
    %v985 = vpop.f32.mrb[0].mxu0
    %986 = vmatprep.mubr.bf16.mxu0 0
    %987 = vmatmul.mubr.bf16.gmra.mrb[0].mxu0 %v856
    %v988 = vpop.f32.mrb[0].mxu0
    %v989 = vadd.f32 %v94, %v988
    %v990 = vpop.f32.mrb[0].mxu0
    %v991 = vpop.f32.mrb[0].mxu0
    %v992 = vadd.f32 %v94, %v991
    %v993 = vpop.f32.mrb[0].mxu0
    %994 = vdwg.mxu0
    %v995 = vmax.f32 %v893, 0.0
    %v996 = vmax.f32 %v896, 0.0
    %v997 = vmax.f32 %v901, 0.0
    %v998 = vmax.f32 %v904, 0.0
    %v999 = vmax.f32 %v909, 0.0
    %v1000 = vmax.f32 %v912, 0.0
    %v1001 = vmax.f32 %v917, 0.0
    %v1002 = vmax.f32 %v920, 0.0
    %v1003 = vmax.f32 %v925, 0.0
    %v1004 = vmax.f32 %v928, 0.0
    %v1005 = vmax.f32 %v933, 0.0
    %v1006 = vmax.f32 %v936, 0.0
    %v1007 = vmax.f32 %v941, 0.0
    %v1008 = vmax.f32 %v944, 0.0
    %v1009 = vmax.f32 %v949, 0.0
    %v1010 = vmax.f32 %v952, 0.0
    %v1011 = vmax.f32 %v957, 0.0
    %v1012 = vmax.f32 %v960, 0.0
    %v1013 = vmax.f32 %v965, 0.0
    %v1014 = vmax.f32 %v968, 0.0
    %v1015 = vmax.f32 %v973, 0.0
    %v1016 = vmax.f32 %v976, 0.0
    %v1017 = vmax.f32 %v981, 0.0
    %v1018 = vmax.f32 %v984, 0.0
    %v1019 = vmax.f32 %v989, 0.0
    %v1020 = vmax.f32 %v992, 0.0
    %v1021 = vpack.c.bf16 %v996, %v995
    %v1022 = vpack.c.bf16 %v998, %v997
    %v1023 = vpack.c.bf16 %v1000, %v999
    %v1024 = vpack.c.bf16 %v1002, %v1001
    %v1025 = vpack.c.bf16 %v1004, %v1003
    %v1026 = vpack.c.bf16 %v1006, %v1005
    %v1027 = vpack.c.bf16 %v1008, %v1007
    %v1028 = vpack.c.bf16 %v1010, %v1009
    %v1029 = vpack.c.bf16 %v1012, %v1011
    %v1030 = vpack.c.bf16 %v1014, %v1013
    %v1031 = vpack.c.bf16 %v1016, %v1015
    %v1032 = vpack.c.bf16 %v1018, %v1017
    %v1033 = vpack.c.bf16 %v1020, %v1019
    %1034 = vst.msk [vmem:[#allocation2 + $0xd0] sm:$0xff] %vm395, %v1021
    %1035 = vst.msk [vmem:[#allocation2 + $0xd8] sm:$0xff] %vm395, %v1022
    %1036 = vst.msk [vmem:[#allocation2 + $0xe0] sm:$0xff] %vm395, %v1023
    %1037 = vst.msk [vmem:[#allocation2 + $0xe8] sm:$0xff] %vm395, %v1024
    %1038 = vst.msk [vmem:[#allocation2 + $0xf0] sm:$0xff] %vm395, %v1025
    %1039 = vst.msk [vmem:[#allocation2 + $0xf8] sm:$0xff] %vm395, %v1026
    %1040 = vst.msk [vmem:[#allocation2 + $0x100] sm:$0xff] %vm395, %v1027
    %1041 = vst.msk [vmem:[#allocation2 + $0x108] sm:$0xff] %vm395, %v1028
    %1042 = vst.msk [vmem:[#allocation2 + $0x110] sm:$0xff] %vm395, %v1029
    %1043 = vst.msk [vmem:[#allocation2 + $0x118] sm:$0xff] %vm395, %v1030
    %1044 = vst.msk [vmem:[#allocation2 + $0x120] sm:$0xff] %vm395, %v1031
    %1045 = vst.msk [vmem:[#allocation2 + $0x128] sm:$0xff] %vm395, %v1032
    %1046 = vst.msk [vmem:[#allocation2 + $0x130] sm:$0xff] %vm395, %v1033
    %v1047 = vld [vmem:[#allocation2] sm:$0xff]
    %v1048 = vld [vmem:[#allocation2 + $0x8] sm:$0xff]
    %v1049 = vld [vmem:[#allocation2 + $0x10] sm:$0xff]
    %v1050 = vld [vmem:[#allocation2 + $0x18] sm:$0xff]
    %v1051 = vld [vmem:[#allocation2 + $0x20] sm:$0xff]
    %v1052 = vld [vmem:[#allocation2 + $0x28] sm:$0xff]
    %v1053 = vld [vmem:[#allocation2 + $0x30] sm:$0xff]
    %v1054 = vld [vmem:[#allocation2 + $0x38] sm:$0xff]
    %v1055 = vld [vmem:[#allocation2 + $0x40] sm:$0xff]
    %v1056 = vld [vmem:[%s3] sm:$0xf]
    %v1057 = vld [vmem:[%s3 + $0x4] sm:$0xf]
    %v1058 = vld [vmem:[%s3 + $0x8] sm:$0xf]
    %v1059 = vld [vmem:[%s3 + $0xc] sm:$0xf]
    %v1060 = vld [vmem:[%s3 + $0x10] sm:$0xf]
    %v1061 = vld [vmem:[%s3 + $0x14] sm:$0xf]
    %v1062 = vld [vmem:[%s3 + $0x18] sm:$0xf]
    %v1063 = vld [vmem:[%s3 + $0x1c] sm:$0xf]
    %v1064 = vld [vmem:[%s3 + $0x20] sm:$0xf]
    %v1065 = vld [vmem:[%s3 + $0x24] sm:$0xf]
    %v1066 = vld [vmem:[%s3 + $0x28] sm:$0xf]
    %v1067 = vld [vmem:[%s3 + $0x2c] sm:$0xf]
    %v1068 = vld [vmem:[#allocation2 + $0x8] sm:$0xf0]
    %v1069 = vld [vmem:[#allocation2 + $0x48] sm:$0xff]
    %v1070 = vld [vmem:[#allocation2 + $0x50] sm:$0xf]
    %s1071 = scalar_lea.vmem %s3, 48
    %v1072 = vld [vmem:[%s1071] sm:$0xf]
    %v1073 = vld [vmem:[%s1071 + $0x4] sm:$0xf]
    %v1074 = vld [vmem:[%s1071 + $0x8] sm:$0xf]
    %v1075 = vld [vmem:[%s1071 + $0xc] sm:$0xf]
    %v1076 = vld [vmem:[%s1071 + $0x10] sm:$0xf]
    %v1077 = vld [vmem:[%s1071 + $0x14] sm:$0xf]
    %v1078 = vld [vmem:[%s1071 + $0x18] sm:$0xf]
    %v1079 = vld [vmem:[%s1071 + $0x1c] sm:$0xf]
    %v1080 = vld [vmem:[%s1071 + $0x20] sm:$0xf]
    %v1081 = vld [vmem:[%s1071 + $0x24] sm:$0xf]
    %v1082 = vld [vmem:[%s1071 + $0x28] sm:$0xf]
    %v1083 = vld [vmem:[%s1071 + $0x2c] sm:$0xf]
    %vm1094 = vcmask 1043456
    %v1095 = vrot.slane %v1068, 4
    %v1096 = vrot.slane %v1049, 4
    %v1097 = vsel %vm1094, %v1095, %v1096
    %v1098 = vrot.slane %v1050, 4
    %v1099 = vsel %vm1094, %v1096, %v1098
    %v1100 = vrot.slane %v1051, 4
    %v1101 = vsel %vm1094, %v1098, %v1100
    %v1102 = vrot.slane %v1052, 4
    %v1103 = vsel %vm1094, %v1100, %v1102
    %v1104 = vrot.slane %v1053, 4
    %v1105 = vsel %vm1094, %v1102, %v1104
    %v1106 = vrot.slane %v1054, 4
    %v1107 = vsel %vm1094, %v1104, %v1106
    %v1108 = vrot.slane %v1055, 4
    %v1109 = vsel %vm1094, %v1106, %v1108
    %v1110 = vrot.slane %v1069, 4
    %v1111 = vsel %vm1094, %v1108, %v1110
    %v1112 = vrot.slane %v1070, 4
    %v1113 = vsel %vm1094, %v1110, %v1112
    %v1126 = vunpack.c.l.b16 %v1072
    %v1127 = vunpack.c.l.b16 %v1073
    %v1128 = vunpack.c.l.b16 %v1074
    %v1129 = vunpack.c.l.b16 %v1075
    %v1130 = vunpack.c.l.b16 %v1076
    %v1131 = vunpack.c.l.b16 %v1077
    %v1132 = vunpack.c.l.b16 %v1078
    %v1133 = vunpack.c.l.b16 %v1079
    %v1134 = vunpack.c.l.b16 %v1080
    %v1135 = vunpack.c.l.b16 %v1081
    %v1136 = vunpack.c.l.b16 %v1082
    %v1137 = vunpack.c.l.b16 %v1083
    %v1138 = vpack.c.b16 %v1127, %v1126
    %v1139 = vpack.c.b16 %v1129, %v1128
    %v1140 = vpack.c.b16 %v1131, %v1130
    %v1141 = vpack.c.b16 %v1133, %v1132
    %v1142 = vpack.c.b16 %v1135, %v1134
    %v1143 = vpack.c.b16 %v1137, %v1136
    %v1151 = vsel %vm395, %v1097, 0
    %v1154 = vsel %vm395, %v1099, 0
    %v1157 = vsel %vm395, %v1101, 0
    %v1160 = vsel %vm395, %v1103, 0
    %v1163 = vsel %vm395, %v1105, 0
    %v1166 = vsel %vm395, %v1107, 0
    %v1169 = vsel %vm395, %v1109, 0
    %v1172 = vsel %vm395, %v1111, 0
    %v1175 = vsel %vm395, %v1113, 0
    %1177 = vmatprep.subr.bf16.mxu0 0
    %1178 = vmatpush1.bf16.msra.mxu0 %v1138
    %1179 = vmatprep.subr.bf16.mxu0 0
    %1180 = vmatpush1.bf16.msra.mxu0 %v1139
    %1181 = vmatprep.subr.bf16.mxu0 0
    %1182 = vmatpush1.bf16.msra.mxu0 %v1140
    %1183 = vmatprep.subr.bf16.mxu0 0
    %1184 = vmatpush1.bf16.msra.mxu0 %v1141
    %1185 = vmatprep.subr.bf16.mxu0 0
    %1186 = vmatpush1.bf16.msra.mxu0 %v1142
    %1187 = vmatprep.subr.bf16.mxu0 0
    %1188 = vmatpush1.bf16.msra.mxu0 %v1143
    %1189 = vmatprep.subr.bf16.mxu0 0
    %1190 = vmatpush1.bf16.msra.mxu0 0
    %1191 = vmatprep.subr.bf16.mxu0 0
    %1192 = vmatpush1.bf16.msra.mxu0 0
    %1193 = vmatprep.subr.bf16.mxu0 0
    %1194 = vmatpush1.bf16.msra.mxu0 0
    %1195 = vmatprep.subr.bf16.mxu0 0
    %1196 = vmatpush1.bf16.msra.mxu0 0
    %1197 = vmatprep.subr.bf16.mxu0 0
    %1198 = vmatpush1.bf16.msra.mxu0 0
    %1199 = vmatprep.subr.bf16.mxu0 0
    %1200 = vmatpush1.bf16.msra.mxu0 0
    %1201 = vmatprep.subr.bf16.mxu0 0
    %1202 = vmatpush1.bf16.msra.mxu0 0
    %1203 = vmatprep.subr.bf16.mxu0 0
    %1204 = vmatpush1.bf16.msra.mxu0 0
    %1205 = vmatprep.subr.bf16.mxu0 0
    %1206 = vmatpush1.bf16.msra.mxu0 0
    %1207 = vmatprep.subr.bf16.mxu0 0
    %1208 = vmatpush1.bf16.msra.mxu0 0
    %1209 = vmatprep.mubr.bf16.mxu0 0
    %1210 = vmatmul.mubr.bf16.gmra.mrb[0].mxu0 %v1151
    %v1211 = vpop.f32.mrb[0].mxu0
    %v1212 = vadd.f32 0.0, %v1211
    %v1213 = vpop.f32.mrb[0].mxu0
    %v1214 = vpop.f32.mrb[0].mxu0
    %v1215 = vadd.f32 0.0, %v1214
    %v1216 = vpop.f32.mrb[0].mxu0
    %1217 = vmatprep.mubr.bf16.mxu0 0
    %1218 = vmatmul.mubr.bf16.gmra.mrb[0].mxu0 %v1154
    %v1219 = vpop.f32.mrb[0].mxu0
    %v1220 = vadd.f32 0.0, %v1219
    %v1221 = vpop.f32.mrb[0].mxu0
    %v1222 = vpop.f32.mrb[0].mxu0
    %v1223 = vadd.f32 0.0, %v1222
    %v1224 = vpop.f32.mrb[0].mxu0
    %1225 = vmatprep.mubr.bf16.mxu0 0
    %1226 = vmatmul.mubr.bf16.gmra.mrb[0].mxu0 %v1157
    %v1227 = vpop.f32.mrb[0].mxu0
    %v1228 = vadd.f32 0.0, %v1227
    %v1229 = vpop.f32.mrb[0].mxu0
    %v1230 = vpop.f32.mrb[0].mxu0
    %v1231 = vadd.f32 0.0, %v1230
    %v1232 = vpop.f32.mrb[0].mxu0
    %1233 = vmatprep.mubr.bf16.mxu0 0
    %1234 = vmatmul.mubr.bf16.gmra.mrb[0].mxu0 %v1160
    %v1235 = vpop.f32.mrb[0].mxu0
    %v1236 = vadd.f32 0.0, %v1235
    %v1237 = vpop.f32.mrb[0].mxu0
    %v1238 = vpop.f32.mrb[0].mxu0
    %v1239 = vadd.f32 0.0, %v1238
    %v1240 = vpop.f32.mrb[0].mxu0
    %1241 = vmatprep.mubr.bf16.mxu0 0
    %1242 = vmatmul.mubr.bf16.gmra.mrb[0].mxu0 %v1163
    %v1243 = vpop.f32.mrb[0].mxu0
    %v1244 = vadd.f32 0.0, %v1243
    %v1245 = vpop.f32.mrb[0].mxu0
    %v1246 = vpop.f32.mrb[0].mxu0
    %v1247 = vadd.f32 0.0, %v1246
    %v1248 = vpop.f32.mrb[0].mxu0
    %1249 = vmatprep.mubr.bf16.mxu0 0
    %1250 = vmatmul.mubr.bf16.gmra.mrb[0].mxu0 %v1166
    %v1251 = vpop.f32.mrb[0].mxu0
    %v1252 = vadd.f32 0.0, %v1251
    %v1253 = vpop.f32.mrb[0].mxu0
    %v1254 = vpop.f32.mrb[0].mxu0
    %v1255 = vadd.f32 0.0, %v1254
    %v1256 = vpop.f32.mrb[0].mxu0
    %1257 = vmatprep.mubr.bf16.mxu0 0
    %1258 = vmatmul.mubr.bf16.gmra.mrb[0].mxu0 %v1169
    %v1259 = vpop.f32.mrb[0].mxu0
    %v1260 = vadd.f32 0.0, %v1259
    %v1261 = vpop.f32.mrb[0].mxu0
    %v1262 = vpop.f32.mrb[0].mxu0
    %v1263 = vadd.f32 0.0, %v1262
    %v1264 = vpop.f32.mrb[0].mxu0
    %1265 = vmatprep.mubr.bf16.mxu0 0
    %1266 = vmatmul.mubr.bf16.gmra.mrb[0].mxu0 %v1172
    %v1267 = vpop.f32.mrb[0].mxu0
    %v1268 = vadd.f32 0.0, %v1267
    %v1269 = vpop.f32.mrb[0].mxu0
    %v1270 = vpop.f32.mrb[0].mxu0
    %v1271 = vadd.f32 0.0, %v1270
    %v1272 = vpop.f32.mrb[0].mxu0
    %1273 = vmatprep.mubr.bf16.mxu0 0
    %1274 = vmatmul.mubr.bf16.gmra.mrb[0].mxu0 %v1175
    %v1275 = vpop.f32.mrb[0].mxu0
    %v1276 = vadd.f32 0.0, %v1275
    %v1277 = vpop.f32.mrb[0].mxu0
    %v1278 = vpop.f32.mrb[0].mxu0
    %v1279 = vadd.f32 0.0, %v1278
    %v1280 = vpop.f32.mrb[0].mxu0
    %1281 = vdwg.mxu0
    %v1294 = vunpack.c.l.b16 %v1056
    %v1295 = vunpack.c.l.b16 %v1057
    %v1296 = vunpack.c.l.b16 %v1058
    %v1297 = vunpack.c.l.b16 %v1059
    %v1298 = vunpack.c.l.b16 %v1060
    %v1299 = vunpack.c.l.b16 %v1061
    %v1300 = vunpack.c.l.b16 %v1062
    %v1301 = vunpack.c.l.b16 %v1063
    %v1302 = vunpack.c.l.b16 %v1064
    %v1303 = vunpack.c.l.b16 %v1065
    %v1304 = vunpack.c.l.b16 %v1066
    %v1305 = vunpack.c.l.b16 %v1067
    %v1306 = vpack.c.b16 %v1295, %v1294
    %v1307 = vpack.c.b16 %v1297, %v1296
    %v1308 = vpack.c.b16 %v1299, %v1298
    %v1309 = vpack.c.b16 %v1301, %v1300
    %v1310 = vpack.c.b16 %v1303, %v1302
    %v1311 = vpack.c.b16 %v1305, %v1304
    %v1319 = vsel %vm395, %v1047, 0
    %v1322 = vsel %vm395, %v1048, 0
    %v1325 = vsel %vm395, %v1049, 0
    %v1328 = vsel %vm395, %v1050, 0
    %v1331 = vsel %vm395, %v1051, 0
    %v1334 = vsel %vm395, %v1052, 0
    %v1337 = vsel %vm395, %v1053, 0
    %v1340 = vsel %vm395, %v1054, 0
    %v1343 = vsel %vm395, %v1055, 0
    %1345 = vmatprep.subr.bf16.mxu0 0
    %1346 = vmatpush1.bf16.msra.mxu0 %v1306
    %1347 = vmatprep.subr.bf16.mxu0 0
    %1348 = vmatpush1.bf16.msra.mxu0 %v1307
    %1349 = vmatprep.subr.bf16.mxu0 0
    %1350 = vmatpush1.bf16.msra.mxu0 %v1308
    %1351 = vmatprep.subr.bf16.mxu0 0
    %1352 = vmatpush1.bf16.msra.mxu0 %v1309
    %1353 = vmatprep.subr.bf16.mxu0 0
    %1354 = vmatpush1.bf16.msra.mxu0 %v1310
    %1355 = vmatprep.subr.bf16.mxu0 0
    %1356 = vmatpush1.bf16.msra.mxu0 %v1311
    %1357 = vmatprep.subr.bf16.mxu0 0
    %1358 = vmatpush1.bf16.msra.mxu0 0
    %1359 = vmatprep.subr.bf16.mxu0 0
    %1360 = vmatpush1.bf16.msra.mxu0 0
    %1361 = vmatprep.subr.bf16.mxu0 0
    %1362 = vmatpush1.bf16.msra.mxu0 0
    %1363 = vmatprep.subr.bf16.mxu0 0
    %1364 = vmatpush1.bf16.msra.mxu0 0
    %1365 = vmatprep.subr.bf16.mxu0 0
    %1366 = vmatpush1.bf16.msra.mxu0 0
    %1367 = vmatprep.subr.bf16.mxu0 0
    %1368 = vmatpush1.bf16.msra.mxu0 0
    %1369 = vmatprep.subr.bf16.mxu0 0
    %1370 = vmatpush1.bf16.msra.mxu0 0
    %1371 = vmatprep.subr.bf16.mxu0 0
    %1372 = vmatpush1.bf16.msra.mxu0 0
    %1373 = vmatprep.subr.bf16.mxu0 0
    %1374 = vmatpush1.bf16.msra.mxu0 0
    %1375 = vmatprep.subr.bf16.mxu0 0
    %1376 = vmatpush1.bf16.msra.mxu0 0
    %1377 = vmatprep.mubr.bf16.mxu0 0
    %1378 = vmatmul.mubr.bf16.gmra.mrb[0].mxu0 %v1319
    %v1379 = vpop.f32.mrb[0].mxu0
    %v1380 = vadd.f32 %v1212, %v1379
    %v1381 = vpop.f32.mrb[0].mxu0
    %v1382 = vpop.f32.mrb[0].mxu0
    %v1383 = vadd.f32 %v1215, %v1382
    %v1384 = vpop.f32.mrb[0].mxu0
    %1385 = vmatprep.mubr.bf16.mxu0 0
    %1386 = vmatmul.mubr.bf16.gmra.mrb[0].mxu0 %v1322
    %v1387 = vpop.f32.mrb[0].mxu0
    %v1388 = vadd.f32 %v1220, %v1387
    %v1389 = vpop.f32.mrb[0].mxu0
    %v1390 = vpop.f32.mrb[0].mxu0
    %v1391 = vadd.f32 %v1223, %v1390
    %v1392 = vpop.f32.mrb[0].mxu0
    %1393 = vmatprep.mubr.bf16.mxu0 0
    %1394 = vmatmul.mubr.bf16.gmra.mrb[0].mxu0 %v1325
    %v1395 = vpop.f32.mrb[0].mxu0
    %v1396 = vadd.f32 %v1228, %v1395
    %v1397 = vpop.f32.mrb[0].mxu0
    %v1398 = vpop.f32.mrb[0].mxu0
    %v1399 = vadd.f32 %v1231, %v1398
    %v1400 = vpop.f32.mrb[0].mxu0
    %1401 = vmatprep.mubr.bf16.mxu0 0
    %1402 = vmatmul.mubr.bf16.gmra.mrb[0].mxu0 %v1328
    %v1403 = vpop.f32.mrb[0].mxu0
    %v1404 = vadd.f32 %v1236, %v1403
    %v1405 = vpop.f32.mrb[0].mxu0
    %v1406 = vpop.f32.mrb[0].mxu0
    %v1407 = vadd.f32 %v1239, %v1406
    %v1408 = vpop.f32.mrb[0].mxu0
    %1409 = vmatprep.mubr.bf16.mxu0 0
    %1410 = vmatmul.mubr.bf16.gmra.mrb[0].mxu0 %v1331
    %v1411 = vpop.f32.mrb[0].mxu0
    %v1412 = vadd.f32 %v1244, %v1411
    %v1413 = vpop.f32.mrb[0].mxu0
    %v1414 = vpop.f32.mrb[0].mxu0
    %v1415 = vadd.f32 %v1247, %v1414
    %v1416 = vpop.f32.mrb[0].mxu0
    %1417 = vmatprep.mubr.bf16.mxu0 0
    %1418 = vmatmul.mubr.bf16.gmra.mrb[0].mxu0 %v1334
    %v1419 = vpop.f32.mrb[0].mxu0
    %v1420 = vadd.f32 %v1252, %v1419
    %v1421 = vpop.f32.mrb[0].mxu0
    %v1422 = vpop.f32.mrb[0].mxu0
    %v1423 = vadd.f32 %v1255, %v1422
    %v1424 = vpop.f32.mrb[0].mxu0
    %1425 = vmatprep.mubr.bf16.mxu0 0
    %1426 = vmatmul.mubr.bf16.gmra.mrb[0].mxu0 %v1337
    %v1427 = vpop.f32.mrb[0].mxu0
    %v1428 = vadd.f32 %v1260, %v1427
    %v1429 = vpop.f32.mrb[0].mxu0
    %v1430 = vpop.f32.mrb[0].mxu0
    %v1431 = vadd.f32 %v1263, %v1430
    %v1432 = vpop.f32.mrb[0].mxu0
    %1433 = vmatprep.mubr.bf16.mxu0 0
    %1434 = vmatmul.mubr.bf16.gmra.mrb[0].mxu0 %v1340
    %v1435 = vpop.f32.mrb[0].mxu0
    %v1436 = vadd.f32 %v1268, %v1435
    %v1437 = vpop.f32.mrb[0].mxu0
    %v1438 = vpop.f32.mrb[0].mxu0
    %v1439 = vadd.f32 %v1271, %v1438
    %v1440 = vpop.f32.mrb[0].mxu0
    %1441 = vmatprep.mubr.bf16.mxu0 0
    %1442 = vmatmul.mubr.bf16.gmra.mrb[0].mxu0 %v1343
    %v1443 = vpop.f32.mrb[0].mxu0
    %v1444 = vadd.f32 %v1276, %v1443
    %v1445 = vpop.f32.mrb[0].mxu0
    %v1446 = vpop.f32.mrb[0].mxu0
    %v1447 = vadd.f32 %v1279, %v1446
    %v1448 = vpop.f32.mrb[0].mxu0
    %1449 = vdwg.mxu0
    %v1450 = vld [vmem:[#allocation2 + $0x18] sm:$0xff]
    %v1451 = vld [vmem:[#allocation2 + $0x20] sm:$0xff]
    %v1452 = vld [vmem:[#allocation2 + $0x28] sm:$0xff]
    %v1453 = vld [vmem:[#allocation2 + $0x30] sm:$0xff]
    %v1454 = vld [vmem:[#allocation2 + $0x38] sm:$0xff]
    %v1455 = vld [vmem:[#allocation2 + $0x40] sm:$0xff]
    %v1456 = vld [vmem:[#allocation2 + $0x48] sm:$0xff]
    %v1457 = vld [vmem:[#allocation2 + $0x50] sm:$0xff]
    %v1458 = vld [vmem:[#allocation2 + $0x58] sm:$0xff]
    %s1459 = scalar_lea.vmem %s3, 96
    %v1460 = vld [vmem:[%s1459] sm:$0xf]
    %v1461 = vld [vmem:[%s1459 + $0x4] sm:$0xf]
    %v1462 = vld [vmem:[%s1459 + $0x8] sm:$0xf]
    %v1463 = vld [vmem:[%s1459 + $0xc] sm:$0xf]
    %v1464 = vld [vmem:[%s1459 + $0x10] sm:$0xf]
    %v1465 = vld [vmem:[%s1459 + $0x14] sm:$0xf]
    %v1466 = vld [vmem:[%s1459 + $0x18] sm:$0xf]
    %v1467 = vld [vmem:[%s1459 + $0x1c] sm:$0xf]
    %v1468 = vld [vmem:[%s1459 + $0x20] sm:$0xf]
    %v1469 = vld [vmem:[%s1459 + $0x24] sm:$0xf]
    %v1470 = vld [vmem:[%s1459 + $0x28] sm:$0xf]
    %v1471 = vld [vmem:[%s1459 + $0x2c] sm:$0xf]
    %v1484 = vunpack.c.l.b16 %v1460
    %v1485 = vunpack.c.l.b16 %v1461
    %v1486 = vunpack.c.l.b16 %v1462
    %v1487 = vunpack.c.l.b16 %v1463
    %v1488 = vunpack.c.l.b16 %v1464
    %v1489 = vunpack.c.l.b16 %v1465
    %v1490 = vunpack.c.l.b16 %v1466
    %v1491 = vunpack.c.l.b16 %v1467
    %v1492 = vunpack.c.l.b16 %v1468
    %v1493 = vunpack.c.l.b16 %v1469
    %v1494 = vunpack.c.l.b16 %v1470
    %v1495 = vunpack.c.l.b16 %v1471
    %v1496 = vpack.c.b16 %v1485, %v1484
    %v1497 = vpack.c.b16 %v1487, %v1486
    %v1498 = vpack.c.b16 %v1489, %v1488
    %v1499 = vpack.c.b16 %v1491, %v1490
    %v1500 = vpack.c.b16 %v1493, %v1492
    %v1501 = vpack.c.b16 %v1495, %v1494
    %v1509 = vsel %vm395, %v1450, 0
    %v1512 = vsel %vm395, %v1451, 0
    %v1515 = vsel %vm395, %v1452, 0
    %v1518 = vsel %vm395, %v1453, 0
    %v1521 = vsel %vm395, %v1454, 0
    %v1524 = vsel %vm395, %v1455, 0
    %v1527 = vsel %vm395, %v1456, 0
    %v1530 = vsel %vm395, %v1457, 0
    %v1533 = vsel %vm395, %v1458, 0
    %1535 = vmatprep.subr.bf16.mxu0 0
    %1536 = vmatpush1.bf16.msra.mxu0 %v1496
    %1537 = vmatprep.subr.bf16.mxu0 0
    %1538 = vmatpush1.bf16.msra.mxu0 %v1497
    %1539 = vmatprep.subr.bf16.mxu0 0
    %1540 = vmatpush1.bf16.msra.mxu0 %v1498
    %1541 = vmatprep.subr.bf16.mxu0 0
    %1542 = vmatpush1.bf16.msra.mxu0 %v1499
    %1543 = vmatprep.subr.bf16.mxu0 0
    %1544 = vmatpush1.bf16.msra.mxu0 %v1500
    %1545 = vmatprep.subr.bf16.mxu0 0
    %1546 = vmatpush1.bf16.msra.mxu0 %v1501
    %1547 = vmatprep.subr.bf16.mxu0 0
    %1548 = vmatpush1.bf16.msra.mxu0 0
    %1549 = vmatprep.subr.bf16.mxu0 0
    %1550 = vmatpush1.bf16.msra.mxu0 0
    %1551 = vmatprep.subr.bf16.mxu0 0
    %1552 = vmatpush1.bf16.msra.mxu0 0
    %1553 = vmatprep.subr.bf16.mxu0 0
    %1554 = vmatpush1.bf16.msra.mxu0 0
    %1555 = vmatprep.subr.bf16.mxu0 0
    %1556 = vmatpush1.bf16.msra.mxu0 0
    %1557 = vmatprep.subr.bf16.mxu0 0
    %1558 = vmatpush1.bf16.msra.mxu0 0
    %1559 = vmatprep.subr.bf16.mxu0 0
    %1560 = vmatpush1.bf16.msra.mxu0 0
    %1561 = vmatprep.subr.bf16.mxu0 0
    %1562 = vmatpush1.bf16.msra.mxu0 0
    %1563 = vmatprep.subr.bf16.mxu0 0
    %1564 = vmatpush1.bf16.msra.mxu0 0
    %1565 = vmatprep.subr.bf16.mxu0 0
    %1566 = vmatpush1.bf16.msra.mxu0 0
    %1567 = vmatprep.mubr.bf16.mxu0 0
    %1568 = vmatmul.mubr.bf16.gmra.mrb[0].mxu0 %v1509
    %v1569 = vpop.f32.mrb[0].mxu0
    %v1570 = vadd.f32 0.0, %v1569
    %v1571 = vpop.f32.mrb[0].mxu0
    %v1572 = vpop.f32.mrb[0].mxu0
    %v1573 = vadd.f32 0.0, %v1572
    %v1574 = vpop.f32.mrb[0].mxu0
    %1575 = vmatprep.mubr.bf16.mxu0 0
    %1576 = vmatmul.mubr.bf16.gmra.mrb[0].mxu0 %v1512
    %v1577 = vpop.f32.mrb[0].mxu0
    %v1578 = vadd.f32 0.0, %v1577
    %v1579 = vpop.f32.mrb[0].mxu0
    %v1580 = vpop.f32.mrb[0].mxu0
    %v1581 = vadd.f32 0.0, %v1580
    %v1582 = vpop.f32.mrb[0].mxu0
    %1583 = vmatprep.mubr.bf16.mxu0 0
    %1584 = vmatmul.mubr.bf16.gmra.mrb[0].mxu0 %v1515
    %v1585 = vpop.f32.mrb[0].mxu0
    %v1586 = vadd.f32 0.0, %v1585
    %v1587 = vpop.f32.mrb[0].mxu0
    %v1588 = vpop.f32.mrb[0].mxu0
    %v1589 = vadd.f32 0.0, %v1588
    %v1590 = vpop.f32.mrb[0].mxu0
    %1591 = vmatprep.mubr.bf16.mxu0 0
    %1592 = vmatmul.mubr.bf16.gmra.mrb[0].mxu0 %v1518
    %v1593 = vpop.f32.mrb[0].mxu0
    %v1594 = vadd.f32 0.0, %v1593
    %v1595 = vpop.f32.mrb[0].mxu0
    %v1596 = vpop.f32.mrb[0].mxu0
    %v1597 = vadd.f32 0.0, %v1596
    %v1598 = vpop.f32.mrb[0].mxu0
    %1599 = vmatprep.mubr.bf16.mxu0 0
    %1600 = vmatmul.mubr.bf16.gmra.mrb[0].mxu0 %v1521
    %v1601 = vpop.f32.mrb[0].mxu0
    %v1602 = vadd.f32 0.0, %v1601
    %v1603 = vpop.f32.mrb[0].mxu0
    %v1604 = vpop.f32.mrb[0].mxu0
    %v1605 = vadd.f32 0.0, %v1604
    %v1606 = vpop.f32.mrb[0].mxu0
    %1607 = vmatprep.mubr.bf16.mxu0 0
    %1608 = vmatmul.mubr.bf16.gmra.mrb[0].mxu0 %v1524
    %v1609 = vpop.f32.mrb[0].mxu0
    %v1610 = vadd.f32 0.0, %v1609
    %v1611 = vpop.f32.mrb[0].mxu0
    %v1612 = vpop.f32.mrb[0].mxu0
    %v1613 = vadd.f32 0.0, %v1612
    %v1614 = vpop.f32.mrb[0].mxu0
    %1615 = vmatprep.mubr.bf16.mxu0 0
    %1616 = vmatmul.mubr.bf16.gmra.mrb[0].mxu0 %v1527
    %v1617 = vpop.f32.mrb[0].mxu0
    %v1618 = vadd.f32 0.0, %v1617
    %v1619 = vpop.f32.mrb[0].mxu0
    %v1620 = vpop.f32.mrb[0].mxu0
    %v1621 = vadd.f32 0.0, %v1620
    %v1622 = vpop.f32.mrb[0].mxu0
    %1623 = vmatprep.mubr.bf16.mxu0 0
    %1624 = vmatmul.mubr.bf16.gmra.mrb[0].mxu0 %v1530
    %v1625 = vpop.f32.mrb[0].mxu0
    %v1626 = vadd.f32 0.0, %v1625
    %v1627 = vpop.f32.mrb[0].mxu0
    %v1628 = vpop.f32.mrb[0].mxu0
    %v1629 = vadd.f32 0.0, %v1628
    %v1630 = vpop.f32.mrb[0].mxu0
    %1631 = vmatprep.mubr.bf16.mxu0 0
    %1632 = vmatmul.mubr.bf16.gmra.mrb[0].mxu0 %v1533
    %v1633 = vpop.f32.mrb[0].mxu0
    %v1634 = vadd.f32 0.0, %v1633
    %v1635 = vpop.f32.mrb[0].mxu0
    %v1636 = vpop.f32.mrb[0].mxu0
    %v1637 = vadd.f32 0.0, %v1636
    %v1638 = vpop.f32.mrb[0].mxu0
    %1639 = vdwg.mxu0
    %v1640 = vadd.f32 %v1380, %v1570
    %v1641 = vadd.f32 %v1383, %v1573
    %v1642 = vadd.f32 %v1388, %v1578
    %v1643 = vadd.f32 %v1391, %v1581
    %v1644 = vadd.f32 %v1396, %v1586
    %v1645 = vadd.f32 %v1399, %v1589
    %v1646 = vadd.f32 %v1404, %v1594
    %v1647 = vadd.f32 %v1407, %v1597
    %v1648 = vadd.f32 %v1412, %v1602
    %v1649 = vadd.f32 %v1415, %v1605
    %v1650 = vadd.f32 %v1420, %v1610
    %v1651 = vadd.f32 %v1423, %v1613
    %v1652 = vadd.f32 %v1428, %v1618
    %v1653 = vadd.f32 %v1431, %v1621
    %v1654 = vadd.f32 %v1436, %v1626
    %v1655 = vadd.f32 %v1439, %v1629
    %v1656 = vadd.f32 %v1444, %v1634
    %v1657 = vadd.f32 %v1447, %v1637
    %v1659 = vlaneseq
    %v1660 = vshrl.u32 %v1659, 7
    %v1661 = vsub.s32 0, %v1660
    %v1662 = vrot.slane %v63, %v1661
    %v1664 = vadd.f32 %v1640, %v1662
    %v1665 = vadd.f32 %v1641, %v1662
    %v1666 = vadd.f32 %v1642, %v1662
    %v1667 = vadd.f32 %v1643, %v1662
    %v1668 = vadd.f32 %v1644, %v1662
    %v1669 = vadd.f32 %v1645, %v1662
    %v1670 = vadd.f32 %v1646, %v1662
    %v1671 = vadd.f32 %v1647, %v1662
    %v1672 = vadd.f32 %v1648, %v1662
    %v1673 = vadd.f32 %v1649, %v1662
    %v1674 = vadd.f32 %v1650, %v1662
    %v1675 = vadd.f32 %v1651, %v1662
    %v1676 = vadd.f32 %v1652, %v1662
    %v1677 = vadd.f32 %v1653, %v1662
    %v1678 = vadd.f32 %v1654, %v1662
    %v1679 = vadd.f32 %v1655, %v1662
    %v1680 = vadd.f32 %v1656, %v1662
    %v1681 = vadd.f32 %v1657, %v1662
    %v1682 = vmax.f32 %v1664, 0.0
    %v1683 = vmax.f32 %v1665, 0.0
    %v1684 = vmax.f32 %v1666, 0.0
    %v1685 = vmax.f32 %v1667, 0.0
    %v1686 = vmax.f32 %v1668, 0.0
    %v1687 = vmax.f32 %v1669, 0.0
    %v1688 = vmax.f32 %v1670, 0.0
    %v1689 = vmax.f32 %v1671, 0.0
    %v1690 = vmax.f32 %v1672, 0.0
    %v1691 = vmax.f32 %v1673, 0.0
    %v1692 = vmax.f32 %v1674, 0.0
    %v1693 = vmax.f32 %v1675, 0.0
    %v1694 = vmax.f32 %v1676, 0.0
    %v1695 = vmax.f32 %v1677, 0.0
    %v1696 = vmax.f32 %v1678, 0.0
    %v1697 = vmax.f32 %v1679, 0.0
    %v1698 = vmax.f32 %v1680, 0.0
    %v1699 = vmax.f32 %v1681, 0.0
    %v1700 = vmax.f32 %v1682, %v1685
    %v1701 = vmax.f32 %v1683, %v1686
    %v1702 = vmax.f32 %v1684, %v1687
    %vm1703 = vcmask 523264
    %1704 = vst.msk [vmem:[#allocation3] sm:$0xff] %vm1703, %v1700
    %1705 = vst.msk [vmem:[#allocation3 + $0x8] sm:$0xff] %vm1703, %v1701
    %1706 = vst.msk [vmem:[#allocation3 + $0x10] sm:$0xff] %vm1703, %v1702
    %v1707 = vmax.f32 %v1688, %v1691
    %v1708 = vmax.f32 %v1689, %v1692
    %v1709 = vmax.f32 %v1690, %v1693
    %1710 = vst.msk [vmem:[#allocation3 + $0x18] sm:$0xff] %vm1703, %v1707
    %1711 = vst.msk [vmem:[#allocation3 + $0x20] sm:$0xff] %vm1703, %v1708
    %1712 = vst.msk [vmem:[#allocation3 + $0x28] sm:$0xff] %vm1703, %v1709
    %v1713 = vmax.f32 %v1694, %v1697
    %v1714 = vmax.f32 %v1695, %v1698
    %v1715 = vmax.f32 %v1696, %v1699
    %1716 = vst.msk [vmem:[#allocation3 + $0x30] sm:$0xff] %vm1703, %v1713
    %1717 = vst.msk [vmem:[#allocation3 + $0x38] sm:$0xff] %vm1703, %v1714
    %1718 = vst.msk [vmem:[#allocation3 + $0x40] sm:$0xff] %vm1703, %v1715
    %v1719 = vld [vmem:[#allocation2 + $0x48] sm:$0xff]
    %v1720 = vld [vmem:[#allocation2 + $0x50] sm:$0xff]
    %v1721 = vld [vmem:[#allocation2 + $0x58] sm:$0xff]
    %v1722 = vld [vmem:[#allocation2 + $0x60] sm:$0xff]
    %v1723 = vld [vmem:[#allocation2 + $0x68] sm:$0xff]
    %v1724 = vld [vmem:[#allocation2 + $0x70] sm:$0xff]
    %v1725 = vld [vmem:[#allocation2 + $0x78] sm:$0xff]
    %v1726 = vld [vmem:[#allocation2 + $0x80] sm:$0xff]
    %v1727 = vld [vmem:[#allocation2 + $0x88] sm:$0xff]
    %v1728 = vld [vmem:[%s3] sm:$0xf]
    %v1729 = vld [vmem:[%s3 + $0x4] sm:$0xf]
    %v1730 = vld [vmem:[%s3 + $0x8] sm:$0xf]
    %v1731 = vld [vmem:[%s3 + $0xc] sm:$0xf]
    %v1732 = vld [vmem:[%s3 + $0x10] sm:$0xf]
    %v1733 = vld [vmem:[%s3 + $0x14] sm:$0xf]
    %v1734 = vld [vmem:[%s3 + $0x18] sm:$0xf]
    %v1735 = vld [vmem:[%s3 + $0x1c] sm:$0xf]
    %v1736 = vld [vmem:[%s3 + $0x20] sm:$0xf]
    %v1737 = vld [vmem:[%s3 + $0x24] sm:$0xf]
    %v1738 = vld [vmem:[%s3 + $0x28] sm:$0xf]
    %v1739 = vld [vmem:[%s3 + $0x2c] sm:$0xf]
    %v1740 = vld [vmem:[#allocation2 + $0x50] sm:$0xf0]
    %v1741 = vld [vmem:[#allocation2 + $0x90] sm:$0xff]
    %v1742 = vld [vmem:[#allocation2 + $0x98] sm:$0xf]
    %v1743 = vld [vmem:[%s1071] sm:$0xf]
    %v1744 = vld [vmem:[%s1071 + $0x4] sm:$0xf]
    %v1745 = vld [vmem:[%s1071 + $0x8] sm:$0xf]
    %v1746 = vld [vmem:[%s1071 + $0xc] sm:$0xf]
    %v1747 = vld [vmem:[%s1071 + $0x10] sm:$0xf]
    %v1748 = vld [vmem:[%s1071 + $0x14] sm:$0xf]
    %v1749 = vld [vmem:[%s1071 + $0x18] sm:$0xf]
    %v1750 = vld [vmem:[%s1071 + $0x1c] sm:$0xf]
    %v1751 = vld [vmem:[%s1071 + $0x20] sm:$0xf]
    %v1752 = vld [vmem:[%s1071 + $0x24] sm:$0xf]
    %v1753 = vld [vmem:[%s1071 + $0x28] sm:$0xf]
    %v1754 = vld [vmem:[%s1071 + $0x2c] sm:$0xf]
    %v1765 = vrot.slane %v1740, 4
    %v1766 = vrot.slane %v1721, 4
    %v1767 = vsel %vm1094, %v1765, %v1766
    %v1768 = vrot.slane %v1722, 4
    %v1769 = vsel %vm1094, %v1766, %v1768
    %v1770 = vrot.slane %v1723, 4
    %v1771 = vsel %vm1094, %v1768, %v1770
    %v1772 = vrot.slane %v1724, 4
    %v1773 = vsel %vm1094, %v1770, %v1772
    %v1774 = vrot.slane %v1725, 4
    %v1775 = vsel %vm1094, %v1772, %v1774
    %v1776 = vrot.slane %v1726, 4
    %v1777 = vsel %vm1094, %v1774, %v1776
    %v1778 = vrot.slane %v1727, 4
    %v1779 = vsel %vm1094, %v1776, %v1778
    %v1780 = vrot.slane %v1741, 4
    %v1781 = vsel %vm1094, %v1778, %v1780
    %v1782 = vrot.slane %v1742, 4
    %v1783 = vsel %vm1094, %v1780, %v1782
    %v1796 = vunpack.c.l.b16 %v1743
    %v1797 = vunpack.c.l.b16 %v1744
    %v1798 = vunpack.c.l.b16 %v1745
    %v1799 = vunpack.c.l.b16 %v1746
    %v1800 = vunpack.c.l.b16 %v1747
    %v1801 = vunpack.c.l.b16 %v1748
    %v1802 = vunpack.c.l.b16 %v1749
    %v1803 = vunpack.c.l.b16 %v1750
    %v1804 = vunpack.c.l.b16 %v1751
    %v1805 = vunpack.c.l.b16 %v1752
    %v1806 = vunpack.c.l.b16 %v1753
    %v1807 = vunpack.c.l.b16 %v1754
    %v1808 = vpack.c.b16 %v1797, %v1796
    %v1809 = vpack.c.b16 %v1799, %v1798
    %v1810 = vpack.c.b16 %v1801, %v1800
    %v1811 = vpack.c.b16 %v1803, %v1802
    %v1812 = vpack.c.b16 %v1805, %v1804
    %v1813 = vpack.c.b16 %v1807, %v1806
    %v1821 = vsel %vm395, %v1767, 0
    %v1824 = vsel %vm395, %v1769, 0
    %v1827 = vsel %vm395, %v1771, 0
    %v1830 = vsel %vm395, %v1773, 0
    %v1833 = vsel %vm395, %v1775, 0
    %v1836 = vsel %vm395, %v1777, 0
    %v1839 = vsel %vm395, %v1779, 0
    %v1842 = vsel %vm395, %v1781, 0
    %v1845 = vsel %vm395, %v1783, 0
    %1847 = vmatprep.subr.bf16.mxu0 0
    %1848 = vmatpush1.bf16.msra.mxu0 %v1808
    %1849 = vmatprep.subr.bf16.mxu0 0
    %1850 = vmatpush1.bf16.msra.mxu0 %v1809
    %1851 = vmatprep.subr.bf16.mxu0 0
    %1852 = vmatpush1.bf16.msra.mxu0 %v1810
    %1853 = vmatprep.subr.bf16.mxu0 0
    %1854 = vmatpush1.bf16.msra.mxu0 %v1811
    %1855 = vmatprep.subr.bf16.mxu0 0
    %1856 = vmatpush1.bf16.msra.mxu0 %v1812
    %1857 = vmatprep.subr.bf16.mxu0 0
    %1858 = vmatpush1.bf16.msra.mxu0 %v1813
    %1859 = vmatprep.subr.bf16.mxu0 0
    %1860 = vmatpush1.bf16.msra.mxu0 0
    %1861 = vmatprep.subr.bf16.mxu0 0
    %1862 = vmatpush1.bf16.msra.mxu0 0
    %1863 = vmatprep.subr.bf16.mxu0 0
    %1864 = vmatpush1.bf16.msra.mxu0 0
    %1865 = vmatprep.subr.bf16.mxu0 0
    %1866 = vmatpush1.bf16.msra.mxu0 0
    %1867 = vmatprep.subr.bf16.mxu0 0
    %1868 = vmatpush1.bf16.msra.mxu0 0
    %1869 = vmatprep.subr.bf16.mxu0 0
    %1870 = vmatpush1.bf16.msra.mxu0 0
    %1871 = vmatprep.subr.bf16.mxu0 0
    %1872 = vmatpush1.bf16.msra.mxu0 0
    %1873 = vmatprep.subr.bf16.mxu0 0
    %1874 = vmatpush1.bf16.msra.mxu0 0
    %1875 = vmatprep.subr.bf16.mxu0 0
    %1876 = vmatpush1.bf16.msra.mxu0 0
    %1877 = vmatprep.subr.bf16.mxu0 0
    %1878 = vmatpush1.bf16.msra.mxu0 0
    %1879 = vmatprep.mubr.bf16.mxu0 0
    %1880 = vmatmul.mubr.bf16.gmra.mrb[0].mxu0 %v1821
    %v1881 = vpop.f32.mrb[0].mxu0
    %v1882 = vadd.f32 0.0, %v1881
    %v1883 = vpop.f32.mrb[0].mxu0
    %v1884 = vpop.f32.mrb[0].mxu0
    %v1885 = vadd.f32 0.0, %v1884
    %v1886 = vpop.f32.mrb[0].mxu0
    %1887 = vmatprep.mubr.bf16.mxu0 0
    %1888 = vmatmul.mubr.bf16.gmra.mrb[0].mxu0 %v1824
    %v1889 = vpop.f32.mrb[0].mxu0
    %v1890 = vadd.f32 0.0, %v1889
    %v1891 = vpop.f32.mrb[0].mxu0
    %v1892 = vpop.f32.mrb[0].mxu0
    %v1893 = vadd.f32 0.0, %v1892
    %v1894 = vpop.f32.mrb[0].mxu0
    %1895 = vmatprep.mubr.bf16.mxu0 0
    %1896 = vmatmul.mubr.bf16.gmra.mrb[0].mxu0 %v1827
    %v1897 = vpop.f32.mrb[0].mxu0
    %v1898 = vadd.f32 0.0, %v1897
    %v1899 = vpop.f32.mrb[0].mxu0
    %v1900 = vpop.f32.mrb[0].mxu0
    %v1901 = vadd.f32 0.0, %v1900
    %v1902 = vpop.f32.mrb[0].mxu0
    %1903 = vmatprep.mubr.bf16.mxu0 0
    %1904 = vmatmul.mubr.bf16.gmra.mrb[0].mxu0 %v1830
    %v1905 = vpop.f32.mrb[0].mxu0
    %v1906 = vadd.f32 0.0, %v1905
    %v1907 = vpop.f32.mrb[0].mxu0
    %v1908 = vpop.f32.mrb[0].mxu0
    %v1909 = vadd.f32 0.0, %v1908
    %v1910 = vpop.f32.mrb[0].mxu0
    %1911 = vmatprep.mubr.bf16.mxu0 0
    %1912 = vmatmul.mubr.bf16.gmra.mrb[0].mxu0 %v1833
    %v1913 = vpop.f32.mrb[0].mxu0
    %v1914 = vadd.f32 0.0, %v1913
    %v1915 = vpop.f32.mrb[0].mxu0
    %v1916 = vpop.f32.mrb[0].mxu0
    %v1917 = vadd.f32 0.0, %v1916
    %v1918 = vpop.f32.mrb[0].mxu0
    %1919 = vmatprep.mubr.bf16.mxu0 0
    %1920 = vmatmul.mubr.bf16.gmra.mrb[0].mxu0 %v1836
    %v1921 = vpop.f32.mrb[0].mxu0
    %v1922 = vadd.f32 0.0, %v1921
    %v1923 = vpop.f32.mrb[0].mxu0
    %v1924 = vpop.f32.mrb[0].mxu0
    %v1925 = vadd.f32 0.0, %v1924
    %v1926 = vpop.f32.mrb[0].mxu0
    %1927 = vmatprep.mubr.bf16.mxu0 0
    %1928 = vmatmul.mubr.bf16.gmra.mrb[0].mxu0 %v1839
    %v1929 = vpop.f32.mrb[0].mxu0
    %v1930 = vadd.f32 0.0, %v1929
    %v1931 = vpop.f32.mrb[0].mxu0
    %v1932 = vpop.f32.mrb[0].mxu0
    %v1933 = vadd.f32 0.0, %v1932
    %v1934 = vpop.f32.mrb[0].mxu0
    %1935 = vmatprep.mubr.bf16.mxu0 0
    %1936 = vmatmul.mubr.bf16.gmra.mrb[0].mxu0 %v1842
    %v1937 = vpop.f32.mrb[0].mxu0
    %v1938 = vadd.f32 0.0, %v1937
    %v1939 = vpop.f32.mrb[0].mxu0
    %v1940 = vpop.f32.mrb[0].mxu0
    %v1941 = vadd.f32 0.0, %v1940
    %v1942 = vpop.f32.mrb[0].mxu0
    %1943 = vmatprep.mubr.bf16.mxu0 0
    %1944 = vmatmul.mubr.bf16.gmra.mrb[0].mxu0 %v1845
    %v1945 = vpop.f32.mrb[0].mxu0
    %v1946 = vadd.f32 0.0, %v1945
    %v1947 = vpop.f32.mrb[0].mxu0
    %v1948 = vpop.f32.mrb[0].mxu0
    %v1949 = vadd.f32 0.0, %v1948
    %v1950 = vpop.f32.mrb[0].mxu0
    %1951 = vdwg.mxu0
    %v1964 = vunpack.c.l.b16 %v1728
    %v1965 = vunpack.c.l.b16 %v1729
    %v1966 = vunpack.c.l.b16 %v1730
    %v1967 = vunpack.c.l.b16 %v1731
    %v1968 = vunpack.c.l.b16 %v1732
    %v1969 = vunpack.c.l.b16 %v1733
    %v1970 = vunpack.c.l.b16 %v1734
    %v1971 = vunpack.c.l.b16 %v1735
    %v1972 = vunpack.c.l.b16 %v1736
    %v1973 = vunpack.c.l.b16 %v1737
    %v1974 = vunpack.c.l.b16 %v1738
    %v1975 = vunpack.c.l.b16 %v1739
    %v1976 = vpack.c.b16 %v1965, %v1964
    %v1977 = vpack.c.b16 %v1967, %v1966
    %v1978 = vpack.c.b16 %v1969, %v1968
    %v1979 = vpack.c.b16 %v1971, %v1970
    %v1980 = vpack.c.b16 %v1973, %v1972
    %v1981 = vpack.c.b16 %v1975, %v1974
    %v1989 = vsel %vm395, %v1719, 0
    %v1992 = vsel %vm395, %v1720, 0
    %v1995 = vsel %vm395, %v1721, 0
    %v1998 = vsel %vm395, %v1722, 0
    %v2001 = vsel %vm395, %v1723, 0
    %v2004 = vsel %vm395, %v1724, 0
    %v2007 = vsel %vm395, %v1725, 0
    %v2010 = vsel %vm395, %v1726, 0
    %v2013 = vsel %vm395, %v1727, 0
    %2015 = vmatprep.subr.bf16.mxu0 0
    %2016 = vmatpush1.bf16.msra.mxu0 %v1976
    %2017 = vmatprep.subr.bf16.mxu0 0
    %2018 = vmatpush1.bf16.msra.mxu0 %v1977
    %2019 = vmatprep.subr.bf16.mxu0 0
    %2020 = vmatpush1.bf16.msra.mxu0 %v1978
    %2021 = vmatprep.subr.bf16.mxu0 0
    %2022 = vmatpush1.bf16.msra.mxu0 %v1979
    %2023 = vmatprep.subr.bf16.mxu0 0
    %2024 = vmatpush1.bf16.msra.mxu0 %v1980
    %2025 = vmatprep.subr.bf16.mxu0 0
    %2026 = vmatpush1.bf16.msra.mxu0 %v1981
    %2027 = vmatprep.subr.bf16.mxu0 0
    %2028 = vmatpush1.bf16.msra.mxu0 0
    %2029 = vmatprep.subr.bf16.mxu0 0
    %2030 = vmatpush1.bf16.msra.mxu0 0
    %2031 = vmatprep.subr.bf16.mxu0 0
    %2032 = vmatpush1.bf16.msra.mxu0 0
    %2033 = vmatprep.subr.bf16.mxu0 0
    %2034 = vmatpush1.bf16.msra.mxu0 0
    %2035 = vmatprep.subr.bf16.mxu0 0
    %2036 = vmatpush1.bf16.msra.mxu0 0
    %2037 = vmatprep.subr.bf16.mxu0 0
    %2038 = vmatpush1.bf16.msra.mxu0 0
    %2039 = vmatprep.subr.bf16.mxu0 0
    %2040 = vmatpush1.bf16.msra.mxu0 0
    %2041 = vmatprep.subr.bf16.mxu0 0
    %2042 = vmatpush1.bf16.msra.mxu0 0
    %2043 = vmatprep.subr.bf16.mxu0 0
    %2044 = vmatpush1.bf16.msra.mxu0 0
    %2045 = vmatprep.subr.bf16.mxu0 0
    %2046 = vmatpush1.bf16.msra.mxu0 0
    %2047 = vmatprep.mubr.bf16.mxu0 0
    %2048 = vmatmul.mubr.bf16.gmra.mrb[0].mxu0 %v1989
    %v2049 = vpop.f32.mrb[0].mxu0
    %v2050 = vadd.f32 %v1882, %v2049
    %v2051 = vpop.f32.mrb[0].mxu0
    %v2052 = vpop.f32.mrb[0].mxu0
    %v2053 = vadd.f32 %v1885, %v2052
    %v2054 = vpop.f32.mrb[0].mxu0
    %2055 = vmatprep.mubr.bf16.mxu0 0
    %2056 = vmatmul.mubr.bf16.gmra.mrb[0].mxu0 %v1992
    %v2057 = vpop.f32.mrb[0].mxu0
    %v2058 = vadd.f32 %v1890, %v2057
    %v2059 = vpop.f32.mrb[0].mxu0
    %v2060 = vpop.f32.mrb[0].mxu0
    %v2061 = vadd.f32 %v1893, %v2060
    %v2062 = vpop.f32.mrb[0].mxu0
    %2063 = vmatprep.mubr.bf16.mxu0 0
    %2064 = vmatmul.mubr.bf16.gmra.mrb[0].mxu0 %v1995
    %v2065 = vpop.f32.mrb[0].mxu0
    %v2066 = vadd.f32 %v1898, %v2065
    %v2067 = vpop.f32.mrb[0].mxu0
    %v2068 = vpop.f32.mrb[0].mxu0
    %v2069 = vadd.f32 %v1901, %v2068
    %v2070 = vpop.f32.mrb[0].mxu0
    %2071 = vmatprep.mubr.bf16.mxu0 0
    %2072 = vmatmul.mubr.bf16.gmra.mrb[0].mxu0 %v1998
    %v2073 = vpop.f32.mrb[0].mxu0
    %v2074 = vadd.f32 %v1906, %v2073
    %v2075 = vpop.f32.mrb[0].mxu0
    %v2076 = vpop.f32.mrb[0].mxu0
    %v2077 = vadd.f32 %v1909, %v2076
    %v2078 = vpop.f32.mrb[0].mxu0
    %2079 = vmatprep.mubr.bf16.mxu0 0
    %2080 = vmatmul.mubr.bf16.gmra.mrb[0].mxu0 %v2001
    %v2081 = vpop.f32.mrb[0].mxu0
    %v2082 = vadd.f32 %v1914, %v2081
    %v2083 = vpop.f32.mrb[0].mxu0
    %v2084 = vpop.f32.mrb[0].mxu0
    %v2085 = vadd.f32 %v1917, %v2084
    %v2086 = vpop.f32.mrb[0].mxu0
    %2087 = vmatprep.mubr.bf16.mxu0 0
    %2088 = vmatmul.mubr.bf16.gmra.mrb[0].mxu0 %v2004
    %v2089 = vpop.f32.mrb[0].mxu0
    %v2090 = vadd.f32 %v1922, %v2089
    %v2091 = vpop.f32.mrb[0].mxu0
    %v2092 = vpop.f32.mrb[0].mxu0
    %v2093 = vadd.f32 %v1925, %v2092
    %v2094 = vpop.f32.mrb[0].mxu0
    %2095 = vmatprep.mubr.bf16.mxu0 0
    %2096 = vmatmul.mubr.bf16.gmra.mrb[0].mxu0 %v2007
    %v2097 = vpop.f32.mrb[0].mxu0
    %v2098 = vadd.f32 %v1930, %v2097
    %v2099 = vpop.f32.mrb[0].mxu0
    %v2100 = vpop.f32.mrb[0].mxu0
    %v2101 = vadd.f32 %v1933, %v2100
    %v2102 = vpop.f32.mrb[0].mxu0
    %2103 = vmatprep.mubr.bf16.mxu0 0
    %2104 = vmatmul.mubr.bf16.gmra.mrb[0].mxu0 %v2010
    %v2105 = vpop.f32.mrb[0].mxu0
    %v2106 = vadd.f32 %v1938, %v2105
    %v2107 = vpop.f32.mrb[0].mxu0
    %v2108 = vpop.f32.mrb[0].mxu0
    %v2109 = vadd.f32 %v1941, %v2108
    %v2110 = vpop.f32.mrb[0].mxu0
    %2111 = vmatprep.mubr.bf16.mxu0 0
    %2112 = vmatmul.mubr.bf16.gmra.mrb[0].mxu0 %v2013
    %v2113 = vpop.f32.mrb[0].mxu0
    %v2114 = vadd.f32 %v1946, %v2113
    %v2115 = vpop.f32.mrb[0].mxu0
    %v2116 = vpop.f32.mrb[0].mxu0
    %v2117 = vadd.f32 %v1949, %v2116
    %v2118 = vpop.f32.mrb[0].mxu0
    %2119 = vdwg.mxu0
    %v2120 = vld [vmem:[#allocation2 + $0x60] sm:$0xff]
    %v2121 = vld [vmem:[#allocation2 + $0x68] sm:$0xff]
    %v2122 = vld [vmem:[#allocation2 + $0x70] sm:$0xff]
    %v2123 = vld [vmem:[#allocation2 + $0x78] sm:$0xff]
    %v2124 = vld [vmem:[#allocation2 + $0x80] sm:$0xff]
    %v2125 = vld [vmem:[#allocation2 + $0x88] sm:$0xff]
    %v2126 = vld [vmem:[#allocation2 + $0x90] sm:$0xff]
    %v2127 = vld [vmem:[#allocation2 + $0x98] sm:$0xff]
    %v2128 = vld [vmem:[#allocation2 + $0xa0] sm:$0xff]
    %v2129 = vld [vmem:[%s1459] sm:$0xf]
    %v2130 = vld [vmem:[%s1459 + $0x4] sm:$0xf]
    %v2131 = vld [vmem:[%s1459 + $0x8] sm:$0xf]
    %v2132 = vld [vmem:[%s1459 + $0xc] sm:$0xf]
    %v2133 = vld [vmem:[%s1459 + $0x10] sm:$0xf]
    %v2134 = vld [vmem:[%s1459 + $0x14] sm:$0xf]
    %v2135 = vld [vmem:[%s1459 + $0x18] sm:$0xf]
    %v2136 = vld [vmem:[%s1459 + $0x1c] sm:$0xf]
    %v2137 = vld [vmem:[%s1459 + $0x20] sm:$0xf]
    %v2138 = vld [vmem:[%s1459 + $0x24] sm:$0xf]
    %v2139 = vld [vmem:[%s1459 + $0x28] sm:$0xf]
    %v2140 = vld [vmem:[%s1459 + $0x2c] sm:$0xf]
    %v2153 = vunpack.c.l.b16 %v2129
    %v2154 = vunpack.c.l.b16 %v2130
    %v2155 = vunpack.c.l.b16 %v2131
    %v2156 = vunpack.c.l.b16 %v2132
    %v2157 = vunpack.c.l.b16 %v2133
    %v2158 = vunpack.c.l.b16 %v2134
    %v2159 = vunpack.c.l.b16 %v2135
    %v2160 = vunpack.c.l.b16 %v2136
    %v2161 = vunpack.c.l.b16 %v2137
    %v2162 = vunpack.c.l.b16 %v2138
    %v2163 = vunpack.c.l.b16 %v2139
    %v2164 = vunpack.c.l.b16 %v2140
    %v2165 = vpack.c.b16 %v2154, %v2153
    %v2166 = vpack.c.b16 %v2156, %v2155
    %v2167 = vpack.c.b16 %v2158, %v2157
    %v2168 = vpack.c.b16 %v2160, %v2159
    %v2169 = vpack.c.b16 %v2162, %v2161
    %v2170 = vpack.c.b16 %v2164, %v2163
    %v2178 = vsel %vm395, %v2120, 0
    %v2181 = vsel %vm395, %v2121, 0
    %v2184 = vsel %vm395, %v2122, 0
    %v2187 = vsel %vm395, %v2123, 0
    %v2190 = vsel %vm395, %v2124, 0
    %v2193 = vsel %vm395, %v2125, 0
    %v2196 = vsel %vm395, %v2126, 0
    %v2199 = vsel %vm395, %v2127, 0
    %v2202 = vsel %vm395, %v2128, 0
    %2204 = vmatprep.subr.bf16.mxu0 0
    %2205 = vmatpush1.bf16.msra.mxu0 %v2165
    %2206 = vmatprep.subr.bf16.mxu0 0
    %2207 = vmatpush1.bf16.msra.mxu0 %v2166
    %2208 = vmatprep.subr.bf16.mxu0 0
    %2209 = vmatpush1.bf16.msra.mxu0 %v2167
    %2210 = vmatprep.subr.bf16.mxu0 0
    %2211 = vmatpush1.bf16.msra.mxu0 %v2168
    %2212 = vmatprep.subr.bf16.mxu0 0
    %2213 = vmatpush1.bf16.msra.mxu0 %v2169
    %2214 = vmatprep.subr.bf16.mxu0 0
    %2215 = vmatpush1.bf16.msra.mxu0 %v2170
    %2216 = vmatprep.subr.bf16.mxu0 0
    %2217 = vmatpush1.bf16.msra.mxu0 0
    %2218 = vmatprep.subr.bf16.mxu0 0
    %2219 = vmatpush1.bf16.msra.mxu0 0
    %2220 = vmatprep.subr.bf16.mxu0 0
    %2221 = vmatpush1.bf16.msra.mxu0 0
    %2222 = vmatprep.subr.bf16.mxu0 0
    %2223 = vmatpush1.bf16.msra.mxu0 0
    %2224 = vmatprep.subr.bf16.mxu0 0
    %2225 = vmatpush1.bf16.msra.mxu0 0
    %2226 = vmatprep.subr.bf16.mxu0 0
    %2227 = vmatpush1.bf16.msra.mxu0 0
    %2228 = vmatprep.subr.bf16.mxu0 0
    %2229 = vmatpush1.bf16.msra.mxu0 0
    %2230 = vmatprep.subr.bf16.mxu0 0
    %2231 = vmatpush1.bf16.msra.mxu0 0
    %2232 = vmatprep.subr.bf16.mxu0 0
    %2233 = vmatpush1.bf16.msra.mxu0 0
    %2234 = vmatprep.subr.bf16.mxu0 0
    %2235 = vmatpush1.bf16.msra.mxu0 0
    %2236 = vmatprep.mubr.bf16.mxu0 0
    %2237 = vmatmul.mubr.bf16.gmra.mrb[0].mxu0 %v2178
    %v2238 = vpop.f32.mrb[0].mxu0
    %v2239 = vadd.f32 0.0, %v2238
    %v2240 = vpop.f32.mrb[0].mxu0
    %v2241 = vpop.f32.mrb[0].mxu0
    %v2242 = vadd.f32 0.0, %v2241
    %v2243 = vpop.f32.mrb[0].mxu0
    %2244 = vmatprep.mubr.bf16.mxu0 0
    %2245 = vmatmul.mubr.bf16.gmra.mrb[0].mxu0 %v2181
    %v2246 = vpop.f32.mrb[0].mxu0
    %v2247 = vadd.f32 0.0, %v2246
    %v2248 = vpop.f32.mrb[0].mxu0
    %v2249 = vpop.f32.mrb[0].mxu0
    %v2250 = vadd.f32 0.0, %v2249
    %v2251 = vpop.f32.mrb[0].mxu0
    %2252 = vmatprep.mubr.bf16.mxu0 0
    %2253 = vmatmul.mubr.bf16.gmra.mrb[0].mxu0 %v2184
    %v2254 = vpop.f32.mrb[0].mxu0
    %v2255 = vadd.f32 0.0, %v2254
    %v2256 = vpop.f32.mrb[0].mxu0
    %v2257 = vpop.f32.mrb[0].mxu0
    %v2258 = vadd.f32 0.0, %v2257
    %v2259 = vpop.f32.mrb[0].mxu0
    %2260 = vmatprep.mubr.bf16.mxu0 0
    %2261 = vmatmul.mubr.bf16.gmra.mrb[0].mxu0 %v2187
    %v2262 = vpop.f32.mrb[0].mxu0
    %v2263 = vadd.f32 0.0, %v2262
    %v2264 = vpop.f32.mrb[0].mxu0
    %v2265 = vpop.f32.mrb[0].mxu0
    %v2266 = vadd.f32 0.0, %v2265
    %v2267 = vpop.f32.mrb[0].mxu0
    %2268 = vmatprep.mubr.bf16.mxu0 0
    %2269 = vmatmul.mubr.bf16.gmra.mrb[0].mxu0 %v2190
    %v2270 = vpop.f32.mrb[0].mxu0
    %v2271 = vadd.f32 0.0, %v2270
    %v2272 = vpop.f32.mrb[0].mxu0
    %v2273 = vpop.f32.mrb[0].mxu0
    %v2274 = vadd.f32 0.0, %v2273
    %v2275 = vpop.f32.mrb[0].mxu0
    %2276 = vmatprep.mubr.bf16.mxu0 0
    %2277 = vmatmul.mubr.bf16.gmra.mrb[0].mxu0 %v2193
    %v2278 = vpop.f32.mrb[0].mxu0
    %v2279 = vadd.f32 0.0, %v2278
    %v2280 = vpop.f32.mrb[0].mxu0
    %v2281 = vpop.f32.mrb[0].mxu0
    %v2282 = vadd.f32 0.0, %v2281
    %v2283 = vpop.f32.mrb[0].mxu0
    %2284 = vmatprep.mubr.bf16.mxu0 0
    %2285 = vmatmul.mubr.bf16.gmra.mrb[0].mxu0 %v2196
    %v2286 = vpop.f32.mrb[0].mxu0
    %v2287 = vadd.f32 0.0, %v2286
    %v2288 = vpop.f32.mrb[0].mxu0
    %v2289 = vpop.f32.mrb[0].mxu0
    %v2290 = vadd.f32 0.0, %v2289
    %v2291 = vpop.f32.mrb[0].mxu0
    %2292 = vmatprep.mubr.bf16.mxu0 0
    %2293 = vmatmul.mubr.bf16.gmra.mrb[0].mxu0 %v2199
    %v2294 = vpop.f32.mrb[0].mxu0
    %v2295 = vadd.f32 0.0, %v2294
    %v2296 = vpop.f32.mrb[0].mxu0
    %v2297 = vpop.f32.mrb[0].mxu0
    %v2298 = vadd.f32 0.0, %v2297
    %v2299 = vpop.f32.mrb[0].mxu0
    %2300 = vmatprep.mubr.bf16.mxu0 0
    %2301 = vmatmul.mubr.bf16.gmra.mrb[0].mxu0 %v2202
    %v2302 = vpop.f32.mrb[0].mxu0
    %v2303 = vadd.f32 0.0, %v2302
    %v2304 = vpop.f32.mrb[0].mxu0
    %v2305 = vpop.f32.mrb[0].mxu0
    %v2306 = vadd.f32 0.0, %v2305
    %v2307 = vpop.f32.mrb[0].mxu0
    %2308 = vdwg.mxu0
    %v2309 = vadd.f32 %v2050, %v2239
    %v2310 = vadd.f32 %v2053, %v2242
    %v2311 = vadd.f32 %v2058, %v2247
    %v2312 = vadd.f32 %v2061, %v2250
    %v2313 = vadd.f32 %v2066, %v2255
    %v2314 = vadd.f32 %v2069, %v2258
    %v2315 = vadd.f32 %v2074, %v2263
    %v2316 = vadd.f32 %v2077, %v2266
    %v2317 = vadd.f32 %v2082, %v2271
    %v2318 = vadd.f32 %v2085, %v2274
    %v2319 = vadd.f32 %v2090, %v2279
    %v2320 = vadd.f32 %v2093, %v2282
    %v2321 = vadd.f32 %v2098, %v2287
    %v2322 = vadd.f32 %v2101, %v2290
    %v2323 = vadd.f32 %v2106, %v2295
    %v2324 = vadd.f32 %v2109, %v2298
    %v2325 = vadd.f32 %v2114, %v2303
    %v2326 = vadd.f32 %v2117, %v2306
    %v2327 = vadd.f32 %v2309, %v1662
    %v2328 = vadd.f32 %v2310, %v1662
    %v2329 = vadd.f32 %v2311, %v1662
    %v2330 = vadd.f32 %v2312, %v1662
    %v2331 = vadd.f32 %v2313, %v1662
    %v2332 = vadd.f32 %v2314, %v1662
    %v2333 = vadd.f32 %v2315, %v1662
    %v2334 = vadd.f32 %v2316, %v1662
    %v2335 = vadd.f32 %v2317, %v1662
    %v2336 = vadd.f32 %v2318, %v1662
    %v2337 = vadd.f32 %v2319, %v1662
    %v2338 = vadd.f32 %v2320, %v1662
    %v2339 = vadd.f32 %v2321, %v1662
    %v2340 = vadd.f32 %v2322, %v1662
    %v2341 = vadd.f32 %v2323, %v1662
    %v2342 = vadd.f32 %v2324, %v1662
    %v2343 = vadd.f32 %v2325, %v1662
    %v2344 = vadd.f32 %v2326, %v1662
    %v2345 = vmax.f32 %v2327, 0.0
    %v2346 = vmax.f32 %v2328, 0.0
    %v2347 = vmax.f32 %v2329, 0.0
    %v2348 = vmax.f32 %v2330, 0.0
    %v2349 = vmax.f32 %v2331, 0.0
    %v2350 = vmax.f32 %v2332, 0.0
    %v2351 = vmax.f32 %v2333, 0.0
    %v2352 = vmax.f32 %v2334, 0.0
    %v2353 = vmax.f32 %v2335, 0.0
    %v2354 = vmax.f32 %v2336, 0.0
    %v2355 = vmax.f32 %v2337, 0.0
    %v2356 = vmax.f32 %v2338, 0.0
    %v2357 = vmax.f32 %v2339, 0.0
    %v2358 = vmax.f32 %v2340, 0.0
    %v2359 = vmax.f32 %v2341, 0.0
    %v2360 = vmax.f32 %v2342, 0.0
    %v2361 = vmax.f32 %v2343, 0.0
    %v2362 = vmax.f32 %v2344, 0.0
    %v2363 = vmax.f32 %v2345, %v2348
    %v2364 = vmax.f32 %v2346, %v2349
    %v2365 = vmax.f32 %v2347, %v2350
    %2366 = vst.msk [vmem:[#allocation3 + $0x48] sm:$0xff] %vm1703, %v2363
    %2367 = vst.msk [vmem:[#allocation3 + $0x50] sm:$0xff] %vm1703, %v2364
    %2368 = vst.msk [vmem:[#allocation3 + $0x58] sm:$0xff] %vm1703, %v2365
    %v2369 = vmax.f32 %v2351, %v2354
    %v2370 = vmax.f32 %v2352, %v2355
    %v2371 = vmax.f32 %v2353, %v2356
    %2372 = vst.msk [vmem:[#allocation3 + $0x60] sm:$0xff] %vm1703, %v2369
    %2373 = vst.msk [vmem:[#allocation3 + $0x68] sm:$0xff] %vm1703, %v2370
    %2374 = vst.msk [vmem:[#allocation3 + $0x70] sm:$0xff] %vm1703, %v2371
    %v2375 = vmax.f32 %v2357, %v2360
    %v2376 = vmax.f32 %v2358, %v2361
    %v2377 = vmax.f32 %v2359, %v2362
    %2378 = vst.msk [vmem:[#allocation3 + $0x78] sm:$0xff] %vm1703, %v2375
    %2379 = vst.msk [vmem:[#allocation3 + $0x80] sm:$0xff] %vm1703, %v2376
    %2380 = vst.msk [vmem:[#allocation3 + $0x88] sm:$0xff] %vm1703, %v2377
    %v2381 = vld [vmem:[#allocation2 + $0x90] sm:$0xff]
    %v2382 = vld [vmem:[#allocation2 + $0x98] sm:$0xff]
    %v2383 = vld [vmem:[#allocation2 + $0xa0] sm:$0xff]
    %v2384 = vld [vmem:[#allocation2 + $0xa8] sm:$0xff]
    %v2385 = vld [vmem:[#allocation2 + $0xb0] sm:$0xff]
    %v2386 = vld [vmem:[#allocation2 + $0xb8] sm:$0xff]
    %v2387 = vld [vmem:[#allocation2 + $0xc0] sm:$0xff]
    %v2388 = vld [vmem:[#allocation2 + $0xc8] sm:$0xff]
    %v2389 = vld [vmem:[#allocation2 + $0xd0] sm:$0xff]
    %v2390 = vld [vmem:[%s3] sm:$0xf]
    %v2391 = vld [vmem:[%s3 + $0x4] sm:$0xf]
    %v2392 = vld [vmem:[%s3 + $0x8] sm:$0xf]
    %v2393 = vld [vmem:[%s3 + $0xc] sm:$0xf]
    %v2394 = vld [vmem:[%s3 + $0x10] sm:$0xf]
    %v2395 = vld [vmem:[%s3 + $0x14] sm:$0xf]
    %v2396 = vld [vmem:[%s3 + $0x18] sm:$0xf]
    %v2397 = vld [vmem:[%s3 + $0x1c] sm:$0xf]
    %v2398 = vld [vmem:[%s3 + $0x20] sm:$0xf]
    %v2399 = vld [vmem:[%s3 + $0x24] sm:$0xf]
    %v2400 = vld [vmem:[%s3 + $0x28] sm:$0xf]
    %v2401 = vld [vmem:[%s3 + $0x2c] sm:$0xf]
    %v2402 = vld [vmem:[#allocation2 + $0x98] sm:$0xf0]
    %v2403 = vld [vmem:[#allocation2 + $0xd8] sm:$0xff]
    %v2404 = vld [vmem:[#allocation2 + $0xe0] sm:$0xf]
    %v2405 = vld [vmem:[%s1071] sm:$0xf]
    %v2406 = vld [vmem:[%s1071 + $0x4] sm:$0xf]
    %v2407 = vld [vmem:[%s1071 + $0x8] sm:$0xf]
    %v2408 = vld [vmem:[%s1071 + $0xc] sm:$0xf]
    %v2409 = vld [vmem:[%s1071 + $0x10] sm:$0xf]
    %v2410 = vld [vmem:[%s1071 + $0x14] sm:$0xf]
    %v2411 = vld [vmem:[%s1071 + $0x18] sm:$0xf]
    %v2412 = vld [vmem:[%s1071 + $0x1c] sm:$0xf]
    %v2413 = vld [vmem:[%s1071 + $0x20] sm:$0xf]
    %v2414 = vld [vmem:[%s1071 + $0x24] sm:$0xf]
    %v2415 = vld [vmem:[%s1071 + $0x28] sm:$0xf]
    %v2416 = vld [vmem:[%s1071 + $0x2c] sm:$0xf]
    %v2427 = vrot.slane %v2402, 4
    %v2428 = vrot.slane %v2383, 4
    %v2429 = vsel %vm1094, %v2427, %v2428
    %v2430 = vrot.slane %v2384, 4
    %v2431 = vsel %vm1094, %v2428, %v2430
    %v2432 = vrot.slane %v2385, 4
    %v2433 = vsel %vm1094, %v2430, %v2432
    %v2434 = vrot.slane %v2386, 4
    %v2435 = vsel %vm1094, %v2432, %v2434
    %v2436 = vrot.slane %v2387, 4
    %v2437 = vsel %vm1094, %v2434, %v2436
    %v2438 = vrot.slane %v2388, 4
    %v2439 = vsel %vm1094, %v2436, %v2438
    %v2440 = vrot.slane %v2389, 4
    %v2441 = vsel %vm1094, %v2438, %v2440
    %v2442 = vrot.slane %v2403, 4
    %v2443 = vsel %vm1094, %v2440, %v2442
    %v2444 = vrot.slane %v2404, 4
    %v2445 = vsel %vm1094, %v2442, %v2444
    %v2458 = vunpack.c.l.b16 %v2405
    %v2459 = vunpack.c.l.b16 %v2406
    %v2460 = vunpack.c.l.b16 %v2407
    %v2461 = vunpack.c.l.b16 %v2408
    %v2462 = vunpack.c.l.b16 %v2409
    %v2463 = vunpack.c.l.b16 %v2410
    %v2464 = vunpack.c.l.b16 %v2411
    %v2465 = vunpack.c.l.b16 %v2412
    %v2466 = vunpack.c.l.b16 %v2413
    %v2467 = vunpack.c.l.b16 %v2414
    %v2468 = vunpack.c.l.b16 %v2415
    %v2469 = vunpack.c.l.b16 %v2416
    %v2470 = vpack.c.b16 %v2459, %v2458
    %v2471 = vpack.c.b16 %v2461, %v2460
    %v2472 = vpack.c.b16 %v2463, %v2462
    %v2473 = vpack.c.b16 %v2465, %v2464
    %v2474 = vpack.c.b16 %v2467, %v2466
    %v2475 = vpack.c.b16 %v2469, %v2468
    %v2483 = vsel %vm395, %v2429, 0
    %v2486 = vsel %vm395, %v2431, 0
    %v2489 = vsel %vm395, %v2433, 0
    %v2492 = vsel %vm395, %v2435, 0
    %v2495 = vsel %vm395, %v2437, 0
    %v2498 = vsel %vm395, %v2439, 0
    %v2501 = vsel %vm395, %v2441, 0
    %v2504 = vsel %vm395, %v2443, 0
    %v2507 = vsel %vm395, %v2445, 0
    %2509 = vmatprep.subr.bf16.mxu0 0
    %2510 = vmatpush1.bf16.msra.mxu0 %v2470
    %2511 = vmatprep.subr.bf16.mxu0 0
    %2512 = vmatpush1.bf16.msra.mxu0 %v2471
    %2513 = vmatprep.subr.bf16.mxu0 0
    %2514 = vmatpush1.bf16.msra.mxu0 %v2472
    %2515 = vmatprep.subr.bf16.mxu0 0
    %2516 = vmatpush1.bf16.msra.mxu0 %v2473
    %2517 = vmatprep.subr.bf16.mxu0 0
    %2518 = vmatpush1.bf16.msra.mxu0 %v2474
    %2519 = vmatprep.subr.bf16.mxu0 0
    %2520 = vmatpush1.bf16.msra.mxu0 %v2475
    %2521 = vmatprep.subr.bf16.mxu0 0
    %2522 = vmatpush1.bf16.msra.mxu0 0
    %2523 = vmatprep.subr.bf16.mxu0 0
    %2524 = vmatpush1.bf16.msra.mxu0 0
    %2525 = vmatprep.subr.bf16.mxu0 0
    %2526 = vmatpush1.bf16.msra.mxu0 0
    %2527 = vmatprep.subr.bf16.mxu0 0
    %2528 = vmatpush1.bf16.msra.mxu0 0
    %2529 = vmatprep.subr.bf16.mxu0 0
    %2530 = vmatpush1.bf16.msra.mxu0 0
    %2531 = vmatprep.subr.bf16.mxu0 0
    %2532 = vmatpush1.bf16.msra.mxu0 0
    %2533 = vmatprep.subr.bf16.mxu0 0
    %2534 = vmatpush1.bf16.msra.mxu0 0
    %2535 = vmatprep.subr.bf16.mxu0 0
    %2536 = vmatpush1.bf16.msra.mxu0 0
    %2537 = vmatprep.subr.bf16.mxu0 0
    %2538 = vmatpush1.bf16.msra.mxu0 0
    %2539 = vmatprep.subr.bf16.mxu0 0
    %2540 = vmatpush1.bf16.msra.mxu0 0
    %2541 = vmatprep.mubr.bf16.mxu0 0
    %2542 = vmatmul.mubr.bf16.gmra.mrb[0].mxu0 %v2483
    %v2543 = vpop.f32.mrb[0].mxu0
    %v2544 = vadd.f32 0.0, %v2543
    %v2545 = vpop.f32.mrb[0].mxu0
    %v2546 = vpop.f32.mrb[0].mxu0
    %v2547 = vadd.f32 0.0, %v2546
    %v2548 = vpop.f32.mrb[0].mxu0
    %2549 = vmatprep.mubr.bf16.mxu0 0
    %2550 = vmatmul.mubr.bf16.gmra.mrb[0].mxu0 %v2486
    %v2551 = vpop.f32.mrb[0].mxu0
    %v2552 = vadd.f32 0.0, %v2551
    %v2553 = vpop.f32.mrb[0].mxu0
    %v2554 = vpop.f32.mrb[0].mxu0
    %v2555 = vadd.f32 0.0, %v2554
    %v2556 = vpop.f32.mrb[0].mxu0
    %2557 = vmatprep.mubr.bf16.mxu0 0
    %2558 = vmatmul.mubr.bf16.gmra.mrb[0].mxu0 %v2489
    %v2559 = vpop.f32.mrb[0].mxu0
    %v2560 = vadd.f32 0.0, %v2559
    %v2561 = vpop.f32.mrb[0].mxu0
    %v2562 = vpop.f32.mrb[0].mxu0
    %v2563 = vadd.f32 0.0, %v2562
    %v2564 = vpop.f32.mrb[0].mxu0
    %2565 = vmatprep.mubr.bf16.mxu0 0
    %2566 = vmatmul.mubr.bf16.gmra.mrb[0].mxu0 %v2492
    %v2567 = vpop.f32.mrb[0].mxu0
    %v2568 = vadd.f32 0.0, %v2567
    %v2569 = vpop.f32.mrb[0].mxu0
    %v2570 = vpop.f32.mrb[0].mxu0
    %v2571 = vadd.f32 0.0, %v2570
    %v2572 = vpop.f32.mrb[0].mxu0
    %2573 = vmatprep.mubr.bf16.mxu0 0
    %2574 = vmatmul.mubr.bf16.gmra.mrb[0].mxu0 %v2495
    %v2575 = vpop.f32.mrb[0].mxu0
    %v2576 = vadd.f32 0.0, %v2575
    %v2577 = vpop.f32.mrb[0].mxu0
    %v2578 = vpop.f32.mrb[0].mxu0
    %v2579 = vadd.f32 0.0, %v2578
    %v2580 = vpop.f32.mrb[0].mxu0
    %2581 = vmatprep.mubr.bf16.mxu0 0
    %2582 = vmatmul.mubr.bf16.gmra.mrb[0].mxu0 %v2498
    %v2583 = vpop.f32.mrb[0].mxu0
    %v2584 = vadd.f32 0.0, %v2583
    %v2585 = vpop.f32.mrb[0].mxu0
    %v2586 = vpop.f32.mrb[0].mxu0
    %v2587 = vadd.f32 0.0, %v2586
    %v2588 = vpop.f32.mrb[0].mxu0
    %2589 = vmatprep.mubr.bf16.mxu0 0
    %2590 = vmatmul.mubr.bf16.gmra.mrb[0].mxu0 %v2501
    %v2591 = vpop.f32.mrb[0].mxu0
    %v2592 = vadd.f32 0.0, %v2591
    %v2593 = vpop.f32.mrb[0].mxu0
    %v2594 = vpop.f32.mrb[0].mxu0
    %v2595 = vadd.f32 0.0, %v2594
    %v2596 = vpop.f32.mrb[0].mxu0
    %2597 = vmatprep.mubr.bf16.mxu0 0
    %2598 = vmatmul.mubr.bf16.gmra.mrb[0].mxu0 %v2504
    %v2599 = vpop.f32.mrb[0].mxu0
    %v2600 = vadd.f32 0.0, %v2599
    %v2601 = vpop.f32.mrb[0].mxu0
    %v2602 = vpop.f32.mrb[0].mxu0
    %v2603 = vadd.f32 0.0, %v2602
    %v2604 = vpop.f32.mrb[0].mxu0
    %2605 = vmatprep.mubr.bf16.mxu0 0
    %2606 = vmatmul.mubr.bf16.gmra.mrb[0].mxu0 %v2507
    %v2607 = vpop.f32.mrb[0].mxu0
    %v2608 = vadd.f32 0.0, %v2607
    %v2609 = vpop.f32.mrb[0].mxu0
    %v2610 = vpop.f32.mrb[0].mxu0
    %v2611 = vadd.f32 0.0, %v2610
    %v2612 = vpop.f32.mrb[0].mxu0
    %2613 = vdwg.mxu0
    %v2626 = vunpack.c.l.b16 %v2390
    %v2627 = vunpack.c.l.b16 %v2391
    %v2628 = vunpack.c.l.b16 %v2392
    %v2629 = vunpack.c.l.b16 %v2393
    %v2630 = vunpack.c.l.b16 %v2394
    %v2631 = vunpack.c.l.b16 %v2395
    %v2632 = vunpack.c.l.b16 %v2396
    %v2633 = vunpack.c.l.b16 %v2397
    %v2634 = vunpack.c.l.b16 %v2398
    %v2635 = vunpack.c.l.b16 %v2399
    %v2636 = vunpack.c.l.b16 %v2400
    %v2637 = vunpack.c.l.b16 %v2401
    %v2638 = vpack.c.b16 %v2627, %v2626
    %v2639 = vpack.c.b16 %v2629, %v2628
    %v2640 = vpack.c.b16 %v2631, %v2630
    %v2641 = vpack.c.b16 %v2633, %v2632
    %v2642 = vpack.c.b16 %v2635, %v2634
    %v2643 = vpack.c.b16 %v2637, %v2636
    %v2651 = vsel %vm395, %v2381, 0
    %v2654 = vsel %vm395, %v2382, 0
    %v2657 = vsel %vm395, %v2383, 0
    %v2660 = vsel %vm395, %v2384, 0
    %v2663 = vsel %vm395, %v2385, 0
    %v2666 = vsel %vm395, %v2386, 0
    %v2669 = vsel %vm395, %v2387, 0
    %v2672 = vsel %vm395, %v2388, 0
    %v2675 = vsel %vm395, %v2389, 0
    %2677 = vmatprep.subr.bf16.mxu0 0
    %2678 = vmatpush1.bf16.msra.mxu0 %v2638
    %2679 = vmatprep.subr.bf16.mxu0 0
    %2680 = vmatpush1.bf16.msra.mxu0 %v2639
    %2681 = vmatprep.subr.bf16.mxu0 0
    %2682 = vmatpush1.bf16.msra.mxu0 %v2640
    %2683 = vmatprep.subr.bf16.mxu0 0
    %2684 = vmatpush1.bf16.msra.mxu0 %v2641
    %2685 = vmatprep.subr.bf16.mxu0 0
    %2686 = vmatpush1.bf16.msra.mxu0 %v2642
    %2687 = vmatprep.subr.bf16.mxu0 0
    %2688 = vmatpush1.bf16.msra.mxu0 %v2643
    %2689 = vmatprep.subr.bf16.mxu0 0
    %2690 = vmatpush1.bf16.msra.mxu0 0
    %2691 = vmatprep.subr.bf16.mxu0 0
    %2692 = vmatpush1.bf16.msra.mxu0 0
    %2693 = vmatprep.subr.bf16.mxu0 0
    %2694 = vmatpush1.bf16.msra.mxu0 0
    %2695 = vmatprep.subr.bf16.mxu0 0
    %2696 = vmatpush1.bf16.msra.mxu0 0
    %2697 = vmatprep.subr.bf16.mxu0 0
    %2698 = vmatpush1.bf16.msra.mxu0 0
    %2699 = vmatprep.subr.bf16.mxu0 0
    %2700 = vmatpush1.bf16.msra.mxu0 0
    %2701 = vmatprep.subr.bf16.mxu0 0
    %2702 = vmatpush1.bf16.msra.mxu0 0
    %2703 = vmatprep.subr.bf16.mxu0 0
    %2704 = vmatpush1.bf16.msra.mxu0 0
    %2705 = vmatprep.subr.bf16.mxu0 0
    %2706 = vmatpush1.bf16.msra.mxu0 0
    %2707 = vmatprep.subr.bf16.mxu0 0
    %2708 = vmatpush1.bf16.msra.mxu0 0
    %2709 = vmatprep.mubr.bf16.mxu0 0
    %2710 = vmatmul.mubr.bf16.gmra.mrb[0].mxu0 %v2651
    %v2711 = vpop.f32.mrb[0].mxu0
    %v2712 = vadd.f32 %v2544, %v2711
    %v2713 = vpop.f32.mrb[0].mxu0
    %v2714 = vpop.f32.mrb[0].mxu0
    %v2715 = vadd.f32 %v2547, %v2714
    %v2716 = vpop.f32.mrb[0].mxu0
    %2717 = vmatprep.mubr.bf16.mxu0 0
    %2718 = vmatmul.mubr.bf16.gmra.mrb[0].mxu0 %v2654
    %v2719 = vpop.f32.mrb[0].mxu0
    %v2720 = vadd.f32 %v2552, %v2719
    %v2721 = vpop.f32.mrb[0].mxu0
    %v2722 = vpop.f32.mrb[0].mxu0
    %v2723 = vadd.f32 %v2555, %v2722
    %v2724 = vpop.f32.mrb[0].mxu0
    %2725 = vmatprep.mubr.bf16.mxu0 0
    %2726 = vmatmul.mubr.bf16.gmra.mrb[0].mxu0 %v2657
    %v2727 = vpop.f32.mrb[0].mxu0
    %v2728 = vadd.f32 %v2560, %v2727
    %v2729 = vpop.f32.mrb[0].mxu0
    %v2730 = vpop.f32.mrb[0].mxu0
    %v2731 = vadd.f32 %v2563, %v2730
    %v2732 = vpop.f32.mrb[0].mxu0
    %2733 = vmatprep.mubr.bf16.mxu0 0
    %2734 = vmatmul.mubr.bf16.gmra.mrb[0].mxu0 %v2660
    %v2735 = vpop.f32.mrb[0].mxu0
    %v2736 = vadd.f32 %v2568, %v2735
    %v2737 = vpop.f32.mrb[0].mxu0
    %v2738 = vpop.f32.mrb[0].mxu0
    %v2739 = vadd.f32 %v2571, %v2738
    %v2740 = vpop.f32.mrb[0].mxu0
    %2741 = vmatprep.mubr.bf16.mxu0 0
    %2742 = vmatmul.mubr.bf16.gmra.mrb[0].mxu0 %v2663
    %v2743 = vpop.f32.mrb[0].mxu0
    %v2744 = vadd.f32 %v2576, %v2743
    %v2745 = vpop.f32.mrb[0].mxu0
    %v2746 = vpop.f32.mrb[0].mxu0
    %v2747 = vadd.f32 %v2579, %v2746
    %v2748 = vpop.f32.mrb[0].mxu0
    %2749 = vmatprep.mubr.bf16.mxu0 0
    %2750 = vmatmul.mubr.bf16.gmra.mrb[0].mxu0 %v2666
    %v2751 = vpop.f32.mrb[0].mxu0
    %v2752 = vadd.f32 %v2584, %v2751
    %v2753 = vpop.f32.mrb[0].mxu0
    %v2754 = vpop.f32.mrb[0].mxu0
    %v2755 = vadd.f32 %v2587, %v2754
    %v2756 = vpop.f32.mrb[0].mxu0
    %2757 = vmatprep.mubr.bf16.mxu0 0
    %2758 = vmatmul.mubr.bf16.gmra.mrb[0].mxu0 %v2669
    %v2759 = vpop.f32.mrb[0].mxu0
    %v2760 = vadd.f32 %v2592, %v2759
    %v2761 = vpop.f32.mrb[0].mxu0
    %v2762 = vpop.f32.mrb[0].mxu0
    %v2763 = vadd.f32 %v2595, %v2762
    %v2764 = vpop.f32.mrb[0].mxu0
    %2765 = vmatprep.mubr.bf16.mxu0 0
    %2766 = vmatmul.mubr.bf16.gmra.mrb[0].mxu0 %v2672
    %v2767 = vpop.f32.mrb[0].mxu0
    %v2768 = vadd.f32 %v2600, %v2767
    %v2769 = vpop.f32.mrb[0].mxu0
    %v2770 = vpop.f32.mrb[0].mxu0
    %v2771 = vadd.f32 %v2603, %v2770
    %v2772 = vpop.f32.mrb[0].mxu0
    %2773 = vmatprep.mubr.bf16.mxu0 0
    %2774 = vmatmul.mubr.bf16.gmra.mrb[0].mxu0 %v2675
    %v2775 = vpop.f32.mrb[0].mxu0
    %v2776 = vadd.f32 %v2608, %v2775
    %v2777 = vpop.f32.mrb[0].mxu0
    %v2778 = vpop.f32.mrb[0].mxu0
    %v2779 = vadd.f32 %v2611, %v2778
    %v2780 = vpop.f32.mrb[0].mxu0
    %2781 = vdwg.mxu0
    %v2782 = vld [vmem:[#allocation2 + $0xa8] sm:$0xff]
    %v2783 = vld [vmem:[#allocation2 + $0xb0] sm:$0xff]
    %v2784 = vld [vmem:[#allocation2 + $0xb8] sm:$0xff]
    %v2785 = vld [vmem:[#allocation2 + $0xc0] sm:$0xff]
    %v2786 = vld [vmem:[#allocation2 + $0xc8] sm:$0xff]
    %v2787 = vld [vmem:[#allocation2 + $0xd0] sm:$0xff]
    %v2788 = vld [vmem:[#allocation2 + $0xd8] sm:$0xff]
    %v2789 = vld [vmem:[#allocation2 + $0xe0] sm:$0xff]
    %v2790 = vld [vmem:[#allocation2 + $0xe8] sm:$0xff]
    %v2791 = vld [vmem:[%s1459] sm:$0xf]
    %v2792 = vld [vmem:[%s1459 + $0x4] sm:$0xf]
    %v2793 = vld [vmem:[%s1459 + $0x8] sm:$0xf]
    %v2794 = vld [vmem:[%s1459 + $0xc] sm:$0xf]
    %v2795 = vld [vmem:[%s1459 + $0x10] sm:$0xf]
    %v2796 = vld [vmem:[%s1459 + $0x14] sm:$0xf]
    %v2797 = vld [vmem:[%s1459 + $0x18] sm:$0xf]
    %v2798 = vld [vmem:[%s1459 + $0x1c] sm:$0xf]
    %v2799 = vld [vmem:[%s1459 + $0x20] sm:$0xf]
    %v2800 = vld [vmem:[%s1459 + $0x24] sm:$0xf]
    %v2801 = vld [vmem:[%s1459 + $0x28] sm:$0xf]
    %v2802 = vld [vmem:[%s1459 + $0x2c] sm:$0xf]
    %v2815 = vunpack.c.l.b16 %v2791
    %v2816 = vunpack.c.l.b16 %v2792
    %v2817 = vunpack.c.l.b16 %v2793
    %v2818 = vunpack.c.l.b16 %v2794
    %v2819 = vunpack.c.l.b16 %v2795
    %v2820 = vunpack.c.l.b16 %v2796
    %v2821 = vunpack.c.l.b16 %v2797
    %v2822 = vunpack.c.l.b16 %v2798
    %v2823 = vunpack.c.l.b16 %v2799
    %v2824 = vunpack.c.l.b16 %v2800
    %v2825 = vunpack.c.l.b16 %v2801
    %v2826 = vunpack.c.l.b16 %v2802
    %v2827 = vpack.c.b16 %v2816, %v2815
    %v2828 = vpack.c.b16 %v2818, %v2817
    %v2829 = vpack.c.b16 %v2820, %v2819
    %v2830 = vpack.c.b16 %v2822, %v2821
    %v2831 = vpack.c.b16 %v2824, %v2823
    %v2832 = vpack.c.b16 %v2826, %v2825
    %v2840 = vsel %vm395, %v2782, 0
    %v2843 = vsel %vm395, %v2783, 0
    %v2846 = vsel %vm395, %v2784, 0
    %v2849 = vsel %vm395, %v2785, 0
    %v2852 = vsel %vm395, %v2786, 0
    %v2855 = vsel %vm395, %v2787, 0
    %v2858 = vsel %vm395, %v2788, 0
    %v2861 = vsel %vm395, %v2789, 0
    %v2864 = vsel %vm395, %v2790, 0
    %2866 = vmatprep.subr.bf16.mxu0 0
    %2867 = vmatpush1.bf16.msra.mxu0 %v2827
    %2868 = vmatprep.subr.bf16.mxu0 0
    %2869 = vmatpush1.bf16.msra.mxu0 %v2828
    %2870 = vmatprep.subr.bf16.mxu0 0
    %2871 = vmatpush1.bf16.msra.mxu0 %v2829
    %2872 = vmatprep.subr.bf16.mxu0 0
    %2873 = vmatpush1.bf16.msra.mxu0 %v2830
    %2874 = vmatprep.subr.bf16.mxu0 0
    %2875 = vmatpush1.bf16.msra.mxu0 %v2831
    %2876 = vmatprep.subr.bf16.mxu0 0
    %2877 = vmatpush1.bf16.msra.mxu0 %v2832
    %2878 = vmatprep.subr.bf16.mxu0 0
    %2879 = vmatpush1.bf16.msra.mxu0 0
    %2880 = vmatprep.subr.bf16.mxu0 0
    %2881 = vmatpush1.bf16.msra.mxu0 0
    %2882 = vmatprep.subr.bf16.mxu0 0
    %2883 = vmatpush1.bf16.msra.mxu0 0
    %2884 = vmatprep.subr.bf16.mxu0 0
    %2885 = vmatpush1.bf16.msra.mxu0 0
    %2886 = vmatprep.subr.bf16.mxu0 0
    %2887 = vmatpush1.bf16.msra.mxu0 0
    %2888 = vmatprep.subr.bf16.mxu0 0
    %2889 = vmatpush1.bf16.msra.mxu0 0
    %2890 = vmatprep.subr.bf16.mxu0 0
    %2891 = vmatpush1.bf16.msra.mxu0 0
    %2892 = vmatprep.subr.bf16.mxu0 0
    %2893 = vmatpush1.bf16.msra.mxu0 0
    %2894 = vmatprep.subr.bf16.mxu0 0
    %2895 = vmatpush1.bf16.msra.mxu0 0
    %2896 = vmatprep.subr.bf16.mxu0 0
    %2897 = vmatpush1.bf16.msra.mxu0 0
    %2898 = vmatprep.mubr.bf16.mxu0 0
    %2899 = vmatmul.mubr.bf16.gmra.mrb[0].mxu0 %v2840
    %v2900 = vpop.f32.mrb[0].mxu0
    %v2901 = vadd.f32 0.0, %v2900
    %v2902 = vpop.f32.mrb[0].mxu0
    %v2903 = vpop.f32.mrb[0].mxu0
    %v2904 = vadd.f32 0.0, %v2903
    %v2905 = vpop.f32.mrb[0].mxu0
    %2906 = vmatprep.mubr.bf16.mxu0 0
    %2907 = vmatmul.mubr.bf16.gmra.mrb[0].mxu0 %v2843
    %v2908 = vpop.f32.mrb[0].mxu0
    %v2909 = vadd.f32 0.0, %v2908
    %v2910 = vpop.f32.mrb[0].mxu0
    %v2911 = vpop.f32.mrb[0].mxu0
    %v2912 = vadd.f32 0.0, %v2911
    %v2913 = vpop.f32.mrb[0].mxu0
    %2914 = vmatprep.mubr.bf16.mxu0 0
    %2915 = vmatmul.mubr.bf16.gmra.mrb[0].mxu0 %v2846
    %v2916 = vpop.f32.mrb[0].mxu0
    %v2917 = vadd.f32 0.0, %v2916
    %v2918 = vpop.f32.mrb[0].mxu0
    %v2919 = vpop.f32.mrb[0].mxu0
    %v2920 = vadd.f32 0.0, %v2919
    %v2921 = vpop.f32.mrb[0].mxu0
    %2922 = vmatprep.mubr.bf16.mxu0 0
    %2923 = vmatmul.mubr.bf16.gmra.mrb[0].mxu0 %v2849
    %v2924 = vpop.f32.mrb[0].mxu0
    %v2925 = vadd.f32 0.0, %v2924
    %v2926 = vpop.f32.mrb[0].mxu0
    %v2927 = vpop.f32.mrb[0].mxu0
    %v2928 = vadd.f32 0.0, %v2927
    %v2929 = vpop.f32.mrb[0].mxu0
    %2930 = vmatprep.mubr.bf16.mxu0 0
    %2931 = vmatmul.mubr.bf16.gmra.mrb[0].mxu0 %v2852
    %v2932 = vpop.f32.mrb[0].mxu0
    %v2933 = vadd.f32 0.0, %v2932
    %v2934 = vpop.f32.mrb[0].mxu0
    %v2935 = vpop.f32.mrb[0].mxu0
    %v2936 = vadd.f32 0.0, %v2935
    %v2937 = vpop.f32.mrb[0].mxu0
    %2938 = vmatprep.mubr.bf16.mxu0 0
    %2939 = vmatmul.mubr.bf16.gmra.mrb[0].mxu0 %v2855
    %v2940 = vpop.f32.mrb[0].mxu0
    %v2941 = vadd.f32 0.0, %v2940
    %v2942 = vpop.f32.mrb[0].mxu0
    %v2943 = vpop.f32.mrb[0].mxu0
    %v2944 = vadd.f32 0.0, %v2943
    %v2945 = vpop.f32.mrb[0].mxu0
    %2946 = vmatprep.mubr.bf16.mxu0 0
    %2947 = vmatmul.mubr.bf16.gmra.mrb[0].mxu0 %v2858
    %v2948 = vpop.f32.mrb[0].mxu0
    %v2949 = vadd.f32 0.0, %v2948
    %v2950 = vpop.f32.mrb[0].mxu0
    %v2951 = vpop.f32.mrb[0].mxu0
    %v2952 = vadd.f32 0.0, %v2951
    %v2953 = vpop.f32.mrb[0].mxu0
    %2954 = vmatprep.mubr.bf16.mxu0 0
    %2955 = vmatmul.mubr.bf16.gmra.mrb[0].mxu0 %v2861
    %v2956 = vpop.f32.mrb[0].mxu0
    %v2957 = vadd.f32 0.0, %v2956
    %v2958 = vpop.f32.mrb[0].mxu0
    %v2959 = vpop.f32.mrb[0].mxu0
    %v2960 = vadd.f32 0.0, %v2959
    %v2961 = vpop.f32.mrb[0].mxu0
    %2962 = vmatprep.mubr.bf16.mxu0 0
    %2963 = vmatmul.mubr.bf16.gmra.mrb[0].mxu0 %v2864
    %v2964 = vpop.f32.mrb[0].mxu0
    %v2965 = vadd.f32 0.0, %v2964
    %v2966 = vpop.f32.mrb[0].mxu0
    %v2967 = vpop.f32.mrb[0].mxu0
    %v2968 = vadd.f32 0.0, %v2967
    %v2969 = vpop.f32.mrb[0].mxu0
    %2970 = vdwg.mxu0
    %v2971 = vadd.f32 %v2712, %v2901
    %v2972 = vadd.f32 %v2715, %v2904
    %v2973 = vadd.f32 %v2720, %v2909
    %v2974 = vadd.f32 %v2723, %v2912
    %v2975 = vadd.f32 %v2728, %v2917
    %v2976 = vadd.f32 %v2731, %v2920
    %v2977 = vadd.f32 %v2736, %v2925
    %v2978 = vadd.f32 %v2739, %v2928
    %v2979 = vadd.f32 %v2744, %v2933
    %v2980 = vadd.f32 %v2747, %v2936
    %v2981 = vadd.f32 %v2752, %v2941
    %v2982 = vadd.f32 %v2755, %v2944
    %v2983 = vadd.f32 %v2760, %v2949
    %v2984 = vadd.f32 %v2763, %v2952
    %v2985 = vadd.f32 %v2768, %v2957
    %v2986 = vadd.f32 %v2771, %v2960
    %v2987 = vadd.f32 %v2776, %v2965
    %v2988 = vadd.f32 %v2779, %v2968
    %v2989 = vadd.f32 %v2971, %v1662
    %v2990 = vadd.f32 %v2972, %v1662
    %v2991 = vadd.f32 %v2973, %v1662
    %v2992 = vadd.f32 %v2974, %v1662
    %v2993 = vadd.f32 %v2975, %v1662
    %v2994 = vadd.f32 %v2976, %v1662
    %v2995 = vadd.f32 %v2977, %v1662
    %v2996 = vadd.f32 %v2978, %v1662
    %v2997 = vadd.f32 %v2979, %v1662
    %v2998 = vadd.f32 %v2980, %v1662
    %v2999 = vadd.f32 %v2981, %v1662
    %v3000 = vadd.f32 %v2982, %v1662
    %v3001 = vadd.f32 %v2983, %v1662
    %v3002 = vadd.f32 %v2984, %v1662
    %v3003 = vadd.f32 %v2985, %v1662
    %v3004 = vadd.f32 %v2986, %v1662
    %v3005 = vadd.f32 %v2987, %v1662
    %v3006 = vadd.f32 %v2988, %v1662
    %v3007 = vmax.f32 %v2989, 0.0
    %v3008 = vmax.f32 %v2990, 0.0
    %v3009 = vmax.f32 %v2991, 0.0
    %v3010 = vmax.f32 %v2992, 0.0
    %v3011 = vmax.f32 %v2993, 0.0
    %v3012 = vmax.f32 %v2994, 0.0
    %v3013 = vmax.f32 %v2995, 0.0
    %v3014 = vmax.f32 %v2996, 0.0
    %v3015 = vmax.f32 %v2997, 0.0
    %v3016 = vmax.f32 %v2998, 0.0
    %v3017 = vmax.f32 %v2999, 0.0
    %v3018 = vmax.f32 %v3000, 0.0
    %v3019 = vmax.f32 %v3001, 0.0
    %v3020 = vmax.f32 %v3002, 0.0
    %v3021 = vmax.f32 %v3003, 0.0
    %v3022 = vmax.f32 %v3004, 0.0
    %v3023 = vmax.f32 %v3005, 0.0
    %v3024 = vmax.f32 %v3006, 0.0
    %v3025 = vmax.f32 %v3007, %v3010
    %v3026 = vmax.f32 %v3008, %v3011
    %v3027 = vmax.f32 %v3009, %v3012
    %3028 = vst.msk [vmem:[#allocation3 + $0x90] sm:$0xff] %vm1703, %v3025
    %3029 = vst.msk [vmem:[#allocation3 + $0x98] sm:$0xff] %vm1703, %v3026
    %3030 = vst.msk [vmem:[#allocation3 + $0xa0] sm:$0xff] %vm1703, %v3027
    %v3031 = vmax.f32 %v3013, %v3016
    %v3032 = vmax.f32 %v3014, %v3017
    %v3033 = vmax.f32 %v3015, %v3018
    %3034 = vst.msk [vmem:[#allocation3 + $0xa8] sm:$0xff] %vm1703, %v3031
    %3035 = vst.msk [vmem:[#allocation3 + $0xb0] sm:$0xff] %vm1703, %v3032
    %3036 = vst.msk [vmem:[#allocation3 + $0xb8] sm:$0xff] %vm1703, %v3033
    %v3037 = vmax.f32 %v3019, %v3022
    %v3038 = vmax.f32 %v3020, %v3023
    %v3039 = vmax.f32 %v3021, %v3024
    %3040 = vst.msk [vmem:[#allocation3 + $0xc0] sm:$0xff] %vm1703, %v3037
    %3041 = vst.msk [vmem:[#allocation3 + $0xc8] sm:$0xff] %vm1703, %v3038
    %3042 = vst.msk [vmem:[#allocation3 + $0xd0] sm:$0xff] %vm1703, %v3039
    %v3043 = vld [vmem:[#allocation2 + $0xd8] sm:$0xff]
    %v3044 = vld [vmem:[#allocation2 + $0xe0] sm:$0xff]
    %v3045 = vld [vmem:[#allocation2 + $0xe8] sm:$0xff]
    %v3046 = vld [vmem:[#allocation2 + $0xf0] sm:$0xff]
    %v3047 = vld [vmem:[#allocation2 + $0xf8] sm:$0xff]
    %v3048 = vld [vmem:[#allocation2 + $0x100] sm:$0xff]
    %v3049 = vld [vmem:[#allocation2 + $0x108] sm:$0xff]
    %v3050 = vld [vmem:[#allocation2 + $0x110] sm:$0xff]
    %v3051 = vld [vmem:[#allocation2 + $0x118] sm:$0xff]
    %v3052 = vld [vmem:[%s3] sm:$0xf]
    %v3053 = vld [vmem:[%s3 + $0x4] sm:$0xf]
    %v3054 = vld [vmem:[%s3 + $0x8] sm:$0xf]
    %v3055 = vld [vmem:[%s3 + $0xc] sm:$0xf]
    %v3056 = vld [vmem:[%s3 + $0x10] sm:$0xf]
    %v3057 = vld [vmem:[%s3 + $0x14] sm:$0xf]
    %v3058 = vld [vmem:[%s3 + $0x18] sm:$0xf]
    %v3059 = vld [vmem:[%s3 + $0x1c] sm:$0xf]
    %v3060 = vld [vmem:[%s3 + $0x20] sm:$0xf]
    %v3061 = vld [vmem:[%s3 + $0x24] sm:$0xf]
    %v3062 = vld [vmem:[%s3 + $0x28] sm:$0xf]
    %v3063 = vld [vmem:[%s3 + $0x2c] sm:$0xf]
    %v3064 = vld [vmem:[#allocation2 + $0xe0] sm:$0xf0]
    %v3065 = vld [vmem:[#allocation2 + $0x120] sm:$0xff]
    %v3066 = vld [vmem:[#allocation2 + $0x128] sm:$0xf]
    %v3067 = vld [vmem:[%s1071] sm:$0xf]
    %v3068 = vld [vmem:[%s1071 + $0x4] sm:$0xf]
    %v3069 = vld [vmem:[%s1071 + $0x8] sm:$0xf]
    %v3070 = vld [vmem:[%s1071 + $0xc] sm:$0xf]
    %v3071 = vld [vmem:[%s1071 + $0x10] sm:$0xf]
    %v3072 = vld [vmem:[%s1071 + $0x14] sm:$0xf]
    %v3073 = vld [vmem:[%s1071 + $0x18] sm:$0xf]
    %v3074 = vld [vmem:[%s1071 + $0x1c] sm:$0xf]
    %v3075 = vld [vmem:[%s1071 + $0x20] sm:$0xf]
    %v3076 = vld [vmem:[%s1071 + $0x24] sm:$0xf]
    %v3077 = vld [vmem:[%s1071 + $0x28] sm:$0xf]
    %v3078 = vld [vmem:[%s1071 + $0x2c] sm:$0xf]
    %v3089 = vrot.slane %v3064, 4
    %v3090 = vrot.slane %v3045, 4
    %v3091 = vsel %vm1094, %v3089, %v3090
    %v3092 = vrot.slane %v3046, 4
    %v3093 = vsel %vm1094, %v3090, %v3092
    %v3094 = vrot.slane %v3047, 4
    %v3095 = vsel %vm1094, %v3092, %v3094
    %v3096 = vrot.slane %v3048, 4
    %v3097 = vsel %vm1094, %v3094, %v3096
    %v3098 = vrot.slane %v3049, 4
    %v3099 = vsel %vm1094, %v3096, %v3098
    %v3100 = vrot.slane %v3050, 4
    %v3101 = vsel %vm1094, %v3098, %v3100
    %v3102 = vrot.slane %v3051, 4
    %v3103 = vsel %vm1094, %v3100, %v3102
    %v3104 = vrot.slane %v3065, 4
    %v3105 = vsel %vm1094, %v3102, %v3104
    %v3106 = vrot.slane %v3066, 4
    %v3107 = vsel %vm1094, %v3104, %v3106
    %v3120 = vunpack.c.l.b16 %v3067
    %v3121 = vunpack.c.l.b16 %v3068
    %v3122 = vunpack.c.l.b16 %v3069
    %v3123 = vunpack.c.l.b16 %v3070
    %v3124 = vunpack.c.l.b16 %v3071
    %v3125 = vunpack.c.l.b16 %v3072
    %v3126 = vunpack.c.l.b16 %v3073
    %v3127 = vunpack.c.l.b16 %v3074
    %v3128 = vunpack.c.l.b16 %v3075
    %v3129 = vunpack.c.l.b16 %v3076
    %v3130 = vunpack.c.l.b16 %v3077
    %v3131 = vunpack.c.l.b16 %v3078
    %v3132 = vpack.c.b16 %v3121, %v3120
    %v3133 = vpack.c.b16 %v3123, %v3122
    %v3134 = vpack.c.b16 %v3125, %v3124
    %v3135 = vpack.c.b16 %v3127, %v3126
    %v3136 = vpack.c.b16 %v3129, %v3128
    %v3137 = vpack.c.b16 %v3131, %v3130
    %v3145 = vsel %vm395, %v3091, 0
    %v3148 = vsel %vm395, %v3093, 0
    %v3151 = vsel %vm395, %v3095, 0
    %v3154 = vsel %vm395, %v3097, 0
    %v3157 = vsel %vm395, %v3099, 0
    %v3160 = vsel %vm395, %v3101, 0
    %v3163 = vsel %vm395, %v3103, 0
    %v3166 = vsel %vm395, %v3105, 0
    %v3169 = vsel %vm395, %v3107, 0
    %3171 = vmatprep.subr.bf16.mxu0 0
    %3172 = vmatpush1.bf16.msra.mxu0 %v3132
    %3173 = vmatprep.subr.bf16.mxu0 0
    %3174 = vmatpush1.bf16.msra.mxu0 %v3133
    %3175 = vmatprep.subr.bf16.mxu0 0
    %3176 = vmatpush1.bf16.msra.mxu0 %v3134
    %3177 = vmatprep.subr.bf16.mxu0 0
    %3178 = vmatpush1.bf16.msra.mxu0 %v3135
    %3179 = vmatprep.subr.bf16.mxu0 0
    %3180 = vmatpush1.bf16.msra.mxu0 %v3136
    %3181 = vmatprep.subr.bf16.mxu0 0
    %3182 = vmatpush1.bf16.msra.mxu0 %v3137
    %3183 = vmatprep.subr.bf16.mxu0 0
    %3184 = vmatpush1.bf16.msra.mxu0 0
    %3185 = vmatprep.subr.bf16.mxu0 0
    %3186 = vmatpush1.bf16.msra.mxu0 0
    %3187 = vmatprep.subr.bf16.mxu0 0
    %3188 = vmatpush1.bf16.msra.mxu0 0
    %3189 = vmatprep.subr.bf16.mxu0 0
    %3190 = vmatpush1.bf16.msra.mxu0 0
    %3191 = vmatprep.subr.bf16.mxu0 0
    %3192 = vmatpush1.bf16.msra.mxu0 0
    %3193 = vmatprep.subr.bf16.mxu0 0
    %3194 = vmatpush1.bf16.msra.mxu0 0
    %3195 = vmatprep.subr.bf16.mxu0 0
    %3196 = vmatpush1.bf16.msra.mxu0 0
    %3197 = vmatprep.subr.bf16.mxu0 0
    %3198 = vmatpush1.bf16.msra.mxu0 0
    %3199 = vmatprep.subr.bf16.mxu0 0
    %3200 = vmatpush1.bf16.msra.mxu0 0
    %3201 = vmatprep.subr.bf16.mxu0 0
    %3202 = vmatpush1.bf16.msra.mxu0 0
    %3203 = vmatprep.mubr.bf16.mxu0 0
    %3204 = vmatmul.mubr.bf16.gmra.mrb[0].mxu0 %v3145
    %v3205 = vpop.f32.mrb[0].mxu0
    %v3206 = vadd.f32 0.0, %v3205
    %v3207 = vpop.f32.mrb[0].mxu0
    %v3208 = vpop.f32.mrb[0].mxu0
    %v3209 = vadd.f32 0.0, %v3208
    %v3210 = vpop.f32.mrb[0].mxu0
    %3211 = vmatprep.mubr.bf16.mxu0 0
    %3212 = vmatmul.mubr.bf16.gmra.mrb[0].mxu0 %v3148
    %v3213 = vpop.f32.mrb[0].mxu0
    %v3214 = vadd.f32 0.0, %v3213
    %v3215 = vpop.f32.mrb[0].mxu0
    %v3216 = vpop.f32.mrb[0].mxu0
    %v3217 = vadd.f32 0.0, %v3216
    %v3218 = vpop.f32.mrb[0].mxu0
    %3219 = vmatprep.mubr.bf16.mxu0 0
    %3220 = vmatmul.mubr.bf16.gmra.mrb[0].mxu0 %v3151
    %v3221 = vpop.f32.mrb[0].mxu0
    %v3222 = vadd.f32 0.0, %v3221
    %v3223 = vpop.f32.mrb[0].mxu0
    %v3224 = vpop.f32.mrb[0].mxu0
    %v3225 = vadd.f32 0.0, %v3224
    %v3226 = vpop.f32.mrb[0].mxu0
    %3227 = vmatprep.mubr.bf16.mxu0 0
    %3228 = vmatmul.mubr.bf16.gmra.mrb[0].mxu0 %v3154
    %v3229 = vpop.f32.mrb[0].mxu0
    %v3230 = vadd.f32 0.0, %v3229
    %v3231 = vpop.f32.mrb[0].mxu0
    %v3232 = vpop.f32.mrb[0].mxu0
    %v3233 = vadd.f32 0.0, %v3232
    %v3234 = vpop.f32.mrb[0].mxu0
    %3235 = vmatprep.mubr.bf16.mxu0 0
    %3236 = vmatmul.mubr.bf16.gmra.mrb[0].mxu0 %v3157
    %v3237 = vpop.f32.mrb[0].mxu0
    %v3238 = vadd.f32 0.0, %v3237
    %v3239 = vpop.f32.mrb[0].mxu0
    %v3240 = vpop.f32.mrb[0].mxu0
    %v3241 = vadd.f32 0.0, %v3240
    %v3242 = vpop.f32.mrb[0].mxu0
    %3243 = vmatprep.mubr.bf16.mxu0 0
    %3244 = vmatmul.mubr.bf16.gmra.mrb[0].mxu0 %v3160
    %v3245 = vpop.f32.mrb[0].mxu0
    %v3246 = vadd.f32 0.0, %v3245
    %v3247 = vpop.f32.mrb[0].mxu0
    %v3248 = vpop.f32.mrb[0].mxu0
    %v3249 = vadd.f32 0.0, %v3248
    %v3250 = vpop.f32.mrb[0].mxu0
    %3251 = vmatprep.mubr.bf16.mxu0 0
    %3252 = vmatmul.mubr.bf16.gmra.mrb[0].mxu0 %v3163
    %v3253 = vpop.f32.mrb[0].mxu0
    %v3254 = vadd.f32 0.0, %v3253
    %v3255 = vpop.f32.mrb[0].mxu0
    %v3256 = vpop.f32.mrb[0].mxu0
    %v3257 = vadd.f32 0.0, %v3256
    %v3258 = vpop.f32.mrb[0].mxu0
    %3259 = vmatprep.mubr.bf16.mxu0 0
    %3260 = vmatmul.mubr.bf16.gmra.mrb[0].mxu0 %v3166
    %v3261 = vpop.f32.mrb[0].mxu0
    %v3262 = vadd.f32 0.0, %v3261
    %v3263 = vpop.f32.mrb[0].mxu0
    %v3264 = vpop.f32.mrb[0].mxu0
    %v3265 = vadd.f32 0.0, %v3264
    %v3266 = vpop.f32.mrb[0].mxu0
    %3267 = vmatprep.mubr.bf16.mxu0 0
    %3268 = vmatmul.mubr.bf16.gmra.mrb[0].mxu0 %v3169
    %v3269 = vpop.f32.mrb[0].mxu0
    %v3270 = vadd.f32 0.0, %v3269
    %v3271 = vpop.f32.mrb[0].mxu0
    %v3272 = vpop.f32.mrb[0].mxu0
    %v3273 = vadd.f32 0.0, %v3272
    %v3274 = vpop.f32.mrb[0].mxu0
    %3275 = vdwg.mxu0
    %v3288 = vunpack.c.l.b16 %v3052
    %v3289 = vunpack.c.l.b16 %v3053
    %v3290 = vunpack.c.l.b16 %v3054
    %v3291 = vunpack.c.l.b16 %v3055
    %v3292 = vunpack.c.l.b16 %v3056
    %v3293 = vunpack.c.l.b16 %v3057
    %v3294 = vunpack.c.l.b16 %v3058
    %v3295 = vunpack.c.l.b16 %v3059
    %v3296 = vunpack.c.l.b16 %v3060
    %v3297 = vunpack.c.l.b16 %v3061
    %v3298 = vunpack.c.l.b16 %v3062
    %v3299 = vunpack.c.l.b16 %v3063
    %v3300 = vpack.c.b16 %v3289, %v3288
    %v3301 = vpack.c.b16 %v3291, %v3290
    %v3302 = vpack.c.b16 %v3293, %v3292
    %v3303 = vpack.c.b16 %v3295, %v3294
    %v3304 = vpack.c.b16 %v3297, %v3296
    %v3305 = vpack.c.b16 %v3299, %v3298
    %v3313 = vsel %vm395, %v3043, 0
    %v3316 = vsel %vm395, %v3044, 0
    %v3319 = vsel %vm395, %v3045, 0
    %v3322 = vsel %vm395, %v3046, 0
    %v3325 = vsel %vm395, %v3047, 0
    %v3328 = vsel %vm395, %v3048, 0
    %v3331 = vsel %vm395, %v3049, 0
    %v3334 = vsel %vm395, %v3050, 0
    %v3337 = vsel %vm395, %v3051, 0
    %3339 = vmatprep.subr.bf16.mxu0 0
    %3340 = vmatpush1.bf16.msra.mxu0 %v3300
    %3341 = vmatprep.subr.bf16.mxu0 0
    %3342 = vmatpush1.bf16.msra.mxu0 %v3301
    %3343 = vmatprep.subr.bf16.mxu0 0
    %3344 = vmatpush1.bf16.msra.mxu0 %v3302
    %3345 = vmatprep.subr.bf16.mxu0 0
    %3346 = vmatpush1.bf16.msra.mxu0 %v3303
    %3347 = vmatprep.subr.bf16.mxu0 0
    %3348 = vmatpush1.bf16.msra.mxu0 %v3304
    %3349 = vmatprep.subr.bf16.mxu0 0
    %3350 = vmatpush1.bf16.msra.mxu0 %v3305
    %3351 = vmatprep.subr.bf16.mxu0 0
    %3352 = vmatpush1.bf16.msra.mxu0 0
    %3353 = vmatprep.subr.bf16.mxu0 0
    %3354 = vmatpush1.bf16.msra.mxu0 0
    %3355 = vmatprep.subr.bf16.mxu0 0
    %3356 = vmatpush1.bf16.msra.mxu0 0
    %3357 = vmatprep.subr.bf16.mxu0 0
    %3358 = vmatpush1.bf16.msra.mxu0 0
    %3359 = vmatprep.subr.bf16.mxu0 0
    %3360 = vmatpush1.bf16.msra.mxu0 0
    %3361 = vmatprep.subr.bf16.mxu0 0
    %3362 = vmatpush1.bf16.msra.mxu0 0
    %3363 = vmatprep.subr.bf16.mxu0 0
    %3364 = vmatpush1.bf16.msra.mxu0 0
    %3365 = vmatprep.subr.bf16.mxu0 0
    %3366 = vmatpush1.bf16.msra.mxu0 0
    %3367 = vmatprep.subr.bf16.mxu0 0
    %3368 = vmatpush1.bf16.msra.mxu0 0
    %3369 = vmatprep.subr.bf16.mxu0 0
    %3370 = vmatpush1.bf16.msra.mxu0 0
    %3371 = vmatprep.mubr.bf16.mxu0 0
    %3372 = vmatmul.mubr.bf16.gmra.mrb[0].mxu0 %v3313
    %v3373 = vpop.f32.mrb[0].mxu0
    %v3374 = vadd.f32 %v3206, %v3373
    %v3375 = vpop.f32.mrb[0].mxu0
    %v3376 = vpop.f32.mrb[0].mxu0
    %v3377 = vadd.f32 %v3209, %v3376
    %v3378 = vpop.f32.mrb[0].mxu0
    %3379 = vmatprep.mubr.bf16.mxu0 0
    %3380 = vmatmul.mubr.bf16.gmra.mrb[0].mxu0 %v3316
    %v3381 = vpop.f32.mrb[0].mxu0
    %v3382 = vadd.f32 %v3214, %v3381
    %v3383 = vpop.f32.mrb[0].mxu0
    %v3384 = vpop.f32.mrb[0].mxu0
    %v3385 = vadd.f32 %v3217, %v3384
    %v3386 = vpop.f32.mrb[0].mxu0
    %3387 = vmatprep.mubr.bf16.mxu0 0
    %3388 = vmatmul.mubr.bf16.gmra.mrb[0].mxu0 %v3319
    %v3389 = vpop.f32.mrb[0].mxu0
    %v3390 = vadd.f32 %v3222, %v3389
    %v3391 = vpop.f32.mrb[0].mxu0
    %v3392 = vpop.f32.mrb[0].mxu0
    %v3393 = vadd.f32 %v3225, %v3392
    %v3394 = vpop.f32.mrb[0].mxu0
    %3395 = vmatprep.mubr.bf16.mxu0 0
    %3396 = vmatmul.mubr.bf16.gmra.mrb[0].mxu0 %v3322
    %v3397 = vpop.f32.mrb[0].mxu0
    %v3398 = vadd.f32 %v3230, %v3397
    %v3399 = vpop.f32.mrb[0].mxu0
    %v3400 = vpop.f32.mrb[0].mxu0
    %v3401 = vadd.f32 %v3233, %v3400
    %v3402 = vpop.f32.mrb[0].mxu0
    %3403 = vmatprep.mubr.bf16.mxu0 0
    %3404 = vmatmul.mubr.bf16.gmra.mrb[0].mxu0 %v3325
    %v3405 = vpop.f32.mrb[0].mxu0
    %v3406 = vadd.f32 %v3238, %v3405
    %v3407 = vpop.f32.mrb[0].mxu0
    %v3408 = vpop.f32.mrb[0].mxu0
    %v3409 = vadd.f32 %v3241, %v3408
    %v3410 = vpop.f32.mrb[0].mxu0
    %3411 = vmatprep.mubr.bf16.mxu0 0
    %3412 = vmatmul.mubr.bf16.gmra.mrb[0].mxu0 %v3328
    %v3413 = vpop.f32.mrb[0].mxu0
    %v3414 = vadd.f32 %v3246, %v3413
    %v3415 = vpop.f32.mrb[0].mxu0
    %v3416 = vpop.f32.mrb[0].mxu0
    %v3417 = vadd.f32 %v3249, %v3416
    %v3418 = vpop.f32.mrb[0].mxu0
    %3419 = vmatprep.mubr.bf16.mxu0 0
    %3420 = vmatmul.mubr.bf16.gmra.mrb[0].mxu0 %v3331
    %v3421 = vpop.f32.mrb[0].mxu0
    %v3422 = vadd.f32 %v3254, %v3421
    %v3423 = vpop.f32.mrb[0].mxu0
    %v3424 = vpop.f32.mrb[0].mxu0
    %v3425 = vadd.f32 %v3257, %v3424
    %v3426 = vpop.f32.mrb[0].mxu0
    %3427 = vmatprep.mubr.bf16.mxu0 0
    %3428 = vmatmul.mubr.bf16.gmra.mrb[0].mxu0 %v3334
    %v3429 = vpop.f32.mrb[0].mxu0
    %v3430 = vadd.f32 %v3262, %v3429
    %v3431 = vpop.f32.mrb[0].mxu0
    %v3432 = vpop.f32.mrb[0].mxu0
    %v3433 = vadd.f32 %v3265, %v3432
    %v3434 = vpop.f32.mrb[0].mxu0
    %3435 = vmatprep.mubr.bf16.mxu0 0
    %3436 = vmatmul.mubr.bf16.gmra.mrb[0].mxu0 %v3337
    %v3437 = vpop.f32.mrb[0].mxu0
    %v3438 = vadd.f32 %v3270, %v3437
    %v3439 = vpop.f32.mrb[0].mxu0
    %v3440 = vpop.f32.mrb[0].mxu0
    %v3441 = vadd.f32 %v3273, %v3440
    %v3442 = vpop.f32.mrb[0].mxu0
    %3443 = vdwg.mxu0
    %v3444 = vld [vmem:[#allocation2 + $0xf0] sm:$0xff]
    %v3445 = vld [vmem:[#allocation2 + $0xf8] sm:$0xff]
    %v3446 = vld [vmem:[#allocation2 + $0x100] sm:$0xff]
    %v3447 = vld [vmem:[#allocation2 + $0x108] sm:$0xff]
    %v3448 = vld [vmem:[#allocation2 + $0x110] sm:$0xff]
    %v3449 = vld [vmem:[#allocation2 + $0x118] sm:$0xff]
    %v3450 = vld [vmem:[#allocation2 + $0x120] sm:$0xff]
    %v3451 = vld [vmem:[#allocation2 + $0x128] sm:$0xff]
    %v3452 = vld [vmem:[#allocation2 + $0x130] sm:$0xff]
    %v3453 = vld [vmem:[%s1459] sm:$0xf]
    %v3454 = vld [vmem:[%s1459 + $0x4] sm:$0xf]
    %v3455 = vld [vmem:[%s1459 + $0x8] sm:$0xf]
    %v3456 = vld [vmem:[%s1459 + $0xc] sm:$0xf]
    %v3457 = vld [vmem:[%s1459 + $0x10] sm:$0xf]
    %v3458 = vld [vmem:[%s1459 + $0x14] sm:$0xf]
    %v3459 = vld [vmem:[%s1459 + $0x18] sm:$0xf]
    %v3460 = vld [vmem:[%s1459 + $0x1c] sm:$0xf]
    %v3461 = vld [vmem:[%s1459 + $0x20] sm:$0xf]
    %v3462 = vld [vmem:[%s1459 + $0x24] sm:$0xf]
    %v3463 = vld [vmem:[%s1459 + $0x28] sm:$0xf]
    %v3464 = vld [vmem:[%s1459 + $0x2c] sm:$0xf]
    %v3477 = vunpack.c.l.b16 %v3453
    %v3478 = vunpack.c.l.b16 %v3454
    %v3479 = vunpack.c.l.b16 %v3455
    %v3480 = vunpack.c.l.b16 %v3456
    %v3481 = vunpack.c.l.b16 %v3457
    %v3482 = vunpack.c.l.b16 %v3458
    %v3483 = vunpack.c.l.b16 %v3459
    %v3484 = vunpack.c.l.b16 %v3460
    %v3485 = vunpack.c.l.b16 %v3461
    %v3486 = vunpack.c.l.b16 %v3462
    %v3487 = vunpack.c.l.b16 %v3463
    %v3488 = vunpack.c.l.b16 %v3464
    %v3489 = vpack.c.b16 %v3478, %v3477
    %v3490 = vpack.c.b16 %v3480, %v3479
    %v3491 = vpack.c.b16 %v3482, %v3481
    %v3492 = vpack.c.b16 %v3484, %v3483
    %v3493 = vpack.c.b16 %v3486, %v3485
    %v3494 = vpack.c.b16 %v3488, %v3487
    %v3502 = vsel %vm395, %v3444, 0
    %v3505 = vsel %vm395, %v3445, 0
    %v3508 = vsel %vm395, %v3446, 0
    %v3511 = vsel %vm395, %v3447, 0
    %v3514 = vsel %vm395, %v3448, 0
    %v3517 = vsel %vm395, %v3449, 0
    %v3520 = vsel %vm395, %v3450, 0
    %v3523 = vsel %vm395, %v3451, 0
    %v3526 = vsel %vm395, %v3452, 0
    %3528 = vmatprep.subr.bf16.mxu0 0
    %3529 = vmatpush1.bf16.msra.mxu0 %v3489
    %3530 = vmatprep.subr.bf16.mxu0 0
    %3531 = vmatpush1.bf16.msra.mxu0 %v3490
    %3532 = vmatprep.subr.bf16.mxu0 0
    %3533 = vmatpush1.bf16.msra.mxu0 %v3491
    %3534 = vmatprep.subr.bf16.mxu0 0
    %3535 = vmatpush1.bf16.msra.mxu0 %v3492
    %3536 = vmatprep.subr.bf16.mxu0 0
    %3537 = vmatpush1.bf16.msra.mxu0 %v3493
    %3538 = vmatprep.subr.bf16.mxu0 0
    %3539 = vmatpush1.bf16.msra.mxu0 %v3494
    %3540 = vmatprep.subr.bf16.mxu0 0
    %3541 = vmatpush1.bf16.msra.mxu0 0
    %3542 = vmatprep.subr.bf16.mxu0 0
    %3543 = vmatpush1.bf16.msra.mxu0 0
    %3544 = vmatprep.subr.bf16.mxu0 0
    %3545 = vmatpush1.bf16.msra.mxu0 0
    %3546 = vmatprep.subr.bf16.mxu0 0
    %3547 = vmatpush1.bf16.msra.mxu0 0
    %3548 = vmatprep.subr.bf16.mxu0 0
    %3549 = vmatpush1.bf16.msra.mxu0 0
    %3550 = vmatprep.subr.bf16.mxu0 0
    %3551 = vmatpush1.bf16.msra.mxu0 0
    %3552 = vmatprep.subr.bf16.mxu0 0
    %3553 = vmatpush1.bf16.msra.mxu0 0
    %3554 = vmatprep.subr.bf16.mxu0 0
    %3555 = vmatpush1.bf16.msra.mxu0 0
    %3556 = vmatprep.subr.bf16.mxu0 0
    %3557 = vmatpush1.bf16.msra.mxu0 0
    %3558 = vmatprep.subr.bf16.mxu0 0
    %3559 = vmatpush1.bf16.msra.mxu0 0
    %3560 = vmatprep.mubr.bf16.mxu0 0
    %3561 = vmatmul.mubr.bf16.gmra.mrb[0].mxu0 %v3502
    %v3562 = vpop.f32.mrb[0].mxu0
    %v3563 = vadd.f32 0.0, %v3562
    %v3564 = vpop.f32.mrb[0].mxu0
    %v3565 = vpop.f32.mrb[0].mxu0
    %v3566 = vadd.f32 0.0, %v3565
    %v3567 = vpop.f32.mrb[0].mxu0
    %3568 = vmatprep.mubr.bf16.mxu0 0
    %3569 = vmatmul.mubr.bf16.gmra.mrb[0].mxu0 %v3505
    %v3570 = vpop.f32.mrb[0].mxu0
    %v3571 = vadd.f32 0.0, %v3570
    %v3572 = vpop.f32.mrb[0].mxu0
    %v3573 = vpop.f32.mrb[0].mxu0
    %v3574 = vadd.f32 0.0, %v3573
    %v3575 = vpop.f32.mrb[0].mxu0
    %3576 = vmatprep.mubr.bf16.mxu0 0
    %3577 = vmatmul.mubr.bf16.gmra.mrb[0].mxu0 %v3508
    %v3578 = vpop.f32.mrb[0].mxu0
    %v3579 = vadd.f32 0.0, %v3578
    %v3580 = vpop.f32.mrb[0].mxu0
    %v3581 = vpop.f32.mrb[0].mxu0
    %v3582 = vadd.f32 0.0, %v3581
    %v3583 = vpop.f32.mrb[0].mxu0
    %3584 = vmatprep.mubr.bf16.mxu0 0
    %3585 = vmatmul.mubr.bf16.gmra.mrb[0].mxu0 %v3511
    %v3586 = vpop.f32.mrb[0].mxu0
    %v3587 = vadd.f32 0.0, %v3586
    %v3588 = vpop.f32.mrb[0].mxu0
    %v3589 = vpop.f32.mrb[0].mxu0
    %v3590 = vadd.f32 0.0, %v3589
    %v3591 = vpop.f32.mrb[0].mxu0
    %3592 = vmatprep.mubr.bf16.mxu0 0
    %3593 = vmatmul.mubr.bf16.gmra.mrb[0].mxu0 %v3514
    %v3594 = vpop.f32.mrb[0].mxu0
    %v3595 = vadd.f32 0.0, %v3594
    %v3596 = vpop.f32.mrb[0].mxu0
    %v3597 = vpop.f32.mrb[0].mxu0
    %v3598 = vadd.f32 0.0, %v3597
    %v3599 = vpop.f32.mrb[0].mxu0
    %3600 = vmatprep.mubr.bf16.mxu0 0
    %3601 = vmatmul.mubr.bf16.gmra.mrb[0].mxu0 %v3517
    %v3602 = vpop.f32.mrb[0].mxu0
    %v3603 = vadd.f32 0.0, %v3602
    %v3604 = vpop.f32.mrb[0].mxu0
    %v3605 = vpop.f32.mrb[0].mxu0
    %v3606 = vadd.f32 0.0, %v3605
    %v3607 = vpop.f32.mrb[0].mxu0
    %3608 = vmatprep.mubr.bf16.mxu0 0
    %3609 = vmatmul.mubr.bf16.gmra.mrb[0].mxu0 %v3520
    %v3610 = vpop.f32.mrb[0].mxu0
    %v3611 = vadd.f32 0.0, %v3610
    %v3612 = vpop.f32.mrb[0].mxu0
    %v3613 = vpop.f32.mrb[0].mxu0
    %v3614 = vadd.f32 0.0, %v3613
    %v3615 = vpop.f32.mrb[0].mxu0
    %3616 = vmatprep.mubr.bf16.mxu0 0
    %3617 = vmatmul.mubr.bf16.gmra.mrb[0].mxu0 %v3523
    %v3618 = vpop.f32.mrb[0].mxu0
    %v3619 = vadd.f32 0.0, %v3618
    %v3620 = vpop.f32.mrb[0].mxu0
    %v3621 = vpop.f32.mrb[0].mxu0
    %v3622 = vadd.f32 0.0, %v3621
    %v3623 = vpop.f32.mrb[0].mxu0
    %3624 = vmatprep.mubr.bf16.mxu0 0
    %3625 = vmatmul.mubr.bf16.gmra.mrb[0].mxu0 %v3526
    %v3626 = vpop.f32.mrb[0].mxu0
    %v3627 = vadd.f32 0.0, %v3626
    %v3628 = vpop.f32.mrb[0].mxu0
    %v3629 = vpop.f32.mrb[0].mxu0
    %v3630 = vadd.f32 0.0, %v3629
    %v3631 = vpop.f32.mrb[0].mxu0
    %3632 = vdwg.mxu0
    %v3633 = vadd.f32 %v3374, %v3563
    %v3634 = vadd.f32 %v3377, %v3566
    %v3635 = vadd.f32 %v3382, %v3571
    %v3636 = vadd.f32 %v3385, %v3574
    %v3637 = vadd.f32 %v3390, %v3579
    %v3638 = vadd.f32 %v3393, %v3582
    %v3639 = vadd.f32 %v3398, %v3587
    %v3640 = vadd.f32 %v3401, %v3590
    %v3641 = vadd.f32 %v3406, %v3595
    %v3642 = vadd.f32 %v3409, %v3598
    %v3643 = vadd.f32 %v3414, %v3603
    %v3644 = vadd.f32 %v3417, %v3606
    %v3645 = vadd.f32 %v3422, %v3611
    %v3646 = vadd.f32 %v3425, %v3614
    %v3647 = vadd.f32 %v3430, %v3619
    %v3648 = vadd.f32 %v3433, %v3622
    %v3649 = vadd.f32 %v3438, %v3627
    %v3650 = vadd.f32 %v3441, %v3630
    %v3651 = vadd.f32 %v3633, %v1662
    %v3652 = vadd.f32 %v3634, %v1662
    %v3653 = vadd.f32 %v3635, %v1662
    %v3654 = vadd.f32 %v3636, %v1662
    %v3655 = vadd.f32 %v3637, %v1662
    %v3656 = vadd.f32 %v3638, %v1662
    %v3657 = vadd.f32 %v3639, %v1662
    %v3658 = vadd.f32 %v3640, %v1662
    %v3659 = vadd.f32 %v3641, %v1662
    %v3660 = vadd.f32 %v3642, %v1662
    %v3661 = vadd.f32 %v3643, %v1662
    %v3662 = vadd.f32 %v3644, %v1662
    %v3663 = vadd.f32 %v3645, %v1662
    %v3664 = vadd.f32 %v3646, %v1662
    %v3665 = vadd.f32 %v3647, %v1662
    %v3666 = vadd.f32 %v3648, %v1662
    %v3667 = vadd.f32 %v3649, %v1662
    %v3668 = vadd.f32 %v3650, %v1662
    %v3669 = vmax.f32 %v3651, 0.0
    %v3670 = vmax.f32 %v3652, 0.0
    %v3671 = vmax.f32 %v3653, 0.0
    %v3672 = vmax.f32 %v3654, 0.0
    %v3673 = vmax.f32 %v3655, 0.0
    %v3674 = vmax.f32 %v3656, 0.0
    %v3675 = vmax.f32 %v3657, 0.0
    %v3676 = vmax.f32 %v3658, 0.0
    %v3677 = vmax.f32 %v3659, 0.0
    %v3678 = vmax.f32 %v3660, 0.0
    %v3679 = vmax.f32 %v3661, 0.0
    %v3680 = vmax.f32 %v3662, 0.0
    %v3681 = vmax.f32 %v3663, 0.0
    %v3682 = vmax.f32 %v3664, 0.0
    %v3683 = vmax.f32 %v3665, 0.0
    %v3684 = vmax.f32 %v3666, 0.0
    %v3685 = vmax.f32 %v3667, 0.0
    %v3686 = vmax.f32 %v3668, 0.0
    %v3687 = vmax.f32 %v3669, %v3672
    %v3688 = vmax.f32 %v3670, %v3673
    %v3689 = vmax.f32 %v3671, %v3674
    %3690 = vst.msk [vmem:[#allocation3 + $0xd8] sm:$0xff] %vm1703, %v3687
    %3691 = vst.msk [vmem:[#allocation3 + $0xe0] sm:$0xff] %vm1703, %v3688
    %3692 = vst.msk [vmem:[#allocation3 + $0xe8] sm:$0xff] %vm1703, %v3689
    %v3693 = vmax.f32 %v3675, %v3678
    %v3694 = vmax.f32 %v3676, %v3679
    %v3695 = vmax.f32 %v3677, %v3680
    %3696 = vst.msk [vmem:[#allocation3 + $0xf0] sm:$0xff] %vm1703, %v3693
    %3697 = vst.msk [vmem:[#allocation3 + $0xf8] sm:$0xff] %vm1703, %v3694
    %3698 = vst.msk [vmem:[#allocation3 + $0x100] sm:$0xff] %vm1703, %v3695
    %v3699 = vmax.f32 %v3681, %v3684
    %v3700 = vmax.f32 %v3682, %v3685
    %v3701 = vmax.f32 %v3683, %v3686
    %3702 = vst.msk [vmem:[#allocation3 + $0x108] sm:$0xff] %vm1703, %v3699
    %3703 = vst.msk [vmem:[#allocation3 + $0x110] sm:$0xff] %vm1703, %v3700
    %3704 = vst.msk [vmem:[#allocation3 + $0x118] sm:$0xff] %vm1703, %v3701
    %v3705 = vld [vmem:[#allocation3] ss:$2 sm:$0xff]
    %s3706 = scalar_lea.vmem [#allocation3], 16
    %v3707 = vld [vmem:[%s3706] ss:$2 sm:$0xff]
    %s3708 = scalar_lea.vmem [#allocation3], 32
    %v3709 = vld [vmem:[%s3708] ss:$2 sm:$0xff]
    %s3710 = scalar_lea.vmem [#allocation3], 48
    %v3711 = vld [vmem:[%s3710] ss:$2 sm:$0xff]
    %s3712 = scalar_lea.vmem [#allocation3], 64
    %v3713 = vld [vmem:[%s3712] ss:$2 sm:$0xff]
    %s3714 = scalar_lea.vmem [#allocation3], 80
    %v3715 = vld [vmem:[%s3714] ss:$2 sm:$0xff]
    %s3716 = scalar_lea.vmem [#allocation3], 96
    %v3717 = vld [vmem:[%s3716] ss:$2 sm:$0xff]
    %s3718 = scalar_lea.vmem [#allocation3], 112
    %v3719 = vld [vmem:[%s3718] ss:$2 sm:$0xff]
    %s3720 = scalar_lea.vmem [#allocation3], 128
    %v3721 = vld [vmem:[%s3720] ss:$2 sm:$0xff]
    %s3722 = scalar_lea.vmem [#allocation3], 144
    %v3723 = vld [vmem:[%s3722] ss:$2 sm:$0xff]
    %s3724 = scalar_lea.vmem [#allocation3], 160
    %v3725 = vld [vmem:[%s3724] ss:$2 sm:$0xff]
    %s3726 = scalar_lea.vmem [#allocation3], 176
    %v3727 = vld [vmem:[%s3726] ss:$2 sm:$0xff]
    %s3728 = scalar_lea.vmem [#allocation3], 192
    %v3729 = vld [vmem:[%s3728] ss:$2 sm:$0xff]
    %s3730 = scalar_lea.vmem [#allocation3], 208
    %v3731 = vld [vmem:[%s3730] ss:$2 sm:$0xff]
    %s3732 = scalar_lea.vmem [#allocation3], 224
    %v3733 = vld [vmem:[%s3732] ss:$2 sm:$0xff]
    %s3734 = scalar_lea.vmem [#allocation3], 240
    %v3735 = vld [vmem:[%s3734] ss:$2 sm:$0xff]
    %s3736 = scalar_lea.vmem [#allocation3], 256
    %v3737 = vld [vmem:[%s3736] ss:$2 sm:$0xff]
    %s3738 = scalar_lea.vmem [#allocation3], 272
    %v3739 = vld [vmem:[%s3738] ss:$2 sm:$0xff]
    %s3740 = scalar_lea.vmem [#allocation3], 1
    %v3741 = vld [vmem:[%s3740] ss:$2 sm:$0xff]
    %s3742 = scalar_lea.vmem [#allocation3], 17
    %v3743 = vld [vmem:[%s3742] ss:$2 sm:$0xff]
    %s3744 = scalar_lea.vmem [#allocation3], 33
    %v3745 = vld [vmem:[%s3744] ss:$2 sm:$0xff]
    %s3746 = scalar_lea.vmem [#allocation3], 49
    %v3747 = vld [vmem:[%s3746] ss:$2 sm:$0xff]
    %s3748 = scalar_lea.vmem [#allocation3], 65
    %v3749 = vld [vmem:[%s3748] ss:$2 sm:$0xff]
    %s3750 = scalar_lea.vmem [#allocation3], 81
    %v3751 = vld [vmem:[%s3750] ss:$2 sm:$0xff]
    %s3752 = scalar_lea.vmem [#allocation3], 97
    %v3753 = vld [vmem:[%s3752] ss:$2 sm:$0xff]
    %s3754 = scalar_lea.vmem [#allocation3], 113
    %v3755 = vld [vmem:[%s3754] ss:$2 sm:$0xff]
    %s3756 = scalar_lea.vmem [#allocation3], 129
    %v3757 = vld [vmem:[%s3756] ss:$2 sm:$0xff]
    %s3758 = scalar_lea.vmem [#allocation3], 145
    %v3759 = vld [vmem:[%s3758] ss:$2 sm:$0xff]
    %s3760 = scalar_lea.vmem [#allocation3], 161
    %v3761 = vld [vmem:[%s3760] ss:$2 sm:$0xff]
    %s3762 = scalar_lea.vmem [#allocation3], 177
    %v3763 = vld [vmem:[%s3762] ss:$2 sm:$0xff]
    %s3764 = scalar_lea.vmem [#allocation3], 193
    %v3765 = vld [vmem:[%s3764] ss:$2 sm:$0xff]
    %s3766 = scalar_lea.vmem [#allocation3], 209
    %v3767 = vld [vmem:[%s3766] ss:$2 sm:$0xff]
    %s3768 = scalar_lea.vmem [#allocation3], 225
    %v3769 = vld [vmem:[%s3768] ss:$2 sm:$0xff]
    %s3770 = scalar_lea.vmem [#allocation3], 241
    %v3771 = vld [vmem:[%s3770] ss:$2 sm:$0xff]
    %s3772 = scalar_lea.vmem [#allocation3], 257
    %v3773 = vld [vmem:[%s3772] ss:$2 sm:$0xff]
    %s3774 = scalar_lea.vmem [#allocation3], 273
    %v3775 = vld [vmem:[%s3774] ss:$2 sm:$0xff]
    %v3776 = vmax.f32 %v3705, %v3741
    %v3777 = vmax.f32 %v3707, %v3743
    %v3778 = vmax.f32 %v3709, %v3745
    %v3779 = vmax.f32 %v3711, %v3747
    %v3780 = vmax.f32 %v3713, %v3749
    %v3781 = vmax.f32 %v3715, %v3751
    %v3782 = vmax.f32 %v3717, %v3753
    %v3783 = vmax.f32 %v3719, %v3755
    %v3784 = vmax.f32 %v3721, %v3757
    %v3785 = vmax.f32 %v3723, %v3759
    %v3786 = vmax.f32 %v3725, %v3761
    %v3787 = vmax.f32 %v3727, %v3763
    %v3788 = vmax.f32 %v3729, %v3765
    %v3789 = vmax.f32 %v3731, %v3767
    %v3790 = vmax.f32 %v3733, %v3769
    %v3791 = vmax.f32 %v3735, %v3771
    %v3792 = vmax.f32 %v3737, %v3773
    %v3793 = vmax.f32 %v3739, %v3775
    %v3794 = vpack.c.bf16 %v3777, %v3776
    %v3795 = vpack.c.bf16 %v3779, %v3778
    %v3796 = vpack.c.bf16 %v3781, %v3780
    %v3797 = vpack.c.bf16 %v3783, %v3782
    %v3798 = vpack.c.bf16 %v3785, %v3784
    %v3799 = vpack.c.bf16 %v3787, %v3786
    %v3800 = vpack.c.bf16 %v3789, %v3788
    %v3801 = vpack.c.bf16 %v3791, %v3790
    %v3802 = vpack.c.bf16 %v3793, %v3792
    %v3812 = vunpack.c.l.b16 %v3794
    %v3813 = vunpack.c.h.b16 %v3794
    %v3814 = vunpack.c.l.b16 %v3795
    %v3815 = vunpack.c.h.b16 %v3795
    %v3816 = vunpack.c.l.b16 %v3796
    %v3817 = vunpack.c.h.b16 %v3796
    %v3818 = vunpack.c.l.b16 %v3797
    %v3819 = vunpack.c.h.b16 %v3797
    %v3820 = vunpack.c.l.b16 %v3798
    %v3821 = vunpack.c.h.b16 %v3798
    %v3822 = vunpack.c.l.b16 %v3799
    %v3823 = vunpack.c.h.b16 %v3799
    %v3824 = vunpack.c.l.b16 %v3800
    %v3825 = vunpack.c.h.b16 %v3800
    %v3826 = vunpack.c.l.b16 %v3801
    %v3827 = vunpack.c.h.b16 %v3801
    %v3828 = vunpack.c.l.b16 %v3802
    %v3829 = vunpack.c.h.b16 %v3802
    %v3830 = vpack.c.b16 %v3812, %v3812
    %v3831 = vpack.c.b16 %v3813, %v3813
    %v3832 = vpack.c.b16 %v3814, %v3814
    %v3833 = vpack.c.b16 %v3815, %v3815
    %v3834 = vpack.c.b16 %v3816, %v3816
    %v3835 = vpack.c.b16 %v3817, %v3817
    %v3836 = vpack.c.b16 %v3818, %v3818
    %v3837 = vpack.c.b16 %v3819, %v3819
    %v3838 = vpack.c.b16 %v3820, %v3820
    %v3839 = vpack.c.b16 %v3821, %v3821
    %v3840 = vpack.c.b16 %v3822, %v3822
    %v3841 = vpack.c.b16 %v3823, %v3823
    %v3842 = vpack.c.b16 %v3824, %v3824
    %v3843 = vpack.c.b16 %v3825, %v3825
    %v3844 = vpack.c.b16 %v3826, %v3826
    %v3845 = vpack.c.b16 %v3827, %v3827
    %v3846 = vpack.c.b16 %v3828, %v3828
    %v3847 = vpack.c.b16 %v3829, %v3829
    %vm3866 = vcmask 519168
    %3867 = vst.msk [vmem:[%s5] sm:$0xf] %vm3866, %v3830
    %3868 = vst.msk [vmem:[%s5 + $0x4] sm:$0xf] %vm3866, %v3831
    %3869 = vst.msk [vmem:[%s5 + $0x8] sm:$0xf] %vm3866, %v3832
    %3870 = vst.msk [vmem:[%s5 + $0xc] sm:$0xf] %vm3866, %v3833
    %3871 = vst.msk [vmem:[%s5 + $0x10] sm:$0xf] %vm3866, %v3834
    %3872 = vst.msk [vmem:[%s5 + $0x14] sm:$0xf] %vm3866, %v3835
    %3873 = vst.msk [vmem:[%s5 + $0x18] sm:$0xf] %vm3866, %v3836
    %3874 = vst.msk [vmem:[%s5 + $0x1c] sm:$0xf] %vm3866, %v3837
    %3875 = vst.msk [vmem:[%s5 + $0x20] sm:$0xf] %vm3866, %v3838
    %3876 = vst.msk [vmem:[%s5 + $0x24] sm:$0xf] %vm3866, %v3839
    %3877 = vst.msk [vmem:[%s5 + $0x28] sm:$0xf] %vm3866, %v3840
    %3878 = vst.msk [vmem:[%s5 + $0x2c] sm:$0xf] %vm3866, %v3841
    %3879 = vst.msk [vmem:[%s5 + $0x30] sm:$0xf] %vm3866, %v3842
    %3880 = vst.msk [vmem:[%s5 + $0x34] sm:$0xf] %vm3866, %v3843
    %3881 = vst.msk [vmem:[%s5 + $0x38] sm:$0xf] %vm3866, %v3844
    %3882 = vst.msk [vmem:[%s5 + $0x3c] sm:$0xf] %vm3866, %v3845
    %3883 = vst.msk [vmem:[%s5 + $0x40] sm:$0xf] %vm3866, %v3846
    %3884 = vst.msk [vmem:[%s5 + $0x44] sm:$0xf] %vm3866, %v3847
    %s3885 = scalar_lea.vmem %s0, 312
    %v3886 = vld [vmem:[%s3885] sm:$0xf]
    %v3887 = vld [vmem:[%s3885 + $0x4] sm:$0xf]
    %v3888 = vld [vmem:[%s3885 + $0x8] sm:$0xf]
    %v3889 = vld [vmem:[%s3885 + $0xc] sm:$0xf]
    %v3890 = vld [vmem:[%s3885 + $0x10] sm:$0xf]
    %v3891 = vld [vmem:[%s3885 + $0x14] sm:$0xf]
    %v3892 = vld [vmem:[%s3885 + $0x18] sm:$0xf]
    %v3893 = vld [vmem:[%s3885 + $0x1c] sm:$0xf]
    %v3894 = vld [vmem:[%s3885 + $0x20] sm:$0xf]
    %v3895 = vld [vmem:[%s3885 + $0x24] sm:$0xf]
    %v3896 = vld [vmem:[%s3885 + $0x28] sm:$0xf]
    %v3897 = vld [vmem:[%s3885 + $0x2c] sm:$0xf]
    %v3898 = vld [vmem:[%s3885 + $0x30] sm:$0xf]
    %v3899 = vld [vmem:[%s3885 + $0x34] sm:$0xf]
    %v3900 = vld [vmem:[%s3885 + $0x38] sm:$0xf]
    %v3901 = vld [vmem:[%s3885 + $0x3c] sm:$0xf]
    %v3902 = vld [vmem:[%s3885 + $0x40] sm:$0xf]
    %v3903 = vld [vmem:[%s3885 + $0x44] sm:$0xf]
    %v3904 = vld [vmem:[%s3885 + $0x48] sm:$0xf]
    %v3905 = vld [vmem:[%s3885 + $0x4c] sm:$0xf]
    %v3906 = vld [vmem:[%s3885 + $0x50] sm:$0xf]
    %v3907 = vld [vmem:[%s3885 + $0x54] sm:$0xf]
    %v3908 = vld [vmem:[%s3885 + $0x58] sm:$0xf]
    %v3909 = vld [vmem:[%s3885 + $0x5c] sm:$0xf]
    %v3910 = vld [vmem:[%s3885 + $0x60] sm:$0xf]
    %v3911 = vld [vmem:[%s3885 + $0x64] sm:$0xf]
    %v3938 = vunpack.c.l.b16 %v3886
    %v3939 = vunpack.c.l.b16 %v3887
    %v3940 = vunpack.c.l.b16 %v3888
    %v3941 = vunpack.c.l.b16 %v3889
    %v3942 = vunpack.c.l.b16 %v3890
    %v3943 = vunpack.c.l.b16 %v3891
    %v3944 = vunpack.c.l.b16 %v3892
    %v3945 = vunpack.c.l.b16 %v3893
    %v3946 = vunpack.c.l.b16 %v3894
    %v3947 = vunpack.c.l.b16 %v3895
    %v3948 = vunpack.c.l.b16 %v3896
    %v3949 = vunpack.c.l.b16 %v3897
    %v3950 = vunpack.c.l.b16 %v3898
    %v3951 = vunpack.c.l.b16 %v3899
    %v3952 = vunpack.c.l.b16 %v3900
    %v3953 = vunpack.c.l.b16 %v3901
    %v3954 = vunpack.c.l.b16 %v3902
    %v3955 = vunpack.c.l.b16 %v3903
    %v3956 = vunpack.c.l.b16 %v3904
    %v3957 = vunpack.c.l.b16 %v3905
    %v3958 = vunpack.c.l.b16 %v3906
    %v3959 = vunpack.c.l.b16 %v3907
    %v3960 = vunpack.c.l.b16 %v3908
    %v3961 = vunpack.c.l.b16 %v3909
    %v3962 = vunpack.c.l.b16 %v3910
    %v3963 = vunpack.c.l.b16 %v3911
    %v3964 = vpack.c.b16 %v3939, %v3938
    %v3965 = vpack.c.b16 %v3941, %v3940
    %v3966 = vpack.c.b16 %v3943, %v3942
    %v3967 = vpack.c.b16 %v3945, %v3944
    %v3968 = vpack.c.b16 %v3947, %v3946
    %v3969 = vpack.c.b16 %v3949, %v3948
    %v3970 = vpack.c.b16 %v3951, %v3950
    %v3971 = vpack.c.b16 %v3953, %v3952
    %v3972 = vpack.c.b16 %v3955, %v3954
    %v3973 = vpack.c.b16 %v3957, %v3956
    %v3974 = vpack.c.b16 %v3959, %v3958
    %v3975 = vpack.c.b16 %v3961, %v3960
    %v3976 = vpack.c.b16 %v3963, %v3962
    %v3978 = vsel %vm172, %v3964, 0
    %v3981 = vsel %vm172, %v3965, 0
    %v3984 = vsel %vm172, %v3966, 0
    %v3987 = vsel %vm172, %v3967, 0
    %v3990 = vsel %vm172, %v3968, 0
    %v3993 = vsel %vm172, %v3969, 0
    %v3996 = vsel %vm172, %v3970, 0
    %v3999 = vsel %vm172, %v3971, 0
    %v4002 = vsel %vm172, %v3972, 0
    %v4005 = vsel %vm172, %v3973, 0
    %v4008 = vsel %vm172, %v3974, 0
    %v4011 = vsel %vm172, %v3975, 0
    %v4014 = vsel %vm172, %v3976, 0
    %4016 = vmatprep.subr.bf16.mxu0 0
    %4017 = vmatpush1.bf16.msra.mxu0 %v169
    %4018 = vmatprep.subr.bf16.mxu0 0
    %4019 = vmatpush1.bf16.msra.mxu0 %v217
    %4020 = vmatprep.subr.bf16.mxu0 0
    %4021 = vmatpush1.bf16.msra.mxu0 0
    %4022 = vmatprep.subr.bf16.mxu0 0
    %4023 = vmatpush1.bf16.msra.mxu0 0
    %4024 = vmatprep.subr.bf16.mxu0 0
    %4025 = vmatpush1.bf16.msra.mxu0 0
    %4026 = vmatprep.subr.bf16.mxu0 0
    %4027 = vmatpush1.bf16.msra.mxu0 0
    %4028 = vmatprep.subr.bf16.mxu0 0
    %4029 = vmatpush1.bf16.msra.mxu0 0
    %4030 = vmatprep.subr.bf16.mxu0 0
    %4031 = vmatpush1.bf16.msra.mxu0 0
    %4032 = vmatprep.subr.bf16.mxu0 0
    %4033 = vmatpush1.bf16.msra.mxu0 0
    %4034 = vmatprep.subr.bf16.mxu0 0
    %4035 = vmatpush1.bf16.msra.mxu0 0
    %4036 = vmatprep.subr.bf16.mxu0 0
    %4037 = vmatpush1.bf16.msra.mxu0 0
    %4038 = vmatprep.subr.bf16.mxu0 0
    %4039 = vmatpush1.bf16.msra.mxu0 0
    %4040 = vmatprep.subr.bf16.mxu0 0
    %4041 = vmatpush1.bf16.msra.mxu0 0
    %4042 = vmatprep.subr.bf16.mxu0 0
    %4043 = vmatpush1.bf16.msra.mxu0 0
    %4044 = vmatprep.subr.bf16.mxu0 0
    %4045 = vmatpush1.bf16.msra.mxu0 0
    %4046 = vmatprep.subr.bf16.mxu0 0
    %4047 = vmatpush1.bf16.msra.mxu0 0
    %4048 = vmatprep.mubr.bf16.mxu0 0
    %4049 = vmatmul.mubr.bf16.gmra.mrb[0].mxu0 %v3978
    %v4050 = vpop.f32.mrb[0].mxu0
    %v4051 = vadd.f32 %v94, %v4050
    %v4052 = vpop.f32.mrb[0].mxu0
    %v4053 = vpop.f32.mrb[0].mxu0
    %v4054 = vadd.f32 %v94, %v4053
    %v4055 = vpop.f32.mrb[0].mxu0
    %4056 = vmatprep.mubr.bf16.mxu0 0
    %4057 = vmatmul.mubr.bf16.gmra.mrb[0].mxu0 %v3981
    %v4058 = vpop.f32.mrb[0].mxu0
    %v4059 = vadd.f32 %v94, %v4058
    %v4060 = vpop.f32.mrb[0].mxu0
    %v4061 = vpop.f32.mrb[0].mxu0
    %v4062 = vadd.f32 %v94, %v4061
    %v4063 = vpop.f32.mrb[0].mxu0
    %4064 = vmatprep.mubr.bf16.mxu0 0
    %4065 = vmatmul.mubr.bf16.gmra.mrb[0].mxu0 %v3984
    %v4066 = vpop.f32.mrb[0].mxu0
    %v4067 = vadd.f32 %v94, %v4066
    %v4068 = vpop.f32.mrb[0].mxu0
    %v4069 = vpop.f32.mrb[0].mxu0
    %v4070 = vadd.f32 %v94, %v4069
    %v4071 = vpop.f32.mrb[0].mxu0
    %4072 = vmatprep.mubr.bf16.mxu0 0
    %4073 = vmatmul.mubr.bf16.gmra.mrb[0].mxu0 %v3987
    %v4074 = vpop.f32.mrb[0].mxu0
    %v4075 = vadd.f32 %v94, %v4074
    %v4076 = vpop.f32.mrb[0].mxu0
    %v4077 = vpop.f32.mrb[0].mxu0
    %v4078 = vadd.f32 %v94, %v4077
    %v4079 = vpop.f32.mrb[0].mxu0
    %4080 = vmatprep.mubr.bf16.mxu0 0
    %4081 = vmatmul.mubr.bf16.gmra.mrb[0].mxu0 %v3990
    %v4082 = vpop.f32.mrb[0].mxu0
    %v4083 = vadd.f32 %v94, %v4082
    %v4084 = vpop.f32.mrb[0].mxu0
    %v4085 = vpop.f32.mrb[0].mxu0
    %v4086 = vadd.f32 %v94, %v4085
    %v4087 = vpop.f32.mrb[0].mxu0
    %4088 = vmatprep.mubr.bf16.mxu0 0
    %4089 = vmatmul.mubr.bf16.gmra.mrb[0].mxu0 %v3993
    %v4090 = vpop.f32.mrb[0].mxu0
    %v4091 = vadd.f32 %v94, %v4090
    %v4092 = vpop.f32.mrb[0].mxu0
    %v4093 = vpop.f32.mrb[0].mxu0
    %v4094 = vadd.f32 %v94, %v4093
    %v4095 = vpop.f32.mrb[0].mxu0
    %4096 = vmatprep.mubr.bf16.mxu0 0
    %4097 = vmatmul.mubr.bf16.gmra.mrb[0].mxu0 %v3996
    %v4098 = vpop.f32.mrb[0].mxu0
    %v4099 = vadd.f32 %v94, %v4098
    %v4100 = vpop.f32.mrb[0].mxu0
    %v4101 = vpop.f32.mrb[0].mxu0
    %v4102 = vadd.f32 %v94, %v4101
    %v4103 = vpop.f32.mrb[0].mxu0
    %4104 = vmatprep.mubr.bf16.mxu0 0
    %4105 = vmatmul.mubr.bf16.gmra.mrb[0].mxu0 %v3999
    %v4106 = vpop.f32.mrb[0].mxu0
    %v4107 = vadd.f32 %v94, %v4106
    %v4108 = vpop.f32.mrb[0].mxu0
    %v4109 = vpop.f32.mrb[0].mxu0
    %v4110 = vadd.f32 %v94, %v4109
    %v4111 = vpop.f32.mrb[0].mxu0
    %4112 = vmatprep.mubr.bf16.mxu0 0
    %4113 = vmatmul.mubr.bf16.gmra.mrb[0].mxu0 %v4002
    %v4114 = vpop.f32.mrb[0].mxu0
    %v4115 = vadd.f32 %v94, %v4114
    %v4116 = vpop.f32.mrb[0].mxu0
    %v4117 = vpop.f32.mrb[0].mxu0
    %v4118 = vadd.f32 %v94, %v4117
    %v4119 = vpop.f32.mrb[0].mxu0
    %4120 = vmatprep.mubr.bf16.mxu0 0
    %4121 = vmatmul.mubr.bf16.gmra.mrb[0].mxu0 %v4005
    %v4122 = vpop.f32.mrb[0].mxu0
    %v4123 = vadd.f32 %v94, %v4122
    %v4124 = vpop.f32.mrb[0].mxu0
    %v4125 = vpop.f32.mrb[0].mxu0
    %v4126 = vadd.f32 %v94, %v4125
    %v4127 = vpop.f32.mrb[0].mxu0
    %4128 = vmatprep.mubr.bf16.mxu0 0
    %4129 = vmatmul.mubr.bf16.gmra.mrb[0].mxu0 %v4008
    %v4130 = vpop.f32.mrb[0].mxu0
    %v4131 = vadd.f32 %v94, %v4130
    %v4132 = vpop.f32.mrb[0].mxu0
    %v4133 = vpop.f32.mrb[0].mxu0
    %v4134 = vadd.f32 %v94, %v4133
    %v4135 = vpop.f32.mrb[0].mxu0
    %4136 = vmatprep.mubr.bf16.mxu0 0
    %4137 = vmatmul.mubr.bf16.gmra.mrb[0].mxu0 %v4011
    %v4138 = vpop.f32.mrb[0].mxu0
    %v4139 = vadd.f32 %v94, %v4138
    %v4140 = vpop.f32.mrb[0].mxu0
    %v4141 = vpop.f32.mrb[0].mxu0
    %v4142 = vadd.f32 %v94, %v4141
    %v4143 = vpop.f32.mrb[0].mxu0
    %4144 = vmatprep.mubr.bf16.mxu0 0
    %4145 = vmatmul.mubr.bf16.gmra.mrb[0].mxu0 %v4014
    %v4146 = vpop.f32.mrb[0].mxu0
    %v4147 = vadd.f32 %v94, %v4146
    %v4148 = vpop.f32.mrb[0].mxu0
    %v4149 = vpop.f32.mrb[0].mxu0
    %v4150 = vadd.f32 %v94, %v4149
    %v4151 = vpop.f32.mrb[0].mxu0
    %4152 = vdwg.mxu0
    %v4153 = vmax.f32 %v4051, 0.0
    %v4154 = vmax.f32 %v4054, 0.0
    %v4155 = vmax.f32 %v4059, 0.0
    %v4156 = vmax.f32 %v4062, 0.0
    %v4157 = vmax.f32 %v4067, 0.0
    %v4158 = vmax.f32 %v4070, 0.0
    %v4159 = vmax.f32 %v4075, 0.0
    %v4160 = vmax.f32 %v4078, 0.0
    %v4161 = vmax.f32 %v4083, 0.0
    %v4162 = vmax.f32 %v4086, 0.0
    %v4163 = vmax.f32 %v4091, 0.0
    %v4164 = vmax.f32 %v4094, 0.0
    %v4165 = vmax.f32 %v4099, 0.0
    %v4166 = vmax.f32 %v4102, 0.0
    %v4167 = vmax.f32 %v4107, 0.0
    %v4168 = vmax.f32 %v4110, 0.0
    %v4169 = vmax.f32 %v4115, 0.0
    %v4170 = vmax.f32 %v4118, 0.0
    %v4171 = vmax.f32 %v4123, 0.0
    %v4172 = vmax.f32 %v4126, 0.0
    %v4173 = vmax.f32 %v4131, 0.0
    %v4174 = vmax.f32 %v4134, 0.0
    %v4175 = vmax.f32 %v4139, 0.0
    %v4176 = vmax.f32 %v4142, 0.0
    %v4177 = vmax.f32 %v4147, 0.0
    %v4178 = vmax.f32 %v4150, 0.0
    %v4179 = vpack.c.bf16 %v4154, %v4153
    %v4180 = vpack.c.bf16 %v4156, %v4155
    %v4181 = vpack.c.bf16 %v4158, %v4157
    %v4182 = vpack.c.bf16 %v4160, %v4159
    %v4183 = vpack.c.bf16 %v4162, %v4161
    %v4184 = vpack.c.bf16 %v4164, %v4163
    %v4185 = vpack.c.bf16 %v4166, %v4165
    %v4186 = vpack.c.bf16 %v4168, %v4167
    %v4187 = vpack.c.bf16 %v4170, %v4169
    %v4188 = vpack.c.bf16 %v4172, %v4171
    %v4189 = vpack.c.bf16 %v4174, %v4173
    %v4190 = vpack.c.bf16 %v4176, %v4175
    %v4191 = vpack.c.bf16 %v4178, %v4177
    %4192 = vst.msk [vmem:[#allocation2] sm:$0xff] %vm395, %v4179
    %4193 = vst.msk [vmem:[#allocation2 + $0x8] sm:$0xff] %vm395, %v4180
    %4194 = vst.msk [vmem:[#allocation2 + $0x10] sm:$0xff] %vm395, %v4181
    %4195 = vst.msk [vmem:[#allocation2 + $0x18] sm:$0xff] %vm395, %v4182
    %4196 = vst.msk [vmem:[#allocation2 + $0x20] sm:$0xff] %vm395, %v4183
    %4197 = vst.msk [vmem:[#allocation2 + $0x28] sm:$0xff] %vm395, %v4184
    %4198 = vst.msk [vmem:[#allocation2 + $0x30] sm:$0xff] %vm395, %v4185
    %4199 = vst.msk [vmem:[#allocation2 + $0x38] sm:$0xff] %vm395, %v4186
    %4200 = vst.msk [vmem:[#allocation2 + $0x40] sm:$0xff] %vm395, %v4187
    %4201 = vst.msk [vmem:[#allocation2 + $0x48] sm:$0xff] %vm395, %v4188
    %4202 = vst.msk [vmem:[#allocation2 + $0x50] sm:$0xff] %vm395, %v4189
    %4203 = vst.msk [vmem:[#allocation2 + $0x58] sm:$0xff] %vm395, %v4190
    %4204 = vst.msk [vmem:[#allocation2 + $0x60] sm:$0xff] %vm395, %v4191
    %v4205 = vld [vmem:[%s3885 + $0x68] sm:$0xf]
    %v4206 = vld [vmem:[%s3885 + $0x6c] sm:$0xf]
    %v4207 = vld [vmem:[%s3885 + $0x70] sm:$0xf]
    %v4208 = vld [vmem:[%s3885 + $0x74] sm:$0xf]
    %v4209 = vld [vmem:[%s3885 + $0x78] sm:$0xf]
    %v4210 = vld [vmem:[%s3885 + $0x7c] sm:$0xf]
    %v4211 = vld [vmem:[%s3885 + $0x80] sm:$0xf]
    %v4212 = vld [vmem:[%s3885 + $0x84] sm:$0xf]
    %v4213 = vld [vmem:[%s3885 + $0x88] sm:$0xf]
    %v4214 = vld [vmem:[%s3885 + $0x8c] sm:$0xf]
    %v4215 = vld [vmem:[%s3885 + $0x90] sm:$0xf]
    %v4216 = vld [vmem:[%s3885 + $0x94] sm:$0xf]
    %v4217 = vld [vmem:[%s3885 + $0x98] sm:$0xf]
    %v4218 = vld [vmem:[%s3885 + $0x9c] sm:$0xf]
    %v4219 = vld [vmem:[%s3885 + $0xa0] sm:$0xf]
    %v4220 = vld [vmem:[%s3885 + $0xa4] sm:$0xf]
    %v4221 = vld [vmem:[%s3885 + $0xa8] sm:$0xf]
    %v4222 = vld [vmem:[%s3885 + $0xac] sm:$0xf]
    %v4223 = vld [vmem:[%s3885 + $0xb0] sm:$0xf]
    %v4224 = vld [vmem:[%s3885 + $0xb4] sm:$0xf]
    %v4225 = vld [vmem:[%s3885 + $0xb8] sm:$0xf]
    %v4226 = vld [vmem:[%s3885 + $0xbc] sm:$0xf]
    %v4227 = vld [vmem:[%s3885 + $0xc0] sm:$0xf]
    %v4228 = vld [vmem:[%s3885 + $0xc4] sm:$0xf]
    %v4229 = vld [vmem:[%s3885 + $0xc8] sm:$0xf]
    %v4230 = vld [vmem:[%s3885 + $0xcc] sm:$0xf]
    %v4257 = vunpack.c.l.b16 %v4205
    %v4258 = vunpack.c.l.b16 %v4206
    %v4259 = vunpack.c.l.b16 %v4207
    %v4260 = vunpack.c.l.b16 %v4208
    %v4261 = vunpack.c.l.b16 %v4209
    %v4262 = vunpack.c.l.b16 %v4210
    %v4263 = vunpack.c.l.b16 %v4211
    %v4264 = vunpack.c.l.b16 %v4212
    %v4265 = vunpack.c.l.b16 %v4213
    %v4266 = vunpack.c.l.b16 %v4214
    %v4267 = vunpack.c.l.b16 %v4215
    %v4268 = vunpack.c.l.b16 %v4216
    %v4269 = vunpack.c.l.b16 %v4217
    %v4270 = vunpack.c.l.b16 %v4218
    %v4271 = vunpack.c.l.b16 %v4219
    %v4272 = vunpack.c.l.b16 %v4220
    %v4273 = vunpack.c.l.b16 %v4221
    %v4274 = vunpack.c.l.b16 %v4222
    %v4275 = vunpack.c.l.b16 %v4223
    %v4276 = vunpack.c.l.b16 %v4224
    %v4277 = vunpack.c.l.b16 %v4225
    %v4278 = vunpack.c.l.b16 %v4226
    %v4279 = vunpack.c.l.b16 %v4227
    %v4280 = vunpack.c.l.b16 %v4228
    %v4281 = vunpack.c.l.b16 %v4229
    %v4282 = vunpack.c.l.b16 %v4230
    %v4283 = vpack.c.b16 %v4258, %v4257
    %v4284 = vpack.c.b16 %v4260, %v4259
    %v4285 = vpack.c.b16 %v4262, %v4261
    %v4286 = vpack.c.b16 %v4264, %v4263
    %v4287 = vpack.c.b16 %v4266, %v4265
    %v4288 = vpack.c.b16 %v4268, %v4267
    %v4289 = vpack.c.b16 %v4270, %v4269
    %v4290 = vpack.c.b16 %v4272, %v4271
    %v4291 = vpack.c.b16 %v4274, %v4273
    %v4292 = vpack.c.b16 %v4276, %v4275
    %v4293 = vpack.c.b16 %v4278, %v4277
    %v4294 = vpack.c.b16 %v4280, %v4279
    %v4295 = vpack.c.b16 %v4282, %v4281
    %v4297 = vsel %vm172, %v4283, 0
    %v4300 = vsel %vm172, %v4284, 0
    %v4303 = vsel %vm172, %v4285, 0
    %v4306 = vsel %vm172, %v4286, 0
    %v4309 = vsel %vm172, %v4287, 0
    %v4312 = vsel %vm172, %v4288, 0
    %v4315 = vsel %vm172, %v4289, 0
    %v4318 = vsel %vm172, %v4290, 0
    %v4321 = vsel %vm172, %v4291, 0
    %v4324 = vsel %vm172, %v4292, 0
    %v4327 = vsel %vm172, %v4293, 0
    %v4330 = vsel %vm172, %v4294, 0
    %v4333 = vsel %vm172, %v4295, 0
    %4335 = vmatprep.subr.bf16.mxu0 0
    %4336 = vmatpush1.bf16.msra.mxu0 %v169
    %4337 = vmatprep.subr.bf16.mxu0 0
    %4338 = vmatpush1.bf16.msra.mxu0 %v217
    %4339 = vmatprep.subr.bf16.mxu0 0
    %4340 = vmatpush1.bf16.msra.mxu0 0
    %4341 = vmatprep.subr.bf16.mxu0 0
    %4342 = vmatpush1.bf16.msra.mxu0 0
    %4343 = vmatprep.subr.bf16.mxu0 0
    %4344 = vmatpush1.bf16.msra.mxu0 0
    %4345 = vmatprep.subr.bf16.mxu0 0
    %4346 = vmatpush1.bf16.msra.mxu0 0
    %4347 = vmatprep.subr.bf16.mxu0 0
    %4348 = vmatpush1.bf16.msra.mxu0 0
    %4349 = vmatprep.subr.bf16.mxu0 0
    %4350 = vmatpush1.bf16.msra.mxu0 0
    %4351 = vmatprep.subr.bf16.mxu0 0
    %4352 = vmatpush1.bf16.msra.mxu0 0
    %4353 = vmatprep.subr.bf16.mxu0 0
    %4354 = vmatpush1.bf16.msra.mxu0 0
    %4355 = vmatprep.subr.bf16.mxu0 0
    %4356 = vmatpush1.bf16.msra.mxu0 0
    %4357 = vmatprep.subr.bf16.mxu0 0
    %4358 = vmatpush1.bf16.msra.mxu0 0
    %4359 = vmatprep.subr.bf16.mxu0 0
    %4360 = vmatpush1.bf16.msra.mxu0 0
    %4361 = vmatprep.subr.bf16.mxu0 0
    %4362 = vmatpush1.bf16.msra.mxu0 0
    %4363 = vmatprep.subr.bf16.mxu0 0
    %4364 = vmatpush1.bf16.msra.mxu0 0
    %4365 = vmatprep.subr.bf16.mxu0 0
    %4366 = vmatpush1.bf16.msra.mxu0 0
    %4367 = vmatprep.mubr.bf16.mxu0 0
    %4368 = vmatmul.mubr.bf16.gmra.mrb[0].mxu0 %v4297
    %v4369 = vpop.f32.mrb[0].mxu0
    %v4370 = vadd.f32 %v94, %v4369
    %v4371 = vpop.f32.mrb[0].mxu0
    %v4372 = vpop.f32.mrb[0].mxu0
    %v4373 = vadd.f32 %v94, %v4372
    %v4374 = vpop.f32.mrb[0].mxu0
    %4375 = vmatprep.mubr.bf16.mxu0 0
    %4376 = vmatmul.mubr.bf16.gmra.mrb[0].mxu0 %v4300
    %v4377 = vpop.f32.mrb[0].mxu0
    %v4378 = vadd.f32 %v94, %v4377
    %v4379 = vpop.f32.mrb[0].mxu0
    %v4380 = vpop.f32.mrb[0].mxu0
    %v4381 = vadd.f32 %v94, %v4380
    %v4382 = vpop.f32.mrb[0].mxu0
    %4383 = vmatprep.mubr.bf16.mxu0 0
    %4384 = vmatmul.mubr.bf16.gmra.mrb[0].mxu0 %v4303
    %v4385 = vpop.f32.mrb[0].mxu0
    %v4386 = vadd.f32 %v94, %v4385
    %v4387 = vpop.f32.mrb[0].mxu0
    %v4388 = vpop.f32.mrb[0].mxu0
    %v4389 = vadd.f32 %v94, %v4388
    %v4390 = vpop.f32.mrb[0].mxu0
    %4391 = vmatprep.mubr.bf16.mxu0 0
    %4392 = vmatmul.mubr.bf16.gmra.mrb[0].mxu0 %v4306
    %v4393 = vpop.f32.mrb[0].mxu0
    %v4394 = vadd.f32 %v94, %v4393
    %v4395 = vpop.f32.mrb[0].mxu0
    %v4396 = vpop.f32.mrb[0].mxu0
    %v4397 = vadd.f32 %v94, %v4396
    %v4398 = vpop.f32.mrb[0].mxu0
    %4399 = vmatprep.mubr.bf16.mxu0 0
    %4400 = vmatmul.mubr.bf16.gmra.mrb[0].mxu0 %v4309
    %v4401 = vpop.f32.mrb[0].mxu0
    %v4402 = vadd.f32 %v94, %v4401
    %v4403 = vpop.f32.mrb[0].mxu0
    %v4404 = vpop.f32.mrb[0].mxu0
    %v4405 = vadd.f32 %v94, %v4404
    %v4406 = vpop.f32.mrb[0].mxu0
    %4407 = vmatprep.mubr.bf16.mxu0 0
    %4408 = vmatmul.mubr.bf16.gmra.mrb[0].mxu0 %v4312
    %v4409 = vpop.f32.mrb[0].mxu0
    %v4410 = vadd.f32 %v94, %v4409
    %v4411 = vpop.f32.mrb[0].mxu0
    %v4412 = vpop.f32.mrb[0].mxu0
    %v4413 = vadd.f32 %v94, %v4412
    %v4414 = vpop.f32.mrb[0].mxu0
    %4415 = vmatprep.mubr.bf16.mxu0 0
    %4416 = vmatmul.mubr.bf16.gmra.mrb[0].mxu0 %v4315
    %v4417 = vpop.f32.mrb[0].mxu0
    %v4418 = vadd.f32 %v94, %v4417
    %v4419 = vpop.f32.mrb[0].mxu0
    %v4420 = vpop.f32.mrb[0].mxu0
    %v4421 = vadd.f32 %v94, %v4420
    %v4422 = vpop.f32.mrb[0].mxu0
    %4423 = vmatprep.mubr.bf16.mxu0 0
    %4424 = vmatmul.mubr.bf16.gmra.mrb[0].mxu0 %v4318
    %v4425 = vpop.f32.mrb[0].mxu0
    %v4426 = vadd.f32 %v94, %v4425
    %v4427 = vpop.f32.mrb[0].mxu0
    %v4428 = vpop.f32.mrb[0].mxu0
    %v4429 = vadd.f32 %v94, %v4428
    %v4430 = vpop.f32.mrb[0].mxu0
    %4431 = vmatprep.mubr.bf16.mxu0 0
    %4432 = vmatmul.mubr.bf16.gmra.mrb[0].mxu0 %v4321
    %v4433 = vpop.f32.mrb[0].mxu0
    %v4434 = vadd.f32 %v94, %v4433
    %v4435 = vpop.f32.mrb[0].mxu0
    %v4436 = vpop.f32.mrb[0].mxu0
    %v4437 = vadd.f32 %v94, %v4436
    %v4438 = vpop.f32.mrb[0].mxu0
    %4439 = vmatprep.mubr.bf16.mxu0 0
    %4440 = vmatmul.mubr.bf16.gmra.mrb[0].mxu0 %v4324
    %v4441 = vpop.f32.mrb[0].mxu0
    %v4442 = vadd.f32 %v94, %v4441
    %v4443 = vpop.f32.mrb[0].mxu0
    %v4444 = vpop.f32.mrb[0].mxu0
    %v4445 = vadd.f32 %v94, %v4444
    %v4446 = vpop.f32.mrb[0].mxu0
    %4447 = vmatprep.mubr.bf16.mxu0 0
    %4448 = vmatmul.mubr.bf16.gmra.mrb[0].mxu0 %v4327
    %v4449 = vpop.f32.mrb[0].mxu0
    %v4450 = vadd.f32 %v94, %v4449
    %v4451 = vpop.f32.mrb[0].mxu0
    %v4452 = vpop.f32.mrb[0].mxu0
    %v4453 = vadd.f32 %v94, %v4452
    %v4454 = vpop.f32.mrb[0].mxu0
    %4455 = vmatprep.mubr.bf16.mxu0 0
    %4456 = vmatmul.mubr.bf16.gmra.mrb[0].mxu0 %v4330
    %v4457 = vpop.f32.mrb[0].mxu0
    %v4458 = vadd.f32 %v94, %v4457
    %v4459 = vpop.f32.mrb[0].mxu0
    %v4460 = vpop.f32.mrb[0].mxu0
    %v4461 = vadd.f32 %v94, %v4460
    %v4462 = vpop.f32.mrb[0].mxu0
    %4463 = vmatprep.mubr.bf16.mxu0 0
    %4464 = vmatmul.mubr.bf16.gmra.mrb[0].mxu0 %v4333
    %v4465 = vpop.f32.mrb[0].mxu0
    %v4466 = vadd.f32 %v94, %v4465
    %v4467 = vpop.f32.mrb[0].mxu0
    %v4468 = vpop.f32.mrb[0].mxu0
    %v4469 = vadd.f32 %v94, %v4468
    %v4470 = vpop.f32.mrb[0].mxu0
    %4471 = vdwg.mxu0
    %v4472 = vmax.f32 %v4370, 0.0
    %v4473 = vmax.f32 %v4373, 0.0
    %v4474 = vmax.f32 %v4378, 0.0
    %v4475 = vmax.f32 %v4381, 0.0
    %v4476 = vmax.f32 %v4386, 0.0
    %v4477 = vmax.f32 %v4389, 0.0
    %v4478 = vmax.f32 %v4394, 0.0
    %v4479 = vmax.f32 %v4397, 0.0
    %v4480 = vmax.f32 %v4402, 0.0
    %v4481 = vmax.f32 %v4405, 0.0
    %v4482 = vmax.f32 %v4410, 0.0
    %v4483 = vmax.f32 %v4413, 0.0
    %v4484 = vmax.f32 %v4418, 0.0
    %v4485 = vmax.f32 %v4421, 0.0
    %v4486 = vmax.f32 %v4426, 0.0
    %v4487 = vmax.f32 %v4429, 0.0
    %v4488 = vmax.f32 %v4434, 0.0
    %v4489 = vmax.f32 %v4437, 0.0
    %v4490 = vmax.f32 %v4442, 0.0
    %v4491 = vmax.f32 %v4445, 0.0
    %v4492 = vmax.f32 %v4450, 0.0
    %v4493 = vmax.f32 %v4453, 0.0
    %v4494 = vmax.f32 %v4458, 0.0
    %v4495 = vmax.f32 %v4461, 0.0
    %v4496 = vmax.f32 %v4466, 0.0
    %v4497 = vmax.f32 %v4469, 0.0
    %v4498 = vpack.c.bf16 %v4473, %v4472
    %v4499 = vpack.c.bf16 %v4475, %v4474
    %v4500 = vpack.c.bf16 %v4477, %v4476
    %v4501 = vpack.c.bf16 %v4479, %v4478
    %v4502 = vpack.c.bf16 %v4481, %v4480
    %v4503 = vpack.c.bf16 %v4483, %v4482
    %v4504 = vpack.c.bf16 %v4485, %v4484
    %v4505 = vpack.c.bf16 %v4487, %v4486
    %v4506 = vpack.c.bf16 %v4489, %v4488
    %v4507 = vpack.c.bf16 %v4491, %v4490
    %v4508 = vpack.c.bf16 %v4493, %v4492
    %v4509 = vpack.c.bf16 %v4495, %v4494
    %v4510 = vpack.c.bf16 %v4497, %v4496
    %4511 = vst.msk [vmem:[#allocation2 + $0x68] sm:$0xff] %vm395, %v4498
    %4512 = vst.msk [vmem:[#allocation2 + $0x70] sm:$0xff] %vm395, %v4499
    %4513 = vst.msk [vmem:[#allocation2 + $0x78] sm:$0xff] %vm395, %v4500
    %4514 = vst.msk [vmem:[#allocation2 + $0x80] sm:$0xff] %vm395, %v4501
    %4515 = vst.msk [vmem:[#allocation2 + $0x88] sm:$0xff] %vm395, %v4502
    %4516 = vst.msk [vmem:[#allocation2 + $0x90] sm:$0xff] %vm395, %v4503
    %4517 = vst.msk [vmem:[#allocation2 + $0x98] sm:$0xff] %vm395, %v4504
    %4518 = vst.msk [vmem:[#allocation2 + $0xa0] sm:$0xff] %vm395, %v4505
    %4519 = vst.msk [vmem:[#allocation2 + $0xa8] sm:$0xff] %vm395, %v4506
    %4520 = vst.msk [vmem:[#allocation2 + $0xb0] sm:$0xff] %vm395, %v4507
    %4521 = vst.msk [vmem:[#allocation2 + $0xb8] sm:$0xff] %vm395, %v4508
    %4522 = vst.msk [vmem:[#allocation2 + $0xc0] sm:$0xff] %vm395, %v4509
    %4523 = vst.msk [vmem:[#allocation2 + $0xc8] sm:$0xff] %vm395, %v4510
    %v4524 = vld [vmem:[%s3885 + $0xd0] sm:$0xf]
    %v4525 = vld [vmem:[%s3885 + $0xd4] sm:$0xf]
    %v4526 = vld [vmem:[%s3885 + $0xd8] sm:$0xf]
    %v4527 = vld [vmem:[%s3885 + $0xdc] sm:$0xf]
    %v4528 = vld [vmem:[%s3885 + $0xe0] sm:$0xf]
    %v4529 = vld [vmem:[%s3885 + $0xe4] sm:$0xf]
    %v4530 = vld [vmem:[%s3885 + $0xe8] sm:$0xf]
    %v4531 = vld [vmem:[%s3885 + $0xec] sm:$0xf]
    %v4532 = vld [vmem:[%s3885 + $0xf0] sm:$0xf]
    %v4533 = vld [vmem:[%s3885 + $0xf4] sm:$0xf]
    %v4534 = vld [vmem:[%s3885 + $0xf8] sm:$0xf]
    %v4535 = vld [vmem:[%s3885 + $0xfc] sm:$0xf]
    %v4536 = vld [vmem:[%s3885 + $0x100] sm:$0xf]
    %v4537 = vld [vmem:[%s3885 + $0x104] sm:$0xf]
    %v4538 = vld [vmem:[%s3885 + $0x108] sm:$0xf]
    %v4539 = vld [vmem:[%s3885 + $0x10c] sm:$0xf]
    %v4540 = vld [vmem:[%s3885 + $0x110] sm:$0xf]
    %v4541 = vld [vmem:[%s3885 + $0x114] sm:$0xf]
    %v4542 = vld [vmem:[%s3885 + $0x118] sm:$0xf]
    %v4543 = vld [vmem:[%s3885 + $0x11c] sm:$0xf]
    %v4544 = vld [vmem:[%s3885 + $0x120] sm:$0xf]
    %v4545 = vld [vmem:[%s3885 + $0x124] sm:$0xf]
    %v4546 = vld [vmem:[%s3885 + $0x128] sm:$0xf]
    %v4547 = vld [vmem:[%s3885 + $0x12c] sm:$0xf]
    %v4548 = vld [vmem:[%s3885 + $0x130] sm:$0xf]
    %v4549 = vld [vmem:[%s3885 + $0x134] sm:$0xf]
    %v4576 = vunpack.c.l.b16 %v4524
    %v4577 = vunpack.c.l.b16 %v4525
    %v4578 = vunpack.c.l.b16 %v4526
    %v4579 = vunpack.c.l.b16 %v4527
    %v4580 = vunpack.c.l.b16 %v4528
    %v4581 = vunpack.c.l.b16 %v4529
    %v4582 = vunpack.c.l.b16 %v4530
    %v4583 = vunpack.c.l.b16 %v4531
    %v4584 = vunpack.c.l.b16 %v4532
    %v4585 = vunpack.c.l.b16 %v4533
    %v4586 = vunpack.c.l.b16 %v4534
    %v4587 = vunpack.c.l.b16 %v4535
    %v4588 = vunpack.c.l.b16 %v4536
    %v4589 = vunpack.c.l.b16 %v4537
    %v4590 = vunpack.c.l.b16 %v4538
    %v4591 = vunpack.c.l.b16 %v4539
    %v4592 = vunpack.c.l.b16 %v4540
    %v4593 = vunpack.c.l.b16 %v4541
    %v4594 = vunpack.c.l.b16 %v4542
    %v4595 = vunpack.c.l.b16 %v4543
    %v4596 = vunpack.c.l.b16 %v4544
    %v4597 = vunpack.c.l.b16 %v4545
    %v4598 = vunpack.c.l.b16 %v4546
    %v4599 = vunpack.c.l.b16 %v4547
    %v4600 = vunpack.c.l.b16 %v4548
    %v4601 = vunpack.c.l.b16 %v4549
    %v4602 = vpack.c.b16 %v4577, %v4576
    %v4603 = vpack.c.b16 %v4579, %v4578
    %v4604 = vpack.c.b16 %v4581, %v4580
    %v4605 = vpack.c.b16 %v4583, %v4582
    %v4606 = vpack.c.b16 %v4585, %v4584
    %v4607 = vpack.c.b16 %v4587, %v4586
    %v4608 = vpack.c.b16 %v4589, %v4588
    %v4609 = vpack.c.b16 %v4591, %v4590
    %v4610 = vpack.c.b16 %v4593, %v4592
    %v4611 = vpack.c.b16 %v4595, %v4594
    %v4612 = vpack.c.b16 %v4597, %v4596
    %v4613 = vpack.c.b16 %v4599, %v4598
    %v4614 = vpack.c.b16 %v4601, %v4600
    %v4616 = vsel %vm172, %v4602, 0
    %v4619 = vsel %vm172, %v4603, 0
    %v4622 = vsel %vm172, %v4604, 0
    %v4625 = vsel %vm172, %v4605, 0
    %v4628 = vsel %vm172, %v4606, 0
    %v4631 = vsel %vm172, %v4607, 0
    %v4634 = vsel %vm172, %v4608, 0
    %v4637 = vsel %vm172, %v4609, 0
    %v4640 = vsel %vm172, %v4610, 0
    %v4643 = vsel %vm172, %v4611, 0
    %v4646 = vsel %vm172, %v4612, 0
    %v4649 = vsel %vm172, %v4613, 0
    %v4652 = vsel %vm172, %v4614, 0
    %4654 = vmatprep.subr.bf16.mxu0 0
    %4655 = vmatpush1.bf16.msra.mxu0 %v169
    %4656 = vmatprep.subr.bf16.mxu0 0
    %4657 = vmatpush1.bf16.msra.mxu0 %v217
    %4658 = vmatprep.subr.bf16.mxu0 0
    %4659 = vmatpush1.bf16.msra.mxu0 0
    %4660 = vmatprep.subr.bf16.mxu0 0
    %4661 = vmatpush1.bf16.msra.mxu0 0
    %4662 = vmatprep.subr.bf16.mxu0 0
    %4663 = vmatpush1.bf16.msra.mxu0 0
    %4664 = vmatprep.subr.bf16.mxu0 0
    %4665 = vmatpush1.bf16.msra.mxu0 0
    %4666 = vmatprep.subr.bf16.mxu0 0
    %4667 = vmatpush1.bf16.msra.mxu0 0
    %4668 = vmatprep.subr.bf16.mxu0 0
    %4669 = vmatpush1.bf16.msra.mxu0 0
    %4670 = vmatprep.subr.bf16.mxu0 0
    %4671 = vmatpush1.bf16.msra.mxu0 0
    %4672 = vmatprep.subr.bf16.mxu0 0
    %4673 = vmatpush1.bf16.msra.mxu0 0
    %4674 = vmatprep.subr.bf16.mxu0 0
    %4675 = vmatpush1.bf16.msra.mxu0 0
    %4676 = vmatprep.subr.bf16.mxu0 0
    %4677 = vmatpush1.bf16.msra.mxu0 0
    %4678 = vmatprep.subr.bf16.mxu0 0
    %4679 = vmatpush1.bf16.msra.mxu0 0
    %4680 = vmatprep.subr.bf16.mxu0 0
    %4681 = vmatpush1.bf16.msra.mxu0 0
    %4682 = vmatprep.subr.bf16.mxu0 0
    %4683 = vmatpush1.bf16.msra.mxu0 0
    %4684 = vmatprep.subr.bf16.mxu0 0
    %4685 = vmatpush1.bf16.msra.mxu0 0
    %4686 = vmatprep.mubr.bf16.mxu0 0
    %4687 = vmatmul.mubr.bf16.gmra.mrb[0].mxu0 %v4616
    %v4688 = vpop.f32.mrb[0].mxu0
    %v4689 = vadd.f32 %v94, %v4688
    %v4690 = vpop.f32.mrb[0].mxu0
    %v4691 = vpop.f32.mrb[0].mxu0
    %v4692 = vadd.f32 %v94, %v4691
    %v4693 = vpop.f32.mrb[0].mxu0
    %4694 = vmatprep.mubr.bf16.mxu0 0
    %4695 = vmatmul.mubr.bf16.gmra.mrb[0].mxu0 %v4619
    %v4696 = vpop.f32.mrb[0].mxu0
    %v4697 = vadd.f32 %v94, %v4696
    %v4698 = vpop.f32.mrb[0].mxu0
    %v4699 = vpop.f32.mrb[0].mxu0
    %v4700 = vadd.f32 %v94, %v4699
    %v4701 = vpop.f32.mrb[0].mxu0
    %4702 = vmatprep.mubr.bf16.mxu0 0
    %4703 = vmatmul.mubr.bf16.gmra.mrb[0].mxu0 %v4622
    %v4704 = vpop.f32.mrb[0].mxu0
    %v4705 = vadd.f32 %v94, %v4704
    %v4706 = vpop.f32.mrb[0].mxu0
    %v4707 = vpop.f32.mrb[0].mxu0
    %v4708 = vadd.f32 %v94, %v4707
    %v4709 = vpop.f32.mrb[0].mxu0
    %4710 = vmatprep.mubr.bf16.mxu0 0
    %4711 = vmatmul.mubr.bf16.gmra.mrb[0].mxu0 %v4625
    %v4712 = vpop.f32.mrb[0].mxu0
    %v4713 = vadd.f32 %v94, %v4712
    %v4714 = vpop.f32.mrb[0].mxu0
    %v4715 = vpop.f32.mrb[0].mxu0
    %v4716 = vadd.f32 %v94, %v4715
    %v4717 = vpop.f32.mrb[0].mxu0
    %4718 = vmatprep.mubr.bf16.mxu0 0
    %4719 = vmatmul.mubr.bf16.gmra.mrb[0].mxu0 %v4628
    %v4720 = vpop.f32.mrb[0].mxu0
    %v4721 = vadd.f32 %v94, %v4720
    %v4722 = vpop.f32.mrb[0].mxu0
    %v4723 = vpop.f32.mrb[0].mxu0
    %v4724 = vadd.f32 %v94, %v4723
    %v4725 = vpop.f32.mrb[0].mxu0
    %4726 = vmatprep.mubr.bf16.mxu0 0
    %4727 = vmatmul.mubr.bf16.gmra.mrb[0].mxu0 %v4631
    %v4728 = vpop.f32.mrb[0].mxu0
    %v4729 = vadd.f32 %v94, %v4728
    %v4730 = vpop.f32.mrb[0].mxu0
    %v4731 = vpop.f32.mrb[0].mxu0
    %v4732 = vadd.f32 %v94, %v4731
    %v4733 = vpop.f32.mrb[0].mxu0
    %4734 = vmatprep.mubr.bf16.mxu0 0
    %4735 = vmatmul.mubr.bf16.gmra.mrb[0].mxu0 %v4634
    %v4736 = vpop.f32.mrb[0].mxu0
    %v4737 = vadd.f32 %v94, %v4736
    %v4738 = vpop.f32.mrb[0].mxu0
    %v4739 = vpop.f32.mrb[0].mxu0
    %v4740 = vadd.f32 %v94, %v4739
    %v4741 = vpop.f32.mrb[0].mxu0
    %4742 = vmatprep.mubr.bf16.mxu0 0
    %4743 = vmatmul.mubr.bf16.gmra.mrb[0].mxu0 %v4637
    %v4744 = vpop.f32.mrb[0].mxu0
    %v4745 = vadd.f32 %v94, %v4744
    %v4746 = vpop.f32.mrb[0].mxu0
    %v4747 = vpop.f32.mrb[0].mxu0
    %v4748 = vadd.f32 %v94, %v4747
    %v4749 = vpop.f32.mrb[0].mxu0
    %4750 = vmatprep.mubr.bf16.mxu0 0
    %4751 = vmatmul.mubr.bf16.gmra.mrb[0].mxu0 %v4640
    %v4752 = vpop.f32.mrb[0].mxu0
    %v4753 = vadd.f32 %v94, %v4752
    %v4754 = vpop.f32.mrb[0].mxu0
    %v4755 = vpop.f32.mrb[0].mxu0
    %v4756 = vadd.f32 %v94, %v4755
    %v4757 = vpop.f32.mrb[0].mxu0
    %4758 = vmatprep.mubr.bf16.mxu0 0
    %4759 = vmatmul.mubr.bf16.gmra.mrb[0].mxu0 %v4643
    %v4760 = vpop.f32.mrb[0].mxu0
    %v4761 = vadd.f32 %v94, %v4760
    %v4762 = vpop.f32.mrb[0].mxu0
    %v4763 = vpop.f32.mrb[0].mxu0
    %v4764 = vadd.f32 %v94, %v4763
    %v4765 = vpop.f32.mrb[0].mxu0
    %4766 = vmatprep.mubr.bf16.mxu0 0
    %4767 = vmatmul.mubr.bf16.gmra.mrb[0].mxu0 %v4646
    %v4768 = vpop.f32.mrb[0].mxu0
    %v4769 = vadd.f32 %v94, %v4768
    %v4770 = vpop.f32.mrb[0].mxu0
    %v4771 = vpop.f32.mrb[0].mxu0
    %v4772 = vadd.f32 %v94, %v4771
    %v4773 = vpop.f32.mrb[0].mxu0
    %4774 = vmatprep.mubr.bf16.mxu0 0
    %4775 = vmatmul.mubr.bf16.gmra.mrb[0].mxu0 %v4649
    %v4776 = vpop.f32.mrb[0].mxu0
    %v4777 = vadd.f32 %v94, %v4776
    %v4778 = vpop.f32.mrb[0].mxu0
    %v4779 = vpop.f32.mrb[0].mxu0
    %v4780 = vadd.f32 %v94, %v4779
    %v4781 = vpop.f32.mrb[0].mxu0
    %4782 = vmatprep.mubr.bf16.mxu0 0
    %4783 = vmatmul.mubr.bf16.gmra.mrb[0].mxu0 %v4652
    %v4784 = vpop.f32.mrb[0].mxu0
    %v4785 = vadd.f32 %v94, %v4784
    %v4786 = vpop.f32.mrb[0].mxu0
    %v4787 = vpop.f32.mrb[0].mxu0
    %v4788 = vadd.f32 %v94, %v4787
    %v4789 = vpop.f32.mrb[0].mxu0
    %4790 = vdwg.mxu0
    %v4791 = vmax.f32 %v4689, 0.0
    %v4792 = vmax.f32 %v4692, 0.0
    %v4793 = vmax.f32 %v4697, 0.0
    %v4794 = vmax.f32 %v4700, 0.0
    %v4795 = vmax.f32 %v4705, 0.0
    %v4796 = vmax.f32 %v4708, 0.0
    %v4797 = vmax.f32 %v4713, 0.0
    %v4798 = vmax.f32 %v4716, 0.0
    %v4799 = vmax.f32 %v4721, 0.0
    %v4800 = vmax.f32 %v4724, 0.0
    %v4801 = vmax.f32 %v4729, 0.0
    %v4802 = vmax.f32 %v4732, 0.0
    %v4803 = vmax.f32 %v4737, 0.0
    %v4804 = vmax.f32 %v4740, 0.0
    %v4805 = vmax.f32 %v4745, 0.0
    %v4806 = vmax.f32 %v4748, 0.0
    %v4807 = vmax.f32 %v4753, 0.0
    %v4808 = vmax.f32 %v4756, 0.0
    %v4809 = vmax.f32 %v4761, 0.0
    %v4810 = vmax.f32 %v4764, 0.0
    %v4811 = vmax.f32 %v4769, 0.0
    %v4812 = vmax.f32 %v4772, 0.0
    %v4813 = vmax.f32 %v4777, 0.0
    %v4814 = vmax.f32 %v4780, 0.0
    %v4815 = vmax.f32 %v4785, 0.0
    %v4816 = vmax.f32 %v4788, 0.0
    %v4817 = vpack.c.bf16 %v4792, %v4791
    %v4818 = vpack.c.bf16 %v4794, %v4793
    %v4819 = vpack.c.bf16 %v4796, %v4795
    %v4820 = vpack.c.bf16 %v4798, %v4797
    %v4821 = vpack.c.bf16 %v4800, %v4799
    %v4822 = vpack.c.bf16 %v4802, %v4801
    %v4823 = vpack.c.bf16 %v4804, %v4803
    %v4824 = vpack.c.bf16 %v4806, %v4805
    %v4825 = vpack.c.bf16 %v4808, %v4807
    %v4826 = vpack.c.bf16 %v4810, %v4809
    %v4827 = vpack.c.bf16 %v4812, %v4811
    %v4828 = vpack.c.bf16 %v4814, %v4813
    %v4829 = vpack.c.bf16 %v4816, %v4815
    %4830 = vst.msk [vmem:[#allocation2 + $0xd0] sm:$0xff] %vm395, %v4817
    %4831 = vst.msk [vmem:[#allocation2 + $0xd8] sm:$0xff] %vm395, %v4818
    %4832 = vst.msk [vmem:[#allocation2 + $0xe0] sm:$0xff] %vm395, %v4819
    %4833 = vst.msk [vmem:[#allocation2 + $0xe8] sm:$0xff] %vm395, %v4820
    %4834 = vst.msk [vmem:[#allocation2 + $0xf0] sm:$0xff] %vm395, %v4821
    %4835 = vst.msk [vmem:[#allocation2 + $0xf8] sm:$0xff] %vm395, %v4822
    %4836 = vst.msk [vmem:[#allocation2 + $0x100] sm:$0xff] %vm395, %v4823
    %4837 = vst.msk [vmem:[#allocation2 + $0x108] sm:$0xff] %vm395, %v4824
    %4838 = vst.msk [vmem:[#allocation2 + $0x110] sm:$0xff] %vm395, %v4825
    %4839 = vst.msk [vmem:[#allocation2 + $0x118] sm:$0xff] %vm395, %v4826
    %4840 = vst.msk [vmem:[#allocation2 + $0x120] sm:$0xff] %vm395, %v4827
    %4841 = vst.msk [vmem:[#allocation2 + $0x128] sm:$0xff] %vm395, %v4828
    %4842 = vst.msk [vmem:[#allocation2 + $0x130] sm:$0xff] %vm395, %v4829
    %v4843 = vld [vmem:[#allocation2] sm:$0xff]
    %v4844 = vld [vmem:[#allocation2 + $0x8] sm:$0xff]
    %v4845 = vld [vmem:[#allocation2 + $0x10] sm:$0xff]
    %v4846 = vld [vmem:[#allocation2 + $0x18] sm:$0xff]
    %v4847 = vld [vmem:[#allocation2 + $0x20] sm:$0xff]
    %v4848 = vld [vmem:[#allocation2 + $0x28] sm:$0xff]
    %v4849 = vld [vmem:[#allocation2 + $0x30] sm:$0xff]
    %v4850 = vld [vmem:[#allocation2 + $0x38] sm:$0xff]
    %v4851 = vld [vmem:[#allocation2 + $0x40] sm:$0xff]
    %v4852 = vld [vmem:[%s3] sm:$0xf]
    %v4853 = vld [vmem:[%s3 + $0x4] sm:$0xf]
    %v4854 = vld [vmem:[%s3 + $0x8] sm:$0xf]
    %v4855 = vld [vmem:[%s3 + $0xc] sm:$0xf]
    %v4856 = vld [vmem:[%s3 + $0x10] sm:$0xf]
    %v4857 = vld [vmem:[%s3 + $0x14] sm:$0xf]
    %v4858 = vld [vmem:[%s3 + $0x18] sm:$0xf]
    %v4859 = vld [vmem:[%s3 + $0x1c] sm:$0xf]
    %v4860 = vld [vmem:[%s3 + $0x20] sm:$0xf]
    %v4861 = vld [vmem:[%s3 + $0x24] sm:$0xf]
    %v4862 = vld [vmem:[%s3 + $0x28] sm:$0xf]
    %v4863 = vld [vmem:[%s3 + $0x2c] sm:$0xf]
    %v4864 = vld [vmem:[#allocation2 + $0x8] sm:$0xf0]
    %v4865 = vld [vmem:[#allocation2 + $0x48] sm:$0xff]
    %v4866 = vld [vmem:[#allocation2 + $0x50] sm:$0xf]
    %v4867 = vld [vmem:[%s1071] sm:$0xf]
    %v4868 = vld [vmem:[%s1071 + $0x4] sm:$0xf]
    %v4869 = vld [vmem:[%s1071 + $0x8] sm:$0xf]
    %v4870 = vld [vmem:[%s1071 + $0xc] sm:$0xf]
    %v4871 = vld [vmem:[%s1071 + $0x10] sm:$0xf]
    %v4872 = vld [vmem:[%s1071 + $0x14] sm:$0xf]
    %v4873 = vld [vmem:[%s1071 + $0x18] sm:$0xf]
    %v4874 = vld [vmem:[%s1071 + $0x1c] sm:$0xf]
    %v4875 = vld [vmem:[%s1071 + $0x20] sm:$0xf]
    %v4876 = vld [vmem:[%s1071 + $0x24] sm:$0xf]
    %v4877 = vld [vmem:[%s1071 + $0x28] sm:$0xf]
    %v4878 = vld [vmem:[%s1071 + $0x2c] sm:$0xf]
    %v4889 = vrot.slane %v4864, 4
    %v4890 = vrot.slane %v4845, 4
    %v4891 = vsel %vm1094, %v4889, %v4890
    %v4892 = vrot.slane %v4846, 4
    %v4893 = vsel %vm1094, %v4890, %v4892
    %v4894 = vrot.slane %v4847, 4
    %v4895 = vsel %vm1094, %v4892, %v4894
    %v4896 = vrot.slane %v4848, 4
    %v4897 = vsel %vm1094, %v4894, %v4896
    %v4898 = vrot.slane %v4849, 4
    %v4899 = vsel %vm1094, %v4896, %v4898
    %v4900 = vrot.slane %v4850, 4
    %v4901 = vsel %vm1094, %v4898, %v4900
    %v4902 = vrot.slane %v4851, 4
    %v4903 = vsel %vm1094, %v4900, %v4902
    %v4904 = vrot.slane %v4865, 4
    %v4905 = vsel %vm1094, %v4902, %v4904
    %v4906 = vrot.slane %v4866, 4
    %v4907 = vsel %vm1094, %v4904, %v4906
    %v4920 = vunpack.c.l.b16 %v4867
    %v4921 = vunpack.c.l.b16 %v4868
    %v4922 = vunpack.c.l.b16 %v4869
    %v4923 = vunpack.c.l.b16 %v4870
    %v4924 = vunpack.c.l.b16 %v4871
    %v4925 = vunpack.c.l.b16 %v4872
    %v4926 = vunpack.c.l.b16 %v4873
    %v4927 = vunpack.c.l.b16 %v4874
    %v4928 = vunpack.c.l.b16 %v4875
    %v4929 = vunpack.c.l.b16 %v4876
    %v4930 = vunpack.c.l.b16 %v4877
    %v4931 = vunpack.c.l.b16 %v4878
    %v4932 = vpack.c.b16 %v4921, %v4920
    %v4933 = vpack.c.b16 %v4923, %v4922
    %v4934 = vpack.c.b16 %v4925, %v4924
    %v4935 = vpack.c.b16 %v4927, %v4926
    %v4936 = vpack.c.b16 %v4929, %v4928
    %v4937 = vpack.c.b16 %v4931, %v4930
    %v4945 = vsel %vm395, %v4891, 0
    %v4948 = vsel %vm395, %v4893, 0
    %v4951 = vsel %vm395, %v4895, 0
    %v4954 = vsel %vm395, %v4897, 0
    %v4957 = vsel %vm395, %v4899, 0
    %v4960 = vsel %vm395, %v4901, 0
    %v4963 = vsel %vm395, %v4903, 0
    %v4966 = vsel %vm395, %v4905, 0
    %v4969 = vsel %vm395, %v4907, 0
    %4971 = vmatprep.subr.bf16.mxu0 0
    %4972 = vmatpush1.bf16.msra.mxu0 %v4932
    %4973 = vmatprep.subr.bf16.mxu0 0
    %4974 = vmatpush1.bf16.msra.mxu0 %v4933
    %4975 = vmatprep.subr.bf16.mxu0 0
    %4976 = vmatpush1.bf16.msra.mxu0 %v4934
    %4977 = vmatprep.subr.bf16.mxu0 0
    %4978 = vmatpush1.bf16.msra.mxu0 %v4935
    %4979 = vmatprep.subr.bf16.mxu0 0
    %4980 = vmatpush1.bf16.msra.mxu0 %v4936
    %4981 = vmatprep.subr.bf16.mxu0 0
    %4982 = vmatpush1.bf16.msra.mxu0 %v4937
    %4983 = vmatprep.subr.bf16.mxu0 0
    %4984 = vmatpush1.bf16.msra.mxu0 0
    %4985 = vmatprep.subr.bf16.mxu0 0
    %4986 = vmatpush1.bf16.msra.mxu0 0
    %4987 = vmatprep.subr.bf16.mxu0 0
    %4988 = vmatpush1.bf16.msra.mxu0 0
    %4989 = vmatprep.subr.bf16.mxu0 0
    %4990 = vmatpush1.bf16.msra.mxu0 0
    %4991 = vmatprep.subr.bf16.mxu0 0
    %4992 = vmatpush1.bf16.msra.mxu0 0
    %4993 = vmatprep.subr.bf16.mxu0 0
    %4994 = vmatpush1.bf16.msra.mxu0 0
    %4995 = vmatprep.subr.bf16.mxu0 0
    %4996 = vmatpush1.bf16.msra.mxu0 0
    %4997 = vmatprep.subr.bf16.mxu0 0
    %4998 = vmatpush1.bf16.msra.mxu0 0
    %4999 = vmatprep.subr.bf16.mxu0 0
    %5000 = vmatpush1.bf16.msra.mxu0 0
    %5001 = vmatprep.subr.bf16.mxu0 0
    %5002 = vmatpush1.bf16.msra.mxu0 0
    %5003 = vmatprep.mubr.bf16.mxu0 0
    %5004 = vmatmul.mubr.bf16.gmra.mrb[0].mxu0 %v4945
    %v5005 = vpop.f32.mrb[0].mxu0
    %v5006 = vadd.f32 0.0, %v5005
    %v5007 = vpop.f32.mrb[0].mxu0
    %v5008 = vpop.f32.mrb[0].mxu0
    %v5009 = vadd.f32 0.0, %v5008
    %v5010 = vpop.f32.mrb[0].mxu0
    %5011 = vmatprep.mubr.bf16.mxu0 0
    %5012 = vmatmul.mubr.bf16.gmra.mrb[0].mxu0 %v4948
    %v5013 = vpop.f32.mrb[0].mxu0
    %v5014 = vadd.f32 0.0, %v5013
    %v5015 = vpop.f32.mrb[0].mxu0
    %v5016 = vpop.f32.mrb[0].mxu0
    %v5017 = vadd.f32 0.0, %v5016
    %v5018 = vpop.f32.mrb[0].mxu0
    %5019 = vmatprep.mubr.bf16.mxu0 0
    %5020 = vmatmul.mubr.bf16.gmra.mrb[0].mxu0 %v4951
    %v5021 = vpop.f32.mrb[0].mxu0
    %v5022 = vadd.f32 0.0, %v5021
    %v5023 = vpop.f32.mrb[0].mxu0
    %v5024 = vpop.f32.mrb[0].mxu0
    %v5025 = vadd.f32 0.0, %v5024
    %v5026 = vpop.f32.mrb[0].mxu0
    %5027 = vmatprep.mubr.bf16.mxu0 0
    %5028 = vmatmul.mubr.bf16.gmra.mrb[0].mxu0 %v4954
    %v5029 = vpop.f32.mrb[0].mxu0
    %v5030 = vadd.f32 0.0, %v5029
    %v5031 = vpop.f32.mrb[0].mxu0
    %v5032 = vpop.f32.mrb[0].mxu0
    %v5033 = vadd.f32 0.0, %v5032
    %v5034 = vpop.f32.mrb[0].mxu0
    %5035 = vmatprep.mubr.bf16.mxu0 0
    %5036 = vmatmul.mubr.bf16.gmra.mrb[0].mxu0 %v4957
    %v5037 = vpop.f32.mrb[0].mxu0
    %v5038 = vadd.f32 0.0, %v5037
    %v5039 = vpop.f32.mrb[0].mxu0
    %v5040 = vpop.f32.mrb[0].mxu0
    %v5041 = vadd.f32 0.0, %v5040
    %v5042 = vpop.f32.mrb[0].mxu0
    %5043 = vmatprep.mubr.bf16.mxu0 0
    %5044 = vmatmul.mubr.bf16.gmra.mrb[0].mxu0 %v4960
    %v5045 = vpop.f32.mrb[0].mxu0
    %v5046 = vadd.f32 0.0, %v5045
    %v5047 = vpop.f32.mrb[0].mxu0
    %v5048 = vpop.f32.mrb[0].mxu0
    %v5049 = vadd.f32 0.0, %v5048
    %v5050 = vpop.f32.mrb[0].mxu0
    %5051 = vmatprep.mubr.bf16.mxu0 0
    %5052 = vmatmul.mubr.bf16.gmra.mrb[0].mxu0 %v4963
    %v5053 = vpop.f32.mrb[0].mxu0
    %v5054 = vadd.f32 0.0, %v5053
    %v5055 = vpop.f32.mrb[0].mxu0
    %v5056 = vpop.f32.mrb[0].mxu0
    %v5057 = vadd.f32 0.0, %v5056
    %v5058 = vpop.f32.mrb[0].mxu0
    %5059 = vmatprep.mubr.bf16.mxu0 0
    %5060 = vmatmul.mubr.bf16.gmra.mrb[0].mxu0 %v4966
    %v5061 = vpop.f32.mrb[0].mxu0
    %v5062 = vadd.f32 0.0, %v5061
    %v5063 = vpop.f32.mrb[0].mxu0
    %v5064 = vpop.f32.mrb[0].mxu0
    %v5065 = vadd.f32 0.0, %v5064
    %v5066 = vpop.f32.mrb[0].mxu0
    %5067 = vmatprep.mubr.bf16.mxu0 0
    %5068 = vmatmul.mubr.bf16.gmra.mrb[0].mxu0 %v4969
    %v5069 = vpop.f32.mrb[0].mxu0
    %v5070 = vadd.f32 0.0, %v5069
    %v5071 = vpop.f32.mrb[0].mxu0
    %v5072 = vpop.f32.mrb[0].mxu0
    %v5073 = vadd.f32 0.0, %v5072
    %v5074 = vpop.f32.mrb[0].mxu0
    %5075 = vdwg.mxu0
    %v5088 = vunpack.c.l.b16 %v4852
    %v5089 = vunpack.c.l.b16 %v4853
    %v5090 = vunpack.c.l.b16 %v4854
    %v5091 = vunpack.c.l.b16 %v4855
    %v5092 = vunpack.c.l.b16 %v4856
    %v5093 = vunpack.c.l.b16 %v4857
    %v5094 = vunpack.c.l.b16 %v4858
    %v5095 = vunpack.c.l.b16 %v4859
    %v5096 = vunpack.c.l.b16 %v4860
    %v5097 = vunpack.c.l.b16 %v4861
    %v5098 = vunpack.c.l.b16 %v4862
    %v5099 = vunpack.c.l.b16 %v4863
    %v5100 = vpack.c.b16 %v5089, %v5088
    %v5101 = vpack.c.b16 %v5091, %v5090
    %v5102 = vpack.c.b16 %v5093, %v5092
    %v5103 = vpack.c.b16 %v5095, %v5094
    %v5104 = vpack.c.b16 %v5097, %v5096
    %v5105 = vpack.c.b16 %v5099, %v5098
    %v5113 = vsel %vm395, %v4843, 0
    %v5116 = vsel %vm395, %v4844, 0
    %v5119 = vsel %vm395, %v4845, 0
    %v5122 = vsel %vm395, %v4846, 0
    %v5125 = vsel %vm395, %v4847, 0
    %v5128 = vsel %vm395, %v4848, 0
    %v5131 = vsel %vm395, %v4849, 0
    %v5134 = vsel %vm395, %v4850, 0
    %v5137 = vsel %vm395, %v4851, 0
    %5139 = vmatprep.subr.bf16.mxu0 0
    %5140 = vmatpush1.bf16.msra.mxu0 %v5100
    %5141 = vmatprep.subr.bf16.mxu0 0
    %5142 = vmatpush1.bf16.msra.mxu0 %v5101
    %5143 = vmatprep.subr.bf16.mxu0 0
    %5144 = vmatpush1.bf16.msra.mxu0 %v5102
    %5145 = vmatprep.subr.bf16.mxu0 0
    %5146 = vmatpush1.bf16.msra.mxu0 %v5103
    %5147 = vmatprep.subr.bf16.mxu0 0
    %5148 = vmatpush1.bf16.msra.mxu0 %v5104
    %5149 = vmatprep.subr.bf16.mxu0 0
    %5150 = vmatpush1.bf16.msra.mxu0 %v5105
    %5151 = vmatprep.subr.bf16.mxu0 0
    %5152 = vmatpush1.bf16.msra.mxu0 0
    %5153 = vmatprep.subr.bf16.mxu0 0
    %5154 = vmatpush1.bf16.msra.mxu0 0
    %5155 = vmatprep.subr.bf16.mxu0 0
    %5156 = vmatpush1.bf16.msra.mxu0 0
    %5157 = vmatprep.subr.bf16.mxu0 0
    %5158 = vmatpush1.bf16.msra.mxu0 0
    %5159 = vmatprep.subr.bf16.mxu0 0
    %5160 = vmatpush1.bf16.msra.mxu0 0
    %5161 = vmatprep.subr.bf16.mxu0 0
    %5162 = vmatpush1.bf16.msra.mxu0 0
    %5163 = vmatprep.subr.bf16.mxu0 0
    %5164 = vmatpush1.bf16.msra.mxu0 0
    %5165 = vmatprep.subr.bf16.mxu0 0
    %5166 = vmatpush1.bf16.msra.mxu0 0
    %5167 = vmatprep.subr.bf16.mxu0 0
    %5168 = vmatpush1.bf16.msra.mxu0 0
    %5169 = vmatprep.subr.bf16.mxu0 0
    %5170 = vmatpush1.bf16.msra.mxu0 0
    %5171 = vmatprep.mubr.bf16.mxu0 0
    %5172 = vmatmul.mubr.bf16.gmra.mrb[0].mxu0 %v5113
    %v5173 = vpop.f32.mrb[0].mxu0
    %v5174 = vadd.f32 %v5006, %v5173
    %v5175 = vpop.f32.mrb[0].mxu0
    %v5176 = vpop.f32.mrb[0].mxu0
    %v5177 = vadd.f32 %v5009, %v5176
    %v5178 = vpop.f32.mrb[0].mxu0
    %5179 = vmatprep.mubr.bf16.mxu0 0
    %5180 = vmatmul.mubr.bf16.gmra.mrb[0].mxu0 %v5116
    %v5181 = vpop.f32.mrb[0].mxu0
    %v5182 = vadd.f32 %v5014, %v5181
    %v5183 = vpop.f32.mrb[0].mxu0
    %v5184 = vpop.f32.mrb[0].mxu0
    %v5185 = vadd.f32 %v5017, %v5184
    %v5186 = vpop.f32.mrb[0].mxu0
    %5187 = vmatprep.mubr.bf16.mxu0 0
    %5188 = vmatmul.mubr.bf16.gmra.mrb[0].mxu0 %v5119
    %v5189 = vpop.f32.mrb[0].mxu0
    %v5190 = vadd.f32 %v5022, %v5189
    %v5191 = vpop.f32.mrb[0].mxu0
    %v5192 = vpop.f32.mrb[0].mxu0
    %v5193 = vadd.f32 %v5025, %v5192
    %v5194 = vpop.f32.mrb[0].mxu0
    %5195 = vmatprep.mubr.bf16.mxu0 0
    %5196 = vmatmul.mubr.bf16.gmra.mrb[0].mxu0 %v5122
    %v5197 = vpop.f32.mrb[0].mxu0
    %v5198 = vadd.f32 %v5030, %v5197
    %v5199 = vpop.f32.mrb[0].mxu0
    %v5200 = vpop.f32.mrb[0].mxu0
    %v5201 = vadd.f32 %v5033, %v5200
    %v5202 = vpop.f32.mrb[0].mxu0
    %5203 = vmatprep.mubr.bf16.mxu0 0
    %5204 = vmatmul.mubr.bf16.gmra.mrb[0].mxu0 %v5125
    %v5205 = vpop.f32.mrb[0].mxu0
    %v5206 = vadd.f32 %v5038, %v5205
    %v5207 = vpop.f32.mrb[0].mxu0
    %v5208 = vpop.f32.mrb[0].mxu0
    %v5209 = vadd.f32 %v5041, %v5208
    %v5210 = vpop.f32.mrb[0].mxu0
    %5211 = vmatprep.mubr.bf16.mxu0 0
    %5212 = vmatmul.mubr.bf16.gmra.mrb[0].mxu0 %v5128
    %v5213 = vpop.f32.mrb[0].mxu0
    %v5214 = vadd.f32 %v5046, %v5213
    %v5215 = vpop.f32.mrb[0].mxu0
    %v5216 = vpop.f32.mrb[0].mxu0
    %v5217 = vadd.f32 %v5049, %v5216
    %v5218 = vpop.f32.mrb[0].mxu0
    %5219 = vmatprep.mubr.bf16.mxu0 0
    %5220 = vmatmul.mubr.bf16.gmra.mrb[0].mxu0 %v5131
    %v5221 = vpop.f32.mrb[0].mxu0
    %v5222 = vadd.f32 %v5054, %v5221
    %v5223 = vpop.f32.mrb[0].mxu0
    %v5224 = vpop.f32.mrb[0].mxu0
    %v5225 = vadd.f32 %v5057, %v5224
    %v5226 = vpop.f32.mrb[0].mxu0
    %5227 = vmatprep.mubr.bf16.mxu0 0
    %5228 = vmatmul.mubr.bf16.gmra.mrb[0].mxu0 %v5134
    %v5229 = vpop.f32.mrb[0].mxu0
    %v5230 = vadd.f32 %v5062, %v5229
    %v5231 = vpop.f32.mrb[0].mxu0
    %v5232 = vpop.f32.mrb[0].mxu0
    %v5233 = vadd.f32 %v5065, %v5232
    %v5234 = vpop.f32.mrb[0].mxu0
    %5235 = vmatprep.mubr.bf16.mxu0 0
    %5236 = vmatmul.mubr.bf16.gmra.mrb[0].mxu0 %v5137
    %v5237 = vpop.f32.mrb[0].mxu0
    %v5238 = vadd.f32 %v5070, %v5237
    %v5239 = vpop.f32.mrb[0].mxu0
    %v5240 = vpop.f32.mrb[0].mxu0
    %v5241 = vadd.f32 %v5073, %v5240
    %v5242 = vpop.f32.mrb[0].mxu0
    %5243 = vdwg.mxu0
    %v5244 = vld [vmem:[#allocation2 + $0x18] sm:$0xff]
    %v5245 = vld [vmem:[#allocation2 + $0x20] sm:$0xff]
    %v5246 = vld [vmem:[#allocation2 + $0x28] sm:$0xff]
    %v5247 = vld [vmem:[#allocation2 + $0x30] sm:$0xff]
    %v5248 = vld [vmem:[#allocation2 + $0x38] sm:$0xff]
    %v5249 = vld [vmem:[#allocation2 + $0x40] sm:$0xff]
    %v5250 = vld [vmem:[#allocation2 + $0x48] sm:$0xff]
    %v5251 = vld [vmem:[#allocation2 + $0x50] sm:$0xff]
    %v5252 = vld [vmem:[#allocation2 + $0x58] sm:$0xff]
    %v5253 = vld [vmem:[%s1459] sm:$0xf]
    %v5254 = vld [vmem:[%s1459 + $0x4] sm:$0xf]
    %v5255 = vld [vmem:[%s1459 + $0x8] sm:$0xf]
    %v5256 = vld [vmem:[%s1459 + $0xc] sm:$0xf]
    %v5257 = vld [vmem:[%s1459 + $0x10] sm:$0xf]
    %v5258 = vld [vmem:[%s1459 + $0x14] sm:$0xf]
    %v5259 = vld [vmem:[%s1459 + $0x18] sm:$0xf]
    %v5260 = vld [vmem:[%s1459 + $0x1c] sm:$0xf]
    %v5261 = vld [vmem:[%s1459 + $0x20] sm:$0xf]
    %v5262 = vld [vmem:[%s1459 + $0x24] sm:$0xf]
    %v5263 = vld [vmem:[%s1459 + $0x28] sm:$0xf]
    %v5264 = vld [vmem:[%s1459 + $0x2c] sm:$0xf]
    %v5277 = vunpack.c.l.b16 %v5253
    %v5278 = vunpack.c.l.b16 %v5254
    %v5279 = vunpack.c.l.b16 %v5255
    %v5280 = vunpack.c.l.b16 %v5256
    %v5281 = vunpack.c.l.b16 %v5257
    %v5282 = vunpack.c.l.b16 %v5258
    %v5283 = vunpack.c.l.b16 %v5259
    %v5284 = vunpack.c.l.b16 %v5260
    %v5285 = vunpack.c.l.b16 %v5261
    %v5286 = vunpack.c.l.b16 %v5262
    %v5287 = vunpack.c.l.b16 %v5263
    %v5288 = vunpack.c.l.b16 %v5264
    %v5289 = vpack.c.b16 %v5278, %v5277
    %v5290 = vpack.c.b16 %v5280, %v5279
    %v5291 = vpack.c.b16 %v5282, %v5281
    %v5292 = vpack.c.b16 %v5284, %v5283
    %v5293 = vpack.c.b16 %v5286, %v5285
    %v5294 = vpack.c.b16 %v5288, %v5287
    %v5302 = vsel %vm395, %v5244, 0
    %v5305 = vsel %vm395, %v5245, 0
    %v5308 = vsel %vm395, %v5246, 0
    %v5311 = vsel %vm395, %v5247, 0
    %v5314 = vsel %vm395, %v5248, 0
    %v5317 = vsel %vm395, %v5249, 0
    %v5320 = vsel %vm395, %v5250, 0
    %v5323 = vsel %vm395, %v5251, 0
    %v5326 = vsel %vm395, %v5252, 0
    %5328 = vmatprep.subr.bf16.mxu0 0
    %5329 = vmatpush1.bf16.msra.mxu0 %v5289
    %5330 = vmatprep.subr.bf16.mxu0 0
    %5331 = vmatpush1.bf16.msra.mxu0 %v5290
    %5332 = vmatprep.subr.bf16.mxu0 0
    %5333 = vmatpush1.bf16.msra.mxu0 %v5291
    %5334 = vmatprep.subr.bf16.mxu0 0
    %5335 = vmatpush1.bf16.msra.mxu0 %v5292
    %5336 = vmatprep.subr.bf16.mxu0 0
    %5337 = vmatpush1.bf16.msra.mxu0 %v5293
    %5338 = vmatprep.subr.bf16.mxu0 0
    %5339 = vmatpush1.bf16.msra.mxu0 %v5294
    %5340 = vmatprep.subr.bf16.mxu0 0
    %5341 = vmatpush1.bf16.msra.mxu0 0
    %5342 = vmatprep.subr.bf16.mxu0 0
    %5343 = vmatpush1.bf16.msra.mxu0 0
    %5344 = vmatprep.subr.bf16.mxu0 0
    %5345 = vmatpush1.bf16.msra.mxu0 0
    %5346 = vmatprep.subr.bf16.mxu0 0
    %5347 = vmatpush1.bf16.msra.mxu0 0
    %5348 = vmatprep.subr.bf16.mxu0 0
    %5349 = vmatpush1.bf16.msra.mxu0 0
    %5350 = vmatprep.subr.bf16.mxu0 0
    %5351 = vmatpush1.bf16.msra.mxu0 0
    %5352 = vmatprep.subr.bf16.mxu0 0
    %5353 = vmatpush1.bf16.msra.mxu0 0
    %5354 = vmatprep.subr.bf16.mxu0 0
    %5355 = vmatpush1.bf16.msra.mxu0 0
    %5356 = vmatprep.subr.bf16.mxu0 0
    %5357 = vmatpush1.bf16.msra.mxu0 0
    %5358 = vmatprep.subr.bf16.mxu0 0
    %5359 = vmatpush1.bf16.msra.mxu0 0
    %5360 = vmatprep.mubr.bf16.mxu0 0
    %5361 = vmatmul.mubr.bf16.gmra.mrb[0].mxu0 %v5302
    %v5362 = vpop.f32.mrb[0].mxu0
    %v5363 = vadd.f32 0.0, %v5362
    %v5364 = vpop.f32.mrb[0].mxu0
    %v5365 = vpop.f32.mrb[0].mxu0
    %v5366 = vadd.f32 0.0, %v5365
    %v5367 = vpop.f32.mrb[0].mxu0
    %5368 = vmatprep.mubr.bf16.mxu0 0
    %5369 = vmatmul.mubr.bf16.gmra.mrb[0].mxu0 %v5305
    %v5370 = vpop.f32.mrb[0].mxu0
    %v5371 = vadd.f32 0.0, %v5370
    %v5372 = vpop.f32.mrb[0].mxu0
    %v5373 = vpop.f32.mrb[0].mxu0
    %v5374 = vadd.f32 0.0, %v5373
    %v5375 = vpop.f32.mrb[0].mxu0
    %5376 = vmatprep.mubr.bf16.mxu0 0
    %5377 = vmatmul.mubr.bf16.gmra.mrb[0].mxu0 %v5308
    %v5378 = vpop.f32.mrb[0].mxu0
    %v5379 = vadd.f32 0.0, %v5378
    %v5380 = vpop.f32.mrb[0].mxu0
    %v5381 = vpop.f32.mrb[0].mxu0
    %v5382 = vadd.f32 0.0, %v5381
    %v5383 = vpop.f32.mrb[0].mxu0
    %5384 = vmatprep.mubr.bf16.mxu0 0
    %5385 = vmatmul.mubr.bf16.gmra.mrb[0].mxu0 %v5311
    %v5386 = vpop.f32.mrb[0].mxu0
    %v5387 = vadd.f32 0.0, %v5386
    %v5388 = vpop.f32.mrb[0].mxu0
    %v5389 = vpop.f32.mrb[0].mxu0
    %v5390 = vadd.f32 0.0, %v5389
    %v5391 = vpop.f32.mrb[0].mxu0
    %5392 = vmatprep.mubr.bf16.mxu0 0
    %5393 = vmatmul.mubr.bf16.gmra.mrb[0].mxu0 %v5314
    %v5394 = vpop.f32.mrb[0].mxu0
    %v5395 = vadd.f32 0.0, %v5394
    %v5396 = vpop.f32.mrb[0].mxu0
    %v5397 = vpop.f32.mrb[0].mxu0
    %v5398 = vadd.f32 0.0, %v5397
    %v5399 = vpop.f32.mrb[0].mxu0
    %5400 = vmatprep.mubr.bf16.mxu0 0
    %5401 = vmatmul.mubr.bf16.gmra.mrb[0].mxu0 %v5317
    %v5402 = vpop.f32.mrb[0].mxu0
    %v5403 = vadd.f32 0.0, %v5402
    %v5404 = vpop.f32.mrb[0].mxu0
    %v5405 = vpop.f32.mrb[0].mxu0
    %v5406 = vadd.f32 0.0, %v5405
    %v5407 = vpop.f32.mrb[0].mxu0
    %5408 = vmatprep.mubr.bf16.mxu0 0
    %5409 = vmatmul.mubr.bf16.gmra.mrb[0].mxu0 %v5320
    %v5410 = vpop.f32.mrb[0].mxu0
    %v5411 = vadd.f32 0.0, %v5410
    %v5412 = vpop.f32.mrb[0].mxu0
    %v5413 = vpop.f32.mrb[0].mxu0
    %v5414 = vadd.f32 0.0, %v5413
    %v5415 = vpop.f32.mrb[0].mxu0
    %5416 = vmatprep.mubr.bf16.mxu0 0
    %5417 = vmatmul.mubr.bf16.gmra.mrb[0].mxu0 %v5323
    %v5418 = vpop.f32.mrb[0].mxu0
    %v5419 = vadd.f32 0.0, %v5418
    %v5420 = vpop.f32.mrb[0].mxu0
    %v5421 = vpop.f32.mrb[0].mxu0
    %v5422 = vadd.f32 0.0, %v5421
    %v5423 = vpop.f32.mrb[0].mxu0
    %5424 = vmatprep.mubr.bf16.mxu0 0
    %5425 = vmatmul.mubr.bf16.gmra.mrb[0].mxu0 %v5326
    %v5426 = vpop.f32.mrb[0].mxu0
    %v5427 = vadd.f32 0.0, %v5426
    %v5428 = vpop.f32.mrb[0].mxu0
    %v5429 = vpop.f32.mrb[0].mxu0
    %v5430 = vadd.f32 0.0, %v5429
    %v5431 = vpop.f32.mrb[0].mxu0
    %5432 = vdwg.mxu0
    %v5433 = vadd.f32 %v5174, %v5363
    %v5434 = vadd.f32 %v5177, %v5366
    %v5435 = vadd.f32 %v5182, %v5371
    %v5436 = vadd.f32 %v5185, %v5374
    %v5437 = vadd.f32 %v5190, %v5379
    %v5438 = vadd.f32 %v5193, %v5382
    %v5439 = vadd.f32 %v5198, %v5387
    %v5440 = vadd.f32 %v5201, %v5390
    %v5441 = vadd.f32 %v5206, %v5395
    %v5442 = vadd.f32 %v5209, %v5398
    %v5443 = vadd.f32 %v5214, %v5403
    %v5444 = vadd.f32 %v5217, %v5406
    %v5445 = vadd.f32 %v5222, %v5411
    %v5446 = vadd.f32 %v5225, %v5414
    %v5447 = vadd.f32 %v5230, %v5419
    %v5448 = vadd.f32 %v5233, %v5422
    %v5449 = vadd.f32 %v5238, %v5427
    %v5450 = vadd.f32 %v5241, %v5430
    %v5451 = vadd.f32 %v5433, %v1662
    %v5452 = vadd.f32 %v5434, %v1662
    %v5453 = vadd.f32 %v5435, %v1662
    %v5454 = vadd.f32 %v5436, %v1662
    %v5455 = vadd.f32 %v5437, %v1662
    %v5456 = vadd.f32 %v5438, %v1662
    %v5457 = vadd.f32 %v5439, %v1662
    %v5458 = vadd.f32 %v5440, %v1662
    %v5459 = vadd.f32 %v5441, %v1662
    %v5460 = vadd.f32 %v5442, %v1662
    %v5461 = vadd.f32 %v5443, %v1662
    %v5462 = vadd.f32 %v5444, %v1662
    %v5463 = vadd.f32 %v5445, %v1662
    %v5464 = vadd.f32 %v5446, %v1662
    %v5465 = vadd.f32 %v5447, %v1662
    %v5466 = vadd.f32 %v5448, %v1662
    %v5467 = vadd.f32 %v5449, %v1662
    %v5468 = vadd.f32 %v5450, %v1662
    %v5469 = vmax.f32 %v5451, 0.0
    %v5470 = vmax.f32 %v5452, 0.0
    %v5471 = vmax.f32 %v5453, 0.0
    %v5472 = vmax.f32 %v5454, 0.0
    %v5473 = vmax.f32 %v5455, 0.0
    %v5474 = vmax.f32 %v5456, 0.0
    %v5475 = vmax.f32 %v5457, 0.0
    %v5476 = vmax.f32 %v5458, 0.0
    %v5477 = vmax.f32 %v5459, 0.0
    %v5478 = vmax.f32 %v5460, 0.0
    %v5479 = vmax.f32 %v5461, 0.0
    %v5480 = vmax.f32 %v5462, 0.0
    %v5481 = vmax.f32 %v5463, 0.0
    %v5482 = vmax.f32 %v5464, 0.0
    %v5483 = vmax.f32 %v5465, 0.0
    %v5484 = vmax.f32 %v5466, 0.0
    %v5485 = vmax.f32 %v5467, 0.0
    %v5486 = vmax.f32 %v5468, 0.0
    %v5487 = vmax.f32 %v5469, %v5472
    %v5488 = vmax.f32 %v5470, %v5473
    %v5489 = vmax.f32 %v5471, %v5474
    %5490 = vst.msk [vmem:[#allocation3] sm:$0xff] %vm1703, %v5487
    %5491 = vst.msk [vmem:[#allocation3 + $0x8] sm:$0xff] %vm1703, %v5488
    %5492 = vst.msk [vmem:[#allocation3 + $0x10] sm:$0xff] %vm1703, %v5489
    %v5493 = vmax.f32 %v5475, %v5478
    %v5494 = vmax.f32 %v5476, %v5479
    %v5495 = vmax.f32 %v5477, %v5480
    %5496 = vst.msk [vmem:[#allocation3 + $0x18] sm:$0xff] %vm1703, %v5493
    %5497 = vst.msk [vmem:[#allocation3 + $0x20] sm:$0xff] %vm1703, %v5494
    %5498 = vst.msk [vmem:[#allocation3 + $0x28] sm:$0xff] %vm1703, %v5495
    %v5499 = vmax.f32 %v5481, %v5484
    %v5500 = vmax.f32 %v5482, %v5485
    %v5501 = vmax.f32 %v5483, %v5486
    %5502 = vst.msk [vmem:[#allocation3 + $0x30] sm:$0xff] %vm1703, %v5499
    %5503 = vst.msk [vmem:[#allocation3 + $0x38] sm:$0xff] %vm1703, %v5500
    %5504 = vst.msk [vmem:[#allocation3 + $0x40] sm:$0xff] %vm1703, %v5501
    %v5505 = vld [vmem:[#allocation2 + $0x48] sm:$0xff]
    %v5506 = vld [vmem:[#allocation2 + $0x50] sm:$0xff]
    %v5507 = vld [vmem:[#allocation2 + $0x58] sm:$0xff]
    %v5508 = vld [vmem:[#allocation2 + $0x60] sm:$0xff]
    %v5509 = vld [vmem:[#allocation2 + $0x68] sm:$0xff]
    %v5510 = vld [vmem:[#allocation2 + $0x70] sm:$0xff]
    %v5511 = vld [vmem:[#allocation2 + $0x78] sm:$0xff]
    %v5512 = vld [vmem:[#allocation2 + $0x80] sm:$0xff]
    %v5513 = vld [vmem:[#allocation2 + $0x88] sm:$0xff]
    %v5514 = vld [vmem:[%s3] sm:$0xf]
    %v5515 = vld [vmem:[%s3 + $0x4] sm:$0xf]
    %v5516 = vld [vmem:[%s3 + $0x8] sm:$0xf]
    %v5517 = vld [vmem:[%s3 + $0xc] sm:$0xf]
    %v5518 = vld [vmem:[%s3 + $0x10] sm:$0xf]
    %v5519 = vld [vmem:[%s3 + $0x14] sm:$0xf]
    %v5520 = vld [vmem:[%s3 + $0x18] sm:$0xf]
    %v5521 = vld [vmem:[%s3 + $0x1c] sm:$0xf]
    %v5522 = vld [vmem:[%s3 + $0x20] sm:$0xf]
    %v5523 = vld [vmem:[%s3 + $0x24] sm:$0xf]
    %v5524 = vld [vmem:[%s3 + $0x28] sm:$0xf]
    %v5525 = vld [vmem:[%s3 + $0x2c] sm:$0xf]
    %v5526 = vld [vmem:[#allocation2 + $0x50] sm:$0xf0]
    %v5527 = vld [vmem:[#allocation2 + $0x90] sm:$0xff]
    %v5528 = vld [vmem:[#allocation2 + $0x98] sm:$0xf]
    %v5529 = vld [vmem:[%s1071] sm:$0xf]
    %v5530 = vld [vmem:[%s1071 + $0x4] sm:$0xf]
    %v5531 = vld [vmem:[%s1071 + $0x8] sm:$0xf]
    %v5532 = vld [vmem:[%s1071 + $0xc] sm:$0xf]
    %v5533 = vld [vmem:[%s1071 + $0x10] sm:$0xf]
    %v5534 = vld [vmem:[%s1071 + $0x14] sm:$0xf]
    %v5535 = vld [vmem:[%s1071 + $0x18] sm:$0xf]
    %v5536 = vld [vmem:[%s1071 + $0x1c] sm:$0xf]
    %v5537 = vld [vmem:[%s1071 + $0x20] sm:$0xf]
    %v5538 = vld [vmem:[%s1071 + $0x24] sm:$0xf]
    %v5539 = vld [vmem:[%s1071 + $0x28] sm:$0xf]
    %v5540 = vld [vmem:[%s1071 + $0x2c] sm:$0xf]
    %v5551 = vrot.slane %v5526, 4
    %v5552 = vrot.slane %v5507, 4
    %v5553 = vsel %vm1094, %v5551, %v5552
    %v5554 = vrot.slane %v5508, 4
    %v5555 = vsel %vm1094, %v5552, %v5554
    %v5556 = vrot.slane %v5509, 4
    %v5557 = vsel %vm1094, %v5554, %v5556
    %v5558 = vrot.slane %v5510, 4
    %v5559 = vsel %vm1094, %v5556, %v5558
    %v5560 = vrot.slane %v5511, 4
    %v5561 = vsel %vm1094, %v5558, %v5560
    %v5562 = vrot.slane %v5512, 4
    %v5563 = vsel %vm1094, %v5560, %v5562
    %v5564 = vrot.slane %v5513, 4
    %v5565 = vsel %vm1094, %v5562, %v5564
    %v5566 = vrot.slane %v5527, 4
    %v5567 = vsel %vm1094, %v5564, %v5566
    %v5568 = vrot.slane %v5528, 4
    %v5569 = vsel %vm1094, %v5566, %v5568
    %v5582 = vunpack.c.l.b16 %v5529
    %v5583 = vunpack.c.l.b16 %v5530
    %v5584 = vunpack.c.l.b16 %v5531
    %v5585 = vunpack.c.l.b16 %v5532
    %v5586 = vunpack.c.l.b16 %v5533
    %v5587 = vunpack.c.l.b16 %v5534
    %v5588 = vunpack.c.l.b16 %v5535
    %v5589 = vunpack.c.l.b16 %v5536
    %v5590 = vunpack.c.l.b16 %v5537
    %v5591 = vunpack.c.l.b16 %v5538
    %v5592 = vunpack.c.l.b16 %v5539
    %v5593 = vunpack.c.l.b16 %v5540
    %v5594 = vpack.c.b16 %v5583, %v5582
    %v5595 = vpack.c.b16 %v5585, %v5584
    %v5596 = vpack.c.b16 %v5587, %v5586
    %v5597 = vpack.c.b16 %v5589, %v5588
    %v5598 = vpack.c.b16 %v5591, %v5590
    %v5599 = vpack.c.b16 %v5593, %v5592
    %v5607 = vsel %vm395, %v5553, 0
    %v5610 = vsel %vm395, %v5555, 0
    %v5613 = vsel %vm395, %v5557, 0
    %v5616 = vsel %vm395, %v5559, 0
    %v5619 = vsel %vm395, %v5561, 0
    %v5622 = vsel %vm395, %v5563, 0
    %v5625 = vsel %vm395, %v5565, 0
    %v5628 = vsel %vm395, %v5567, 0
    %v5631 = vsel %vm395, %v5569, 0
    %5633 = vmatprep.subr.bf16.mxu0 0
    %5634 = vmatpush1.bf16.msra.mxu0 %v5594
    %5635 = vmatprep.subr.bf16.mxu0 0
    %5636 = vmatpush1.bf16.msra.mxu0 %v5595
    %5637 = vmatprep.subr.bf16.mxu0 0
    %5638 = vmatpush1.bf16.msra.mxu0 %v5596
    %5639 = vmatprep.subr.bf16.mxu0 0
    %5640 = vmatpush1.bf16.msra.mxu0 %v5597
    %5641 = vmatprep.subr.bf16.mxu0 0
    %5642 = vmatpush1.bf16.msra.mxu0 %v5598
    %5643 = vmatprep.subr.bf16.mxu0 0
    %5644 = vmatpush1.bf16.msra.mxu0 %v5599
    %5645 = vmatprep.subr.bf16.mxu0 0
    %5646 = vmatpush1.bf16.msra.mxu0 0
    %5647 = vmatprep.subr.bf16.mxu0 0
    %5648 = vmatpush1.bf16.msra.mxu0 0
    %5649 = vmatprep.subr.bf16.mxu0 0
    %5650 = vmatpush1.bf16.msra.mxu0 0
    %5651 = vmatprep.subr.bf16.mxu0 0
    %5652 = vmatpush1.bf16.msra.mxu0 0
    %5653 = vmatprep.subr.bf16.mxu0 0
    %5654 = vmatpush1.bf16.msra.mxu0 0
    %5655 = vmatprep.subr.bf16.mxu0 0
    %5656 = vmatpush1.bf16.msra.mxu0 0
    %5657 = vmatprep.subr.bf16.mxu0 0
    %5658 = vmatpush1.bf16.msra.mxu0 0
    %5659 = vmatprep.subr.bf16.mxu0 0
    %5660 = vmatpush1.bf16.msra.mxu0 0
    %5661 = vmatprep.subr.bf16.mxu0 0
    %5662 = vmatpush1.bf16.msra.mxu0 0
    %5663 = vmatprep.subr.bf16.mxu0 0
    %5664 = vmatpush1.bf16.msra.mxu0 0
    %5665 = vmatprep.mubr.bf16.mxu0 0
    %5666 = vmatmul.mubr.bf16.gmra.mrb[0].mxu0 %v5607
    %v5667 = vpop.f32.mrb[0].mxu0
    %v5668 = vadd.f32 0.0, %v5667
    %v5669 = vpop.f32.mrb[0].mxu0
    %v5670 = vpop.f32.mrb[0].mxu0
    %v5671 = vadd.f32 0.0, %v5670
    %v5672 = vpop.f32.mrb[0].mxu0
    %5673 = vmatprep.mubr.bf16.mxu0 0
    %5674 = vmatmul.mubr.bf16.gmra.mrb[0].mxu0 %v5610
    %v5675 = vpop.f32.mrb[0].mxu0
    %v5676 = vadd.f32 0.0, %v5675
    %v5677 = vpop.f32.mrb[0].mxu0
    %v5678 = vpop.f32.mrb[0].mxu0
    %v5679 = vadd.f32 0.0, %v5678
    %v5680 = vpop.f32.mrb[0].mxu0
    %5681 = vmatprep.mubr.bf16.mxu0 0
    %5682 = vmatmul.mubr.bf16.gmra.mrb[0].mxu0 %v5613
    %v5683 = vpop.f32.mrb[0].mxu0
    %v5684 = vadd.f32 0.0, %v5683
    %v5685 = vpop.f32.mrb[0].mxu0
    %v5686 = vpop.f32.mrb[0].mxu0
    %v5687 = vadd.f32 0.0, %v5686
    %v5688 = vpop.f32.mrb[0].mxu0
    %5689 = vmatprep.mubr.bf16.mxu0 0
    %5690 = vmatmul.mubr.bf16.gmra.mrb[0].mxu0 %v5616
    %v5691 = vpop.f32.mrb[0].mxu0
    %v5692 = vadd.f32 0.0, %v5691
    %v5693 = vpop.f32.mrb[0].mxu0
    %v5694 = vpop.f32.mrb[0].mxu0
    %v5695 = vadd.f32 0.0, %v5694
    %v5696 = vpop.f32.mrb[0].mxu0
    %5697 = vmatprep.mubr.bf16.mxu0 0
    %5698 = vmatmul.mubr.bf16.gmra.mrb[0].mxu0 %v5619
    %v5699 = vpop.f32.mrb[0].mxu0
    %v5700 = vadd.f32 0.0, %v5699
    %v5701 = vpop.f32.mrb[0].mxu0
    %v5702 = vpop.f32.mrb[0].mxu0
    %v5703 = vadd.f32 0.0, %v5702
    %v5704 = vpop.f32.mrb[0].mxu0
    %5705 = vmatprep.mubr.bf16.mxu0 0
    %5706 = vmatmul.mubr.bf16.gmra.mrb[0].mxu0 %v5622
    %v5707 = vpop.f32.mrb[0].mxu0
    %v5708 = vadd.f32 0.0, %v5707
    %v5709 = vpop.f32.mrb[0].mxu0
    %v5710 = vpop.f32.mrb[0].mxu0
    %v5711 = vadd.f32 0.0, %v5710
    %v5712 = vpop.f32.mrb[0].mxu0
    %5713 = vmatprep.mubr.bf16.mxu0 0
    %5714 = vmatmul.mubr.bf16.gmra.mrb[0].mxu0 %v5625
    %v5715 = vpop.f32.mrb[0].mxu0
    %v5716 = vadd.f32 0.0, %v5715
    %v5717 = vpop.f32.mrb[0].mxu0
    %v5718 = vpop.f32.mrb[0].mxu0
    %v5719 = vadd.f32 0.0, %v5718
    %v5720 = vpop.f32.mrb[0].mxu0
    %5721 = vmatprep.mubr.bf16.mxu0 0
    %5722 = vmatmul.mubr.bf16.gmra.mrb[0].mxu0 %v5628
    %v5723 = vpop.f32.mrb[0].mxu0
    %v5724 = vadd.f32 0.0, %v5723
    %v5725 = vpop.f32.mrb[0].mxu0
    %v5726 = vpop.f32.mrb[0].mxu0
    %v5727 = vadd.f32 0.0, %v5726
    %v5728 = vpop.f32.mrb[0].mxu0
    %5729 = vmatprep.mubr.bf16.mxu0 0
    %5730 = vmatmul.mubr.bf16.gmra.mrb[0].mxu0 %v5631
    %v5731 = vpop.f32.mrb[0].mxu0
    %v5732 = vadd.f32 0.0, %v5731
    %v5733 = vpop.f32.mrb[0].mxu0
    %v5734 = vpop.f32.mrb[0].mxu0
    %v5735 = vadd.f32 0.0, %v5734
    %v5736 = vpop.f32.mrb[0].mxu0
    %5737 = vdwg.mxu0
    %v5750 = vunpack.c.l.b16 %v5514
    %v5751 = vunpack.c.l.b16 %v5515
    %v5752 = vunpack.c.l.b16 %v5516
    %v5753 = vunpack.c.l.b16 %v5517
    %v5754 = vunpack.c.l.b16 %v5518
    %v5755 = vunpack.c.l.b16 %v5519
    %v5756 = vunpack.c.l.b16 %v5520
    %v5757 = vunpack.c.l.b16 %v5521
    %v5758 = vunpack.c.l.b16 %v5522
    %v5759 = vunpack.c.l.b16 %v5523
    %v5760 = vunpack.c.l.b16 %v5524
    %v5761 = vunpack.c.l.b16 %v5525
    %v5762 = vpack.c.b16 %v5751, %v5750
    %v5763 = vpack.c.b16 %v5753, %v5752
    %v5764 = vpack.c.b16 %v5755, %v5754
    %v5765 = vpack.c.b16 %v5757, %v5756
    %v5766 = vpack.c.b16 %v5759, %v5758
    %v5767 = vpack.c.b16 %v5761, %v5760
    %v5775 = vsel %vm395, %v5505, 0
    %v5778 = vsel %vm395, %v5506, 0
    %v5781 = vsel %vm395, %v5507, 0
    %v5784 = vsel %vm395, %v5508, 0
    %v5787 = vsel %vm395, %v5509, 0
    %v5790 = vsel %vm395, %v5510, 0
    %v5793 = vsel %vm395, %v5511, 0
    %v5796 = vsel %vm395, %v5512, 0
    %v5799 = vsel %vm395, %v5513, 0
    %5801 = vmatprep.subr.bf16.mxu0 0
    %5802 = vmatpush1.bf16.msra.mxu0 %v5762
    %5803 = vmatprep.subr.bf16.mxu0 0
    %5804 = vmatpush1.bf16.msra.mxu0 %v5763
    %5805 = vmatprep.subr.bf16.mxu0 0
    %5806 = vmatpush1.bf16.msra.mxu0 %v5764
    %5807 = vmatprep.subr.bf16.mxu0 0
    %5808 = vmatpush1.bf16.msra.mxu0 %v5765
    %5809 = vmatprep.subr.bf16.mxu0 0
    %5810 = vmatpush1.bf16.msra.mxu0 %v5766
    %5811 = vmatprep.subr.bf16.mxu0 0
    %5812 = vmatpush1.bf16.msra.mxu0 %v5767
    %5813 = vmatprep.subr.bf16.mxu0 0
    %5814 = vmatpush1.bf16.msra.mxu0 0
    %5815 = vmatprep.subr.bf16.mxu0 0
    %5816 = vmatpush1.bf16.msra.mxu0 0
    %5817 = vmatprep.subr.bf16.mxu0 0
    %5818 = vmatpush1.bf16.msra.mxu0 0
    %5819 = vmatprep.subr.bf16.mxu0 0
    %5820 = vmatpush1.bf16.msra.mxu0 0
    %5821 = vmatprep.subr.bf16.mxu0 0
    %5822 = vmatpush1.bf16.msra.mxu0 0
    %5823 = vmatprep.subr.bf16.mxu0 0
    %5824 = vmatpush1.bf16.msra.mxu0 0
    %5825 = vmatprep.subr.bf16.mxu0 0
    %5826 = vmatpush1.bf16.msra.mxu0 0
    %5827 = vmatprep.subr.bf16.mxu0 0
    %5828 = vmatpush1.bf16.msra.mxu0 0
    %5829 = vmatprep.subr.bf16.mxu0 0
    %5830 = vmatpush1.bf16.msra.mxu0 0
    %5831 = vmatprep.subr.bf16.mxu0 0
    %5832 = vmatpush1.bf16.msra.mxu0 0
    %5833 = vmatprep.mubr.bf16.mxu0 0
    %5834 = vmatmul.mubr.bf16.gmra.mrb[0].mxu0 %v5775
    %v5835 = vpop.f32.mrb[0].mxu0
    %v5836 = vadd.f32 %v5668, %v5835
    %v5837 = vpop.f32.mrb[0].mxu0
    %v5838 = vpop.f32.mrb[0].mxu0
    %v5839 = vadd.f32 %v5671, %v5838
    %v5840 = vpop.f32.mrb[0].mxu0
    %5841 = vmatprep.mubr.bf16.mxu0 0
    %5842 = vmatmul.mubr.bf16.gmra.mrb[0].mxu0 %v5778
    %v5843 = vpop.f32.mrb[0].mxu0
    %v5844 = vadd.f32 %v5676, %v5843
    %v5845 = vpop.f32.mrb[0].mxu0
    %v5846 = vpop.f32.mrb[0].mxu0
    %v5847 = vadd.f32 %v5679, %v5846
    %v5848 = vpop.f32.mrb[0].mxu0
    %5849 = vmatprep.mubr.bf16.mxu0 0
    %5850 = vmatmul.mubr.bf16.gmra.mrb[0].mxu0 %v5781
    %v5851 = vpop.f32.mrb[0].mxu0
    %v5852 = vadd.f32 %v5684, %v5851
    %v5853 = vpop.f32.mrb[0].mxu0
    %v5854 = vpop.f32.mrb[0].mxu0
    %v5855 = vadd.f32 %v5687, %v5854
    %v5856 = vpop.f32.mrb[0].mxu0
    %5857 = vmatprep.mubr.bf16.mxu0 0
    %5858 = vmatmul.mubr.bf16.gmra.mrb[0].mxu0 %v5784
    %v5859 = vpop.f32.mrb[0].mxu0
    %v5860 = vadd.f32 %v5692, %v5859
    %v5861 = vpop.f32.mrb[0].mxu0
    %v5862 = vpop.f32.mrb[0].mxu0
    %v5863 = vadd.f32 %v5695, %v5862
    %v5864 = vpop.f32.mrb[0].mxu0
    %5865 = vmatprep.mubr.bf16.mxu0 0
    %5866 = vmatmul.mubr.bf16.gmra.mrb[0].mxu0 %v5787
    %v5867 = vpop.f32.mrb[0].mxu0
    %v5868 = vadd.f32 %v5700, %v5867
    %v5869 = vpop.f32.mrb[0].mxu0
    %v5870 = vpop.f32.mrb[0].mxu0
    %v5871 = vadd.f32 %v5703, %v5870
    %v5872 = vpop.f32.mrb[0].mxu0
    %5873 = vmatprep.mubr.bf16.mxu0 0
    %5874 = vmatmul.mubr.bf16.gmra.mrb[0].mxu0 %v5790
    %v5875 = vpop.f32.mrb[0].mxu0
    %v5876 = vadd.f32 %v5708, %v5875
    %v5877 = vpop.f32.mrb[0].mxu0
    %v5878 = vpop.f32.mrb[0].mxu0
    %v5879 = vadd.f32 %v5711, %v5878
    %v5880 = vpop.f32.mrb[0].mxu0
    %5881 = vmatprep.mubr.bf16.mxu0 0
    %5882 = vmatmul.mubr.bf16.gmra.mrb[0].mxu0 %v5793
    %v5883 = vpop.f32.mrb[0].mxu0
    %v5884 = vadd.f32 %v5716, %v5883
    %v5885 = vpop.f32.mrb[0].mxu0
    %v5886 = vpop.f32.mrb[0].mxu0
    %v5887 = vadd.f32 %v5719, %v5886
    %v5888 = vpop.f32.mrb[0].mxu0
    %5889 = vmatprep.mubr.bf16.mxu0 0
    %5890 = vmatmul.mubr.bf16.gmra.mrb[0].mxu0 %v5796
    %v5891 = vpop.f32.mrb[0].mxu0
    %v5892 = vadd.f32 %v5724, %v5891
    %v5893 = vpop.f32.mrb[0].mxu0
    %v5894 = vpop.f32.mrb[0].mxu0
    %v5895 = vadd.f32 %v5727, %v5894
    %v5896 = vpop.f32.mrb[0].mxu0
    %5897 = vmatprep.mubr.bf16.mxu0 0
    %5898 = vmatmul.mubr.bf16.gmra.mrb[0].mxu0 %v5799
    %v5899 = vpop.f32.mrb[0].mxu0
    %v5900 = vadd.f32 %v5732, %v5899
    %v5901 = vpop.f32.mrb[0].mxu0
    %v5902 = vpop.f32.mrb[0].mxu0
    %v5903 = vadd.f32 %v5735, %v5902
    %v5904 = vpop.f32.mrb[0].mxu0
    %5905 = vdwg.mxu0
    %v5906 = vld [vmem:[#allocation2 + $0x60] sm:$0xff]
    %v5907 = vld [vmem:[#allocation2 + $0x68] sm:$0xff]
    %v5908 = vld [vmem:[#allocation2 + $0x70] sm:$0xff]
    %v5909 = vld [vmem:[#allocation2 + $0x78] sm:$0xff]
    %v5910 = vld [vmem:[#allocation2 + $0x80] sm:$0xff]
    %v5911 = vld [vmem:[#allocation2 + $0x88] sm:$0xff]
    %v5912 = vld [vmem:[#allocation2 + $0x90] sm:$0xff]
    %v5913 = vld [vmem:[#allocation2 + $0x98] sm:$0xff]
    %v5914 = vld [vmem:[#allocation2 + $0xa0] sm:$0xff]
    %v5915 = vld [vmem:[%s1459] sm:$0xf]
    %v5916 = vld [vmem:[%s1459 + $0x4] sm:$0xf]
    %v5917 = vld [vmem:[%s1459 + $0x8] sm:$0xf]
    %v5918 = vld [vmem:[%s1459 + $0xc] sm:$0xf]
    %v5919 = vld [vmem:[%s1459 + $0x10] sm:$0xf]
    %v5920 = vld [vmem:[%s1459 + $0x14] sm:$0xf]
    %v5921 = vld [vmem:[%s1459 + $0x18] sm:$0xf]
    %v5922 = vld [vmem:[%s1459 + $0x1c] sm:$0xf]
    %v5923 = vld [vmem:[%s1459 + $0x20] sm:$0xf]
    %v5924 = vld [vmem:[%s1459 + $0x24] sm:$0xf]
    %v5925 = vld [vmem:[%s1459 + $0x28] sm:$0xf]
    %v5926 = vld [vmem:[%s1459 + $0x2c] sm:$0xf]
    %v5939 = vunpack.c.l.b16 %v5915
    %v5940 = vunpack.c.l.b16 %v5916
    %v5941 = vunpack.c.l.b16 %v5917
    %v5942 = vunpack.c.l.b16 %v5918
    %v5943 = vunpack.c.l.b16 %v5919
    %v5944 = vunpack.c.l.b16 %v5920
    %v5945 = vunpack.c.l.b16 %v5921
    %v5946 = vunpack.c.l.b16 %v5922
    %v5947 = vunpack.c.l.b16 %v5923
    %v5948 = vunpack.c.l.b16 %v5924
    %v5949 = vunpack.c.l.b16 %v5925
    %v5950 = vunpack.c.l.b16 %v5926
    %v5951 = vpack.c.b16 %v5940, %v5939
    %v5952 = vpack.c.b16 %v5942, %v5941
    %v5953 = vpack.c.b16 %v5944, %v5943
    %v5954 = vpack.c.b16 %v5946, %v5945
    %v5955 = vpack.c.b16 %v5948, %v5947
    %v5956 = vpack.c.b16 %v5950, %v5949
    %v5964 = vsel %vm395, %v5906, 0
    %v5967 = vsel %vm395, %v5907, 0
    %v5970 = vsel %vm395, %v5908, 0
    %v5973 = vsel %vm395, %v5909, 0
    %v5976 = vsel %vm395, %v5910, 0
    %v5979 = vsel %vm395, %v5911, 0
    %v5982 = vsel %vm395, %v5912, 0
    %v5985 = vsel %vm395, %v5913, 0
    %v5988 = vsel %vm395, %v5914, 0
    %5990 = vmatprep.subr.bf16.mxu0 0
    %5991 = vmatpush1.bf16.msra.mxu0 %v5951
    %5992 = vmatprep.subr.bf16.mxu0 0
    %5993 = vmatpush1.bf16.msra.mxu0 %v5952
    %5994 = vmatprep.subr.bf16.mxu0 0
    %5995 = vmatpush1.bf16.msra.mxu0 %v5953
    %5996 = vmatprep.subr.bf16.mxu0 0
    %5997 = vmatpush1.bf16.msra.mxu0 %v5954
    %5998 = vmatprep.subr.bf16.mxu0 0
    %5999 = vmatpush1.bf16.msra.mxu0 %v5955
    %6000 = vmatprep.subr.bf16.mxu0 0
    %6001 = vmatpush1.bf16.msra.mxu0 %v5956
    %6002 = vmatprep.subr.bf16.mxu0 0
    %6003 = vmatpush1.bf16.msra.mxu0 0
    %6004 = vmatprep.subr.bf16.mxu0 0
    %6005 = vmatpush1.bf16.msra.mxu0 0
    %6006 = vmatprep.subr.bf16.mxu0 0
    %6007 = vmatpush1.bf16.msra.mxu0 0
    %6008 = vmatprep.subr.bf16.mxu0 0
    %6009 = vmatpush1.bf16.msra.mxu0 0
    %6010 = vmatprep.subr.bf16.mxu0 0
    %6011 = vmatpush1.bf16.msra.mxu0 0
    %6012 = vmatprep.subr.bf16.mxu0 0
    %6013 = vmatpush1.bf16.msra.mxu0 0
    %6014 = vmatprep.subr.bf16.mxu0 0
    %6015 = vmatpush1.bf16.msra.mxu0 0
    %6016 = vmatprep.subr.bf16.mxu0 0
    %6017 = vmatpush1.bf16.msra.mxu0 0
    %6018 = vmatprep.subr.bf16.mxu0 0
    %6019 = vmatpush1.bf16.msra.mxu0 0
    %6020 = vmatprep.subr.bf16.mxu0 0
    %6021 = vmatpush1.bf16.msra.mxu0 0
    %6022 = vmatprep.mubr.bf16.mxu0 0
    %6023 = vmatmul.mubr.bf16.gmra.mrb[0].mxu0 %v5964
    %v6024 = vpop.f32.mrb[0].mxu0
    %v6025 = vadd.f32 0.0, %v6024
    %v6026 = vpop.f32.mrb[0].mxu0
    %v6027 = vpop.f32.mrb[0].mxu0
    %v6028 = vadd.f32 0.0, %v6027
    %v6029 = vpop.f32.mrb[0].mxu0
    %6030 = vmatprep.mubr.bf16.mxu0 0
    %6031 = vmatmul.mubr.bf16.gmra.mrb[0].mxu0 %v5967
    %v6032 = vpop.f32.mrb[0].mxu0
    %v6033 = vadd.f32 0.0, %v6032
    %v6034 = vpop.f32.mrb[0].mxu0
    %v6035 = vpop.f32.mrb[0].mxu0
    %v6036 = vadd.f32 0.0, %v6035
    %v6037 = vpop.f32.mrb[0].mxu0
    %6038 = vmatprep.mubr.bf16.mxu0 0
    %6039 = vmatmul.mubr.bf16.gmra.mrb[0].mxu0 %v5970
    %v6040 = vpop.f32.mrb[0].mxu0
    %v6041 = vadd.f32 0.0, %v6040
    %v6042 = vpop.f32.mrb[0].mxu0
    %v6043 = vpop.f32.mrb[0].mxu0
    %v6044 = vadd.f32 0.0, %v6043
    %v6045 = vpop.f32.mrb[0].mxu0
    %6046 = vmatprep.mubr.bf16.mxu0 0
    %6047 = vmatmul.mubr.bf16.gmra.mrb[0].mxu0 %v5973
    %v6048 = vpop.f32.mrb[0].mxu0
    %v6049 = vadd.f32 0.0, %v6048
    %v6050 = vpop.f32.mrb[0].mxu0
    %v6051 = vpop.f32.mrb[0].mxu0
    %v6052 = vadd.f32 0.0, %v6051
    %v6053 = vpop.f32.mrb[0].mxu0
    %6054 = vmatprep.mubr.bf16.mxu0 0
    %6055 = vmatmul.mubr.bf16.gmra.mrb[0].mxu0 %v5976
    %v6056 = vpop.f32.mrb[0].mxu0
    %v6057 = vadd.f32 0.0, %v6056
    %v6058 = vpop.f32.mrb[0].mxu0
    %v6059 = vpop.f32.mrb[0].mxu0
    %v6060 = vadd.f32 0.0, %v6059
    %v6061 = vpop.f32.mrb[0].mxu0
    %6062 = vmatprep.mubr.bf16.mxu0 0
    %6063 = vmatmul.mubr.bf16.gmra.mrb[0].mxu0 %v5979
    %v6064 = vpop.f32.mrb[0].mxu0
    %v6065 = vadd.f32 0.0, %v6064
    %v6066 = vpop.f32.mrb[0].mxu0
    %v6067 = vpop.f32.mrb[0].mxu0
    %v6068 = vadd.f32 0.0, %v6067
    %v6069 = vpop.f32.mrb[0].mxu0
    %6070 = vmatprep.mubr.bf16.mxu0 0
    %6071 = vmatmul.mubr.bf16.gmra.mrb[0].mxu0 %v5982
    %v6072 = vpop.f32.mrb[0].mxu0
    %v6073 = vadd.f32 0.0, %v6072
    %v6074 = vpop.f32.mrb[0].mxu0
    %v6075 = vpop.f32.mrb[0].mxu0
    %v6076 = vadd.f32 0.0, %v6075
    %v6077 = vpop.f32.mrb[0].mxu0
    %6078 = vmatprep.mubr.bf16.mxu0 0
    %6079 = vmatmul.mubr.bf16.gmra.mrb[0].mxu0 %v5985
    %v6080 = vpop.f32.mrb[0].mxu0
    %v6081 = vadd.f32 0.0, %v6080
    %v6082 = vpop.f32.mrb[0].mxu0
    %v6083 = vpop.f32.mrb[0].mxu0
    %v6084 = vadd.f32 0.0, %v6083
    %v6085 = vpop.f32.mrb[0].mxu0
    %6086 = vmatprep.mubr.bf16.mxu0 0
    %6087 = vmatmul.mubr.bf16.gmra.mrb[0].mxu0 %v5988
    %v6088 = vpop.f32.mrb[0].mxu0
    %v6089 = vadd.f32 0.0, %v6088
    %v6090 = vpop.f32.mrb[0].mxu0
    %v6091 = vpop.f32.mrb[0].mxu0
    %v6092 = vadd.f32 0.0, %v6091
    %v6093 = vpop.f32.mrb[0].mxu0
    %6094 = vdwg.mxu0
    %v6095 = vadd.f32 %v5836, %v6025
    %v6096 = vadd.f32 %v5839, %v6028
    %v6097 = vadd.f32 %v5844, %v6033
    %v6098 = vadd.f32 %v5847, %v6036
    %v6099 = vadd.f32 %v5852, %v6041
    %v6100 = vadd.f32 %v5855, %v6044
    %v6101 = vadd.f32 %v5860, %v6049
    %v6102 = vadd.f32 %v5863, %v6052
    %v6103 = vadd.f32 %v5868, %v6057
    %v6104 = vadd.f32 %v5871, %v6060
    %v6105 = vadd.f32 %v5876, %v6065
    %v6106 = vadd.f32 %v5879, %v6068
    %v6107 = vadd.f32 %v5884, %v6073
    %v6108 = vadd.f32 %v5887, %v6076
    %v6109 = vadd.f32 %v5892, %v6081
    %v6110 = vadd.f32 %v5895, %v6084
    %v6111 = vadd.f32 %v5900, %v6089
    %v6112 = vadd.f32 %v5903, %v6092
    %v6113 = vadd.f32 %v6095, %v1662
    %v6114 = vadd.f32 %v6096, %v1662
    %v6115 = vadd.f32 %v6097, %v1662
    %v6116 = vadd.f32 %v6098, %v1662
    %v6117 = vadd.f32 %v6099, %v1662
    %v6118 = vadd.f32 %v6100, %v1662
    %v6119 = vadd.f32 %v6101, %v1662
    %v6120 = vadd.f32 %v6102, %v1662
    %v6121 = vadd.f32 %v6103, %v1662
    %v6122 = vadd.f32 %v6104, %v1662
    %v6123 = vadd.f32 %v6105, %v1662
    %v6124 = vadd.f32 %v6106, %v1662
    %v6125 = vadd.f32 %v6107, %v1662
    %v6126 = vadd.f32 %v6108, %v1662
    %v6127 = vadd.f32 %v6109, %v1662
    %v6128 = vadd.f32 %v6110, %v1662
    %v6129 = vadd.f32 %v6111, %v1662
    %v6130 = vadd.f32 %v6112, %v1662
    %v6131 = vmax.f32 %v6113, 0.0
    %v6132 = vmax.f32 %v6114, 0.0
    %v6133 = vmax.f32 %v6115, 0.0
    %v6134 = vmax.f32 %v6116, 0.0
    %v6135 = vmax.f32 %v6117, 0.0
    %v6136 = vmax.f32 %v6118, 0.0
    %v6137 = vmax.f32 %v6119, 0.0
    %v6138 = vmax.f32 %v6120, 0.0
    %v6139 = vmax.f32 %v6121, 0.0
    %v6140 = vmax.f32 %v6122, 0.0
    %v6141 = vmax.f32 %v6123, 0.0
    %v6142 = vmax.f32 %v6124, 0.0
    %v6143 = vmax.f32 %v6125, 0.0
    %v6144 = vmax.f32 %v6126, 0.0
    %v6145 = vmax.f32 %v6127, 0.0
    %v6146 = vmax.f32 %v6128, 0.0
    %v6147 = vmax.f32 %v6129, 0.0
    %v6148 = vmax.f32 %v6130, 0.0
    %v6149 = vmax.f32 %v6131, %v6134
    %v6150 = vmax.f32 %v6132, %v6135
    %v6151 = vmax.f32 %v6133, %v6136
    %6152 = vst.msk [vmem:[#allocation3 + $0x48] sm:$0xff] %vm1703, %v6149
    %6153 = vst.msk [vmem:[#allocation3 + $0x50] sm:$0xff] %vm1703, %v6150
    %6154 = vst.msk [vmem:[#allocation3 + $0x58] sm:$0xff] %vm1703, %v6151
    %v6155 = vmax.f32 %v6137, %v6140
    %v6156 = vmax.f32 %v6138, %v6141
    %v6157 = vmax.f32 %v6139, %v6142
    %6158 = vst.msk [vmem:[#allocation3 + $0x60] sm:$0xff] %vm1703, %v6155
    %6159 = vst.msk [vmem:[#allocation3 + $0x68] sm:$0xff] %vm1703, %v6156
    %6160 = vst.msk [vmem:[#allocation3 + $0x70] sm:$0xff] %vm1703, %v6157
    %v6161 = vmax.f32 %v6143, %v6146
    %v6162 = vmax.f32 %v6144, %v6147
    %v6163 = vmax.f32 %v6145, %v6148
    %6164 = vst.msk [vmem:[#allocation3 + $0x78] sm:$0xff] %vm1703, %v6161
    %6165 = vst.msk [vmem:[#allocation3 + $0x80] sm:$0xff] %vm1703, %v6162
    %6166 = vst.msk [vmem:[#allocation3 + $0x88] sm:$0xff] %vm1703, %v6163
    %v6167 = vld [vmem:[#allocation2 + $0x90] sm:$0xff]
    %v6168 = vld [vmem:[#allocation2 + $0x98] sm:$0xff]
    %v6169 = vld [vmem:[#allocation2 + $0xa0] sm:$0xff]
    %v6170 = vld [vmem:[#allocation2 + $0xa8] sm:$0xff]
    %v6171 = vld [vmem:[#allocation2 + $0xb0] sm:$0xff]
    %v6172 = vld [vmem:[#allocation2 + $0xb8] sm:$0xff]
    %v6173 = vld [vmem:[#allocation2 + $0xc0] sm:$0xff]
    %v6174 = vld [vmem:[#allocation2 + $0xc8] sm:$0xff]
    %v6175 = vld [vmem:[#allocation2 + $0xd0] sm:$0xff]
    %v6176 = vld [vmem:[%s3] sm:$0xf]
    %v6177 = vld [vmem:[%s3 + $0x4] sm:$0xf]
    %v6178 = vld [vmem:[%s3 + $0x8] sm:$0xf]
    %v6179 = vld [vmem:[%s3 + $0xc] sm:$0xf]
    %v6180 = vld [vmem:[%s3 + $0x10] sm:$0xf]
    %v6181 = vld [vmem:[%s3 + $0x14] sm:$0xf]
    %v6182 = vld [vmem:[%s3 + $0x18] sm:$0xf]
    %v6183 = vld [vmem:[%s3 + $0x1c] sm:$0xf]
    %v6184 = vld [vmem:[%s3 + $0x20] sm:$0xf]
    %v6185 = vld [vmem:[%s3 + $0x24] sm:$0xf]
    %v6186 = vld [vmem:[%s3 + $0x28] sm:$0xf]
    %v6187 = vld [vmem:[%s3 + $0x2c] sm:$0xf]
    %v6188 = vld [vmem:[#allocation2 + $0x98] sm:$0xf0]
    %v6189 = vld [vmem:[#allocation2 + $0xd8] sm:$0xff]
    %v6190 = vld [vmem:[#allocation2 + $0xe0] sm:$0xf]
    %v6191 = vld [vmem:[%s1071] sm:$0xf]
    %v6192 = vld [vmem:[%s1071 + $0x4] sm:$0xf]
    %v6193 = vld [vmem:[%s1071 + $0x8] sm:$0xf]
    %v6194 = vld [vmem:[%s1071 + $0xc] sm:$0xf]
    %v6195 = vld [vmem:[%s1071 + $0x10] sm:$0xf]
    %v6196 = vld [vmem:[%s1071 + $0x14] sm:$0xf]
    %v6197 = vld [vmem:[%s1071 + $0x18] sm:$0xf]
    %v6198 = vld [vmem:[%s1071 + $0x1c] sm:$0xf]
    %v6199 = vld [vmem:[%s1071 + $0x20] sm:$0xf]
    %v6200 = vld [vmem:[%s1071 + $0x24] sm:$0xf]
    %v6201 = vld [vmem:[%s1071 + $0x28] sm:$0xf]
    %v6202 = vld [vmem:[%s1071 + $0x2c] sm:$0xf]
    %v6213 = vrot.slane %v6188, 4
    %v6214 = vrot.slane %v6169, 4
    %v6215 = vsel %vm1094, %v6213, %v6214
    %v6216 = vrot.slane %v6170, 4
    %v6217 = vsel %vm1094, %v6214, %v6216
    %v6218 = vrot.slane %v6171, 4
    %v6219 = vsel %vm1094, %v6216, %v6218
    %v6220 = vrot.slane %v6172, 4
    %v6221 = vsel %vm1094, %v6218, %v6220
    %v6222 = vrot.slane %v6173, 4
    %v6223 = vsel %vm1094, %v6220, %v6222
    %v6224 = vrot.slane %v6174, 4
    %v6225 = vsel %vm1094, %v6222, %v6224
    %v6226 = vrot.slane %v6175, 4
    %v6227 = vsel %vm1094, %v6224, %v6226
    %v6228 = vrot.slane %v6189, 4
    %v6229 = vsel %vm1094, %v6226, %v6228
    %v6230 = vrot.slane %v6190, 4
    %v6231 = vsel %vm1094, %v6228, %v6230
    %v6244 = vunpack.c.l.b16 %v6191
    %v6245 = vunpack.c.l.b16 %v6192
    %v6246 = vunpack.c.l.b16 %v6193
    %v6247 = vunpack.c.l.b16 %v6194
    %v6248 = vunpack.c.l.b16 %v6195
    %v6249 = vunpack.c.l.b16 %v6196
    %v6250 = vunpack.c.l.b16 %v6197
    %v6251 = vunpack.c.l.b16 %v6198
    %v6252 = vunpack.c.l.b16 %v6199
    %v6253 = vunpack.c.l.b16 %v6200
    %v6254 = vunpack.c.l.b16 %v6201
    %v6255 = vunpack.c.l.b16 %v6202
    %v6256 = vpack.c.b16 %v6245, %v6244
    %v6257 = vpack.c.b16 %v6247, %v6246
    %v6258 = vpack.c.b16 %v6249, %v6248
    %v6259 = vpack.c.b16 %v6251, %v6250
    %v6260 = vpack.c.b16 %v6253, %v6252
    %v6261 = vpack.c.b16 %v6255, %v6254
    %v6269 = vsel %vm395, %v6215, 0
    %v6272 = vsel %vm395, %v6217, 0
    %v6275 = vsel %vm395, %v6219, 0
    %v6278 = vsel %vm395, %v6221, 0
    %v6281 = vsel %vm395, %v6223, 0
    %v6284 = vsel %vm395, %v6225, 0
    %v6287 = vsel %vm395, %v6227, 0
    %v6290 = vsel %vm395, %v6229, 0
    %v6293 = vsel %vm395, %v6231, 0
    %6295 = vmatprep.subr.bf16.mxu0 0
    %6296 = vmatpush1.bf16.msra.mxu0 %v6256
    %6297 = vmatprep.subr.bf16.mxu0 0
    %6298 = vmatpush1.bf16.msra.mxu0 %v6257
    %6299 = vmatprep.subr.bf16.mxu0 0
    %6300 = vmatpush1.bf16.msra.mxu0 %v6258
    %6301 = vmatprep.subr.bf16.mxu0 0
    %6302 = vmatpush1.bf16.msra.mxu0 %v6259
    %6303 = vmatprep.subr.bf16.mxu0 0
    %6304 = vmatpush1.bf16.msra.mxu0 %v6260
    %6305 = vmatprep.subr.bf16.mxu0 0
    %6306 = vmatpush1.bf16.msra.mxu0 %v6261
    %6307 = vmatprep.subr.bf16.mxu0 0
    %6308 = vmatpush1.bf16.msra.mxu0 0
    %6309 = vmatprep.subr.bf16.mxu0 0
    %6310 = vmatpush1.bf16.msra.mxu0 0
    %6311 = vmatprep.subr.bf16.mxu0 0
    %6312 = vmatpush1.bf16.msra.mxu0 0
    %6313 = vmatprep.subr.bf16.mxu0 0
    %6314 = vmatpush1.bf16.msra.mxu0 0
    %6315 = vmatprep.subr.bf16.mxu0 0
    %6316 = vmatpush1.bf16.msra.mxu0 0
    %6317 = vmatprep.subr.bf16.mxu0 0
    %6318 = vmatpush1.bf16.msra.mxu0 0
    %6319 = vmatprep.subr.bf16.mxu0 0
    %6320 = vmatpush1.bf16.msra.mxu0 0
    %6321 = vmatprep.subr.bf16.mxu0 0
    %6322 = vmatpush1.bf16.msra.mxu0 0
    %6323 = vmatprep.subr.bf16.mxu0 0
    %6324 = vmatpush1.bf16.msra.mxu0 0
    %6325 = vmatprep.subr.bf16.mxu0 0
    %6326 = vmatpush1.bf16.msra.mxu0 0
    %6327 = vmatprep.mubr.bf16.mxu0 0
    %6328 = vmatmul.mubr.bf16.gmra.mrb[0].mxu0 %v6269
    %v6329 = vpop.f32.mrb[0].mxu0
    %v6330 = vadd.f32 0.0, %v6329
    %v6331 = vpop.f32.mrb[0].mxu0
    %v6332 = vpop.f32.mrb[0].mxu0
    %v6333 = vadd.f32 0.0, %v6332
    %v6334 = vpop.f32.mrb[0].mxu0
    %6335 = vmatprep.mubr.bf16.mxu0 0
    %6336 = vmatmul.mubr.bf16.gmra.mrb[0].mxu0 %v6272
    %v6337 = vpop.f32.mrb[0].mxu0
    %v6338 = vadd.f32 0.0, %v6337
    %v6339 = vpop.f32.mrb[0].mxu0
    %v6340 = vpop.f32.mrb[0].mxu0
    %v6341 = vadd.f32 0.0, %v6340
    %v6342 = vpop.f32.mrb[0].mxu0
    %6343 = vmatprep.mubr.bf16.mxu0 0
    %6344 = vmatmul.mubr.bf16.gmra.mrb[0].mxu0 %v6275
    %v6345 = vpop.f32.mrb[0].mxu0
    %v6346 = vadd.f32 0.0, %v6345
    %v6347 = vpop.f32.mrb[0].mxu0
    %v6348 = vpop.f32.mrb[0].mxu0
    %v6349 = vadd.f32 0.0, %v6348
    %v6350 = vpop.f32.mrb[0].mxu0
    %6351 = vmatprep.mubr.bf16.mxu0 0
    %6352 = vmatmul.mubr.bf16.gmra.mrb[0].mxu0 %v6278
    %v6353 = vpop.f32.mrb[0].mxu0
    %v6354 = vadd.f32 0.0, %v6353
    %v6355 = vpop.f32.mrb[0].mxu0
    %v6356 = vpop.f32.mrb[0].mxu0
    %v6357 = vadd.f32 0.0, %v6356
    %v6358 = vpop.f32.mrb[0].mxu0
    %6359 = vmatprep.mubr.bf16.mxu0 0
    %6360 = vmatmul.mubr.bf16.gmra.mrb[0].mxu0 %v6281
    %v6361 = vpop.f32.mrb[0].mxu0
    %v6362 = vadd.f32 0.0, %v6361
    %v6363 = vpop.f32.mrb[0].mxu0
    %v6364 = vpop.f32.mrb[0].mxu0
    %v6365 = vadd.f32 0.0, %v6364
    %v6366 = vpop.f32.mrb[0].mxu0
    %6367 = vmatprep.mubr.bf16.mxu0 0
    %6368 = vmatmul.mubr.bf16.gmra.mrb[0].mxu0 %v6284
    %v6369 = vpop.f32.mrb[0].mxu0
    %v6370 = vadd.f32 0.0, %v6369
    %v6371 = vpop.f32.mrb[0].mxu0
    %v6372 = vpop.f32.mrb[0].mxu0
    %v6373 = vadd.f32 0.0, %v6372
    %v6374 = vpop.f32.mrb[0].mxu0
    %6375 = vmatprep.mubr.bf16.mxu0 0
    %6376 = vmatmul.mubr.bf16.gmra.mrb[0].mxu0 %v6287
    %v6377 = vpop.f32.mrb[0].mxu0
    %v6378 = vadd.f32 0.0, %v6377
    %v6379 = vpop.f32.mrb[0].mxu0
    %v6380 = vpop.f32.mrb[0].mxu0
    %v6381 = vadd.f32 0.0, %v6380
    %v6382 = vpop.f32.mrb[0].mxu0
    %6383 = vmatprep.mubr.bf16.mxu0 0
    %6384 = vmatmul.mubr.bf16.gmra.mrb[0].mxu0 %v6290
    %v6385 = vpop.f32.mrb[0].mxu0
    %v6386 = vadd.f32 0.0, %v6385
    %v6387 = vpop.f32.mrb[0].mxu0
    %v6388 = vpop.f32.mrb[0].mxu0
    %v6389 = vadd.f32 0.0, %v6388
    %v6390 = vpop.f32.mrb[0].mxu0
    %6391 = vmatprep.mubr.bf16.mxu0 0
    %6392 = vmatmul.mubr.bf16.gmra.mrb[0].mxu0 %v6293
    %v6393 = vpop.f32.mrb[0].mxu0
    %v6394 = vadd.f32 0.0, %v6393
    %v6395 = vpop.f32.mrb[0].mxu0
    %v6396 = vpop.f32.mrb[0].mxu0
    %v6397 = vadd.f32 0.0, %v6396
    %v6398 = vpop.f32.mrb[0].mxu0
    %6399 = vdwg.mxu0
    %v6412 = vunpack.c.l.b16 %v6176
    %v6413 = vunpack.c.l.b16 %v6177
    %v6414 = vunpack.c.l.b16 %v6178
    %v6415 = vunpack.c.l.b16 %v6179
    %v6416 = vunpack.c.l.b16 %v6180
    %v6417 = vunpack.c.l.b16 %v6181
    %v6418 = vunpack.c.l.b16 %v6182
    %v6419 = vunpack.c.l.b16 %v6183
    %v6420 = vunpack.c.l.b16 %v6184
    %v6421 = vunpack.c.l.b16 %v6185
    %v6422 = vunpack.c.l.b16 %v6186
    %v6423 = vunpack.c.l.b16 %v6187
    %v6424 = vpack.c.b16 %v6413, %v6412
    %v6425 = vpack.c.b16 %v6415, %v6414
    %v6426 = vpack.c.b16 %v6417, %v6416
    %v6427 = vpack.c.b16 %v6419, %v6418
    %v6428 = vpack.c.b16 %v6421, %v6420
    %v6429 = vpack.c.b16 %v6423, %v6422
    %v6437 = vsel %vm395, %v6167, 0
    %v6440 = vsel %vm395, %v6168, 0
    %v6443 = vsel %vm395, %v6169, 0
    %v6446 = vsel %vm395, %v6170, 0
    %v6449 = vsel %vm395, %v6171, 0
    %v6452 = vsel %vm395, %v6172, 0
    %v6455 = vsel %vm395, %v6173, 0
    %v6458 = vsel %vm395, %v6174, 0
    %v6461 = vsel %vm395, %v6175, 0
    %6463 = vmatprep.subr.bf16.mxu0 0
    %6464 = vmatpush1.bf16.msra.mxu0 %v6424
    %6465 = vmatprep.subr.bf16.mxu0 0
    %6466 = vmatpush1.bf16.msra.mxu0 %v6425
    %6467 = vmatprep.subr.bf16.mxu0 0
    %6468 = vmatpush1.bf16.msra.mxu0 %v6426
    %6469 = vmatprep.subr.bf16.mxu0 0
    %6470 = vmatpush1.bf16.msra.mxu0 %v6427
    %6471 = vmatprep.subr.bf16.mxu0 0
    %6472 = vmatpush1.bf16.msra.mxu0 %v6428
    %6473 = vmatprep.subr.bf16.mxu0 0
    %6474 = vmatpush1.bf16.msra.mxu0 %v6429
    %6475 = vmatprep.subr.bf16.mxu0 0
    %6476 = vmatpush1.bf16.msra.mxu0 0
    %6477 = vmatprep.subr.bf16.mxu0 0
    %6478 = vmatpush1.bf16.msra.mxu0 0
    %6479 = vmatprep.subr.bf16.mxu0 0
    %6480 = vmatpush1.bf16.msra.mxu0 0
    %6481 = vmatprep.subr.bf16.mxu0 0
    %6482 = vmatpush1.bf16.msra.mxu0 0
    %6483 = vmatprep.subr.bf16.mxu0 0
    %6484 = vmatpush1.bf16.msra.mxu0 0
    %6485 = vmatprep.subr.bf16.mxu0 0
    %6486 = vmatpush1.bf16.msra.mxu0 0
    %6487 = vmatprep.subr.bf16.mxu0 0
    %6488 = vmatpush1.bf16.msra.mxu0 0
    %6489 = vmatprep.subr.bf16.mxu0 0
    %6490 = vmatpush1.bf16.msra.mxu0 0
    %6491 = vmatprep.subr.bf16.mxu0 0
    %6492 = vmatpush1.bf16.msra.mxu0 0
    %6493 = vmatprep.subr.bf16.mxu0 0
    %6494 = vmatpush1.bf16.msra.mxu0 0
    %6495 = vmatprep.mubr.bf16.mxu0 0
    %6496 = vmatmul.mubr.bf16.gmra.mrb[0].mxu0 %v6437
    %v6497 = vpop.f32.mrb[0].mxu0
    %v6498 = vadd.f32 %v6330, %v6497
    %v6499 = vpop.f32.mrb[0].mxu0
    %v6500 = vpop.f32.mrb[0].mxu0
    %v6501 = vadd.f32 %v6333, %v6500
    %v6502 = vpop.f32.mrb[0].mxu0
    %6503 = vmatprep.mubr.bf16.mxu0 0
    %6504 = vmatmul.mubr.bf16.gmra.mrb[0].mxu0 %v6440
    %v6505 = vpop.f32.mrb[0].mxu0
    %v6506 = vadd.f32 %v6338, %v6505
    %v6507 = vpop.f32.mrb[0].mxu0
    %v6508 = vpop.f32.mrb[0].mxu0
    %v6509 = vadd.f32 %v6341, %v6508
    %v6510 = vpop.f32.mrb[0].mxu0
    %6511 = vmatprep.mubr.bf16.mxu0 0
    %6512 = vmatmul.mubr.bf16.gmra.mrb[0].mxu0 %v6443
    %v6513 = vpop.f32.mrb[0].mxu0
    %v6514 = vadd.f32 %v6346, %v6513
    %v6515 = vpop.f32.mrb[0].mxu0
    %v6516 = vpop.f32.mrb[0].mxu0
    %v6517 = vadd.f32 %v6349, %v6516
    %v6518 = vpop.f32.mrb[0].mxu0
    %6519 = vmatprep.mubr.bf16.mxu0 0
    %6520 = vmatmul.mubr.bf16.gmra.mrb[0].mxu0 %v6446
    %v6521 = vpop.f32.mrb[0].mxu0
    %v6522 = vadd.f32 %v6354, %v6521
    %v6523 = vpop.f32.mrb[0].mxu0
    %v6524 = vpop.f32.mrb[0].mxu0
    %v6525 = vadd.f32 %v6357, %v6524
    %v6526 = vpop.f32.mrb[0].mxu0
    %6527 = vmatprep.mubr.bf16.mxu0 0
    %6528 = vmatmul.mubr.bf16.gmra.mrb[0].mxu0 %v6449
    %v6529 = vpop.f32.mrb[0].mxu0
    %v6530 = vadd.f32 %v6362, %v6529
    %v6531 = vpop.f32.mrb[0].mxu0
    %v6532 = vpop.f32.mrb[0].mxu0
    %v6533 = vadd.f32 %v6365, %v6532
    %v6534 = vpop.f32.mrb[0].mxu0
    %6535 = vmatprep.mubr.bf16.mxu0 0
    %6536 = vmatmul.mubr.bf16.gmra.mrb[0].mxu0 %v6452
    %v6537 = vpop.f32.mrb[0].mxu0
    %v6538 = vadd.f32 %v6370, %v6537
    %v6539 = vpop.f32.mrb[0].mxu0
    %v6540 = vpop.f32.mrb[0].mxu0
    %v6541 = vadd.f32 %v6373, %v6540
    %v6542 = vpop.f32.mrb[0].mxu0
    %6543 = vmatprep.mubr.bf16.mxu0 0
    %6544 = vmatmul.mubr.bf16.gmra.mrb[0].mxu0 %v6455
    %v6545 = vpop.f32.mrb[0].mxu0
    %v6546 = vadd.f32 %v6378, %v6545
    %v6547 = vpop.f32.mrb[0].mxu0
    %v6548 = vpop.f32.mrb[0].mxu0
    %v6549 = vadd.f32 %v6381, %v6548
    %v6550 = vpop.f32.mrb[0].mxu0
    %6551 = vmatprep.mubr.bf16.mxu0 0
    %6552 = vmatmul.mubr.bf16.gmra.mrb[0].mxu0 %v6458
    %v6553 = vpop.f32.mrb[0].mxu0
    %v6554 = vadd.f32 %v6386, %v6553
    %v6555 = vpop.f32.mrb[0].mxu0
    %v6556 = vpop.f32.mrb[0].mxu0
    %v6557 = vadd.f32 %v6389, %v6556
    %v6558 = vpop.f32.mrb[0].mxu0
    %6559 = vmatprep.mubr.bf16.mxu0 0
    %6560 = vmatmul.mubr.bf16.gmra.mrb[0].mxu0 %v6461
    %v6561 = vpop.f32.mrb[0].mxu0
    %v6562 = vadd.f32 %v6394, %v6561
    %v6563 = vpop.f32.mrb[0].mxu0
    %v6564 = vpop.f32.mrb[0].mxu0
    %v6565 = vadd.f32 %v6397, %v6564
    %v6566 = vpop.f32.mrb[0].mxu0
    %6567 = vdwg.mxu0
    %v6568 = vld [vmem:[#allocation2 + $0xa8] sm:$0xff]
    %v6569 = vld [vmem:[#allocation2 + $0xb0] sm:$0xff]
    %v6570 = vld [vmem:[#allocation2 + $0xb8] sm:$0xff]
    %v6571 = vld [vmem:[#allocation2 + $0xc0] sm:$0xff]
    %v6572 = vld [vmem:[#allocation2 + $0xc8] sm:$0xff]
    %v6573 = vld [vmem:[#allocation2 + $0xd0] sm:$0xff]
    %v6574 = vld [vmem:[#allocation2 + $0xd8] sm:$0xff]
    %v6575 = vld [vmem:[#allocation2 + $0xe0] sm:$0xff]
    %v6576 = vld [vmem:[#allocation2 + $0xe8] sm:$0xff]
    %v6577 = vld [vmem:[%s1459] sm:$0xf]
    %v6578 = vld [vmem:[%s1459 + $0x4] sm:$0xf]
    %v6579 = vld [vmem:[%s1459 + $0x8] sm:$0xf]
    %v6580 = vld [vmem:[%s1459 + $0xc] sm:$0xf]
    %v6581 = vld [vmem:[%s1459 + $0x10] sm:$0xf]
    %v6582 = vld [vmem:[%s1459 + $0x14] sm:$0xf]
    %v6583 = vld [vmem:[%s1459 + $0x18] sm:$0xf]
    %v6584 = vld [vmem:[%s1459 + $0x1c] sm:$0xf]
    %v6585 = vld [vmem:[%s1459 + $0x20] sm:$0xf]
    %v6586 = vld [vmem:[%s1459 + $0x24] sm:$0xf]
    %v6587 = vld [vmem:[%s1459 + $0x28] sm:$0xf]
    %v6588 = vld [vmem:[%s1459 + $0x2c] sm:$0xf]
    %v6601 = vunpack.c.l.b16 %v6577
    %v6602 = vunpack.c.l.b16 %v6578
    %v6603 = vunpack.c.l.b16 %v6579
    %v6604 = vunpack.c.l.b16 %v6580
    %v6605 = vunpack.c.l.b16 %v6581
    %v6606 = vunpack.c.l.b16 %v6582
    %v6607 = vunpack.c.l.b16 %v6583
    %v6608 = vunpack.c.l.b16 %v6584
    %v6609 = vunpack.c.l.b16 %v6585
    %v6610 = vunpack.c.l.b16 %v6586
    %v6611 = vunpack.c.l.b16 %v6587
    %v6612 = vunpack.c.l.b16 %v6588
    %v6613 = vpack.c.b16 %v6602, %v6601
    %v6614 = vpack.c.b16 %v6604, %v6603
    %v6615 = vpack.c.b16 %v6606, %v6605
    %v6616 = vpack.c.b16 %v6608, %v6607
    %v6617 = vpack.c.b16 %v6610, %v6609
    %v6618 = vpack.c.b16 %v6612, %v6611
    %v6626 = vsel %vm395, %v6568, 0
    %v6629 = vsel %vm395, %v6569, 0
    %v6632 = vsel %vm395, %v6570, 0
    %v6635 = vsel %vm395, %v6571, 0
    %v6638 = vsel %vm395, %v6572, 0
    %v6641 = vsel %vm395, %v6573, 0
    %v6644 = vsel %vm395, %v6574, 0
    %v6647 = vsel %vm395, %v6575, 0
    %v6650 = vsel %vm395, %v6576, 0
    %6652 = vmatprep.subr.bf16.mxu0 0
    %6653 = vmatpush1.bf16.msra.mxu0 %v6613
    %6654 = vmatprep.subr.bf16.mxu0 0
    %6655 = vmatpush1.bf16.msra.mxu0 %v6614
    %6656 = vmatprep.subr.bf16.mxu0 0
    %6657 = vmatpush1.bf16.msra.mxu0 %v6615
    %6658 = vmatprep.subr.bf16.mxu0 0
    %6659 = vmatpush1.bf16.msra.mxu0 %v6616
    %6660 = vmatprep.subr.bf16.mxu0 0
    %6661 = vmatpush1.bf16.msra.mxu0 %v6617
    %6662 = vmatprep.subr.bf16.mxu0 0
    %6663 = vmatpush1.bf16.msra.mxu0 %v6618
    %6664 = vmatprep.subr.bf16.mxu0 0
    %6665 = vmatpush1.bf16.msra.mxu0 0
    %6666 = vmatprep.subr.bf16.mxu0 0
    %6667 = vmatpush1.bf16.msra.mxu0 0
    %6668 = vmatprep.subr.bf16.mxu0 0
    %6669 = vmatpush1.bf16.msra.mxu0 0
    %6670 = vmatprep.subr.bf16.mxu0 0
    %6671 = vmatpush1.bf16.msra.mxu0 0
    %6672 = vmatprep.subr.bf16.mxu0 0
    %6673 = vmatpush1.bf16.msra.mxu0 0
    %6674 = vmatprep.subr.bf16.mxu0 0
    %6675 = vmatpush1.bf16.msra.mxu0 0
    %6676 = vmatprep.subr.bf16.mxu0 0
    %6677 = vmatpush1.bf16.msra.mxu0 0
    %6678 = vmatprep.subr.bf16.mxu0 0
    %6679 = vmatpush1.bf16.msra.mxu0 0
    %6680 = vmatprep.subr.bf16.mxu0 0
    %6681 = vmatpush1.bf16.msra.mxu0 0
    %6682 = vmatprep.subr.bf16.mxu0 0
    %6683 = vmatpush1.bf16.msra.mxu0 0
    %6684 = vmatprep.mubr.bf16.mxu0 0
    %6685 = vmatmul.mubr.bf16.gmra.mrb[0].mxu0 %v6626
    %v6686 = vpop.f32.mrb[0].mxu0
    %v6687 = vadd.f32 0.0, %v6686
    %v6688 = vpop.f32.mrb[0].mxu0
    %v6689 = vpop.f32.mrb[0].mxu0
    %v6690 = vadd.f32 0.0, %v6689
    %v6691 = vpop.f32.mrb[0].mxu0
    %6692 = vmatprep.mubr.bf16.mxu0 0
    %6693 = vmatmul.mubr.bf16.gmra.mrb[0].mxu0 %v6629
    %v6694 = vpop.f32.mrb[0].mxu0
    %v6695 = vadd.f32 0.0, %v6694
    %v6696 = vpop.f32.mrb[0].mxu0
    %v6697 = vpop.f32.mrb[0].mxu0
    %v6698 = vadd.f32 0.0, %v6697
    %v6699 = vpop.f32.mrb[0].mxu0
    %6700 = vmatprep.mubr.bf16.mxu0 0
    %6701 = vmatmul.mubr.bf16.gmra.mrb[0].mxu0 %v6632
    %v6702 = vpop.f32.mrb[0].mxu0
    %v6703 = vadd.f32 0.0, %v6702
    %v6704 = vpop.f32.mrb[0].mxu0
    %v6705 = vpop.f32.mrb[0].mxu0
    %v6706 = vadd.f32 0.0, %v6705
    %v6707 = vpop.f32.mrb[0].mxu0
    %6708 = vmatprep.mubr.bf16.mxu0 0
    %6709 = vmatmul.mubr.bf16.gmra.mrb[0].mxu0 %v6635
    %v6710 = vpop.f32.mrb[0].mxu0
    %v6711 = vadd.f32 0.0, %v6710
    %v6712 = vpop.f32.mrb[0].mxu0
    %v6713 = vpop.f32.mrb[0].mxu0
    %v6714 = vadd.f32 0.0, %v6713
    %v6715 = vpop.f32.mrb[0].mxu0
    %6716 = vmatprep.mubr.bf16.mxu0 0
    %6717 = vmatmul.mubr.bf16.gmra.mrb[0].mxu0 %v6638
    %v6718 = vpop.f32.mrb[0].mxu0
    %v6719 = vadd.f32 0.0, %v6718
    %v6720 = vpop.f32.mrb[0].mxu0
    %v6721 = vpop.f32.mrb[0].mxu0
    %v6722 = vadd.f32 0.0, %v6721
    %v6723 = vpop.f32.mrb[0].mxu0
    %6724 = vmatprep.mubr.bf16.mxu0 0
    %6725 = vmatmul.mubr.bf16.gmra.mrb[0].mxu0 %v6641
    %v6726 = vpop.f32.mrb[0].mxu0
    %v6727 = vadd.f32 0.0, %v6726
    %v6728 = vpop.f32.mrb[0].mxu0
    %v6729 = vpop.f32.mrb[0].mxu0
    %v6730 = vadd.f32 0.0, %v6729
    %v6731 = vpop.f32.mrb[0].mxu0
    %6732 = vmatprep.mubr.bf16.mxu0 0
    %6733 = vmatmul.mubr.bf16.gmra.mrb[0].mxu0 %v6644
    %v6734 = vpop.f32.mrb[0].mxu0
    %v6735 = vadd.f32 0.0, %v6734
    %v6736 = vpop.f32.mrb[0].mxu0
    %v6737 = vpop.f32.mrb[0].mxu0
    %v6738 = vadd.f32 0.0, %v6737
    %v6739 = vpop.f32.mrb[0].mxu0
    %6740 = vmatprep.mubr.bf16.mxu0 0
    %6741 = vmatmul.mubr.bf16.gmra.mrb[0].mxu0 %v6647
    %v6742 = vpop.f32.mrb[0].mxu0
    %v6743 = vadd.f32 0.0, %v6742
    %v6744 = vpop.f32.mrb[0].mxu0
    %v6745 = vpop.f32.mrb[0].mxu0
    %v6746 = vadd.f32 0.0, %v6745
    %v6747 = vpop.f32.mrb[0].mxu0
    %6748 = vmatprep.mubr.bf16.mxu0 0
    %6749 = vmatmul.mubr.bf16.gmra.mrb[0].mxu0 %v6650
    %v6750 = vpop.f32.mrb[0].mxu0
    %v6751 = vadd.f32 0.0, %v6750
    %v6752 = vpop.f32.mrb[0].mxu0
    %v6753 = vpop.f32.mrb[0].mxu0
    %v6754 = vadd.f32 0.0, %v6753
    %v6755 = vpop.f32.mrb[0].mxu0
    %6756 = vdwg.mxu0
    %v6757 = vadd.f32 %v6498, %v6687
    %v6758 = vadd.f32 %v6501, %v6690
    %v6759 = vadd.f32 %v6506, %v6695
    %v6760 = vadd.f32 %v6509, %v6698
    %v6761 = vadd.f32 %v6514, %v6703
    %v6762 = vadd.f32 %v6517, %v6706
    %v6763 = vadd.f32 %v6522, %v6711
    %v6764 = vadd.f32 %v6525, %v6714
    %v6765 = vadd.f32 %v6530, %v6719
    %v6766 = vadd.f32 %v6533, %v6722
    %v6767 = vadd.f32 %v6538, %v6727
    %v6768 = vadd.f32 %v6541, %v6730
    %v6769 = vadd.f32 %v6546, %v6735
    %v6770 = vadd.f32 %v6549, %v6738
    %v6771 = vadd.f32 %v6554, %v6743
    %v6772 = vadd.f32 %v6557, %v6746
    %v6773 = vadd.f32 %v6562, %v6751
    %v6774 = vadd.f32 %v6565, %v6754
    %v6775 = vadd.f32 %v6757, %v1662
    %v6776 = vadd.f32 %v6758, %v1662
    %v6777 = vadd.f32 %v6759, %v1662
    %v6778 = vadd.f32 %v6760, %v1662
    %v6779 = vadd.f32 %v6761, %v1662
    %v6780 = vadd.f32 %v6762, %v1662
    %v6781 = vadd.f32 %v6763, %v1662
    %v6782 = vadd.f32 %v6764, %v1662
    %v6783 = vadd.f32 %v6765, %v1662
    %v6784 = vadd.f32 %v6766, %v1662
    %v6785 = vadd.f32 %v6767, %v1662
    %v6786 = vadd.f32 %v6768, %v1662
    %v6787 = vadd.f32 %v6769, %v1662
    %v6788 = vadd.f32 %v6770, %v1662
    %v6789 = vadd.f32 %v6771, %v1662
    %v6790 = vadd.f32 %v6772, %v1662
    %v6791 = vadd.f32 %v6773, %v1662
    %v6792 = vadd.f32 %v6774, %v1662
    %v6793 = vmax.f32 %v6775, 0.0
    %v6794 = vmax.f32 %v6776, 0.0
    %v6795 = vmax.f32 %v6777, 0.0
    %v6796 = vmax.f32 %v6778, 0.0
    %v6797 = vmax.f32 %v6779, 0.0
    %v6798 = vmax.f32 %v6780, 0.0
    %v6799 = vmax.f32 %v6781, 0.0
    %v6800 = vmax.f32 %v6782, 0.0
    %v6801 = vmax.f32 %v6783, 0.0
    %v6802 = vmax.f32 %v6784, 0.0
    %v6803 = vmax.f32 %v6785, 0.0
    %v6804 = vmax.f32 %v6786, 0.0
    %v6805 = vmax.f32 %v6787, 0.0
    %v6806 = vmax.f32 %v6788, 0.0
    %v6807 = vmax.f32 %v6789, 0.0
    %v6808 = vmax.f32 %v6790, 0.0
    %v6809 = vmax.f32 %v6791, 0.0
    %v6810 = vmax.f32 %v6792, 0.0
    %v6811 = vmax.f32 %v6793, %v6796
    %v6812 = vmax.f32 %v6794, %v6797
    %v6813 = vmax.f32 %v6795, %v6798
    %6814 = vst.msk [vmem:[#allocation3 + $0x90] sm:$0xff] %vm1703, %v6811
    %6815 = vst.msk [vmem:[#allocation3 + $0x98] sm:$0xff] %vm1703, %v6812
    %6816 = vst.msk [vmem:[#allocation3 + $0xa0] sm:$0xff] %vm1703, %v6813
    %v6817 = vmax.f32 %v6799, %v6802
    %v6818 = vmax.f32 %v6800, %v6803
    %v6819 = vmax.f32 %v6801, %v6804
    %6820 = vst.msk [vmem:[#allocation3 + $0xa8] sm:$0xff] %vm1703, %v6817
    %6821 = vst.msk [vmem:[#allocation3 + $0xb0] sm:$0xff] %vm1703, %v6818
    %6822 = vst.msk [vmem:[#allocation3 + $0xb8] sm:$0xff] %vm1703, %v6819
    %v6823 = vmax.f32 %v6805, %v6808
    %v6824 = vmax.f32 %v6806, %v6809
    %v6825 = vmax.f32 %v6807, %v6810
    %6826 = vst.msk [vmem:[#allocation3 + $0xc0] sm:$0xff] %vm1703, %v6823
    %6827 = vst.msk [vmem:[#allocation3 + $0xc8] sm:$0xff] %vm1703, %v6824
    %6828 = vst.msk [vmem:[#allocation3 + $0xd0] sm:$0xff] %vm1703, %v6825
    %v6829 = vld [vmem:[#allocation2 + $0xd8] sm:$0xff]
    %v6830 = vld [vmem:[#allocation2 + $0xe0] sm:$0xff]
    %v6831 = vld [vmem:[#allocation2 + $0xe8] sm:$0xff]
    %v6832 = vld [vmem:[#allocation2 + $0xf0] sm:$0xff]
    %v6833 = vld [vmem:[#allocation2 + $0xf8] sm:$0xff]
    %v6834 = vld [vmem:[#allocation2 + $0x100] sm:$0xff]
    %v6835 = vld [vmem:[#allocation2 + $0x108] sm:$0xff]
    %v6836 = vld [vmem:[#allocation2 + $0x110] sm:$0xff]
    %v6837 = vld [vmem:[#allocation2 + $0x118] sm:$0xff]
    %v6838 = vld [vmem:[%s3] sm:$0xf]
    %v6839 = vld [vmem:[%s3 + $0x4] sm:$0xf]
    %v6840 = vld [vmem:[%s3 + $0x8] sm:$0xf]
    %v6841 = vld [vmem:[%s3 + $0xc] sm:$0xf]
    %v6842 = vld [vmem:[%s3 + $0x10] sm:$0xf]
    %v6843 = vld [vmem:[%s3 + $0x14] sm:$0xf]
    %v6844 = vld [vmem:[%s3 + $0x18] sm:$0xf]
    %v6845 = vld [vmem:[%s3 + $0x1c] sm:$0xf]
    %v6846 = vld [vmem:[%s3 + $0x20] sm:$0xf]
    %v6847 = vld [vmem:[%s3 + $0x24] sm:$0xf]
    %v6848 = vld [vmem:[%s3 + $0x28] sm:$0xf]
    %v6849 = vld [vmem:[%s3 + $0x2c] sm:$0xf]
    %v6850 = vld [vmem:[#allocation2 + $0xe0] sm:$0xf0]
    %v6851 = vld [vmem:[#allocation2 + $0x120] sm:$0xff]
    %v6852 = vld [vmem:[#allocation2 + $0x128] sm:$0xf]
    %v6853 = vld [vmem:[%s1071] sm:$0xf]
    %v6854 = vld [vmem:[%s1071 + $0x4] sm:$0xf]
    %v6855 = vld [vmem:[%s1071 + $0x8] sm:$0xf]
    %v6856 = vld [vmem:[%s1071 + $0xc] sm:$0xf]
    %v6857 = vld [vmem:[%s1071 + $0x10] sm:$0xf]
    %v6858 = vld [vmem:[%s1071 + $0x14] sm:$0xf]
    %v6859 = vld [vmem:[%s1071 + $0x18] sm:$0xf]
    %v6860 = vld [vmem:[%s1071 + $0x1c] sm:$0xf]
    %v6861 = vld [vmem:[%s1071 + $0x20] sm:$0xf]
    %v6862 = vld [vmem:[%s1071 + $0x24] sm:$0xf]
    %v6863 = vld [vmem:[%s1071 + $0x28] sm:$0xf]
    %v6864 = vld [vmem:[%s1071 + $0x2c] sm:$0xf]
    %v6875 = vrot.slane %v6850, 4
    %v6876 = vrot.slane %v6831, 4
    %v6877 = vsel %vm1094, %v6875, %v6876
    %v6878 = vrot.slane %v6832, 4
    %v6879 = vsel %vm1094, %v6876, %v6878
    %v6880 = vrot.slane %v6833, 4
    %v6881 = vsel %vm1094, %v6878, %v6880
    %v6882 = vrot.slane %v6834, 4
    %v6883 = vsel %vm1094, %v6880, %v6882
    %v6884 = vrot.slane %v6835, 4
    %v6885 = vsel %vm1094, %v6882, %v6884
    %v6886 = vrot.slane %v6836, 4
    %v6887 = vsel %vm1094, %v6884, %v6886
    %v6888 = vrot.slane %v6837, 4
    %v6889 = vsel %vm1094, %v6886, %v6888
    %v6890 = vrot.slane %v6851, 4
    %v6891 = vsel %vm1094, %v6888, %v6890
    %v6892 = vrot.slane %v6852, 4
    %v6893 = vsel %vm1094, %v6890, %v6892
    %v6906 = vunpack.c.l.b16 %v6853
    %v6907 = vunpack.c.l.b16 %v6854
    %v6908 = vunpack.c.l.b16 %v6855
    %v6909 = vunpack.c.l.b16 %v6856
    %v6910 = vunpack.c.l.b16 %v6857
    %v6911 = vunpack.c.l.b16 %v6858
    %v6912 = vunpack.c.l.b16 %v6859
    %v6913 = vunpack.c.l.b16 %v6860
    %v6914 = vunpack.c.l.b16 %v6861
    %v6915 = vunpack.c.l.b16 %v6862
    %v6916 = vunpack.c.l.b16 %v6863
    %v6917 = vunpack.c.l.b16 %v6864
    %v6918 = vpack.c.b16 %v6907, %v6906
    %v6919 = vpack.c.b16 %v6909, %v6908
    %v6920 = vpack.c.b16 %v6911, %v6910
    %v6921 = vpack.c.b16 %v6913, %v6912
    %v6922 = vpack.c.b16 %v6915, %v6914
    %v6923 = vpack.c.b16 %v6917, %v6916
    %v6931 = vsel %vm395, %v6877, 0
    %v6934 = vsel %vm395, %v6879, 0
    %v6937 = vsel %vm395, %v6881, 0
    %v6940 = vsel %vm395, %v6883, 0
    %v6943 = vsel %vm395, %v6885, 0
    %v6946 = vsel %vm395, %v6887, 0
    %v6949 = vsel %vm395, %v6889, 0
    %v6952 = vsel %vm395, %v6891, 0
    %v6955 = vsel %vm395, %v6893, 0
    %6957 = vmatprep.subr.bf16.mxu0 0
    %6958 = vmatpush1.bf16.msra.mxu0 %v6918
    %6959 = vmatprep.subr.bf16.mxu0 0
    %6960 = vmatpush1.bf16.msra.mxu0 %v6919
    %6961 = vmatprep.subr.bf16.mxu0 0
    %6962 = vmatpush1.bf16.msra.mxu0 %v6920
    %6963 = vmatprep.subr.bf16.mxu0 0
    %6964 = vmatpush1.bf16.msra.mxu0 %v6921
    %6965 = vmatprep.subr.bf16.mxu0 0
    %6966 = vmatpush1.bf16.msra.mxu0 %v6922
    %6967 = vmatprep.subr.bf16.mxu0 0
    %6968 = vmatpush1.bf16.msra.mxu0 %v6923
    %6969 = vmatprep.subr.bf16.mxu0 0
    %6970 = vmatpush1.bf16.msra.mxu0 0
    %6971 = vmatprep.subr.bf16.mxu0 0
    %6972 = vmatpush1.bf16.msra.mxu0 0
    %6973 = vmatprep.subr.bf16.mxu0 0
    %6974 = vmatpush1.bf16.msra.mxu0 0
    %6975 = vmatprep.subr.bf16.mxu0 0
    %6976 = vmatpush1.bf16.msra.mxu0 0
    %6977 = vmatprep.subr.bf16.mxu0 0
    %6978 = vmatpush1.bf16.msra.mxu0 0
    %6979 = vmatprep.subr.bf16.mxu0 0
    %6980 = vmatpush1.bf16.msra.mxu0 0
    %6981 = vmatprep.subr.bf16.mxu0 0
    %6982 = vmatpush1.bf16.msra.mxu0 0
    %6983 = vmatprep.subr.bf16.mxu0 0
    %6984 = vmatpush1.bf16.msra.mxu0 0
    %6985 = vmatprep.subr.bf16.mxu0 0
    %6986 = vmatpush1.bf16.msra.mxu0 0
    %6987 = vmatprep.subr.bf16.mxu0 0
    %6988 = vmatpush1.bf16.msra.mxu0 0
    %6989 = vmatprep.mubr.bf16.mxu0 0
    %6990 = vmatmul.mubr.bf16.gmra.mrb[0].mxu0 %v6931
    %v6991 = vpop.f32.mrb[0].mxu0
    %v6992 = vadd.f32 0.0, %v6991
    %v6993 = vpop.f32.mrb[0].mxu0
    %v6994 = vpop.f32.mrb[0].mxu0
    %v6995 = vadd.f32 0.0, %v6994
    %v6996 = vpop.f32.mrb[0].mxu0
    %6997 = vmatprep.mubr.bf16.mxu0 0
    %6998 = vmatmul.mubr.bf16.gmra.mrb[0].mxu0 %v6934
    %v6999 = vpop.f32.mrb[0].mxu0
    %v7000 = vadd.f32 0.0, %v6999
    %v7001 = vpop.f32.mrb[0].mxu0
    %v7002 = vpop.f32.mrb[0].mxu0
    %v7003 = vadd.f32 0.0, %v7002
    %v7004 = vpop.f32.mrb[0].mxu0
    %7005 = vmatprep.mubr.bf16.mxu0 0
    %7006 = vmatmul.mubr.bf16.gmra.mrb[0].mxu0 %v6937
    %v7007 = vpop.f32.mrb[0].mxu0
    %v7008 = vadd.f32 0.0, %v7007
    %v7009 = vpop.f32.mrb[0].mxu0
    %v7010 = vpop.f32.mrb[0].mxu0
    %v7011 = vadd.f32 0.0, %v7010
    %v7012 = vpop.f32.mrb[0].mxu0
    %7013 = vmatprep.mubr.bf16.mxu0 0
    %7014 = vmatmul.mubr.bf16.gmra.mrb[0].mxu0 %v6940
    %v7015 = vpop.f32.mrb[0].mxu0
    %v7016 = vadd.f32 0.0, %v7015
    %v7017 = vpop.f32.mrb[0].mxu0
    %v7018 = vpop.f32.mrb[0].mxu0
    %v7019 = vadd.f32 0.0, %v7018
    %v7020 = vpop.f32.mrb[0].mxu0
    %7021 = vmatprep.mubr.bf16.mxu0 0
    %7022 = vmatmul.mubr.bf16.gmra.mrb[0].mxu0 %v6943
    %v7023 = vpop.f32.mrb[0].mxu0
    %v7024 = vadd.f32 0.0, %v7023
    %v7025 = vpop.f32.mrb[0].mxu0
    %v7026 = vpop.f32.mrb[0].mxu0
    %v7027 = vadd.f32 0.0, %v7026
    %v7028 = vpop.f32.mrb[0].mxu0
    %7029 = vmatprep.mubr.bf16.mxu0 0
    %7030 = vmatmul.mubr.bf16.gmra.mrb[0].mxu0 %v6946
    %v7031 = vpop.f32.mrb[0].mxu0
    %v7032 = vadd.f32 0.0, %v7031
    %v7033 = vpop.f32.mrb[0].mxu0
    %v7034 = vpop.f32.mrb[0].mxu0
    %v7035 = vadd.f32 0.0, %v7034
    %v7036 = vpop.f32.mrb[0].mxu0
    %7037 = vmatprep.mubr.bf16.mxu0 0
    %7038 = vmatmul.mubr.bf16.gmra.mrb[0].mxu0 %v6949
    %v7039 = vpop.f32.mrb[0].mxu0
    %v7040 = vadd.f32 0.0, %v7039
    %v7041 = vpop.f32.mrb[0].mxu0
    %v7042 = vpop.f32.mrb[0].mxu0
    %v7043 = vadd.f32 0.0, %v7042
    %v7044 = vpop.f32.mrb[0].mxu0
    %7045 = vmatprep.mubr.bf16.mxu0 0
    %7046 = vmatmul.mubr.bf16.gmra.mrb[0].mxu0 %v6952
    %v7047 = vpop.f32.mrb[0].mxu0
    %v7048 = vadd.f32 0.0, %v7047
    %v7049 = vpop.f32.mrb[0].mxu0
    %v7050 = vpop.f32.mrb[0].mxu0
    %v7051 = vadd.f32 0.0, %v7050
    %v7052 = vpop.f32.mrb[0].mxu0
    %7053 = vmatprep.mubr.bf16.mxu0 0
    %7054 = vmatmul.mubr.bf16.gmra.mrb[0].mxu0 %v6955
    %v7055 = vpop.f32.mrb[0].mxu0
    %v7056 = vadd.f32 0.0, %v7055
    %v7057 = vpop.f32.mrb[0].mxu0
    %v7058 = vpop.f32.mrb[0].mxu0
    %v7059 = vadd.f32 0.0, %v7058
    %v7060 = vpop.f32.mrb[0].mxu0
    %7061 = vdwg.mxu0
    %v7074 = vunpack.c.l.b16 %v6838
    %v7075 = vunpack.c.l.b16 %v6839
    %v7076 = vunpack.c.l.b16 %v6840
    %v7077 = vunpack.c.l.b16 %v6841
    %v7078 = vunpack.c.l.b16 %v6842
    %v7079 = vunpack.c.l.b16 %v6843
    %v7080 = vunpack.c.l.b16 %v6844
    %v7081 = vunpack.c.l.b16 %v6845
    %v7082 = vunpack.c.l.b16 %v6846
    %v7083 = vunpack.c.l.b16 %v6847
    %v7084 = vunpack.c.l.b16 %v6848
    %v7085 = vunpack.c.l.b16 %v6849
    %v7086 = vpack.c.b16 %v7075, %v7074
    %v7087 = vpack.c.b16 %v7077, %v7076
    %v7088 = vpack.c.b16 %v7079, %v7078
    %v7089 = vpack.c.b16 %v7081, %v7080
    %v7090 = vpack.c.b16 %v7083, %v7082
    %v7091 = vpack.c.b16 %v7085, %v7084
    %v7099 = vsel %vm395, %v6829, 0
    %v7102 = vsel %vm395, %v6830, 0
    %v7105 = vsel %vm395, %v6831, 0
    %v7108 = vsel %vm395, %v6832, 0
    %v7111 = vsel %vm395, %v6833, 0
    %v7114 = vsel %vm395, %v6834, 0
    %v7117 = vsel %vm395, %v6835, 0
    %v7120 = vsel %vm395, %v6836, 0
    %v7123 = vsel %vm395, %v6837, 0
    %7125 = vmatprep.subr.bf16.mxu0 0
    %7126 = vmatpush1.bf16.msra.mxu0 %v7086
    %7127 = vmatprep.subr.bf16.mxu0 0
    %7128 = vmatpush1.bf16.msra.mxu0 %v7087
    %7129 = vmatprep.subr.bf16.mxu0 0
    %7130 = vmatpush1.bf16.msra.mxu0 %v7088
    %7131 = vmatprep.subr.bf16.mxu0 0
    %7132 = vmatpush1.bf16.msra.mxu0 %v7089
    %7133 = vmatprep.subr.bf16.mxu0 0
    %7134 = vmatpush1.bf16.msra.mxu0 %v7090
    %7135 = vmatprep.subr.bf16.mxu0 0
    %7136 = vmatpush1.bf16.msra.mxu0 %v7091
    %7137 = vmatprep.subr.bf16.mxu0 0
    %7138 = vmatpush1.bf16.msra.mxu0 0
    %7139 = vmatprep.subr.bf16.mxu0 0
    %7140 = vmatpush1.bf16.msra.mxu0 0
    %7141 = vmatprep.subr.bf16.mxu0 0
    %7142 = vmatpush1.bf16.msra.mxu0 0
    %7143 = vmatprep.subr.bf16.mxu0 0
    %7144 = vmatpush1.bf16.msra.mxu0 0
    %7145 = vmatprep.subr.bf16.mxu0 0
    %7146 = vmatpush1.bf16.msra.mxu0 0
    %7147 = vmatprep.subr.bf16.mxu0 0
    %7148 = vmatpush1.bf16.msra.mxu0 0
    %7149 = vmatprep.subr.bf16.mxu0 0
    %7150 = vmatpush1.bf16.msra.mxu0 0
    %7151 = vmatprep.subr.bf16.mxu0 0
    %7152 = vmatpush1.bf16.msra.mxu0 0
    %7153 = vmatprep.subr.bf16.mxu0 0
    %7154 = vmatpush1.bf16.msra.mxu0 0
    %7155 = vmatprep.subr.bf16.mxu0 0
    %7156 = vmatpush1.bf16.msra.mxu0 0
    %7157 = vmatprep.mubr.bf16.mxu0 0
    %7158 = vmatmul.mubr.bf16.gmra.mrb[0].mxu0 %v7099
    %v7159 = vpop.f32.mrb[0].mxu0
    %v7160 = vadd.f32 %v6992, %v7159
    %v7161 = vpop.f32.mrb[0].mxu0
    %v7162 = vpop.f32.mrb[0].mxu0
    %v7163 = vadd.f32 %v6995, %v7162
    %v7164 = vpop.f32.mrb[0].mxu0
    %7165 = vmatprep.mubr.bf16.mxu0 0
    %7166 = vmatmul.mubr.bf16.gmra.mrb[0].mxu0 %v7102
    %v7167 = vpop.f32.mrb[0].mxu0
    %v7168 = vadd.f32 %v7000, %v7167
    %v7169 = vpop.f32.mrb[0].mxu0
    %v7170 = vpop.f32.mrb[0].mxu0
    %v7171 = vadd.f32 %v7003, %v7170
    %v7172 = vpop.f32.mrb[0].mxu0
    %7173 = vmatprep.mubr.bf16.mxu0 0
    %7174 = vmatmul.mubr.bf16.gmra.mrb[0].mxu0 %v7105
    %v7175 = vpop.f32.mrb[0].mxu0
    %v7176 = vadd.f32 %v7008, %v7175
    %v7177 = vpop.f32.mrb[0].mxu0
    %v7178 = vpop.f32.mrb[0].mxu0
    %v7179 = vadd.f32 %v7011, %v7178
    %v7180 = vpop.f32.mrb[0].mxu0
    %7181 = vmatprep.mubr.bf16.mxu0 0
    %7182 = vmatmul.mubr.bf16.gmra.mrb[0].mxu0 %v7108
    %v7183 = vpop.f32.mrb[0].mxu0
    %v7184 = vadd.f32 %v7016, %v7183
    %v7185 = vpop.f32.mrb[0].mxu0
    %v7186 = vpop.f32.mrb[0].mxu0
    %v7187 = vadd.f32 %v7019, %v7186
    %v7188 = vpop.f32.mrb[0].mxu0
    %7189 = vmatprep.mubr.bf16.mxu0 0
    %7190 = vmatmul.mubr.bf16.gmra.mrb[0].mxu0 %v7111
    %v7191 = vpop.f32.mrb[0].mxu0
    %v7192 = vadd.f32 %v7024, %v7191
    %v7193 = vpop.f32.mrb[0].mxu0
    %v7194 = vpop.f32.mrb[0].mxu0
    %v7195 = vadd.f32 %v7027, %v7194
    %v7196 = vpop.f32.mrb[0].mxu0
    %7197 = vmatprep.mubr.bf16.mxu0 0
    %7198 = vmatmul.mubr.bf16.gmra.mrb[0].mxu0 %v7114
    %v7199 = vpop.f32.mrb[0].mxu0
    %v7200 = vadd.f32 %v7032, %v7199
    %v7201 = vpop.f32.mrb[0].mxu0
    %v7202 = vpop.f32.mrb[0].mxu0
    %v7203 = vadd.f32 %v7035, %v7202
    %v7204 = vpop.f32.mrb[0].mxu0
    %7205 = vmatprep.mubr.bf16.mxu0 0
    %7206 = vmatmul.mubr.bf16.gmra.mrb[0].mxu0 %v7117
    %v7207 = vpop.f32.mrb[0].mxu0
    %v7208 = vadd.f32 %v7040, %v7207
    %v7209 = vpop.f32.mrb[0].mxu0
    %v7210 = vpop.f32.mrb[0].mxu0
    %v7211 = vadd.f32 %v7043, %v7210
    %v7212 = vpop.f32.mrb[0].mxu0
    %7213 = vmatprep.mubr.bf16.mxu0 0
    %7214 = vmatmul.mubr.bf16.gmra.mrb[0].mxu0 %v7120
    %v7215 = vpop.f32.mrb[0].mxu0
    %v7216 = vadd.f32 %v7048, %v7215
    %v7217 = vpop.f32.mrb[0].mxu0
    %v7218 = vpop.f32.mrb[0].mxu0
    %v7219 = vadd.f32 %v7051, %v7218
    %v7220 = vpop.f32.mrb[0].mxu0
    %7221 = vmatprep.mubr.bf16.mxu0 0
    %7222 = vmatmul.mubr.bf16.gmra.mrb[0].mxu0 %v7123
    %v7223 = vpop.f32.mrb[0].mxu0
    %v7224 = vadd.f32 %v7056, %v7223
    %v7225 = vpop.f32.mrb[0].mxu0
    %v7226 = vpop.f32.mrb[0].mxu0
    %v7227 = vadd.f32 %v7059, %v7226
    %v7228 = vpop.f32.mrb[0].mxu0
    %7229 = vdwg.mxu0
    %v7230 = vld [vmem:[#allocation2 + $0xf0] sm:$0xff]
    %v7231 = vld [vmem:[#allocation2 + $0xf8] sm:$0xff]
    %v7232 = vld [vmem:[#allocation2 + $0x100] sm:$0xff]
    %v7233 = vld [vmem:[#allocation2 + $0x108] sm:$0xff]
    %v7234 = vld [vmem:[#allocation2 + $0x110] sm:$0xff]
    %v7235 = vld [vmem:[#allocation2 + $0x118] sm:$0xff]
    %v7236 = vld [vmem:[#allocation2 + $0x120] sm:$0xff]
    %v7237 = vld [vmem:[#allocation2 + $0x128] sm:$0xff]
    %v7238 = vld [vmem:[#allocation2 + $0x130] sm:$0xff]
    %v7239 = vld [vmem:[%s1459] sm:$0xf]
    %v7240 = vld [vmem:[%s1459 + $0x4] sm:$0xf]
    %v7241 = vld [vmem:[%s1459 + $0x8] sm:$0xf]
    %v7242 = vld [vmem:[%s1459 + $0xc] sm:$0xf]
    %v7243 = vld [vmem:[%s1459 + $0x10] sm:$0xf]
    %v7244 = vld [vmem:[%s1459 + $0x14] sm:$0xf]
    %v7245 = vld [vmem:[%s1459 + $0x18] sm:$0xf]
    %v7246 = vld [vmem:[%s1459 + $0x1c] sm:$0xf]
    %v7247 = vld [vmem:[%s1459 + $0x20] sm:$0xf]
    %v7248 = vld [vmem:[%s1459 + $0x24] sm:$0xf]
    %v7249 = vld [vmem:[%s1459 + $0x28] sm:$0xf]
    %v7250 = vld [vmem:[%s1459 + $0x2c] sm:$0xf]
    %v7263 = vunpack.c.l.b16 %v7239
    %v7264 = vunpack.c.l.b16 %v7240
    %v7265 = vunpack.c.l.b16 %v7241
    %v7266 = vunpack.c.l.b16 %v7242
    %v7267 = vunpack.c.l.b16 %v7243
    %v7268 = vunpack.c.l.b16 %v7244
    %v7269 = vunpack.c.l.b16 %v7245
    %v7270 = vunpack.c.l.b16 %v7246
    %v7271 = vunpack.c.l.b16 %v7247
    %v7272 = vunpack.c.l.b16 %v7248
    %v7273 = vunpack.c.l.b16 %v7249
    %v7274 = vunpack.c.l.b16 %v7250
    %v7275 = vpack.c.b16 %v7264, %v7263
    %v7276 = vpack.c.b16 %v7266, %v7265
    %v7277 = vpack.c.b16 %v7268, %v7267
    %v7278 = vpack.c.b16 %v7270, %v7269
    %v7279 = vpack.c.b16 %v7272, %v7271
    %v7280 = vpack.c.b16 %v7274, %v7273
    %v7288 = vsel %vm395, %v7230, 0
    %v7291 = vsel %vm395, %v7231, 0
    %v7294 = vsel %vm395, %v7232, 0
    %v7297 = vsel %vm395, %v7233, 0
    %v7300 = vsel %vm395, %v7234, 0
    %v7303 = vsel %vm395, %v7235, 0
    %v7306 = vsel %vm395, %v7236, 0
    %v7309 = vsel %vm395, %v7237, 0
    %v7312 = vsel %vm395, %v7238, 0
    %7314 = vmatprep.subr.bf16.mxu0 0
    %7315 = vmatpush1.bf16.msra.mxu0 %v7275
    %7316 = vmatprep.subr.bf16.mxu0 0
    %7317 = vmatpush1.bf16.msra.mxu0 %v7276
    %7318 = vmatprep.subr.bf16.mxu0 0
    %7319 = vmatpush1.bf16.msra.mxu0 %v7277
    %7320 = vmatprep.subr.bf16.mxu0 0
    %7321 = vmatpush1.bf16.msra.mxu0 %v7278
    %7322 = vmatprep.subr.bf16.mxu0 0
    %7323 = vmatpush1.bf16.msra.mxu0 %v7279
    %7324 = vmatprep.subr.bf16.mxu0 0
    %7325 = vmatpush1.bf16.msra.mxu0 %v7280
    %7326 = vmatprep.subr.bf16.mxu0 0
    %7327 = vmatpush1.bf16.msra.mxu0 0
    %7328 = vmatprep.subr.bf16.mxu0 0
    %7329 = vmatpush1.bf16.msra.mxu0 0
    %7330 = vmatprep.subr.bf16.mxu0 0
    %7331 = vmatpush1.bf16.msra.mxu0 0
    %7332 = vmatprep.subr.bf16.mxu0 0
    %7333 = vmatpush1.bf16.msra.mxu0 0
    %7334 = vmatprep.subr.bf16.mxu0 0
    %7335 = vmatpush1.bf16.msra.mxu0 0
    %7336 = vmatprep.subr.bf16.mxu0 0
    %7337 = vmatpush1.bf16.msra.mxu0 0
    %7338 = vmatprep.subr.bf16.mxu0 0
    %7339 = vmatpush1.bf16.msra.mxu0 0
    %7340 = vmatprep.subr.bf16.mxu0 0
    %7341 = vmatpush1.bf16.msra.mxu0 0
    %7342 = vmatprep.subr.bf16.mxu0 0
    %7343 = vmatpush1.bf16.msra.mxu0 0
    %7344 = vmatprep.subr.bf16.mxu0 0
    %7345 = vmatpush1.bf16.msra.mxu0 0
    %7346 = vmatprep.mubr.bf16.mxu0 0
    %7347 = vmatmul.mubr.bf16.gmra.mrb[0].mxu0 %v7288
    %v7348 = vpop.f32.mrb[0].mxu0
    %v7349 = vadd.f32 0.0, %v7348
    %v7350 = vpop.f32.mrb[0].mxu0
    %v7351 = vpop.f32.mrb[0].mxu0
    %v7352 = vadd.f32 0.0, %v7351
    %v7353 = vpop.f32.mrb[0].mxu0
    %7354 = vmatprep.mubr.bf16.mxu0 0
    %7355 = vmatmul.mubr.bf16.gmra.mrb[0].mxu0 %v7291
    %v7356 = vpop.f32.mrb[0].mxu0
    %v7357 = vadd.f32 0.0, %v7356
    %v7358 = vpop.f32.mrb[0].mxu0
    %v7359 = vpop.f32.mrb[0].mxu0
    %v7360 = vadd.f32 0.0, %v7359
    %v7361 = vpop.f32.mrb[0].mxu0
    %7362 = vmatprep.mubr.bf16.mxu0 0
    %7363 = vmatmul.mubr.bf16.gmra.mrb[0].mxu0 %v7294
    %v7364 = vpop.f32.mrb[0].mxu0
    %v7365 = vadd.f32 0.0, %v7364
    %v7366 = vpop.f32.mrb[0].mxu0
    %v7367 = vpop.f32.mrb[0].mxu0
    %v7368 = vadd.f32 0.0, %v7367
    %v7369 = vpop.f32.mrb[0].mxu0
    %7370 = vmatprep.mubr.bf16.mxu0 0
    %7371 = vmatmul.mubr.bf16.gmra.mrb[0].mxu0 %v7297
    %v7372 = vpop.f32.mrb[0].mxu0
    %v7373 = vadd.f32 0.0, %v7372
    %v7374 = vpop.f32.mrb[0].mxu0
    %v7375 = vpop.f32.mrb[0].mxu0
    %v7376 = vadd.f32 0.0, %v7375
    %v7377 = vpop.f32.mrb[0].mxu0
    %7378 = vmatprep.mubr.bf16.mxu0 0
    %7379 = vmatmul.mubr.bf16.gmra.mrb[0].mxu0 %v7300
    %v7380 = vpop.f32.mrb[0].mxu0
    %v7381 = vadd.f32 0.0, %v7380
    %v7382 = vpop.f32.mrb[0].mxu0
    %v7383 = vpop.f32.mrb[0].mxu0
    %v7384 = vadd.f32 0.0, %v7383
    %v7385 = vpop.f32.mrb[0].mxu0
    %7386 = vmatprep.mubr.bf16.mxu0 0
    %7387 = vmatmul.mubr.bf16.gmra.mrb[0].mxu0 %v7303
    %v7388 = vpop.f32.mrb[0].mxu0
    %v7389 = vadd.f32 0.0, %v7388
    %v7390 = vpop.f32.mrb[0].mxu0
    %v7391 = vpop.f32.mrb[0].mxu0
    %v7392 = vadd.f32 0.0, %v7391
    %v7393 = vpop.f32.mrb[0].mxu0
    %7394 = vmatprep.mubr.bf16.mxu0 0
    %7395 = vmatmul.mubr.bf16.gmra.mrb[0].mxu0 %v7306
    %v7396 = vpop.f32.mrb[0].mxu0
    %v7397 = vadd.f32 0.0, %v7396
    %v7398 = vpop.f32.mrb[0].mxu0
    %v7399 = vpop.f32.mrb[0].mxu0
    %v7400 = vadd.f32 0.0, %v7399
    %v7401 = vpop.f32.mrb[0].mxu0
    %7402 = vmatprep.mubr.bf16.mxu0 0
    %7403 = vmatmul.mubr.bf16.gmra.mrb[0].mxu0 %v7309
    %v7404 = vpop.f32.mrb[0].mxu0
    %v7405 = vadd.f32 0.0, %v7404
    %v7406 = vpop.f32.mrb[0].mxu0
    %v7407 = vpop.f32.mrb[0].mxu0
    %v7408 = vadd.f32 0.0, %v7407
    %v7409 = vpop.f32.mrb[0].mxu0
    %7410 = vmatprep.mubr.bf16.mxu0 0
    %7411 = vmatmul.mubr.bf16.gmra.mrb[0].mxu0 %v7312
    %v7412 = vpop.f32.mrb[0].mxu0
    %v7413 = vadd.f32 0.0, %v7412
    %v7414 = vpop.f32.mrb[0].mxu0
    %v7415 = vpop.f32.mrb[0].mxu0
    %v7416 = vadd.f32 0.0, %v7415
    %v7417 = vpop.f32.mrb[0].mxu0
    %7418 = vdwg.mxu0
    %v7419 = vadd.f32 %v7160, %v7349
    %v7420 = vadd.f32 %v7163, %v7352
    %v7421 = vadd.f32 %v7168, %v7357
    %v7422 = vadd.f32 %v7171, %v7360
    %v7423 = vadd.f32 %v7176, %v7365
    %v7424 = vadd.f32 %v7179, %v7368
    %v7425 = vadd.f32 %v7184, %v7373
    %v7426 = vadd.f32 %v7187, %v7376
    %v7427 = vadd.f32 %v7192, %v7381
    %v7428 = vadd.f32 %v7195, %v7384
    %v7429 = vadd.f32 %v7200, %v7389
    %v7430 = vadd.f32 %v7203, %v7392
    %v7431 = vadd.f32 %v7208, %v7397
    %v7432 = vadd.f32 %v7211, %v7400
    %v7433 = vadd.f32 %v7216, %v7405
    %v7434 = vadd.f32 %v7219, %v7408
    %v7435 = vadd.f32 %v7224, %v7413
    %v7436 = vadd.f32 %v7227, %v7416
    %v7437 = vadd.f32 %v7419, %v1662
    %v7438 = vadd.f32 %v7420, %v1662
    %v7439 = vadd.f32 %v7421, %v1662
    %v7440 = vadd.f32 %v7422, %v1662
    %v7441 = vadd.f32 %v7423, %v1662
    %v7442 = vadd.f32 %v7424, %v1662
    %v7443 = vadd.f32 %v7425, %v1662
    %v7444 = vadd.f32 %v7426, %v1662
    %v7445 = vadd.f32 %v7427, %v1662
    %v7446 = vadd.f32 %v7428, %v1662
    %v7447 = vadd.f32 %v7429, %v1662
    %v7448 = vadd.f32 %v7430, %v1662
    %v7449 = vadd.f32 %v7431, %v1662
    %v7450 = vadd.f32 %v7432, %v1662
    %v7451 = vadd.f32 %v7433, %v1662
    %v7452 = vadd.f32 %v7434, %v1662
    %v7453 = vadd.f32 %v7435, %v1662
    %v7454 = vadd.f32 %v7436, %v1662
    %v7455 = vmax.f32 %v7437, 0.0
    %v7456 = vmax.f32 %v7438, 0.0
    %v7457 = vmax.f32 %v7439, 0.0
    %v7458 = vmax.f32 %v7440, 0.0
    %v7459 = vmax.f32 %v7441, 0.0
    %v7460 = vmax.f32 %v7442, 0.0
    %v7461 = vmax.f32 %v7443, 0.0
    %v7462 = vmax.f32 %v7444, 0.0
    %v7463 = vmax.f32 %v7445, 0.0
    %v7464 = vmax.f32 %v7446, 0.0
    %v7465 = vmax.f32 %v7447, 0.0
    %v7466 = vmax.f32 %v7448, 0.0
    %v7467 = vmax.f32 %v7449, 0.0
    %v7468 = vmax.f32 %v7450, 0.0
    %v7469 = vmax.f32 %v7451, 0.0
    %v7470 = vmax.f32 %v7452, 0.0
    %v7471 = vmax.f32 %v7453, 0.0
    %v7472 = vmax.f32 %v7454, 0.0
    %v7473 = vmax.f32 %v7455, %v7458
    %v7474 = vmax.f32 %v7456, %v7459
    %v7475 = vmax.f32 %v7457, %v7460
    %7476 = vst.msk [vmem:[#allocation3 + $0xd8] sm:$0xff] %vm1703, %v7473
    %7477 = vst.msk [vmem:[#allocation3 + $0xe0] sm:$0xff] %vm1703, %v7474
    %7478 = vst.msk [vmem:[#allocation3 + $0xe8] sm:$0xff] %vm1703, %v7475
    %v7479 = vmax.f32 %v7461, %v7464
    %v7480 = vmax.f32 %v7462, %v7465
    %v7481 = vmax.f32 %v7463, %v7466
    %7482 = vst.msk [vmem:[#allocation3 + $0xf0] sm:$0xff] %vm1703, %v7479
    %7483 = vst.msk [vmem:[#allocation3 + $0xf8] sm:$0xff] %vm1703, %v7480
    %7484 = vst.msk [vmem:[#allocation3 + $0x100] sm:$0xff] %vm1703, %v7481
    %v7485 = vmax.f32 %v7467, %v7470
    %v7486 = vmax.f32 %v7468, %v7471
    %v7487 = vmax.f32 %v7469, %v7472
    %7488 = vst.msk [vmem:[#allocation3 + $0x108] sm:$0xff] %vm1703, %v7485
    %7489 = vst.msk [vmem:[#allocation3 + $0x110] sm:$0xff] %vm1703, %v7486
    %7490 = vst.msk [vmem:[#allocation3 + $0x118] sm:$0xff] %vm1703, %v7487
    %v7491 = vld [vmem:[#allocation3] ss:$2 sm:$0xff]
    %v7492 = vld [vmem:[%s3706] ss:$2 sm:$0xff]
    %v7493 = vld [vmem:[%s3708] ss:$2 sm:$0xff]
    %v7494 = vld [vmem:[%s3710] ss:$2 sm:$0xff]
    %v7495 = vld [vmem:[%s3712] ss:$2 sm:$0xff]
    %v7496 = vld [vmem:[%s3714] ss:$2 sm:$0xff]
    %v7497 = vld [vmem:[%s3716] ss:$2 sm:$0xff]
    %v7498 = vld [vmem:[%s3718] ss:$2 sm:$0xff]
    %v7499 = vld [vmem:[%s3720] ss:$2 sm:$0xff]
    %v7500 = vld [vmem:[%s3722] ss:$2 sm:$0xff]
    %v7501 = vld [vmem:[%s3724] ss:$2 sm:$0xff]
    %v7502 = vld [vmem:[%s3726] ss:$2 sm:$0xff]
    %v7503 = vld [vmem:[%s3728] ss:$2 sm:$0xff]
    %v7504 = vld [vmem:[%s3730] ss:$2 sm:$0xff]
    %v7505 = vld [vmem:[%s3732] ss:$2 sm:$0xff]
    %v7506 = vld [vmem:[%s3734] ss:$2 sm:$0xff]
    %v7507 = vld [vmem:[%s3736] ss:$2 sm:$0xff]
    %v7508 = vld [vmem:[%s3738] ss:$2 sm:$0xff]
    %v7509 = vld [vmem:[%s3740] ss:$2 sm:$0xff]
    %v7510 = vld [vmem:[%s3742] ss:$2 sm:$0xff]
    %v7511 = vld [vmem:[%s3744] ss:$2 sm:$0xff]
    %v7512 = vld [vmem:[%s3746] ss:$2 sm:$0xff]
    %v7513 = vld [vmem:[%s3748] ss:$2 sm:$0xff]
    %v7514 = vld [vmem:[%s3750] ss:$2 sm:$0xff]
    %v7515 = vld [vmem:[%s3752] ss:$2 sm:$0xff]
    %v7516 = vld [vmem:[%s3754] ss:$2 sm:$0xff]
    %v7517 = vld [vmem:[%s3756] ss:$2 sm:$0xff]
    %v7518 = vld [vmem:[%s3758] ss:$2 sm:$0xff]
    %v7519 = vld [vmem:[%s3760] ss:$2 sm:$0xff]
    %v7520 = vld [vmem:[%s3762] ss:$2 sm:$0xff]
    %v7521 = vld [vmem:[%s3764] ss:$2 sm:$0xff]
    %v7522 = vld [vmem:[%s3766] ss:$2 sm:$0xff]
    %v7523 = vld [vmem:[%s3768] ss:$2 sm:$0xff]
    %v7524 = vld [vmem:[%s3770] ss:$2 sm:$0xff]
    %v7525 = vld [vmem:[%s3772] ss:$2 sm:$0xff]
    %v7526 = vld [vmem:[%s3774] ss:$2 sm:$0xff]
    %v7527 = vmax.f32 %v7491, %v7509
    %v7528 = vmax.f32 %v7492, %v7510
    %v7529 = vmax.f32 %v7493, %v7511
    %v7530 = vmax.f32 %v7494, %v7512
    %v7531 = vmax.f32 %v7495, %v7513
    %v7532 = vmax.f32 %v7496, %v7514
    %v7533 = vmax.f32 %v7497, %v7515
    %v7534 = vmax.f32 %v7498, %v7516
    %v7535 = vmax.f32 %v7499, %v7517
    %v7536 = vmax.f32 %v7500, %v7518
    %v7537 = vmax.f32 %v7501, %v7519
    %v7538 = vmax.f32 %v7502, %v7520
    %v7539 = vmax.f32 %v7503, %v7521
    %v7540 = vmax.f32 %v7504, %v7522
    %v7541 = vmax.f32 %v7505, %v7523
    %v7542 = vmax.f32 %v7506, %v7524
    %v7543 = vmax.f32 %v7507, %v7525
    %v7544 = vmax.f32 %v7508, %v7526
    %v7545 = vpack.c.bf16 %v7528, %v7527
    %v7546 = vpack.c.bf16 %v7530, %v7529
    %v7547 = vpack.c.bf16 %v7532, %v7531
    %v7548 = vpack.c.bf16 %v7534, %v7533
    %v7549 = vpack.c.bf16 %v7536, %v7535
    %v7550 = vpack.c.bf16 %v7538, %v7537
    %v7551 = vpack.c.bf16 %v7540, %v7539
    %v7552 = vpack.c.bf16 %v7542, %v7541
    %v7553 = vpack.c.bf16 %v7544, %v7543
    %v7563 = vunpack.c.l.b16 %v7545
    %v7564 = vunpack.c.h.b16 %v7545
    %v7565 = vunpack.c.l.b16 %v7546
    %v7566 = vunpack.c.h.b16 %v7546
    %v7567 = vunpack.c.l.b16 %v7547
    %v7568 = vunpack.c.h.b16 %v7547
    %v7569 = vunpack.c.l.b16 %v7548
    %v7570 = vunpack.c.h.b16 %v7548
    %v7571 = vunpack.c.l.b16 %v7549
    %v7572 = vunpack.c.h.b16 %v7549
    %v7573 = vunpack.c.l.b16 %v7550
    %v7574 = vunpack.c.h.b16 %v7550
    %v7575 = vunpack.c.l.b16 %v7551
    %v7576 = vunpack.c.h.b16 %v7551
    %v7577 = vunpack.c.l.b16 %v7552
    %v7578 = vunpack.c.h.b16 %v7552
    %v7579 = vunpack.c.l.b16 %v7553
    %v7580 = vunpack.c.h.b16 %v7553
    %v7581 = vpack.c.b16 %v7563, %v7563
    %v7582 = vpack.c.b16 %v7564, %v7564
    %v7583 = vpack.c.b16 %v7565, %v7565
    %v7584 = vpack.c.b16 %v7566, %v7566
    %v7585 = vpack.c.b16 %v7567, %v7567
    %v7586 = vpack.c.b16 %v7568, %v7568
    %v7587 = vpack.c.b16 %v7569, %v7569
    %v7588 = vpack.c.b16 %v7570, %v7570
    %v7589 = vpack.c.b16 %v7571, %v7571
    %v7590 = vpack.c.b16 %v7572, %v7572
    %v7591 = vpack.c.b16 %v7573, %v7573
    %v7592 = vpack.c.b16 %v7574, %v7574
    %v7593 = vpack.c.b16 %v7575, %v7575
    %v7594 = vpack.c.b16 %v7576, %v7576
    %v7595 = vpack.c.b16 %v7577, %v7577
    %v7596 = vpack.c.b16 %v7578, %v7578
    %v7597 = vpack.c.b16 %v7579, %v7579
    %v7598 = vpack.c.b16 %v7580, %v7580
    %s7617 = scalar_lea.vmem %s5, 72
    %7618 = vst.msk [vmem:[%s7617] sm:$0xf] %vm3866, %v7581
    %7619 = vst.msk [vmem:[%s7617 + $0x4] sm:$0xf] %vm3866, %v7582
    %7620 = vst.msk [vmem:[%s7617 + $0x8] sm:$0xf] %vm3866, %v7583
    %7621 = vst.msk [vmem:[%s7617 + $0xc] sm:$0xf] %vm3866, %v7584
    %7622 = vst.msk [vmem:[%s7617 + $0x10] sm:$0xf] %vm3866, %v7585
    %7623 = vst.msk [vmem:[%s7617 + $0x14] sm:$0xf] %vm3866, %v7586
    %7624 = vst.msk [vmem:[%s7617 + $0x18] sm:$0xf] %vm3866, %v7587
    %7625 = vst.msk [vmem:[%s7617 + $0x1c] sm:$0xf] %vm3866, %v7588
    %7626 = vst.msk [vmem:[%s7617 + $0x20] sm:$0xf] %vm3866, %v7589
    %7627 = vst.msk [vmem:[%s7617 + $0x24] sm:$0xf] %vm3866, %v7590
    %7628 = vst.msk [vmem:[%s7617 + $0x28] sm:$0xf] %vm3866, %v7591
    %7629 = vst.msk [vmem:[%s7617 + $0x2c] sm:$0xf] %vm3866, %v7592
    %7630 = vst.msk [vmem:[%s7617 + $0x30] sm:$0xf] %vm3866, %v7593
    %7631 = vst.msk [vmem:[%s7617 + $0x34] sm:$0xf] %vm3866, %v7594
    %7632 = vst.msk [vmem:[%s7617 + $0x38] sm:$0xf] %vm3866, %v7595
    %7633 = vst.msk [vmem:[%s7617 + $0x3c] sm:$0xf] %vm3866, %v7596
    %7634 = vst.msk [vmem:[%s7617 + $0x40] sm:$0xf] %vm3866, %v7597
    %7635 = vst.msk [vmem:[%s7617 + $0x44] sm:$0xf] %vm3866, %v7598
    // Predicated region
    $region34: #{net_forward.2} parent=1 // pred_check
      _
    $region35: #{net_forward.2} parent=1 // pred_check_branch
      %7637 = sbr.rel (0) target = $region37
    $region36: #{net_forward.2} parent=1 // pred_region
      _
    $region37: #{net_forward.2} parent=1 // pred_fallthru
      _
    // Predicated region
    $region38: #{net_forward.2} parent=1 // pred_check
      _
    $region39: #{net_forward.2} parent=1 // pred_check_branch
      %7639 = sbr.rel (0) target = $region41
    $region40: #{net_forward.2} parent=1 // pred_region
      _
    $region41: #{net_forward.2} parent=1 // pred_fallthru
      _
    %7640 = vsyncpa [#allocation5], 1
    %7641 = vsyncpa [#allocation7], 1

</llo_original>
